<compile_context>
chip_gen: v6e
topology: v6e:2x2x1
jax: 0.10.0
libtpu: 0.0.40
codegen_flags: <defaults>
</compile_context>

<pallas_src>
import functools

import jax
import jax.numpy as jnp
import numpy as np
from jax.experimental import pallas as pl
from jax.experimental.pallas import tpu as pltpu

H = 51        # true hidden size (nn.LSTMCell(1, 51))
HP = 128      # lane-padded hidden size
G = 4 * HP    # fused gate width (i, f, g, o) -> 512 lanes


# ----------------------------------------------------------------------------
# Kernel: the full recurrence (both LSTM cells + linear head, incl. the
# autoregressive `future` steps) runs inside one grid step of one pallas_call.
# ----------------------------------------------------------------------------
def seq_kernel(x_ref, wih1_ref, whh1_ref, b1_ref, w2ih_ref, w2hh_ref, b2_ref,
               wfb_ref, b1fb_ref, wlin_ref, blin_ref, out_ref,
               *, n_teacher, n_future):
    f32 = jnp.float32
    B = x_ref.shape[0]
    T = n_teacher
    n_total = T + n_future

    # --- hoist all time-invariant loads / broadcasts out of the unrolled loop
    whh1 = whh1_ref[...]                                   # (HP, G)
    w2ih = w2ih_ref[...]                                   # (HP, G)
    w2hh = w2hh_ref[...]                                   # (HP, G)
    wfb = wfb_ref[...]                                     # (HP, G)
    b1_b = jnp.broadcast_to(b1_ref[...], (B, G))
    b2_b = jnp.broadcast_to(b2_ref[...], (B, G))
    b1fb_b = jnp.broadcast_to(b1fb_ref[...], (B, G))
    wlin_b = jnp.broadcast_to(wlin_ref[...], (B, HP))
    blin_b = jnp.broadcast_to(blin_ref[...], (B, 1))
    wih1_row = wih1_ref[...]                               # (1, G)

    # zero the padded lanes of the resident output tile once (cheap dense store)
    out_ref[...] = jnp.zeros_like(out_ref)

    def gate_update(gates, c):
        # PyTorch LSTMCell gate order [i, f, g, o]; static lane-aligned slices.
        i = jax.nn.sigmoid(gates[:, 0 * HP:1 * HP])
        f = jax.nn.sigmoid(gates[:, 1 * HP:2 * HP])
        g = jnp.tanh(gates[:, 2 * HP:3 * HP])
        o = jax.nn.sigmoid(gates[:, 3 * HP:4 * HP])
        c_new = f * c + i * g
        h_new = o * jnp.tanh(c_new)
        return h_new, c_new

    zeros = jnp.zeros((B, HP), f32)
    h1, c1, h2, c2 = zeros, zeros, zeros, zeros

    for t in range(n_total):            # static unroll (T + future is small)
        if t < T:
            # Teacher-forced input path computed in-loop: depends only on x,
            # so it is off the serial chain and keeps no extra vregs live.
            g1 = (x_ref[:, t:t + 1] * wih1_row + b1_b) \
                 + jnp.dot(h1, whh1, preferred_element_type=f32)
        else:
            # Autoregressive feedback folded into the weights:
            #   out_{t-1} * W_ih1 == h2 @ (W_lin^T W_ih1) + b_lin * W_ih1.
            # Split K=128 dots: the h2-half can issue before h1 is ready.
            g1 = (jnp.dot(h2, wfb, preferred_element_type=f32) + b1fb_b) \
                 + jnp.dot(h1, whh1, preferred_element_type=f32)
        h1, c1 = gate_update(g1, c1)

        # LSTM2: hidden-path dot (h2, ready a full cell earlier) issues first,
        # then the input-path dot on the freshly computed h1 accumulates in.
        g2 = (jnp.dot(h2, w2hh, preferred_element_type=f32) + b2_b) \
             + jnp.dot(h1, w2ih, preferred_element_type=f32)
        h2, c2 = gate_update(g2, c2)

        # Linear(51, 1) head — only feeds the output tile, not the recurrence.
        out_t = jnp.sum(h2 * wlin_b, axis=-1, keepdims=True) + blin_b
        out_ref[:, t:t + 1] = out_t.astype(out_ref.dtype)


# ----------------------------------------------------------------------------
# Parameter construction (deterministic, from PRNGKey) and gate-fused packing.
# ----------------------------------------------------------------------------
def make_params(key):
    ks = jax.random.split(key, 10)
    s = 0.1
    n = lambda k, shp: (jax.random.normal(k, shp, jnp.float32) * s)
    return dict(
        W_ih1=n(ks[0], (4 * H, 1)),   W_hh1=n(ks[1], (4 * H, H)),
        b_ih1=n(ks[2], (4 * H,)),     b_hh1=n(ks[3], (4 * H,)),
        W_ih2=n(ks[4], (4 * H, H)),   W_hh2=n(ks[5], (4 * H, H)),
        b_ih2=n(ks[6], (4 * H,)),     b_hh2=n(ks[7], (4 * H,)),
        W_lin=n(ks[8], (1, H)),       b_lin=n(ks[9], (1,)),
    )


def _pack_gate_weight(W, in_pad):
    # W: torch-layout (4H, in_dim). Returns (in_pad, 4*HP) so that
    # x @ result reproduces x @ W.T with gate g at columns [g*HP : g*HP+H].
    four_h, in_dim = W.shape
    Wg = W.reshape(4, H, in_dim).transpose(0, 2, 1)           # (4, in_dim, H)
    Wg = jnp.pad(Wg, ((0, 0), (0, in_pad - in_dim), (0, HP - H)))
    return Wg.transpose(1, 0, 2).reshape(in_pad, G)


def _pack_gate_bias(b_ih, b_hh):
    b = (b_ih + b_hh).reshape(4, H)
    b = jnp.pad(b, ((0, 0), (0, HP - H)))
    return b.reshape(1, G)


def pack_params(p):
    wih1 = _pack_gate_weight(p["W_ih1"], 1)                   # (1, G)
    whh1 = _pack_gate_weight(p["W_hh1"], HP)                  # (HP, G)
    b1 = _pack_gate_bias(p["b_ih1"], p["b_hh1"])              # (1, G)
    w2ih = _pack_gate_weight(p["W_ih2"], HP)                  # (HP, G)
    w2hh = _pack_gate_weight(p["W_hh2"], HP)                  # (HP, G)
    b2 = _pack_gate_bias(p["b_ih2"], p["b_hh2"])              # (1, G)
    wlin = jnp.pad(p["W_lin"], ((0, 0), (0, HP - H)))         # (1, HP)
    blin = p["b_lin"].reshape(1, 1)                           # (1, 1)
    # Autoregressive feedback fusion:
    #   out_{t-1} * W_ih1 = h2 @ (W_lin^T @ W_ih1) + b_lin * W_ih1
    w_fb = wlin.T @ wih1                                      # (HP, G)
    b1fb = b1 + blin * wih1                                   # (1, G)
    return wih1, whh1, b1, w2ih, w2hh, b2, w_fb, b1fb, wlin, blin


def _choose_bt(B):
    # Batch tile: multiple of 8 (sublane tile), capped at 256 rows so larger
    # batches amortize per-step fixed cost while VMEM stays tiny.
    b8 = ((B + 7) // 8) * 8
    return b8 if b8 <= 256 else 256


def sequence_forward(x, params, future=0):
    B, T = x.shape
    n_total = T + future
    BT = _choose_bt(B)
    B_pad = ((B + BT - 1) // BT) * BT
    pad_out = ((n_total + 127) // 128) * 128                  # lane-dense output slab
    if B_pad != B:
        x = jnp.pad(x, ((0, B_pad - B), (0, 0)))
    packed = pack_params(params)

    kernel = functools.partial(seq_kernel, n_teacher=T, n_future=future)
    in_specs = [pl.BlockSpec((BT, T), lambda i: (i, 0))]      # x: tiled over batch
    in_specs += [pl.BlockSpec(w.shape, lambda i: (0, 0)) for w in packed]
    out_specs = pl.BlockSpec((BT, pad_out), lambda i: (i, 0))

    out = pl.pallas_call(
        kernel,
        out_shape=jax.ShapeDtypeStruct((B_pad, pad_out), jnp.float32),
        grid_spec=pltpu.PrefetchScalarGridSpec(
            num_scalar_prefetch=0,
            grid=(B_pad // BT,),
            in_specs=in_specs,
            out_specs=out_specs,
        ),
        compiler_params=pltpu.CompilerParams(
            dimension_semantics=("parallel",)),
    )(x, *packed)
    return out[:B, :n_total]


# ----------------------------------------------------------------------------
# Pure-JAX reference (unpadded) mirroring the PyTorch forward exactly.
# ----------------------------------------------------------------------------
def reference_forward(x, p, future=0):
    B, T = x.shape

    def cell(x_in, h, c, W_ih, W_hh, b_ih, b_hh):
        gates = x_in @ W_ih.T + h @ W_hh.T + b_ih + b_hh
        i, f, g, o = jnp.split(gates, 4, axis=-1)
        c_new = jax.nn.sigmoid(f) * c + jax.nn.sigmoid(i) * jnp.tanh(g)
        h_new = jax.nn.sigmoid(o) * jnp.tanh(c_new)
        return h_new, c_new

    h1 = c1 = h2 = c2 = jnp.zeros((B, H), jnp.float32)
    outs, out = [], None
    for t in range(T + future):
        x_t = x[:, t:t + 1] if t < T else out
        h1, c1 = cell(x_t, h1, c1, p["W_ih1"], p["W_hh1"], p["b_ih1"], p["b_hh1"])
        h2, c2 = cell(h1, h2, c2, p["W_ih2"], p["W_hh2"], p["b_ih2"], p["b_hh2"])
        out = h2 @ p["W_lin"].T + p["b_lin"]
        outs.append(out)
    return jnp.concatenate(outs, axis=1)


if __name__ == "__main__":
    key = jax.random.PRNGKey(0)
    pkey, xkey = jax.random.split(key)
    params = make_params(pkey)

    B, T, FUTURE = 8, 8, 4
    t_axis = jnp.arange(T, dtype=jnp.float32)
    phase = jax.random.uniform(xkey, (B, 1), jnp.float32) * 2.0 * jnp.pi
    x = jnp.sin(0.5 * t_axis[None, :] + phase)               # (B, T) sine-wave input

    out = sequence_forward(x, params, future=FUTURE)         # (B, T + FUTURE)
    out = jax.block_until_ready(out)

    ref = reference_forward(x, params, future=FUTURE)
    np.testing.assert_allclose(np.asarray(out), np.asarray(ref),
                               rtol=2e-4, atol=2e-5)
    print("KERNEL_OK")
</pallas_src>

<mosaic_0001>
module attributes {stable_mosaic.version = 11 : i64} {
  func.func @seq_kernel(%arg0: i32, %arg1: memref<8x8xf32, #tpu.memory_space<vmem>>, %arg2: memref<1x512xf32, #tpu.memory_space<vmem>>, %arg3: memref<128x512xf32, #tpu.memory_space<vmem>>, %arg4: memref<1x512xf32, #tpu.memory_space<vmem>>, %arg5: memref<128x512xf32, #tpu.memory_space<vmem>>, %arg6: memref<128x512xf32, #tpu.memory_space<vmem>>, %arg7: memref<1x512xf32, #tpu.memory_space<vmem>>, %arg8: memref<128x512xf32, #tpu.memory_space<vmem>>, %arg9: memref<1x512xf32, #tpu.memory_space<vmem>>, %arg10: memref<1x128xf32, #tpu.memory_space<vmem>>, %arg11: memref<1x1xf32, #tpu.memory_space<vmem>>, %arg12: memref<8x128xf32, #tpu.memory_space<vmem>>) attributes {dimension_semantics = [#tpu.dimension_semantics<parallel>], iteration_bounds = array<i64: 1>, scalar_prefetch = 0 : i64, scratch_operands = 0 : i64, tpu.core_type = #tpu.core_type<tc>, window_params = [{transform_indices = @transform_0, window_bounds = array<i64: 8, 8>}, {pipeline_mode = #tpu.pipeline_mode<synchronous>, transform_indices = @transform_1, window_bounds = array<i64: 1, 512>}, {pipeline_mode = #tpu.pipeline_mode<synchronous>, transform_indices = @transform_2, window_bounds = array<i64: 128, 512>}, {pipeline_mode = #tpu.pipeline_mode<synchronous>, transform_indices = @transform_3, window_bounds = array<i64: 1, 512>}, {pipeline_mode = #tpu.pipeline_mode<synchronous>, transform_indices = @transform_4, window_bounds = array<i64: 128, 512>}, {pipeline_mode = #tpu.pipeline_mode<synchronous>, transform_indices = @transform_5, window_bounds = array<i64: 128, 512>}, {pipeline_mode = #tpu.pipeline_mode<synchronous>, transform_indices = @transform_6, window_bounds = array<i64: 1, 512>}, {pipeline_mode = #tpu.pipeline_mode<synchronous>, transform_indices = @transform_7, window_bounds = array<i64: 128, 512>}, {pipeline_mode = #tpu.pipeline_mode<synchronous>, transform_indices = @transform_8, window_bounds = array<i64: 1, 512>}, {pipeline_mode = #tpu.pipeline_mode<synchronous>, transform_indices = @transform_9, window_bounds = array<i64: 1, 128>}, {pipeline_mode = #tpu.pipeline_mode<synchronous>, transform_indices = @transform_10, window_bounds = array<i64: 1, 1>}, {transform_indices = @transform_11, window_bounds = array<i64: 8, 128>}]} {
    %c0 = arith.constant 0 : index
    %c0_0 = arith.constant 0 : index
    %0 = vector.load %arg3[%c0, %c0_0] : memref<128x512xf32, #tpu.memory_space<vmem>>, vector<128x512xf32>
    %c0_1 = arith.constant 0 : index
    %c0_2 = arith.constant 0 : index
    %1 = vector.load %arg5[%c0_1, %c0_2] : memref<128x512xf32, #tpu.memory_space<vmem>>, vector<128x512xf32>
    %c0_3 = arith.constant 0 : index
    %c0_4 = arith.constant 0 : index
    %2 = vector.load %arg6[%c0_3, %c0_4] : memref<128x512xf32, #tpu.memory_space<vmem>>, vector<128x512xf32>
    %c0_5 = arith.constant 0 : index
    %c0_6 = arith.constant 0 : index
    %3 = vector.load %arg8[%c0_5, %c0_6] : memref<128x512xf32, #tpu.memory_space<vmem>>, vector<128x512xf32>
    %c0_7 = arith.constant 0 : index
    %c0_8 = arith.constant 0 : index
    %4 = vector.load %arg4[%c0_7, %c0_8] : memref<1x512xf32, #tpu.memory_space<vmem>>, vector<1x512xf32>
    %5 = vector.shape_cast %4 : vector<1x512xf32> to vector<1x512xf32>
    %6 = vector.broadcast %5 : vector<1x512xf32> to vector<8x512xf32>
    %c0_9 = arith.constant 0 : index
    %c0_10 = arith.constant 0 : index
    %7 = vector.load %arg7[%c0_9, %c0_10] : memref<1x512xf32, #tpu.memory_space<vmem>>, vector<1x512xf32>
    %8 = vector.shape_cast %7 : vector<1x512xf32> to vector<1x512xf32>
    %9 = vector.broadcast %8 : vector<1x512xf32> to vector<8x512xf32>
    %c0_11 = arith.constant 0 : index
    %c0_12 = arith.constant 0 : index
    %10 = vector.load %arg9[%c0_11, %c0_12] : memref<1x512xf32, #tpu.memory_space<vmem>>, vector<1x512xf32>
    %11 = vector.shape_cast %10 : vector<1x512xf32> to vector<1x512xf32>
    %12 = vector.broadcast %11 : vector<1x512xf32> to vector<8x512xf32>
    %c0_13 = arith.constant 0 : index
    %c0_14 = arith.constant 0 : index
    %13 = vector.load %arg10[%c0_13, %c0_14] : memref<1x128xf32, #tpu.memory_space<vmem>>, vector<1x128xf32>
    %14 = vector.shape_cast %13 : vector<1x128xf32> to vector<1x128xf32>
    %15 = vector.broadcast %14 : vector<1x128xf32> to vector<8x128xf32>
    %c0_15 = arith.constant 0 : index
    %c0_16 = arith.constant 0 : index
    %16 = vector.load %arg11[%c0_15, %c0_16] : memref<1x1xf32, #tpu.memory_space<vmem>>, vector<1x1xf32>
    %17 = vector.shape_cast %16 : vector<1x1xf32> to vector<1x1xf32>
    %18 = vector.broadcast %17 : vector<1x1xf32> to vector<8x1xf32>
    %c0_17 = arith.constant 0 : index
    %c0_18 = arith.constant 0 : index
    %19 = vector.load %arg2[%c0_17, %c0_18] : memref<1x512xf32, #tpu.memory_space<vmem>>, vector<1x512xf32>
    %cst = arith.constant 0.000000e+00 : f32
    %20 = vector.broadcast %cst : f32 to vector<8x128xf32>
    %c0_19 = arith.constant 0 : index
    %c0_20 = arith.constant 0 : index
    %21 = vector.load %arg12[%c0_19, %c0_20] : memref<8x128xf32, #tpu.memory_space<vmem>>, vector<8x128xf32>
    tpu.vector_store %arg12[%c0_19, %c0_20], %20 {strides = array<i32>} : memref<8x128xf32, #tpu.memory_space<vmem>>, vector<8x128xf32>,
    %cst_21 = arith.constant 0.000000e+00 : f32
    %22 = vector.broadcast %cst_21 : f32 to vector<8x128xf32>
    %c0_22 = arith.constant 0 : index
    %c0_23 = arith.constant 0 : index
    %23 = vector.load %arg1[%c0_22, %c0_23] : memref<8x8xf32, #tpu.memory_space<vmem>>, vector<8x1xf32>
    %24 = vector.broadcast %23 : vector<8x1xf32> to vector<8x512xf32>
    %25 = vector.broadcast %19 : vector<1x512xf32> to vector<8x512xf32>
    %26 = arith.mulf %24, %25 : vector<8x512xf32>
    %27 = arith.addf %26, %6 : vector<8x512xf32>
    %cst_24 = arith.constant dense<0.000000e+00> : vector<8x512xf32>
    %28 = tpu.matmul %22, %0, %cst_24 {dimension_numbers = #tpu.dot_dimension_numbers<[1], [0], [0], [1], [0, 0, 1, 1], [], []>} : vector<8x128xf32>, vector<128x512xf32>, vector<8x512xf32> -> vector<8x512xf32>
    %29 = arith.addf %27, %28 : vector<8x512xf32>
    %30 = vector.extract_strided_slice %29 {offsets = [0, 0], sizes = [8, 128], strides = [1, 1]} : vector<8x512xf32> to vector<8x128xf32>
    %31 = arith.negf %30 : vector<8x128xf32>
    %32 = math.exp %31 : vector<8x128xf32>
    %cst_25 = arith.constant 1.000000e+00 : f32
    %33 = vector.broadcast %cst_25 : f32 to vector<8x128xf32>
    %34 = arith.addf %33, %32 : vector<8x128xf32>
    %35 = arith.divf %33, %34 : vector<8x128xf32>
    %36 = vector.extract_strided_slice %29 {offsets = [0, 128], sizes = [8, 128], strides = [1, 1]} : vector<8x512xf32> to vector<8x128xf32>
    %37 = arith.negf %36 : vector<8x128xf32>
    %38 = math.exp %37 : vector<8x128xf32>
    %cst_26 = arith.constant 1.000000e+00 : f32
    %39 = vector.broadcast %cst_26 : f32 to vector<8x128xf32>
    %40 = arith.addf %39, %38 : vector<8x128xf32>
    %41 = arith.divf %39, %40 : vector<8x128xf32>
    %42 = vector.extract_strided_slice %29 {offsets = [0, 256], sizes = [8, 128], strides = [1, 1]} : vector<8x512xf32> to vector<8x128xf32>
    %43 = math.tanh %42 : vector<8x128xf32>
    %44 = vector.extract_strided_slice %29 {offsets = [0, 384], sizes = [8, 128], strides = [1, 1]} : vector<8x512xf32> to vector<8x128xf32>
    %45 = arith.negf %44 : vector<8x128xf32>
    %46 = math.exp %45 : vector<8x128xf32>
    %cst_27 = arith.constant 1.000000e+00 : f32
    %47 = vector.broadcast %cst_27 : f32 to vector<8x128xf32>
    %48 = arith.addf %47, %46 : vector<8x128xf32>
    %49 = arith.divf %47, %48 : vector<8x128xf32>
    %50 = arith.mulf %41, %22 : vector<8x128xf32>
    %51 = arith.mulf %35, %43 : vector<8x128xf32>
    %52 = arith.addf %50, %51 : vector<8x128xf32>
    %53 = math.tanh %52 : vector<8x128xf32>
    %54 = arith.mulf %49, %53 : vector<8x128xf32>
    %cst_28 = arith.constant dense<0.000000e+00> : vector<8x512xf32>
    %55 = tpu.matmul %22, %2, %cst_28 {dimension_numbers = #tpu.dot_dimension_numbers<[1], [0], [0], [1], [0, 0, 1, 1], [], []>} : vector<8x128xf32>, vector<128x512xf32>, vector<8x512xf32> -> vector<8x512xf32>
    %56 = arith.addf %55, %9 : vector<8x512xf32>
    %cst_29 = arith.constant dense<0.000000e+00> : vector<8x512xf32>
    %57 = tpu.matmul %54, %1, %cst_29 {dimension_numbers = #tpu.dot_dimension_numbers<[1], [0], [0], [1], [0, 0, 1, 1], [], []>} : vector<8x128xf32>, vector<128x512xf32>, vector<8x512xf32> -> vector<8x512xf32>
    %58 = arith.addf %56, %57 : vector<8x512xf32>
    %59 = vector.extract_strided_slice %58 {offsets = [0, 0], sizes = [8, 128], strides = [1, 1]} : vector<8x512xf32> to vector<8x128xf32>
    %60 = arith.negf %59 : vector<8x128xf32>
    %61 = math.exp %60 : vector<8x128xf32>
    %cst_30 = arith.constant 1.000000e+00 : f32
    %62 = vector.broadcast %cst_30 : f32 to vector<8x128xf32>
    %63 = arith.addf %62, %61 : vector<8x128xf32>
    %64 = arith.divf %62, %63 : vector<8x128xf32>
    %65 = vector.extract_strided_slice %58 {offsets = [0, 128], sizes = [8, 128], strides = [1, 1]} : vector<8x512xf32> to vector<8x128xf32>
    %66 = arith.negf %65 : vector<8x128xf32>
    %67 = math.exp %66 : vector<8x128xf32>
    %cst_31 = arith.constant 1.000000e+00 : f32
    %68 = vector.broadcast %cst_31 : f32 to vector<8x128xf32>
    %69 = arith.addf %68, %67 : vector<8x128xf32>
    %70 = arith.divf %68, %69 : vector<8x128xf32>
    %71 = vector.extract_strided_slice %58 {offsets = [0, 256], sizes = [8, 128], strides = [1, 1]} : vector<8x512xf32> to vector<8x128xf32>
    %72 = math.tanh %71 : vector<8x128xf32>
    %73 = vector.extract_strided_slice %58 {offsets = [0, 384], sizes = [8, 128], strides = [1, 1]} : vector<8x512xf32> to vector<8x128xf32>
    %74 = arith.negf %73 : vector<8x128xf32>
    %75 = math.exp %74 : vector<8x128xf32>
    %cst_32 = arith.constant 1.000000e+00 : f32
    %76 = vector.broadcast %cst_32 : f32 to vector<8x128xf32>
    %77 = arith.addf %76, %75 : vector<8x128xf32>
    %78 = arith.divf %76, %77 : vector<8x128xf32>
    %79 = arith.mulf %70, %22 : vector<8x128xf32>
    %80 = arith.mulf %64, %72 : vector<8x128xf32>
    %81 = arith.addf %79, %80 : vector<8x128xf32>
    %82 = math.tanh %81 : vector<8x128xf32>
    %83 = arith.mulf %78, %82 : vector<8x128xf32>
    %84 = arith.mulf %83, %15 : vector<8x128xf32>
    %cst_33 = arith.constant dense<0.000000e+00> : vector<8xf32>
    %85 = vector.multi_reduction <add>, %84, %cst_33 [1] : vector<8x128xf32> to vector<8xf32>
    %86 = vector.shape_cast %85 : vector<8xf32> to vector<8x1xf32>
    %87 = arith.addf %86, %18 : vector<8x1xf32>
    %c0_34 = arith.constant 0 : index
    %c0_35 = arith.constant 0 : index
    %88 = vector.load %arg12[%c0_34, %c0_35] : memref<8x128xf32, #tpu.memory_space<vmem>>, vector<8x1xf32>
    tpu.vector_store %arg12[%c0_34, %c0_35], %87 {strides = array<i32>} : memref<8x128xf32, #tpu.memory_space<vmem>>, vector<8x1xf32>,
    %c0_36 = arith.constant 0 : index
    %c1 = arith.constant 1 : index
    %89 = vector.load %arg1[%c0_36, %c1] : memref<8x8xf32, #tpu.memory_space<vmem>>, vector<8x1xf32>
    %90 = vector.broadcast %89 : vector<8x1xf32> to vector<8x512xf32>
    %91 = vector.broadcast %19 : vector<1x512xf32> to vector<8x512xf32>
    %92 = arith.mulf %90, %91 : vector<8x512xf32>
    %93 = arith.addf %92, %6 : vector<8x512xf32>
    %cst_37 = arith.constant dense<0.000000e+00> : vector<8x512xf32>
    %94 = tpu.matmul %54, %0, %cst_37 {dimension_numbers = #tpu.dot_dimension_numbers<[1], [0], [0], [1], [0, 0, 1, 1], [], []>} : vector<8x128xf32>, vector<128x512xf32>, vector<8x512xf32> -> vector<8x512xf32>
    %95 = arith.addf %93, %94 : vector<8x512xf32>
    %96 = vector.extract_strided_slice %95 {offsets = [0, 0], sizes = [8, 128], strides = [1, 1]} : vector<8x512xf32> to vector<8x128xf32>
    %97 = arith.negf %96 : vector<8x128xf32>
    %98 = math.exp %97 : vector<8x128xf32>
    %cst_38 = arith.constant 1.000000e+00 : f32
    %99 = vector.broadcast %cst_38 : f32 to vector<8x128xf32>
    %100 = arith.addf %99, %98 : vector<8x128xf32>
    %101 = arith.divf %99, %100 : vector<8x128xf32>
    %102 = vector.extract_strided_slice %95 {offsets = [0, 128], sizes = [8, 128], strides = [1, 1]} : vector<8x512xf32> to vector<8x128xf32>
    %103 = arith.negf %102 : vector<8x128xf32>
    %104 = math.exp %103 : vector<8x128xf32>
    %cst_39 = arith.constant 1.000000e+00 : f32
    %105 = vector.broadcast %cst_39 : f32 to vector<8x128xf32>
    %106 = arith.addf %105, %104 : vector<8x128xf32>
    %107 = arith.divf %105, %106 : vector<8x128xf32>
    %108 = vector.extract_strided_slice %95 {offsets = [0, 256], sizes = [8, 128], strides = [1, 1]} : vector<8x512xf32> to vector<8x128xf32>
    %109 = math.tanh %108 : vector<8x128xf32>
    %110 = vector.extract_strided_slice %95 {offsets = [0, 384], sizes = [8, 128], strides = [1, 1]} : vector<8x512xf32> to vector<8x128xf32>
    %111 = arith.negf %110 : vector<8x128xf32>
    %112 = math.exp %111 : vector<8x128xf32>
    %cst_40 = arith.constant 1.000000e+00 : f32
    %113 = vector.broadcast %cst_40 : f32 to vector<8x128xf32>
    %114 = arith.addf %113, %112 : vector<8x128xf32>
    %115 = arith.divf %113, %114 : vector<8x128xf32>
    %116 = arith.mulf %107, %52 : vector<8x128xf32>
    %117 = arith.mulf %101, %109 : vector<8x128xf32>
    %118 = arith.addf %116, %117 : vector<8x128xf32>
    %119 = math.tanh %118 : vector<8x128xf32>
    %120 = arith.mulf %115, %119 : vector<8x128xf32>
    %cst_41 = arith.constant dense<0.000000e+00> : vector<8x512xf32>
    %121 = tpu.matmul %83, %2, %cst_41 {dimension_numbers = #tpu.dot_dimension_numbers<[1], [0], [0], [1], [0, 0, 1, 1], [], []>} : vector<8x128xf32>, vector<128x512xf32>, vector<8x512xf32> -> vector<8x512xf32>
    %122 = arith.addf %121, %9 : vector<8x512xf32>
    %cst_42 = arith.constant dense<0.000000e+00> : vector<8x512xf32>
    %123 = tpu.matmul %120, %1, %cst_42 {dimension_numbers = #tpu.dot_dimension_numbers<[1], [0], [0], [1], [0, 0, 1, 1], [], []>} : vector<8x128xf32>, vector<128x512xf32>, vector<8x512xf32> -> vector<8x512xf32>
    %124 = arith.addf %122, %123 : vector<8x512xf32>
    %125 = vector.extract_strided_slice %124 {offsets = [0, 0], sizes = [8, 128], strides = [1, 1]} : vector<8x512xf32> to vector<8x128xf32>
    %126 = arith.negf %125 : vector<8x128xf32>
    %127 = math.exp %126 : vector<8x128xf32>
    %cst_43 = arith.constant 1.000000e+00 : f32
    %128 = vector.broadcast %cst_43 : f32 to vector<8x128xf32>
    %129 = arith.addf %128, %127 : vector<8x128xf32>
    %130 = arith.divf %128, %129 : vector<8x128xf32>
    %131 = vector.extract_strided_slice %124 {offsets = [0, 128], sizes = [8, 128], strides = [1, 1]} : vector<8x512xf32> to vector<8x128xf32>
    %132 = arith.negf %131 : vector<8x128xf32>
    %133 = math.exp %132 : vector<8x128xf32>
    %cst_44 = arith.constant 1.000000e+00 : f32
    %134 = vector.broadcast %cst_44 : f32 to vector<8x128xf32>
    %135 = arith.addf %134, %133 : vector<8x128xf32>
    %136 = arith.divf %134, %135 : vector<8x128xf32>
    %137 = vector.extract_strided_slice %124 {offsets = [0, 256], sizes = [8, 128], strides = [1, 1]} : vector<8x512xf32> to vector<8x128xf32>
    %138 = math.tanh %137 : vector<8x128xf32>
    %139 = vector.extract_strided_slice %124 {offsets = [0, 384], sizes = [8, 128], strides = [1, 1]} : vector<8x512xf32> to vector<8x128xf32>
    %140 = arith.negf %139 : vector<8x128xf32>
    %141 = math.exp %140 : vector<8x128xf32>
    %cst_45 = arith.constant 1.000000e+00 : f32
    %142 = vector.broadcast %cst_45 : f32 to vector<8x128xf32>
    %143 = arith.addf %142, %141 : vector<8x128xf32>
    %144 = arith.divf %142, %143 : vector<8x128xf32>
    %145 = arith.mulf %136, %81 : vector<8x128xf32>
    %146 = arith.mulf %130, %138 : vector<8x128xf32>
    %147 = arith.addf %145, %146 : vector<8x128xf32>
    %148 = math.tanh %147 : vector<8x128xf32>
    %149 = arith.mulf %144, %148 : vector<8x128xf32>
    %150 = arith.mulf %149, %15 : vector<8x128xf32>
    %cst_46 = arith.constant dense<0.000000e+00> : vector<8xf32>
    %151 = vector.multi_reduction <add>, %150, %cst_46 [1] : vector<8x128xf32> to vector<8xf32>
    %152 = vector.shape_cast %151 : vector<8xf32> to vector<8x1xf32>
    %153 = arith.addf %152, %18 : vector<8x1xf32>
    %c0_47 = arith.constant 0 : index
    %c1_48 = arith.constant 1 : index
    %154 = vector.load %arg12[%c0_47, %c1_48] : memref<8x128xf32, #tpu.memory_space<vmem>>, vector<8x1xf32>
    tpu.vector_store %arg12[%c0_47, %c1_48], %153 {strides = array<i32>} : memref<8x128xf32, #tpu.memory_space<vmem>>, vector<8x1xf32>,
    %c0_49 = arith.constant 0 : index
    %c2 = arith.constant 2 : index
    %155 = vector.load %arg1[%c0_49, %c2] : memref<8x8xf32, #tpu.memory_space<vmem>>, vector<8x1xf32>
    %156 = vector.broadcast %155 : vector<8x1xf32> to vector<8x512xf32>
    %157 = vector.broadcast %19 : vector<1x512xf32> to vector<8x512xf32>
    %158 = arith.mulf %156, %157 : vector<8x512xf32>
    %159 = arith.addf %158, %6 : vector<8x512xf32>
    %cst_50 = arith.constant dense<0.000000e+00> : vector<8x512xf32>
    %160 = tpu.matmul %120, %0, %cst_50 {dimension_numbers = #tpu.dot_dimension_numbers<[1], [0], [0], [1], [0, 0, 1, 1], [], []>} : vector<8x128xf32>, vector<128x512xf32>, vector<8x512xf32> -> vector<8x512xf32>
    %161 = arith.addf %159, %160 : vector<8x512xf32>
    %162 = vector.extract_strided_slice %161 {offsets = [0, 0], sizes = [8, 128], strides = [1, 1]} : vector<8x512xf32> to vector<8x128xf32>
    %163 = arith.negf %162 : vector<8x128xf32>
    %164 = math.exp %163 : vector<8x128xf32>
    %cst_51 = arith.constant 1.000000e+00 : f32
    %165 = vector.broadcast %cst_51 : f32 to vector<8x128xf32>
    %166 = arith.addf %165, %164 : vector<8x128xf32>
    %167 = arith.divf %165, %166 : vector<8x128xf32>
    %168 = vector.extract_strided_slice %161 {offsets = [0, 128], sizes = [8, 128], strides = [1, 1]} : vector<8x512xf32> to vector<8x128xf32>
    %169 = arith.negf %168 : vector<8x128xf32>
    %170 = math.exp %169 : vector<8x128xf32>
    %cst_52 = arith.constant 1.000000e+00 : f32
    %171 = vector.broadcast %cst_52 : f32 to vector<8x128xf32>
    %172 = arith.addf %171, %170 : vector<8x128xf32>
    %173 = arith.divf %171, %172 : vector<8x128xf32>
    %174 = vector.extract_strided_slice %161 {offsets = [0, 256], sizes = [8, 128], strides = [1, 1]} : vector<8x512xf32> to vector<8x128xf32>
    %175 = math.tanh %174 : vector<8x128xf32>
    %176 = vector.extract_strided_slice %161 {offsets = [0, 384], sizes = [8, 128], strides = [1, 1]} : vector<8x512xf32> to vector<8x128xf32>
    %177 = arith.negf %176 : vector<8x128xf32>
    %178 = math.exp %177 : vector<8x128xf32>
    %cst_53 = arith.constant 1.000000e+00 : f32
    %179 = vector.broadcast %cst_53 : f32 to vector<8x128xf32>
    %180 = arith.addf %179, %178 : vector<8x128xf32>
    %181 = arith.divf %179, %180 : vector<8x128xf32>
    %182 = arith.mulf %173, %118 : vector<8x128xf32>
    %183 = arith.mulf %167, %175 : vector<8x128xf32>
    %184 = arith.addf %182, %183 : vector<8x128xf32>
    %185 = math.tanh %184 : vector<8x128xf32>
    %186 = arith.mulf %181, %185 : vector<8x128xf32>
    %cst_54 = arith.constant dense<0.000000e+00> : vector<8x512xf32>
    %187 = tpu.matmul %149, %2, %cst_54 {dimension_numbers = #tpu.dot_dimension_numbers<[1], [0], [0], [1], [0, 0, 1, 1], [], []>} : vector<8x128xf32>, vector<128x512xf32>, vector<8x512xf32> -> vector<8x512xf32>
    %188 = arith.addf %187, %9 : vector<8x512xf32>
    %cst_55 = arith.constant dense<0.000000e+00> : vector<8x512xf32>
    %189 = tpu.matmul %186, %1, %cst_55 {dimension_numbers = #tpu.dot_dimension_numbers<[1], [0], [0], [1], [0, 0, 1, 1], [], []>} : vector<8x128xf32>, vector<128x512xf32>, vector<8x512xf32> -> vector<8x512xf32>
    %190 = arith.addf %188, %189 : vector<8x512xf32>
    %191 = vector.extract_strided_slice %190 {offsets = [0, 0], sizes = [8, 128], strides = [1, 1]} : vector<8x512xf32> to vector<8x128xf32>
    %192 = arith.negf %191 : vector<8x128xf32>
    %193 = math.exp %192 : vector<8x128xf32>
    %cst_56 = arith.constant 1.000000e+00 : f32
    %194 = vector.broadcast %cst_56 : f32 to vector<8x128xf32>
    %195 = arith.addf %194, %193 : vector<8x128xf32>
    %196 = arith.divf %194, %195 : vector<8x128xf32>
    %197 = vector.extract_strided_slice %190 {offsets = [0, 128], sizes = [8, 128], strides = [1, 1]} : vector<8x512xf32> to vector<8x128xf32>
    %198 = arith.negf %197 : vector<8x128xf32>
    %199 = math.exp %198 : vector<8x128xf32>
    %cst_57 = arith.constant 1.000000e+00 : f32
    %200 = vector.broadcast %cst_57 : f32 to vector<8x128xf32>
    %201 = arith.addf %200, %199 : vector<8x128xf32>
    %202 = arith.divf %200, %201 : vector<8x128xf32>
    %203 = vector.extract_strided_slice %190 {offsets = [0, 256], sizes = [8, 128], strides = [1, 1]} : vector<8x512xf32> to vector<8x128xf32>
    %204 = math.tanh %203 : vector<8x128xf32>
    %205 = vector.extract_strided_slice %190 {offsets = [0, 384], sizes = [8, 128], strides = [1, 1]} : vector<8x512xf32> to vector<8x128xf32>
    %206 = arith.negf %205 : vector<8x128xf32>
    %207 = math.exp %206 : vector<8x128xf32>
    %cst_58 = arith.constant 1.000000e+00 : f32
    %208 = vector.broadcast %cst_58 : f32 to vector<8x128xf32>
    %209 = arith.addf %208, %207 : vector<8x128xf32>
    %210 = arith.divf %208, %209 : vector<8x128xf32>
    %211 = arith.mulf %202, %147 : vector<8x128xf32>
    %212 = arith.mulf %196, %204 : vector<8x128xf32>
    %213 = arith.addf %211, %212 : vector<8x128xf32>
    %214 = math.tanh %213 : vector<8x128xf32>
    %215 = arith.mulf %210, %214 : vector<8x128xf32>
    %216 = arith.mulf %215, %15 : vector<8x128xf32>
    %cst_59 = arith.constant dense<0.000000e+00> : vector<8xf32>
    %217 = vector.multi_reduction <add>, %216, %cst_59 [1] : vector<8x128xf32> to vector<8xf32>
    %218 = vector.shape_cast %217 : vector<8xf32> to vector<8x1xf32>
    %219 = arith.addf %218, %18 : vector<8x1xf32>
    %c0_60 = arith.constant 0 : index
    %c2_61 = arith.constant 2 : index
    %220 = vector.load %arg12[%c0_60, %c2_61] : memref<8x128xf32, #tpu.memory_space<vmem>>, vector<8x1xf32>
    tpu.vector_store %arg12[%c0_60, %c2_61], %219 {strides = array<i32>} : memref<8x128xf32, #tpu.memory_space<vmem>>, vector<8x1xf32>,
    %c0_62 = arith.constant 0 : index
    %c3 = arith.constant 3 : index
    %221 = vector.load %arg1[%c0_62, %c3] : memref<8x8xf32, #tpu.memory_space<vmem>>, vector<8x1xf32>
    %222 = vector.broadcast %221 : vector<8x1xf32> to vector<8x512xf32>
    %223 = vector.broadcast %19 : vector<1x512xf32> to vector<8x512xf32>
    %224 = arith.mulf %222, %223 : vector<8x512xf32>
    %225 = arith.addf %224, %6 : vector<8x512xf32>
    %cst_63 = arith.constant dense<0.000000e+00> : vector<8x512xf32>
    %226 = tpu.matmul %186, %0, %cst_63 {dimension_numbers = #tpu.dot_dimension_numbers<[1], [0], [0], [1], [0, 0, 1, 1], [], []>} : vector<8x128xf32>, vector<128x512xf32>, vector<8x512xf32> -> vector<8x512xf32>
    %227 = arith.addf %225, %226 : vector<8x512xf32>
    %228 = vector.extract_strided_slice %227 {offsets = [0, 0], sizes = [8, 128], strides = [1, 1]} : vector<8x512xf32> to vector<8x128xf32>
    %229 = arith.negf %228 : vector<8x128xf32>
    %230 = math.exp %229 : vector<8x128xf32>
    %cst_64 = arith.constant 1.000000e+00 : f32
    %231 = vector.broadcast %cst_64 : f32 to vector<8x128xf32>
    %232 = arith.addf %231, %230 : vector<8x128xf32>
    %233 = arith.divf %231, %232 : vector<8x128xf32>
    %234 = vector.extract_strided_slice %227 {offsets = [0, 128], sizes = [8, 128], strides = [1, 1]} : vector<8x512xf32> to vector<8x128xf32>
    %235 = arith.negf %234 : vector<8x128xf32>
    %236 = math.exp %235 : vector<8x128xf32>
    %cst_65 = arith.constant 1.000000e+00 : f32
    %237 = vector.broadcast %cst_65 : f32 to vector<8x128xf32>
    %238 = arith.addf %237, %236 : vector<8x128xf32>
    %239 = arith.divf %237, %238 : vector<8x128xf32>
    %240 = vector.extract_strided_slice %227 {offsets = [0, 256], sizes = [8, 128], strides = [1, 1]} : vector<8x512xf32> to vector<8x128xf32>
    %241 = math.tanh %240 : vector<8x128xf32>
    %242 = vector.extract_strided_slice %227 {offsets = [0, 384], sizes = [8, 128], strides = [1, 1]} : vector<8x512xf32> to vector<8x128xf32>
    %243 = arith.negf %242 : vector<8x128xf32>
    %244 = math.exp %243 : vector<8x128xf32>
    %cst_66 = arith.constant 1.000000e+00 : f32
    %245 = vector.broadcast %cst_66 : f32 to vector<8x128xf32>
    %246 = arith.addf %245, %244 : vector<8x128xf32>
    %247 = arith.divf %245, %246 : vector<8x128xf32>
    %248 = arith.mulf %239, %184 : vector<8x128xf32>
    %249 = arith.mulf %233, %241 : vector<8x128xf32>
    %250 = arith.addf %248, %249 : vector<8x128xf32>
    %251 = math.tanh %250 : vector<8x128xf32>
    %252 = arith.mulf %247, %251 : vector<8x128xf32>
    %cst_67 = arith.constant dense<0.000000e+00> : vector<8x512xf32>
    %253 = tpu.matmul %215, %2, %cst_67 {dimension_numbers = #tpu.dot_dimension_numbers<[1], [0], [0], [1], [0, 0, 1, 1], [], []>} : vector<8x128xf32>, vector<128x512xf32>, vector<8x512xf32> -> vector<8x512xf32>
    %254 = arith.addf %253, %9 : vector<8x512xf32>
    %cst_68 = arith.constant dense<0.000000e+00> : vector<8x512xf32>
    %255 = tpu.matmul %252, %1, %cst_68 {dimension_numbers = #tpu.dot_dimension_numbers<[1], [0], [0], [1], [0, 0, 1, 1], [], []>} : vector<8x128xf32>, vector<128x512xf32>, vector<8x512xf32> -> vector<8x512xf32>
    %256 = arith.addf %254, %255 : vector<8x512xf32>
    %257 = vector.extract_strided_slice %256 {offsets = [0, 0], sizes = [8, 128], strides = [1, 1]} : vector<8x512xf32> to vector<8x128xf32>
    %258 = arith.negf %257 : vector<8x128xf32>
    %259 = math.exp %258 : vector<8x128xf32>
    %cst_69 = arith.constant 1.000000e+00 : f32
    %260 = vector.broadcast %cst_69 : f32 to vector<8x128xf32>
    %261 = arith.addf %260, %259 : vector<8x128xf32>
    %262 = arith.divf %260, %261 : vector<8x128xf32>
    %263 = vector.extract_strided_slice %256 {offsets = [0, 128], sizes = [8, 128], strides = [1, 1]} : vector<8x512xf32> to vector<8x128xf32>
    %264 = arith.negf %263 : vector<8x128xf32>
    %265 = math.exp %264 : vector<8x128xf32>
    %cst_70 = arith.constant 1.000000e+00 : f32
    %266 = vector.broadcast %cst_70 : f32 to vector<8x128xf32>
    %267 = arith.addf %266, %265 : vector<8x128xf32>
    %268 = arith.divf %266, %267 : vector<8x128xf32>
    %269 = vector.extract_strided_slice %256 {offsets = [0, 256], sizes = [8, 128], strides = [1, 1]} : vector<8x512xf32> to vector<8x128xf32>
    %270 = math.tanh %269 : vector<8x128xf32>
    %271 = vector.extract_strided_slice %256 {offsets = [0, 384], sizes = [8, 128], strides = [1, 1]} : vector<8x512xf32> to vector<8x128xf32>
    %272 = arith.negf %271 : vector<8x128xf32>
    %273 = math.exp %272 : vector<8x128xf32>
    %cst_71 = arith.constant 1.000000e+00 : f32
    %274 = vector.broadcast %cst_71 : f32 to vector<8x128xf32>
    %275 = arith.addf %274, %273 : vector<8x128xf32>
    %276 = arith.divf %274, %275 : vector<8x128xf32>
    %277 = arith.mulf %268, %213 : vector<8x128xf32>
    %278 = arith.mulf %262, %270 : vector<8x128xf32>
    %279 = arith.addf %277, %278 : vector<8x128xf32>
    %280 = math.tanh %279 : vector<8x128xf32>
    %281 = arith.mulf %276, %280 : vector<8x128xf32>
    %282 = arith.mulf %281, %15 : vector<8x128xf32>
    %cst_72 = arith.constant dense<0.000000e+00> : vector<8xf32>
    %283 = vector.multi_reduction <add>, %282, %cst_72 [1] : vector<8x128xf32> to vector<8xf32>
    %284 = vector.shape_cast %283 : vector<8xf32> to vector<8x1xf32>
    %285 = arith.addf %284, %18 : vector<8x1xf32>
    %c0_73 = arith.constant 0 : index
    %c3_74 = arith.constant 3 : index
    %286 = vector.load %arg12[%c0_73, %c3_74] : memref<8x128xf32, #tpu.memory_space<vmem>>, vector<8x1xf32>
    tpu.vector_store %arg12[%c0_73, %c3_74], %285 {strides = array<i32>} : memref<8x128xf32, #tpu.memory_space<vmem>>, vector<8x1xf32>,
    %c0_75 = arith.constant 0 : index
    %c4 = arith.constant 4 : index
    %287 = vector.load %arg1[%c0_75, %c4] : memref<8x8xf32, #tpu.memory_space<vmem>>, vector<8x1xf32>
    %288 = vector.broadcast %287 : vector<8x1xf32> to vector<8x512xf32>
    %289 = vector.broadcast %19 : vector<1x512xf32> to vector<8x512xf32>
    %290 = arith.mulf %288, %289 : vector<8x512xf32>
    %291 = arith.addf %290, %6 : vector<8x512xf32>
    %cst_76 = arith.constant dense<0.000000e+00> : vector<8x512xf32>
    %292 = tpu.matmul %252, %0, %cst_76 {dimension_numbers = #tpu.dot_dimension_numbers<[1], [0], [0], [1], [0, 0, 1, 1], [], []>} : vector<8x128xf32>, vector<128x512xf32>, vector<8x512xf32> -> vector<8x512xf32>
    %293 = arith.addf %291, %292 : vector<8x512xf32>
    %294 = vector.extract_strided_slice %293 {offsets = [0, 0], sizes = [8, 128], strides = [1, 1]} : vector<8x512xf32> to vector<8x128xf32>
    %295 = arith.negf %294 : vector<8x128xf32>
    %296 = math.exp %295 : vector<8x128xf32>
    %cst_77 = arith.constant 1.000000e+00 : f32
    %297 = vector.broadcast %cst_77 : f32 to vector<8x128xf32>
    %298 = arith.addf %297, %296 : vector<8x128xf32>
    %299 = arith.divf %297, %298 : vector<8x128xf32>
    %300 = vector.extract_strided_slice %293 {offsets = [0, 128], sizes = [8, 128], strides = [1, 1]} : vector<8x512xf32> to vector<8x128xf32>
    %301 = arith.negf %300 : vector<8x128xf32>
    %302 = math.exp %301 : vector<8x128xf32>
    %cst_78 = arith.constant 1.000000e+00 : f32
    %303 = vector.broadcast %cst_78 : f32 to vector<8x128xf32>
    %304 = arith.addf %303, %302 : vector<8x128xf32>
    %305 = arith.divf %303, %304 : vector<8x128xf32>
    %306 = vector.extract_strided_slice %293 {offsets = [0, 256], sizes = [8, 128], strides = [1, 1]} : vector<8x512xf32> to vector<8x128xf32>
    %307 = math.tanh %306 : vector<8x128xf32>
    %308 = vector.extract_strided_slice %293 {offsets = [0, 384], sizes = [8, 128], strides = [1, 1]} : vector<8x512xf32> to vector<8x128xf32>
    %309 = arith.negf %308 : vector<8x128xf32>
    %310 = math.exp %309 : vector<8x128xf32>
    %cst_79 = arith.constant 1.000000e+00 : f32
    %311 = vector.broadcast %cst_79 : f32 to vector<8x128xf32>
    %312 = arith.addf %311, %310 : vector<8x128xf32>
    %313 = arith.divf %311, %312 : vector<8x128xf32>
    %314 = arith.mulf %305, %250 : vector<8x128xf32>
    %315 = arith.mulf %299, %307 : vector<8x128xf32>
    %316 = arith.addf %314, %315 : vector<8x128xf32>
    %317 = math.tanh %316 : vector<8x128xf32>
    %318 = arith.mulf %313, %317 : vector<8x128xf32>
    %cst_80 = arith.constant dense<0.000000e+00> : vector<8x512xf32>
    %319 = tpu.matmul %281, %2, %cst_80 {dimension_numbers = #tpu.dot_dimension_numbers<[1], [0], [0], [1], [0, 0, 1, 1], [], []>} : vector<8x128xf32>, vector<128x512xf32>, vector<8x512xf32> -> vector<8x512xf32>
    %320 = arith.addf %319, %9 : vector<8x512xf32>
    %cst_81 = arith.constant dense<0.000000e+00> : vector<8x512xf32>
    %321 = tpu.matmul %318, %1, %cst_81 {dimension_numbers = #tpu.dot_dimension_numbers<[1], [0], [0], [1], [0, 0, 1, 1], [], []>} : vector<8x128xf32>, vector<128x512xf32>, vector<8x512xf32> -> vector<8x512xf32>
    %322 = arith.addf %320, %321 : vector<8x512xf32>
    %323 = vector.extract_strided_slice %322 {offsets = [0, 0], sizes = [8, 128], strides = [1, 1]} : vector<8x512xf32> to vector<8x128xf32>
    %324 = arith.negf %323 : vector<8x128xf32>
    %325 = math.exp %324 : vector<8x128xf32>
    %cst_82 = arith.constant 1.000000e+00 : f32
    %326 = vector.broadcast %cst_82 : f32 to vector<8x128xf32>
    %327 = arith.addf %326, %325 : vector<8x128xf32>
    %328 = arith.divf %326, %327 : vector<8x128xf32>
    %329 = vector.extract_strided_slice %322 {offsets = [0, 128], sizes = [8, 128], strides = [1, 1]} : vector<8x512xf32> to vector<8x128xf32>
    %330 = arith.negf %329 : vector<8x128xf32>
    %331 = math.exp %330 : vector<8x128xf32>
    %cst_83 = arith.constant 1.000000e+00 : f32
    %332 = vector.broadcast %cst_83 : f32 to vector<8x128xf32>
    %333 = arith.addf %332, %331 : vector<8x128xf32>
    %334 = arith.divf %332, %333 : vector<8x128xf32>
    %335 = vector.extract_strided_slice %322 {offsets = [0, 256], sizes = [8, 128], strides = [1, 1]} : vector<8x512xf32> to vector<8x128xf32>
    %336 = math.tanh %335 : vector<8x128xf32>
    %337 = vector.extract_strided_slice %322 {offsets = [0, 384], sizes = [8, 128], strides = [1, 1]} : vector<8x512xf32> to vector<8x128xf32>
    %338 = arith.negf %337 : vector<8x128xf32>
    %339 = math.exp %338 : vector<8x128xf32>
    %cst_84 = arith.constant 1.000000e+00 : f32
    %340 = vector.broadcast %cst_84 : f32 to vector<8x128xf32>
    %341 = arith.addf %340, %339 : vector<8x128xf32>
    %342 = arith.divf %340, %341 : vector<8x128xf32>
    %343 = arith.mulf %334, %279 : vector<8x128xf32>
    %344 = arith.mulf %328, %336 : vector<8x128xf32>
    %345 = arith.addf %343, %344 : vector<8x128xf32>
    %346 = math.tanh %345 : vector<8x128xf32>
    %347 = arith.mulf %342, %346 : vector<8x128xf32>
    %348 = arith.mulf %347, %15 : vector<8x128xf32>
    %cst_85 = arith.constant dense<0.000000e+00> : vector<8xf32>
    %349 = vector.multi_reduction <add>, %348, %cst_85 [1] : vector<8x128xf32> to vector<8xf32>
    %350 = vector.shape_cast %349 : vector<8xf32> to vector<8x1xf32>
    %351 = arith.addf %350, %18 : vector<8x1xf32>
    %c0_86 = arith.constant 0 : index
    %c4_87 = arith.constant 4 : index
    %352 = vector.load %arg12[%c0_86, %c4_87] : memref<8x128xf32, #tpu.memory_space<vmem>>, vector<8x1xf32>
    tpu.vector_store %arg12[%c0_86, %c4_87], %351 {strides = array<i32>} : memref<8x128xf32, #tpu.memory_space<vmem>>, vector<8x1xf32>,
    %c0_88 = arith.constant 0 : index
    %c5 = arith.constant 5 : index
    %353 = vector.load %arg1[%c0_88, %c5] : memref<8x8xf32, #tpu.memory_space<vmem>>, vector<8x1xf32>
    %354 = vector.broadcast %353 : vector<8x1xf32> to vector<8x512xf32>
    %355 = vector.broadcast %19 : vector<1x512xf32> to vector<8x512xf32>
    %356 = arith.mulf %354, %355 : vector<8x512xf32>
    %357 = arith.addf %356, %6 : vector<8x512xf32>
    %cst_89 = arith.constant dense<0.000000e+00> : vector<8x512xf32>
    %358 = tpu.matmul %318, %0, %cst_89 {dimension_numbers = #tpu.dot_dimension_numbers<[1], [0], [0], [1], [0, 0, 1, 1], [], []>} : vector<8x128xf32>, vector<128x512xf32>, vector<8x512xf32> -> vector<8x512xf32>
    %359 = arith.addf %357, %358 : vector<8x512xf32>
    %360 = vector.extract_strided_slice %359 {offsets = [0, 0], sizes = [8, 128], strides = [1, 1]} : vector<8x512xf32> to vector<8x128xf32>
    %361 = arith.negf %360 : vector<8x128xf32>
    %362 = math.exp %361 : vector<8x128xf32>
    %cst_90 = arith.constant 1.000000e+00 : f32
    %363 = vector.broadcast %cst_90 : f32 to vector<8x128xf32>
    %364 = arith.addf %363, %362 : vector<8x128xf32>
    %365 = arith.divf %363, %364 : vector<8x128xf32>
    %366 = vector.extract_strided_slice %359 {offsets = [0, 128], sizes = [8, 128], strides = [1, 1]} : vector<8x512xf32> to vector<8x128xf32>
    %367 = arith.negf %366 : vector<8x128xf32>
    %368 = math.exp %367 : vector<8x128xf32>
    %cst_91 = arith.constant 1.000000e+00 : f32
    %369 = vector.broadcast %cst_91 : f32 to vector<8x128xf32>
    %370 = arith.addf %369, %368 : vector<8x128xf32>
    %371 = arith.divf %369, %370 : vector<8x128xf32>
    %372 = vector.extract_strided_slice %359 {offsets = [0, 256], sizes = [8, 128], strides = [1, 1]} : vector<8x512xf32> to vector<8x128xf32>
    %373 = math.tanh %372 : vector<8x128xf32>
    %374 = vector.extract_strided_slice %359 {offsets = [0, 384], sizes = [8, 128], strides = [1, 1]} : vector<8x512xf32> to vector<8x128xf32>
    %375 = arith.negf %374 : vector<8x128xf32>
    %376 = math.exp %375 : vector<8x128xf32>
    %cst_92 = arith.constant 1.000000e+00 : f32
    %377 = vector.broadcast %cst_92 : f32 to vector<8x128xf32>
    %378 = arith.addf %377, %376 : vector<8x128xf32>
    %379 = arith.divf %377, %378 : vector<8x128xf32>
    %380 = arith.mulf %371, %316 : vector<8x128xf32>
    %381 = arith.mulf %365, %373 : vector<8x128xf32>
    %382 = arith.addf %380, %381 : vector<8x128xf32>
    %383 = math.tanh %382 : vector<8x128xf32>
    %384 = arith.mulf %379, %383 : vector<8x128xf32>
    %cst_93 = arith.constant dense<0.000000e+00> : vector<8x512xf32>
    %385 = tpu.matmul %347, %2, %cst_93 {dimension_numbers = #tpu.dot_dimension_numbers<[1], [0], [0], [1], [0, 0, 1, 1], [], []>} : vector<8x128xf32>, vector<128x512xf32>, vector<8x512xf32> -> vector<8x512xf32>
    %386 = arith.addf %385, %9 : vector<8x512xf32>
    %cst_94 = arith.constant dense<0.000000e+00> : vector<8x512xf32>
    %387 = tpu.matmul %384, %1, %cst_94 {dimension_numbers = #tpu.dot_dimension_numbers<[1], [0], [0], [1], [0, 0, 1, 1], [], []>} : vector<8x128xf32>, vector<128x512xf32>, vector<8x512xf32> -> vector<8x512xf32>
    %388 = arith.addf %386, %387 : vector<8x512xf32>
    %389 = vector.extract_strided_slice %388 {offsets = [0, 0], sizes = [8, 128], strides = [1, 1]} : vector<8x512xf32> to vector<8x128xf32>
    %390 = arith.negf %389 : vector<8x128xf32>
    %391 = math.exp %390 : vector<8x128xf32>
    %cst_95 = arith.constant 1.000000e+00 : f32
    %392 = vector.broadcast %cst_95 : f32 to vector<8x128xf32>
    %393 = arith.addf %392, %391 : vector<8x128xf32>
    %394 = arith.divf %392, %393 : vector<8x128xf32>
    %395 = vector.extract_strided_slice %388 {offsets = [0, 128], sizes = [8, 128], strides = [1, 1]} : vector<8x512xf32> to vector<8x128xf32>
    %396 = arith.negf %395 : vector<8x128xf32>
    %397 = math.exp %396 : vector<8x128xf32>
    %cst_96 = arith.constant 1.000000e+00 : f32
    %398 = vector.broadcast %cst_96 : f32 to vector<8x128xf32>
    %399 = arith.addf %398, %397 : vector<8x128xf32>
    %400 = arith.divf %398, %399 : vector<8x128xf32>
    %401 = vector.extract_strided_slice %388 {offsets = [0, 256], sizes = [8, 128], strides = [1, 1]} : vector<8x512xf32> to vector<8x128xf32>
    %402 = math.tanh %401 : vector<8x128xf32>
    %403 = vector.extract_strided_slice %388 {offsets = [0, 384], sizes = [8, 128], strides = [1, 1]} : vector<8x512xf32> to vector<8x128xf32>
    %404 = arith.negf %403 : vector<8x128xf32>
    %405 = math.exp %404 : vector<8x128xf32>
    %cst_97 = arith.constant 1.000000e+00 : f32
    %406 = vector.broadcast %cst_97 : f32 to vector<8x128xf32>
    %407 = arith.addf %406, %405 : vector<8x128xf32>
    %408 = arith.divf %406, %407 : vector<8x128xf32>
    %409 = arith.mulf %400, %345 : vector<8x128xf32>
    %410 = arith.mulf %394, %402 : vector<8x128xf32>
    %411 = arith.addf %409, %410 : vector<8x128xf32>
    %412 = math.tanh %411 : vector<8x128xf32>
    %413 = arith.mulf %408, %412 : vector<8x128xf32>
    %414 = arith.mulf %413, %15 : vector<8x128xf32>
    %cst_98 = arith.constant dense<0.000000e+00> : vector<8xf32>
    %415 = vector.multi_reduction <add>, %414, %cst_98 [1] : vector<8x128xf32> to vector<8xf32>
    %416 = vector.shape_cast %415 : vector<8xf32> to vector<8x1xf32>
    %417 = arith.addf %416, %18 : vector<8x1xf32>
    %c0_99 = arith.constant 0 : index
    %c5_100 = arith.constant 5 : index
    %418 = vector.load %arg12[%c0_99, %c5_100] : memref<8x128xf32, #tpu.memory_space<vmem>>, vector<8x1xf32>
    tpu.vector_store %arg12[%c0_99, %c5_100], %417 {strides = array<i32>} : memref<8x128xf32, #tpu.memory_space<vmem>>, vector<8x1xf32>,
    %c0_101 = arith.constant 0 : index
    %c6 = arith.constant 6 : index
    %419 = vector.load %arg1[%c0_101, %c6] : memref<8x8xf32, #tpu.memory_space<vmem>>, vector<8x1xf32>
    %420 = vector.broadcast %419 : vector<8x1xf32> to vector<8x512xf32>
    %421 = vector.broadcast %19 : vector<1x512xf32> to vector<8x512xf32>
    %422 = arith.mulf %420, %421 : vector<8x512xf32>
    %423 = arith.addf %422, %6 : vector<8x512xf32>
    %cst_102 = arith.constant dense<0.000000e+00> : vector<8x512xf32>
    %424 = tpu.matmul %384, %0, %cst_102 {dimension_numbers = #tpu.dot_dimension_numbers<[1], [0], [0], [1], [0, 0, 1, 1], [], []>} : vector<8x128xf32>, vector<128x512xf32>, vector<8x512xf32> -> vector<8x512xf32>
    %425 = arith.addf %423, %424 : vector<8x512xf32>
    %426 = vector.extract_strided_slice %425 {offsets = [0, 0], sizes = [8, 128], strides = [1, 1]} : vector<8x512xf32> to vector<8x128xf32>
    %427 = arith.negf %426 : vector<8x128xf32>
    %428 = math.exp %427 : vector<8x128xf32>
    %cst_103 = arith.constant 1.000000e+00 : f32
    %429 = vector.broadcast %cst_103 : f32 to vector<8x128xf32>
    %430 = arith.addf %429, %428 : vector<8x128xf32>
    %431 = arith.divf %429, %430 : vector<8x128xf32>
    %432 = vector.extract_strided_slice %425 {offsets = [0, 128], sizes = [8, 128], strides = [1, 1]} : vector<8x512xf32> to vector<8x128xf32>
    %433 = arith.negf %432 : vector<8x128xf32>
    %434 = math.exp %433 : vector<8x128xf32>
    %cst_104 = arith.constant 1.000000e+00 : f32
    %435 = vector.broadcast %cst_104 : f32 to vector<8x128xf32>
    %436 = arith.addf %435, %434 : vector<8x128xf32>
    %437 = arith.divf %435, %436 : vector<8x128xf32>
    %438 = vector.extract_strided_slice %425 {offsets = [0, 256], sizes = [8, 128], strides = [1, 1]} : vector<8x512xf32> to vector<8x128xf32>
    %439 = math.tanh %438 : vector<8x128xf32>
    %440 = vector.extract_strided_slice %425 {offsets = [0, 384], sizes = [8, 128], strides = [1, 1]} : vector<8x512xf32> to vector<8x128xf32>
    %441 = arith.negf %440 : vector<8x128xf32>
    %442 = math.exp %441 : vector<8x128xf32>
    %cst_105 = arith.constant 1.000000e+00 : f32
    %443 = vector.broadcast %cst_105 : f32 to vector<8x128xf32>
    %444 = arith.addf %443, %442 : vector<8x128xf32>
    %445 = arith.divf %443, %444 : vector<8x128xf32>
    %446 = arith.mulf %437, %382 : vector<8x128xf32>
    %447 = arith.mulf %431, %439 : vector<8x128xf32>
    %448 = arith.addf %446, %447 : vector<8x128xf32>
    %449 = math.tanh %448 : vector<8x128xf32>
    %450 = arith.mulf %445, %449 : vector<8x128xf32>
    %cst_106 = arith.constant dense<0.000000e+00> : vector<8x512xf32>
    %451 = tpu.matmul %413, %2, %cst_106 {dimension_numbers = #tpu.dot_dimension_numbers<[1], [0], [0], [1], [0, 0, 1, 1], [], []>} : vector<8x128xf32>, vector<128x512xf32>, vector<8x512xf32> -> vector<8x512xf32>
    %452 = arith.addf %451, %9 : vector<8x512xf32>
    %cst_107 = arith.constant dense<0.000000e+00> : vector<8x512xf32>
    %453 = tpu.matmul %450, %1, %cst_107 {dimension_numbers = #tpu.dot_dimension_numbers<[1], [0], [0], [1], [0, 0, 1, 1], [], []>} : vector<8x128xf32>, vector<128x512xf32>, vector<8x512xf32> -> vector<8x512xf32>
    %454 = arith.addf %452, %453 : vector<8x512xf32>
    %455 = vector.extract_strided_slice %454 {offsets = [0, 0], sizes = [8, 128], strides = [1, 1]} : vector<8x512xf32> to vector<8x128xf32>
    %456 = arith.negf %455 : vector<8x128xf32>
    %457 = math.exp %456 : vector<8x128xf32>
    %cst_108 = arith.constant 1.000000e+00 : f32
    %458 = vector.broadcast %cst_108 : f32 to vector<8x128xf32>
    %459 = arith.addf %458, %457 : vector<8x128xf32>
    %460 = arith.divf %458, %459 : vector<8x128xf32>
    %461 = vector.extract_strided_slice %454 {offsets = [0, 128], sizes = [8, 128], strides = [1, 1]} : vector<8x512xf32> to vector<8x128xf32>
    %462 = arith.negf %461 : vector<8x128xf32>
    %463 = math.exp %462 : vector<8x128xf32>
    %cst_109 = arith.constant 1.000000e+00 : f32
    %464 = vector.broadcast %cst_109 : f32 to vector<8x128xf32>
    %465 = arith.addf %464, %463 : vector<8x128xf32>
    %466 = arith.divf %464, %465 : vector<8x128xf32>
    %467 = vector.extract_strided_slice %454 {offsets = [0, 256], sizes = [8, 128], strides = [1, 1]} : vector<8x512xf32> to vector<8x128xf32>
    %468 = math.tanh %467 : vector<8x128xf32>
    %469 = vector.extract_strided_slice %454 {offsets = [0, 384], sizes = [8, 128], strides = [1, 1]} : vector<8x512xf32> to vector<8x128xf32>
    %470 = arith.negf %469 : vector<8x128xf32>
    %471 = math.exp %470 : vector<8x128xf32>
    %cst_110 = arith.constant 1.000000e+00 : f32
    %472 = vector.broadcast %cst_110 : f32 to vector<8x128xf32>
    %473 = arith.addf %472, %471 : vector<8x128xf32>
    %474 = arith.divf %472, %473 : vector<8x128xf32>
    %475 = arith.mulf %466, %411 : vector<8x128xf32>
    %476 = arith.mulf %460, %468 : vector<8x128xf32>
    %477 = arith.addf %475, %476 : vector<8x128xf32>
    %478 = math.tanh %477 : vector<8x128xf32>
    %479 = arith.mulf %474, %478 : vector<8x128xf32>
    %480 = arith.mulf %479, %15 : vector<8x128xf32>
    %cst_111 = arith.constant dense<0.000000e+00> : vector<8xf32>
    %481 = vector.multi_reduction <add>, %480, %cst_111 [1] : vector<8x128xf32> to vector<8xf32>
    %482 = vector.shape_cast %481 : vector<8xf32> to vector<8x1xf32>
    %483 = arith.addf %482, %18 : vector<8x1xf32>
    %c0_112 = arith.constant 0 : index
    %c6_113 = arith.constant 6 : index
    %484 = vector.load %arg12[%c0_112, %c6_113] : memref<8x128xf32, #tpu.memory_space<vmem>>, vector<8x1xf32>
    tpu.vector_store %arg12[%c0_112, %c6_113], %483 {strides = array<i32>} : memref<8x128xf32, #tpu.memory_space<vmem>>, vector<8x1xf32>,
    %c0_114 = arith.constant 0 : index
    %c7 = arith.constant 7 : index
    %485 = vector.load %arg1[%c0_114, %c7] : memref<8x8xf32, #tpu.memory_space<vmem>>, vector<8x1xf32>
    %486 = vector.broadcast %485 : vector<8x1xf32> to vector<8x512xf32>
    %487 = vector.broadcast %19 : vector<1x512xf32> to vector<8x512xf32>
    %488 = arith.mulf %486, %487 : vector<8x512xf32>
    %489 = arith.addf %488, %6 : vector<8x512xf32>
    %cst_115 = arith.constant dense<0.000000e+00> : vector<8x512xf32>
    %490 = tpu.matmul %450, %0, %cst_115 {dimension_numbers = #tpu.dot_dimension_numbers<[1], [0], [0], [1], [0, 0, 1, 1], [], []>} : vector<8x128xf32>, vector<128x512xf32>, vector<8x512xf32> -> vector<8x512xf32>
    %491 = arith.addf %489, %490 : vector<8x512xf32>
    %492 = vector.extract_strided_slice %491 {offsets = [0, 0], sizes = [8, 128], strides = [1, 1]} : vector<8x512xf32> to vector<8x128xf32>
    %493 = arith.negf %492 : vector<8x128xf32>
    %494 = math.exp %493 : vector<8x128xf32>
    %cst_116 = arith.constant 1.000000e+00 : f32
    %495 = vector.broadcast %cst_116 : f32 to vector<8x128xf32>
    %496 = arith.addf %495, %494 : vector<8x128xf32>
    %497 = arith.divf %495, %496 : vector<8x128xf32>
    %498 = vector.extract_strided_slice %491 {offsets = [0, 128], sizes = [8, 128], strides = [1, 1]} : vector<8x512xf32> to vector<8x128xf32>
    %499 = arith.negf %498 : vector<8x128xf32>
    %500 = math.exp %499 : vector<8x128xf32>
    %cst_117 = arith.constant 1.000000e+00 : f32
    %501 = vector.broadcast %cst_117 : f32 to vector<8x128xf32>
    %502 = arith.addf %501, %500 : vector<8x128xf32>
    %503 = arith.divf %501, %502 : vector<8x128xf32>
    %504 = vector.extract_strided_slice %491 {offsets = [0, 256], sizes = [8, 128], strides = [1, 1]} : vector<8x512xf32> to vector<8x128xf32>
    %505 = math.tanh %504 : vector<8x128xf32>
    %506 = vector.extract_strided_slice %491 {offsets = [0, 384], sizes = [8, 128], strides = [1, 1]} : vector<8x512xf32> to vector<8x128xf32>
    %507 = arith.negf %506 : vector<8x128xf32>
    %508 = math.exp %507 : vector<8x128xf32>
    %cst_118 = arith.constant 1.000000e+00 : f32
    %509 = vector.broadcast %cst_118 : f32 to vector<8x128xf32>
    %510 = arith.addf %509, %508 : vector<8x128xf32>
    %511 = arith.divf %509, %510 : vector<8x128xf32>
    %512 = arith.mulf %503, %448 : vector<8x128xf32>
    %513 = arith.mulf %497, %505 : vector<8x128xf32>
    %514 = arith.addf %512, %513 : vector<8x128xf32>
    %515 = math.tanh %514 : vector<8x128xf32>
    %516 = arith.mulf %511, %515 : vector<8x128xf32>
    %cst_119 = arith.constant dense<0.000000e+00> : vector<8x512xf32>
    %517 = tpu.matmul %479, %2, %cst_119 {dimension_numbers = #tpu.dot_dimension_numbers<[1], [0], [0], [1], [0, 0, 1, 1], [], []>} : vector<8x128xf32>, vector<128x512xf32>, vector<8x512xf32> -> vector<8x512xf32>
    %518 = arith.addf %517, %9 : vector<8x512xf32>
    %cst_120 = arith.constant dense<0.000000e+00> : vector<8x512xf32>
    %519 = tpu.matmul %516, %1, %cst_120 {dimension_numbers = #tpu.dot_dimension_numbers<[1], [0], [0], [1], [0, 0, 1, 1], [], []>} : vector<8x128xf32>, vector<128x512xf32>, vector<8x512xf32> -> vector<8x512xf32>
    %520 = arith.addf %518, %519 : vector<8x512xf32>
    %521 = vector.extract_strided_slice %520 {offsets = [0, 0], sizes = [8, 128], strides = [1, 1]} : vector<8x512xf32> to vector<8x128xf32>
    %522 = arith.negf %521 : vector<8x128xf32>
    %523 = math.exp %522 : vector<8x128xf32>
    %cst_121 = arith.constant 1.000000e+00 : f32
    %524 = vector.broadcast %cst_121 : f32 to vector<8x128xf32>
    %525 = arith.addf %524, %523 : vector<8x128xf32>
    %526 = arith.divf %524, %525 : vector<8x128xf32>
    %527 = vector.extract_strided_slice %520 {offsets = [0, 128], sizes = [8, 128], strides = [1, 1]} : vector<8x512xf32> to vector<8x128xf32>
    %528 = arith.negf %527 : vector<8x128xf32>
    %529 = math.exp %528 : vector<8x128xf32>
    %cst_122 = arith.constant 1.000000e+00 : f32
    %530 = vector.broadcast %cst_122 : f32 to vector<8x128xf32>
    %531 = arith.addf %530, %529 : vector<8x128xf32>
    %532 = arith.divf %530, %531 : vector<8x128xf32>
    %533 = vector.extract_strided_slice %520 {offsets = [0, 256], sizes = [8, 128], strides = [1, 1]} : vector<8x512xf32> to vector<8x128xf32>
    %534 = math.tanh %533 : vector<8x128xf32>
    %535 = vector.extract_strided_slice %520 {offsets = [0, 384], sizes = [8, 128], strides = [1, 1]} : vector<8x512xf32> to vector<8x128xf32>
    %536 = arith.negf %535 : vector<8x128xf32>
    %537 = math.exp %536 : vector<8x128xf32>
    %cst_123 = arith.constant 1.000000e+00 : f32
    %538 = vector.broadcast %cst_123 : f32 to vector<8x128xf32>
    %539 = arith.addf %538, %537 : vector<8x128xf32>
    %540 = arith.divf %538, %539 : vector<8x128xf32>
    %541 = arith.mulf %532, %477 : vector<8x128xf32>
    %542 = arith.mulf %526, %534 : vector<8x128xf32>
    %543 = arith.addf %541, %542 : vector<8x128xf32>
    %544 = math.tanh %543 : vector<8x128xf32>
    %545 = arith.mulf %540, %544 : vector<8x128xf32>
    %546 = arith.mulf %545, %15 : vector<8x128xf32>
    %cst_124 = arith.constant dense<0.000000e+00> : vector<8xf32>
    %547 = vector.multi_reduction <add>, %546, %cst_124 [1] : vector<8x128xf32> to vector<8xf32>
    %548 = vector.shape_cast %547 : vector<8xf32> to vector<8x1xf32>
    %549 = arith.addf %548, %18 : vector<8x1xf32>
    %c0_125 = arith.constant 0 : index
    %c7_126 = arith.constant 7 : index
    %550 = vector.load %arg12[%c0_125, %c7_126] : memref<8x128xf32, #tpu.memory_space<vmem>>, vector<8x1xf32>
    tpu.vector_store %arg12[%c0_125, %c7_126], %549 {strides = array<i32>} : memref<8x128xf32, #tpu.memory_space<vmem>>, vector<8x1xf32>,
    %cst_127 = arith.constant dense<0.000000e+00> : vector<8x512xf32>
    %551 = tpu.matmul %545, %3, %cst_127 {dimension_numbers = #tpu.dot_dimension_numbers<[1], [0], [0], [1], [0, 0, 1, 1], [], []>} : vector<8x128xf32>, vector<128x512xf32>, vector<8x512xf32> -> vector<8x512xf32>
    %552 = arith.addf %551, %12 : vector<8x512xf32>
    %cst_128 = arith.constant dense<0.000000e+00> : vector<8x512xf32>
    %553 = tpu.matmul %516, %0, %cst_128 {dimension_numbers = #tpu.dot_dimension_numbers<[1], [0], [0], [1], [0, 0, 1, 1], [], []>} : vector<8x128xf32>, vector<128x512xf32>, vector<8x512xf32> -> vector<8x512xf32>
    %554 = arith.addf %552, %553 : vector<8x512xf32>
    %555 = vector.extract_strided_slice %554 {offsets = [0, 0], sizes = [8, 128], strides = [1, 1]} : vector<8x512xf32> to vector<8x128xf32>
    %556 = arith.negf %555 : vector<8x128xf32>
    %557 = math.exp %556 : vector<8x128xf32>
    %cst_129 = arith.constant 1.000000e+00 : f32
    %558 = vector.broadcast %cst_129 : f32 to vector<8x128xf32>
    %559 = arith.addf %558, %557 : vector<8x128xf32>
    %560 = arith.divf %558, %559 : vector<8x128xf32>
    %561 = vector.extract_strided_slice %554 {offsets = [0, 128], sizes = [8, 128], strides = [1, 1]} : vector<8x512xf32> to vector<8x128xf32>
    %562 = arith.negf %561 : vector<8x128xf32>
    %563 = math.exp %562 : vector<8x128xf32>
    %cst_130 = arith.constant 1.000000e+00 : f32
    %564 = vector.broadcast %cst_130 : f32 to vector<8x128xf32>
    %565 = arith.addf %564, %563 : vector<8x128xf32>
    %566 = arith.divf %564, %565 : vector<8x128xf32>
    %567 = vector.extract_strided_slice %554 {offsets = [0, 256], sizes = [8, 128], strides = [1, 1]} : vector<8x512xf32> to vector<8x128xf32>
    %568 = math.tanh %567 : vector<8x128xf32>
    %569 = vector.extract_strided_slice %554 {offsets = [0, 384], sizes = [8, 128], strides = [1, 1]} : vector<8x512xf32> to vector<8x128xf32>
    %570 = arith.negf %569 : vector<8x128xf32>
    %571 = math.exp %570 : vector<8x128xf32>
    %cst_131 = arith.constant 1.000000e+00 : f32
    %572 = vector.broadcast %cst_131 : f32 to vector<8x128xf32>
    %573 = arith.addf %572, %571 : vector<8x128xf32>
    %574 = arith.divf %572, %573 : vector<8x128xf32>
    %575 = arith.mulf %566, %514 : vector<8x128xf32>
    %576 = arith.mulf %560, %568 : vector<8x128xf32>
    %577 = arith.addf %575, %576 : vector<8x128xf32>
    %578 = math.tanh %577 : vector<8x128xf32>
    %579 = arith.mulf %574, %578 : vector<8x128xf32>
    %cst_132 = arith.constant dense<0.000000e+00> : vector<8x512xf32>
    %580 = tpu.matmul %545, %2, %cst_132 {dimension_numbers = #tpu.dot_dimension_numbers<[1], [0], [0], [1], [0, 0, 1, 1], [], []>} : vector<8x128xf32>, vector<128x512xf32>, vector<8x512xf32> -> vector<8x512xf32>
    %581 = arith.addf %580, %9 : vector<8x512xf32>
    %cst_133 = arith.constant dense<0.000000e+00> : vector<8x512xf32>
    %582 = tpu.matmul %579, %1, %cst_133 {dimension_numbers = #tpu.dot_dimension_numbers<[1], [0], [0], [1], [0, 0, 1, 1], [], []>} : vector<8x128xf32>, vector<128x512xf32>, vector<8x512xf32> -> vector<8x512xf32>
    %583 = arith.addf %581, %582 : vector<8x512xf32>
    %584 = vector.extract_strided_slice %583 {offsets = [0, 0], sizes = [8, 128], strides = [1, 1]} : vector<8x512xf32> to vector<8x128xf32>
    %585 = arith.negf %584 : vector<8x128xf32>
    %586 = math.exp %585 : vector<8x128xf32>
    %cst_134 = arith.constant 1.000000e+00 : f32
    %587 = vector.broadcast %cst_134 : f32 to vector<8x128xf32>
    %588 = arith.addf %587, %586 : vector<8x128xf32>
    %589 = arith.divf %587, %588 : vector<8x128xf32>
    %590 = vector.extract_strided_slice %583 {offsets = [0, 128], sizes = [8, 128], strides = [1, 1]} : vector<8x512xf32> to vector<8x128xf32>
    %591 = arith.negf %590 : vector<8x128xf32>
    %592 = math.exp %591 : vector<8x128xf32>
    %cst_135 = arith.constant 1.000000e+00 : f32
    %593 = vector.broadcast %cst_135 : f32 to vector<8x128xf32>
    %594 = arith.addf %593, %592 : vector<8x128xf32>
    %595 = arith.divf %593, %594 : vector<8x128xf32>
    %596 = vector.extract_strided_slice %583 {offsets = [0, 256], sizes = [8, 128], strides = [1, 1]} : vector<8x512xf32> to vector<8x128xf32>
    %597 = math.tanh %596 : vector<8x128xf32>
    %598 = vector.extract_strided_slice %583 {offsets = [0, 384], sizes = [8, 128], strides = [1, 1]} : vector<8x512xf32> to vector<8x128xf32>
    %599 = arith.negf %598 : vector<8x128xf32>
    %600 = math.exp %599 : vector<8x128xf32>
    %cst_136 = arith.constant 1.000000e+00 : f32
    %601 = vector.broadcast %cst_136 : f32 to vector<8x128xf32>
    %602 = arith.addf %601, %600 : vector<8x128xf32>
    %603 = arith.divf %601, %602 : vector<8x128xf32>
    %604 = arith.mulf %595, %543 : vector<8x128xf32>
    %605 = arith.mulf %589, %597 : vector<8x128xf32>
    %606 = arith.addf %604, %605 : vector<8x128xf32>
    %607 = math.tanh %606 : vector<8x128xf32>
    %608 = arith.mulf %603, %607 : vector<8x128xf32>
    %609 = arith.mulf %608, %15 : vector<8x128xf32>
    %cst_137 = arith.constant dense<0.000000e+00> : vector<8xf32>
    %610 = vector.multi_reduction <add>, %609, %cst_137 [1] : vector<8x128xf32> to vector<8xf32>
    %611 = vector.shape_cast %610 : vector<8xf32> to vector<8x1xf32>
    %612 = arith.addf %611, %18 : vector<8x1xf32>
    %c0_138 = arith.constant 0 : index
    %c8 = arith.constant 8 : index
    %613 = vector.load %arg12[%c0_138, %c8] : memref<8x128xf32, #tpu.memory_space<vmem>>, vector<8x1xf32>
    tpu.vector_store %arg12[%c0_138, %c8], %612 {strides = array<i32>} : memref<8x128xf32, #tpu.memory_space<vmem>>, vector<8x1xf32>,
    %cst_139 = arith.constant dense<0.000000e+00> : vector<8x512xf32>
    %614 = tpu.matmul %608, %3, %cst_139 {dimension_numbers = #tpu.dot_dimension_numbers<[1], [0], [0], [1], [0, 0, 1, 1], [], []>} : vector<8x128xf32>, vector<128x512xf32>, vector<8x512xf32> -> vector<8x512xf32>
    %615 = arith.addf %614, %12 : vector<8x512xf32>
    %cst_140 = arith.constant dense<0.000000e+00> : vector<8x512xf32>
    %616 = tpu.matmul %579, %0, %cst_140 {dimension_numbers = #tpu.dot_dimension_numbers<[1], [0], [0], [1], [0, 0, 1, 1], [], []>} : vector<8x128xf32>, vector<128x512xf32>, vector<8x512xf32> -> vector<8x512xf32>
    %617 = arith.addf %615, %616 : vector<8x512xf32>
    %618 = vector.extract_strided_slice %617 {offsets = [0, 0], sizes = [8, 128], strides = [1, 1]} : vector<8x512xf32> to vector<8x128xf32>
    %619 = arith.negf %618 : vector<8x128xf32>
    %620 = math.exp %619 : vector<8x128xf32>
    %cst_141 = arith.constant 1.000000e+00 : f32
    %621 = vector.broadcast %cst_141 : f32 to vector<8x128xf32>
    %622 = arith.addf %621, %620 : vector<8x128xf32>
    %623 = arith.divf %621, %622 : vector<8x128xf32>
    %624 = vector.extract_strided_slice %617 {offsets = [0, 128], sizes = [8, 128], strides = [1, 1]} : vector<8x512xf32> to vector<8x128xf32>
    %625 = arith.negf %624 : vector<8x128xf32>
    %626 = math.exp %625 : vector<8x128xf32>
    %cst_142 = arith.constant 1.000000e+00 : f32
    %627 = vector.broadcast %cst_142 : f32 to vector<8x128xf32>
    %628 = arith.addf %627, %626 : vector<8x128xf32>
    %629 = arith.divf %627, %628 : vector<8x128xf32>
    %630 = vector.extract_strided_slice %617 {offsets = [0, 256], sizes = [8, 128], strides = [1, 1]} : vector<8x512xf32> to vector<8x128xf32>
    %631 = math.tanh %630 : vector<8x128xf32>
    %632 = vector.extract_strided_slice %617 {offsets = [0, 384], sizes = [8, 128], strides = [1, 1]} : vector<8x512xf32> to vector<8x128xf32>
    %633 = arith.negf %632 : vector<8x128xf32>
    %634 = math.exp %633 : vector<8x128xf32>
    %cst_143 = arith.constant 1.000000e+00 : f32
    %635 = vector.broadcast %cst_143 : f32 to vector<8x128xf32>
    %636 = arith.addf %635, %634 : vector<8x128xf32>
    %637 = arith.divf %635, %636 : vector<8x128xf32>
    %638 = arith.mulf %629, %577 : vector<8x128xf32>
    %639 = arith.mulf %623, %631 : vector<8x128xf32>
    %640 = arith.addf %638, %639 : vector<8x128xf32>
    %641 = math.tanh %640 : vector<8x128xf32>
    %642 = arith.mulf %637, %641 : vector<8x128xf32>
    %cst_144 = arith.constant dense<0.000000e+00> : vector<8x512xf32>
    %643 = tpu.matmul %608, %2, %cst_144 {dimension_numbers = #tpu.dot_dimension_numbers<[1], [0], [0], [1], [0, 0, 1, 1], [], []>} : vector<8x128xf32>, vector<128x512xf32>, vector<8x512xf32> -> vector<8x512xf32>
    %644 = arith.addf %643, %9 : vector<8x512xf32>
    %cst_145 = arith.constant dense<0.000000e+00> : vector<8x512xf32>
    %645 = tpu.matmul %642, %1, %cst_145 {dimension_numbers = #tpu.dot_dimension_numbers<[1], [0], [0], [1], [0, 0, 1, 1], [], []>} : vector<8x128xf32>, vector<128x512xf32>, vector<8x512xf32> -> vector<8x512xf32>
    %646 = arith.addf %644, %645 : vector<8x512xf32>
    %647 = vector.extract_strided_slice %646 {offsets = [0, 0], sizes = [8, 128], strides = [1, 1]} : vector<8x512xf32> to vector<8x128xf32>
    %648 = arith.negf %647 : vector<8x128xf32>
    %649 = math.exp %648 : vector<8x128xf32>
    %cst_146 = arith.constant 1.000000e+00 : f32
    %650 = vector.broadcast %cst_146 : f32 to vector<8x128xf32>
    %651 = arith.addf %650, %649 : vector<8x128xf32>
    %652 = arith.divf %650, %651 : vector<8x128xf32>
    %653 = vector.extract_strided_slice %646 {offsets = [0, 128], sizes = [8, 128], strides = [1, 1]} : vector<8x512xf32> to vector<8x128xf32>
    %654 = arith.negf %653 : vector<8x128xf32>
    %655 = math.exp %654 : vector<8x128xf32>
    %cst_147 = arith.constant 1.000000e+00 : f32
    %656 = vector.broadcast %cst_147 : f32 to vector<8x128xf32>
    %657 = arith.addf %656, %655 : vector<8x128xf32>
    %658 = arith.divf %656, %657 : vector<8x128xf32>
    %659 = vector.extract_strided_slice %646 {offsets = [0, 256], sizes = [8, 128], strides = [1, 1]} : vector<8x512xf32> to vector<8x128xf32>
    %660 = math.tanh %659 : vector<8x128xf32>
    %661 = vector.extract_strided_slice %646 {offsets = [0, 384], sizes = [8, 128], strides = [1, 1]} : vector<8x512xf32> to vector<8x128xf32>
    %662 = arith.negf %661 : vector<8x128xf32>
    %663 = math.exp %662 : vector<8x128xf32>
    %cst_148 = arith.constant 1.000000e+00 : f32
    %664 = vector.broadcast %cst_148 : f32 to vector<8x128xf32>
    %665 = arith.addf %664, %663 : vector<8x128xf32>
    %666 = arith.divf %664, %665 : vector<8x128xf32>
    %667 = arith.mulf %658, %606 : vector<8x128xf32>
    %668 = arith.mulf %652, %660 : vector<8x128xf32>
    %669 = arith.addf %667, %668 : vector<8x128xf32>
    %670 = math.tanh %669 : vector<8x128xf32>
    %671 = arith.mulf %666, %670 : vector<8x128xf32>
    %672 = arith.mulf %671, %15 : vector<8x128xf32>
    %cst_149 = arith.constant dense<0.000000e+00> : vector<8xf32>
    %673 = vector.multi_reduction <add>, %672, %cst_149 [1] : vector<8x128xf32> to vector<8xf32>
    %674 = vector.shape_cast %673 : vector<8xf32> to vector<8x1xf32>
    %675 = arith.addf %674, %18 : vector<8x1xf32>
    %c0_150 = arith.constant 0 : index
    %c9 = arith.constant 9 : index
    %676 = vector.load %arg12[%c0_150, %c9] : memref<8x128xf32, #tpu.memory_space<vmem>>, vector<8x1xf32>
    tpu.vector_store %arg12[%c0_150, %c9], %675 {strides = array<i32>} : memref<8x128xf32, #tpu.memory_space<vmem>>, vector<8x1xf32>,
    %cst_151 = arith.constant dense<0.000000e+00> : vector<8x512xf32>
    %677 = tpu.matmul %671, %3, %cst_151 {dimension_numbers = #tpu.dot_dimension_numbers<[1], [0], [0], [1], [0, 0, 1, 1], [], []>} : vector<8x128xf32>, vector<128x512xf32>, vector<8x512xf32> -> vector<8x512xf32>
    %678 = arith.addf %677, %12 : vector<8x512xf32>
    %cst_152 = arith.constant dense<0.000000e+00> : vector<8x512xf32>
    %679 = tpu.matmul %642, %0, %cst_152 {dimension_numbers = #tpu.dot_dimension_numbers<[1], [0], [0], [1], [0, 0, 1, 1], [], []>} : vector<8x128xf32>, vector<128x512xf32>, vector<8x512xf32> -> vector<8x512xf32>
    %680 = arith.addf %678, %679 : vector<8x512xf32>
    %681 = vector.extract_strided_slice %680 {offsets = [0, 0], sizes = [8, 128], strides = [1, 1]} : vector<8x512xf32> to vector<8x128xf32>
    %682 = arith.negf %681 : vector<8x128xf32>
    %683 = math.exp %682 : vector<8x128xf32>
    %cst_153 = arith.constant 1.000000e+00 : f32
    %684 = vector.broadcast %cst_153 : f32 to vector<8x128xf32>
    %685 = arith.addf %684, %683 : vector<8x128xf32>
    %686 = arith.divf %684, %685 : vector<8x128xf32>
    %687 = vector.extract_strided_slice %680 {offsets = [0, 128], sizes = [8, 128], strides = [1, 1]} : vector<8x512xf32> to vector<8x128xf32>
    %688 = arith.negf %687 : vector<8x128xf32>
    %689 = math.exp %688 : vector<8x128xf32>
    %cst_154 = arith.constant 1.000000e+00 : f32
    %690 = vector.broadcast %cst_154 : f32 to vector<8x128xf32>
    %691 = arith.addf %690, %689 : vector<8x128xf32>
    %692 = arith.divf %690, %691 : vector<8x128xf32>
    %693 = vector.extract_strided_slice %680 {offsets = [0, 256], sizes = [8, 128], strides = [1, 1]} : vector<8x512xf32> to vector<8x128xf32>
    %694 = math.tanh %693 : vector<8x128xf32>
    %695 = vector.extract_strided_slice %680 {offsets = [0, 384], sizes = [8, 128], strides = [1, 1]} : vector<8x512xf32> to vector<8x128xf32>
    %696 = arith.negf %695 : vector<8x128xf32>
    %697 = math.exp %696 : vector<8x128xf32>
    %cst_155 = arith.constant 1.000000e+00 : f32
    %698 = vector.broadcast %cst_155 : f32 to vector<8x128xf32>
    %699 = arith.addf %698, %697 : vector<8x128xf32>
    %700 = arith.divf %698, %699 : vector<8x128xf32>
    %701 = arith.mulf %692, %640 : vector<8x128xf32>
    %702 = arith.mulf %686, %694 : vector<8x128xf32>
    %703 = arith.addf %701, %702 : vector<8x128xf32>
    %704 = math.tanh %703 : vector<8x128xf32>
    %705 = arith.mulf %700, %704 : vector<8x128xf32>
    %cst_156 = arith.constant dense<0.000000e+00> : vector<8x512xf32>
    %706 = tpu.matmul %671, %2, %cst_156 {dimension_numbers = #tpu.dot_dimension_numbers<[1], [0], [0], [1], [0, 0, 1, 1], [], []>} : vector<8x128xf32>, vector<128x512xf32>, vector<8x512xf32> -> vector<8x512xf32>
    %707 = arith.addf %706, %9 : vector<8x512xf32>
    %cst_157 = arith.constant dense<0.000000e+00> : vector<8x512xf32>
    %708 = tpu.matmul %705, %1, %cst_157 {dimension_numbers = #tpu.dot_dimension_numbers<[1], [0], [0], [1], [0, 0, 1, 1], [], []>} : vector<8x128xf32>, vector<128x512xf32>, vector<8x512xf32> -> vector<8x512xf32>
    %709 = arith.addf %707, %708 : vector<8x512xf32>
    %710 = vector.extract_strided_slice %709 {offsets = [0, 0], sizes = [8, 128], strides = [1, 1]} : vector<8x512xf32> to vector<8x128xf32>
    %711 = arith.negf %710 : vector<8x128xf32>
    %712 = math.exp %711 : vector<8x128xf32>
    %cst_158 = arith.constant 1.000000e+00 : f32
    %713 = vector.broadcast %cst_158 : f32 to vector<8x128xf32>
    %714 = arith.addf %713, %712 : vector<8x128xf32>
    %715 = arith.divf %713, %714 : vector<8x128xf32>
    %716 = vector.extract_strided_slice %709 {offsets = [0, 128], sizes = [8, 128], strides = [1, 1]} : vector<8x512xf32> to vector<8x128xf32>
    %717 = arith.negf %716 : vector<8x128xf32>
    %718 = math.exp %717 : vector<8x128xf32>
    %cst_159 = arith.constant 1.000000e+00 : f32
    %719 = vector.broadcast %cst_159 : f32 to vector<8x128xf32>
    %720 = arith.addf %719, %718 : vector<8x128xf32>
    %721 = arith.divf %719, %720 : vector<8x128xf32>
    %722 = vector.extract_strided_slice %709 {offsets = [0, 256], sizes = [8, 128], strides = [1, 1]} : vector<8x512xf32> to vector<8x128xf32>
    %723 = math.tanh %722 : vector<8x128xf32>
    %724 = vector.extract_strided_slice %709 {offsets = [0, 384], sizes = [8, 128], strides = [1, 1]} : vector<8x512xf32> to vector<8x128xf32>
    %725 = arith.negf %724 : vector<8x128xf32>
    %726 = math.exp %725 : vector<8x128xf32>
    %cst_160 = arith.constant 1.000000e+00 : f32
    %727 = vector.broadcast %cst_160 : f32 to vector<8x128xf32>
    %728 = arith.addf %727, %726 : vector<8x128xf32>
    %729 = arith.divf %727, %728 : vector<8x128xf32>
    %730 = arith.mulf %721, %669 : vector<8x128xf32>
    %731 = arith.mulf %715, %723 : vector<8x128xf32>
    %732 = arith.addf %730, %731 : vector<8x128xf32>
    %733 = math.tanh %732 : vector<8x128xf32>
    %734 = arith.mulf %729, %733 : vector<8x128xf32>
    %735 = arith.mulf %734, %15 : vector<8x128xf32>
    %cst_161 = arith.constant dense<0.000000e+00> : vector<8xf32>
    %736 = vector.multi_reduction <add>, %735, %cst_161 [1] : vector<8x128xf32> to vector<8xf32>
    %737 = vector.shape_cast %736 : vector<8xf32> to vector<8x1xf32>
    %738 = arith.addf %737, %18 : vector<8x1xf32>
    %c0_162 = arith.constant 0 : index
    %c10 = arith.constant 10 : index
    %739 = vector.load %arg12[%c0_162, %c10] : memref<8x128xf32, #tpu.memory_space<vmem>>, vector<8x1xf32>
    tpu.vector_store %arg12[%c0_162, %c10], %738 {strides = array<i32>} : memref<8x128xf32, #tpu.memory_space<vmem>>, vector<8x1xf32>,
    %cst_163 = arith.constant dense<0.000000e+00> : vector<8x512xf32>
    %740 = tpu.matmul %734, %3, %cst_163 {dimension_numbers = #tpu.dot_dimension_numbers<[1], [0], [0], [1], [0, 0, 1, 1], [], []>} : vector<8x128xf32>, vector<128x512xf32>, vector<8x512xf32> -> vector<8x512xf32>
    %741 = arith.addf %740, %12 : vector<8x512xf32>
    %cst_164 = arith.constant dense<0.000000e+00> : vector<8x512xf32>
    %742 = tpu.matmul %705, %0, %cst_164 {dimension_numbers = #tpu.dot_dimension_numbers<[1], [0], [0], [1], [0, 0, 1, 1], [], []>} : vector<8x128xf32>, vector<128x512xf32>, vector<8x512xf32> -> vector<8x512xf32>
    %743 = arith.addf %741, %742 : vector<8x512xf32>
    %744 = vector.extract_strided_slice %743 {offsets = [0, 0], sizes = [8, 128], strides = [1, 1]} : vector<8x512xf32> to vector<8x128xf32>
    %745 = arith.negf %744 : vector<8x128xf32>
    %746 = math.exp %745 : vector<8x128xf32>
    %cst_165 = arith.constant 1.000000e+00 : f32
    %747 = vector.broadcast %cst_165 : f32 to vector<8x128xf32>
    %748 = arith.addf %747, %746 : vector<8x128xf32>
    %749 = arith.divf %747, %748 : vector<8x128xf32>
    %750 = vector.extract_strided_slice %743 {offsets = [0, 128], sizes = [8, 128], strides = [1, 1]} : vector<8x512xf32> to vector<8x128xf32>
    %751 = arith.negf %750 : vector<8x128xf32>
    %752 = math.exp %751 : vector<8x128xf32>
    %cst_166 = arith.constant 1.000000e+00 : f32
    %753 = vector.broadcast %cst_166 : f32 to vector<8x128xf32>
    %754 = arith.addf %753, %752 : vector<8x128xf32>
    %755 = arith.divf %753, %754 : vector<8x128xf32>
    %756 = vector.extract_strided_slice %743 {offsets = [0, 256], sizes = [8, 128], strides = [1, 1]} : vector<8x512xf32> to vector<8x128xf32>
    %757 = math.tanh %756 : vector<8x128xf32>
    %758 = vector.extract_strided_slice %743 {offsets = [0, 384], sizes = [8, 128], strides = [1, 1]} : vector<8x512xf32> to vector<8x128xf32>
    %759 = arith.negf %758 : vector<8x128xf32>
    %760 = math.exp %759 : vector<8x128xf32>
    %cst_167 = arith.constant 1.000000e+00 : f32
    %761 = vector.broadcast %cst_167 : f32 to vector<8x128xf32>
    %762 = arith.addf %761, %760 : vector<8x128xf32>
    %763 = arith.divf %761, %762 : vector<8x128xf32>
    %764 = arith.mulf %755, %703 : vector<8x128xf32>
    %765 = arith.mulf %749, %757 : vector<8x128xf32>
    %766 = arith.addf %764, %765 : vector<8x128xf32>
    %767 = math.tanh %766 : vector<8x128xf32>
    %768 = arith.mulf %763, %767 : vector<8x128xf32>
    %cst_168 = arith.constant dense<0.000000e+00> : vector<8x512xf32>
    %769 = tpu.matmul %734, %2, %cst_168 {dimension_numbers = #tpu.dot_dimension_numbers<[1], [0], [0], [1], [0, 0, 1, 1], [], []>} : vector<8x128xf32>, vector<128x512xf32>, vector<8x512xf32> -> vector<8x512xf32>
    %770 = arith.addf %769, %9 : vector<8x512xf32>
    %cst_169 = arith.constant dense<0.000000e+00> : vector<8x512xf32>
    %771 = tpu.matmul %768, %1, %cst_169 {dimension_numbers = #tpu.dot_dimension_numbers<[1], [0], [0], [1], [0, 0, 1, 1], [], []>} : vector<8x128xf32>, vector<128x512xf32>, vector<8x512xf32> -> vector<8x512xf32>
    %772 = arith.addf %770, %771 : vector<8x512xf32>
    %773 = vector.extract_strided_slice %772 {offsets = [0, 0], sizes = [8, 128], strides = [1, 1]} : vector<8x512xf32> to vector<8x128xf32>
    %774 = arith.negf %773 : vector<8x128xf32>
    %775 = math.exp %774 : vector<8x128xf32>
    %cst_170 = arith.constant 1.000000e+00 : f32
    %776 = vector.broadcast %cst_170 : f32 to vector<8x128xf32>
    %777 = arith.addf %776, %775 : vector<8x128xf32>
    %778 = arith.divf %776, %777 : vector<8x128xf32>
    %779 = vector.extract_strided_slice %772 {offsets = [0, 128], sizes = [8, 128], strides = [1, 1]} : vector<8x512xf32> to vector<8x128xf32>
    %780 = arith.negf %779 : vector<8x128xf32>
    %781 = math.exp %780 : vector<8x128xf32>
    %cst_171 = arith.constant 1.000000e+00 : f32
    %782 = vector.broadcast %cst_171 : f32 to vector<8x128xf32>
    %783 = arith.addf %782, %781 : vector<8x128xf32>
    %784 = arith.divf %782, %783 : vector<8x128xf32>
    %785 = vector.extract_strided_slice %772 {offsets = [0, 256], sizes = [8, 128], strides = [1, 1]} : vector<8x512xf32> to vector<8x128xf32>
    %786 = math.tanh %785 : vector<8x128xf32>
    %787 = vector.extract_strided_slice %772 {offsets = [0, 384], sizes = [8, 128], strides = [1, 1]} : vector<8x512xf32> to vector<8x128xf32>
    %788 = arith.negf %787 : vector<8x128xf32>
    %789 = math.exp %788 : vector<8x128xf32>
    %cst_172 = arith.constant 1.000000e+00 : f32
    %790 = vector.broadcast %cst_172 : f32 to vector<8x128xf32>
    %791 = arith.addf %790, %789 : vector<8x128xf32>
    %792 = arith.divf %790, %791 : vector<8x128xf32>
    %793 = arith.mulf %784, %732 : vector<8x128xf32>
    %794 = arith.mulf %778, %786 : vector<8x128xf32>
    %795 = arith.addf %793, %794 : vector<8x128xf32>
    %796 = math.tanh %795 : vector<8x128xf32>
    %797 = arith.mulf %792, %796 : vector<8x128xf32>
    %798 = arith.mulf %797, %15 : vector<8x128xf32>
    %cst_173 = arith.constant dense<0.000000e+00> : vector<8xf32>
    %799 = vector.multi_reduction <add>, %798, %cst_173 [1] : vector<8x128xf32> to vector<8xf32>
    %800 = vector.shape_cast %799 : vector<8xf32> to vector<8x1xf32>
    %801 = arith.addf %800, %18 : vector<8x1xf32>
    %c0_174 = arith.constant 0 : index
    %c11 = arith.constant 11 : index
    %802 = vector.load %arg12[%c0_174, %c11] : memref<8x128xf32, #tpu.memory_space<vmem>>, vector<8x1xf32>
    tpu.vector_store %arg12[%c0_174, %c11], %801 {strides = array<i32>} : memref<8x128xf32, #tpu.memory_space<vmem>>, vector<8x1xf32>,
    return
  }
  func.func @transform_0(%arg0: i32) -> (i32, i32) {
    %c0_i32 = arith.constant 0 : i32
    %c0_i32_0 = arith.constant 0 : i32
    return %arg0, %c0_i32 : i32, i32
  }
  func.func @transform_1(%arg0: i32) -> (i32, i32) {
    %c0_i32 = arith.constant 0 : i32
    %c0_i32_0 = arith.constant 0 : i32
    %c0_i32_1 = arith.constant 0 : i32
    return %c0_i32, %c0_i32_0 : i32, i32
  }
  func.func @transform_2(%arg0: i32) -> (i32, i32) {
    %c0_i32 = arith.constant 0 : i32
    %c0_i32_0 = arith.constant 0 : i32
    %c0_i32_1 = arith.constant 0 : i32
    return %c0_i32, %c0_i32_0 : i32, i32
  }
  func.func @transform_3(%arg0: i32) -> (i32, i32) {
    %c0_i32 = arith.constant 0 : i32
    %c0_i32_0 = arith.constant 0 : i32
    %c0_i32_1 = arith.constant 0 : i32
    return %c0_i32, %c0_i32_0 : i32, i32
  }
  func.func @transform_4(%arg0: i32) -> (i32, i32) {
    %c0_i32 = arith.constant 0 : i32
    %c0_i32_0 = arith.constant 0 : i32
    %c0_i32_1 = arith.constant 0 : i32
    return %c0_i32, %c0_i32_0 : i32, i32
  }
  func.func @transform_5(%arg0: i32) -> (i32, i32) {
    %c0_i32 = arith.constant 0 : i32
    %c0_i32_0 = arith.constant 0 : i32
    %c0_i32_1 = arith.constant 0 : i32
    return %c0_i32, %c0_i32_0 : i32, i32
  }
  func.func @transform_6(%arg0: i32) -> (i32, i32) {
    %c0_i32 = arith.constant 0 : i32
    %c0_i32_0 = arith.constant 0 : i32
    %c0_i32_1 = arith.constant 0 : i32
    return %c0_i32, %c0_i32_0 : i32, i32
  }
  func.func @transform_7(%arg0: i32) -> (i32, i32) {
    %c0_i32 = arith.constant 0 : i32
    %c0_i32_0 = arith.constant 0 : i32
    %c0_i32_1 = arith.constant 0 : i32
    return %c0_i32, %c0_i32_0 : i32, i32
  }
  func.func @transform_8(%arg0: i32) -> (i32, i32) {
    %c0_i32 = arith.constant 0 : i32
    %c0_i32_0 = arith.constant 0 : i32
    %c0_i32_1 = arith.constant 0 : i32
    return %c0_i32, %c0_i32_0 : i32, i32
  }
  func.func @transform_9(%arg0: i32) -> (i32, i32) {
    %c0_i32 = arith.constant 0 : i32
    %c0_i32_0 = arith.constant 0 : i32
    %c0_i32_1 = arith.constant 0 : i32
    return %c0_i32, %c0_i32_0 : i32, i32
  }
  func.func @transform_10(%arg0: i32) -> (i32, i32) {
    %c0_i32 = arith.constant 0 : i32
    %c0_i32_0 = arith.constant 0 : i32
    %c0_i32_1 = arith.constant 0 : i32
    return %c0_i32, %c0_i32_0 : i32, i32
  }
  func.func @transform_11(%arg0: i32) -> (i32, i32) {
    %c0_i32 = arith.constant 0 : i32
    %c0_i32_0 = arith.constant 0 : i32
    return %arg0, %c0_i32 : i32, i32
  }
}

</mosaic_0001>

<llo_original>
// kernel: tpu_custom_call.1
$region0: #{tpu_custom_call.1}
  #allocation0 [shape = 'u32[]', space=smem, size = 0x4, offset = 0x4, fixed_abs, tag = 'smem constant byte address 0x4 - core index']
  #allocation1 [shape = 'u32[144,128]{1,0:T(1,128)}', space=vmem, size = 0x12000, scoped, tag = 'internal scratch']
  #allocation2 [shape = 'f32[1,1]{1,0:T(1,128)S(1)}', space=vmem, size = 0x200, scoped, tag = 'scoped memory for tpu_custom_call.1']
  %s0 = inlined_call_operand.hbm [shape: f32[8,8], index: 0, kind: input, shape index: {}]
  %s1 = inlined_call_operand.hbm [shape: f32[1,512], index: 1, kind: input, shape index: {}]
  %s2 = inlined_call_operand.hbm [shape: f32[128,512], index: 2, kind: input, shape index: {}]
  %s3 = inlined_call_operand.vmem [shape: f32[1,512], index: 3, kind: input, shape index: {}]
  %s4 = inlined_call_operand.hbm [shape: f32[128,512], index: 4, kind: input, shape index: {}]
  %s5 = inlined_call_operand.hbm [shape: f32[128,512], index: 5, kind: input, shape index: {}]
  %s6 = inlined_call_operand.vmem [shape: f32[1,512], index: 6, kind: input, shape index: {}]
  %s7 = inlined_call_operand.hbm [shape: f32[128,512], index: 7, kind: input, shape index: {}]
  %s8 = inlined_call_operand.vmem [shape: f32[1,512], index: 8, kind: input, shape index: {}]
  %s9 = inlined_call_operand.vmem [shape: f32[1,128], index: 9, kind: input, shape index: {}]
  %s10 = inlined_call_operand.<no memory space> [shape: f32[1,1], index: 10, kind: input, shape index: {}]
  %s11 = inlined_call_operand.hbm [shape: f32[8,128], index: 11, kind: output, shape index: {}]
  %s12 = sld [smem:[#allocation0]]
  $region78: #{tpu_custom_call.1} parent=0
    _
  %s14 = ssub.s32 1, %s12
  %s15 = scalar_select 0, %s14, %s12
  %v16 = vstv %s10
  %17 = vst [vmem:[#allocation2] sm:$0x1] %v16
  $region1: #{tpu_custom_call.1} parent=0
    #allocation3 [shape = 'u8[4096]{0}', space=vmem, size = 0x1000, scoped, tag = 'input window, operand 0, single buffered']
    #allocation4 [shape = 's32[1]{0}', space=sflag, size = 0x4, scoped, tag = 'scoped memory for tpu_custom_call.1']
    #allocation5 [shape = 's32[1]{0}', space=sflag, size = 0x4, scoped, tag = 'scoped memory for tpu_custom_call.1']
    #allocation6 [shape = 'u8[2048]{0}', space=vmem, size = 0x800, scoped, tag = 'input window, operand 1, single buffered']
    #allocation7 [shape = 's32[1]{0}', space=sflag, size = 0x4, scoped, tag = 'scoped memory for tpu_custom_call.1']
    #allocation8 [shape = 'u8[262144]{0}', space=vmem, size = 0x40000, scoped, tag = 'input window, operand 2, single buffered']
    #allocation9 [shape = 'u8[262144]{0}', space=vmem, size = 0x40000, scoped, tag = 'input window, operand 4, single buffered']
    #allocation10 [shape = 's32[1]{0}', space=sflag, size = 0x4, scoped, tag = 'scoped memory for tpu_custom_call.1']
    #allocation11 [shape = 'u8[262144]{0}', space=vmem, size = 0x40000, scoped, tag = 'input window, operand 5, single buffered']
    #allocation12 [shape = 'u8[262144]{0}', space=vmem, size = 0x40000, scoped, tag = 'input window, operand 7, single buffered']
    #allocation13 [shape = 's32[1]{0}', space=sflag, size = 0x4, scoped, tag = 'scoped memory for tpu_custom_call.1']
    #allocation14 [shape = 'u8[4096]{0}', space=vmem, size = 0x1000, scoped, tag = 'output window, operand 0, single buffered']
    %18 = vsyncpa [#allocation4], 0
    %19 = vsyncpa [#allocation7], 0
    %20 = vsyncpa [#allocation10], 0
    %21 = vsyncpa [#allocation13], 0
    %22 = vsyncpa [#allocation5], 0
    // Predicated region
    $region2: #{tpu_custom_call.1} parent=1 // pred_check
      _
    $region3: #{tpu_custom_call.1} parent=1 // pred_check_branch
      %24 = sbr.rel (0) target = $region5
    $region4: #{tpu_custom_call.1} parent=1 // pred_region
      %s26 = ssub.s32 128, 128
      %27 = vsyncadd [#allocation4], %s26
      %s29 = sshll.u32 [#allocation3], 4
      %s30 = int_to_ptr.vmem [resolvable:$true] %s29
      %32 = dma.hbm_to_vmem [thread:$0]  %s0, 128, %s30, [#allocation4]
    $region5: #{tpu_custom_call.1} parent=1 // pred_fallthru
      _
    // Predicated region
    $region6: #{tpu_custom_call.1} parent=1 // pred_check
      _
    $region7: #{tpu_custom_call.1} parent=1 // pred_check_branch
      %34 = sbr.rel (0) target = $region9
    $region8: #{tpu_custom_call.1} parent=1 // pred_region
      %s36 = ssub.s32 64, 64
      %37 = vsyncadd [#allocation7], %s36
      %s39 = sshll.u32 [#allocation6], 4
      %s40 = int_to_ptr.vmem [resolvable:$true] %s39
      %42 = dma.hbm_to_vmem [thread:$0]  %s1, 64, %s40, [#allocation7]
    $region9: #{tpu_custom_call.1} parent=1 // pred_fallthru
      _
    // Predicated region
    $region10: #{tpu_custom_call.1} parent=1 // pred_check
      _
    $region11: #{tpu_custom_call.1} parent=1 // pred_check_branch
      %44 = sbr.rel (0) target = $region13
    $region12: #{tpu_custom_call.1} parent=1 // pred_region
      %s46 = ssub.s32 8192, 8192
      %47 = vsyncadd [#allocation7], %s46
      %s48 = sshll.u32 [#allocation8], 4
      %s49 = int_to_ptr.vmem [resolvable:$true] %s48
      %54 = dma.hbm_to_vmem [thread:$0]  %s2, 8192, %s49, [#allocation7], 512, 512, 32
    $region13: #{tpu_custom_call.1} parent=1 // pred_fallthru
      _
    // Predicated region
    $region14: #{tpu_custom_call.1} parent=1 // pred_check
      _
    $region15: #{tpu_custom_call.1} parent=1 // pred_check_branch
      %56 = sbr.rel (0) target = $region17
    $region16: #{tpu_custom_call.1} parent=1 // pred_region
      _
    $region17: #{tpu_custom_call.1} parent=1 // pred_fallthru
      _
    // Predicated region
    $region18: #{tpu_custom_call.1} parent=1 // pred_check
      _
    $region19: #{tpu_custom_call.1} parent=1 // pred_check_branch
      %58 = sbr.rel (0) target = $region21
    $region20: #{tpu_custom_call.1} parent=1 // pred_region
      %s60 = ssub.s32 8192, 8192
      %61 = vsyncadd [#allocation10], %s60
      %s62 = sshll.u32 [#allocation9], 4
      %s63 = int_to_ptr.vmem [resolvable:$true] %s62
      %68 = dma.hbm_to_vmem [thread:$0]  %s4, 8192, %s63, [#allocation10], 512, 512, 32
    $region21: #{tpu_custom_call.1} parent=1 // pred_fallthru
      _
    // Predicated region
    $region22: #{tpu_custom_call.1} parent=1 // pred_check
      _
    $region23: #{tpu_custom_call.1} parent=1 // pred_check_branch
      %70 = sbr.rel (0) target = $region25
    $region24: #{tpu_custom_call.1} parent=1 // pred_region
      %s72 = ssub.s32 8192, 8192
      %73 = vsyncadd [#allocation10], %s72
      %s74 = sshll.u32 [#allocation11], 4
      %s75 = int_to_ptr.vmem [resolvable:$true] %s74
      %80 = dma.hbm_to_vmem [thread:$0]  %s5, 8192, %s75, [#allocation10], 512, 512, 32
    $region25: #{tpu_custom_call.1} parent=1 // pred_fallthru
      _
    // Predicated region
    $region26: #{tpu_custom_call.1} parent=1 // pred_check
      _
    $region27: #{tpu_custom_call.1} parent=1 // pred_check_branch
      %82 = sbr.rel (0) target = $region29
    $region28: #{tpu_custom_call.1} parent=1 // pred_region
      _
    $region29: #{tpu_custom_call.1} parent=1 // pred_fallthru
      _
    // Predicated region
    $region30: #{tpu_custom_call.1} parent=1 // pred_check
      _
    $region31: #{tpu_custom_call.1} parent=1 // pred_check_branch
      %84 = sbr.rel (0) target = $region33
    $region32: #{tpu_custom_call.1} parent=1 // pred_region
      %s86 = ssub.s32 8192, 8192
      %87 = vsyncadd [#allocation13], %s86
      %s88 = sshll.u32 [#allocation12], 4
      %s89 = int_to_ptr.vmem [resolvable:$true] %s88
      %94 = dma.hbm_to_vmem [thread:$0]  %s7, 8192, %s89, [#allocation13], 512, 512, 32
    $region33: #{tpu_custom_call.1} parent=1 // pred_fallthru
      _
    // Predicated region
    $region34: #{tpu_custom_call.1} parent=1 // pred_check
      _
    $region35: #{tpu_custom_call.1} parent=1 // pred_check_branch
      %96 = sbr.rel (0) target = $region37
    $region36: #{tpu_custom_call.1} parent=1 // pred_region
      _
    $region37: #{tpu_custom_call.1} parent=1 // pred_fallthru
      _
    // Predicated region
    $region38: #{tpu_custom_call.1} parent=1 // pred_check
      _
    $region39: #{tpu_custom_call.1} parent=1 // pred_check_branch
      %98 = sbr.rel (0) target = $region41
    $region40: #{tpu_custom_call.1} parent=1 // pred_region
      _
    $region41: #{tpu_custom_call.1} parent=1 // pred_fallthru
      _
    // Predicated region
    $region42: #{tpu_custom_call.1} parent=1 // pred_check
      _
    $region43: #{tpu_custom_call.1} parent=1 // pred_check_branch
      %100 = sbr.rel (0) target = $region45
    $region44: #{tpu_custom_call.1} parent=1 // pred_region
      _
    $region45: #{tpu_custom_call.1} parent=1 // pred_fallthru
      _
    // Predicated region
    $region46: #{tpu_custom_call.1} parent=1 // pred_check
      _
    $region47: #{tpu_custom_call.1} parent=1 // pred_check_branch
      %102 = sbr.rel (0) target = $region49
    $region48: #{tpu_custom_call.1} parent=1 // pred_region
      %103 = dma.done [#allocation4], 128
    $region49: #{tpu_custom_call.1} parent=1 // pred_fallthru
      _
    // Predicated region
    $region50: #{tpu_custom_call.1} parent=1 // pred_check
      _
    $region51: #{tpu_custom_call.1} parent=1 // pred_check_branch
      %105 = sbr.rel (0) target = $region53
    $region52: #{tpu_custom_call.1} parent=1 // pred_region
      %106 = dma.done [#allocation7], 64
    $region53: #{tpu_custom_call.1} parent=1 // pred_fallthru
      _
    // Predicated region
    $region54: #{tpu_custom_call.1} parent=1 // pred_check
      _
    $region55: #{tpu_custom_call.1} parent=1 // pred_check_branch
      %108 = sbr.rel (0) target = $region57
    $region56: #{tpu_custom_call.1} parent=1 // pred_region
      %109 = dma.done [#allocation7], 8192
    $region57: #{tpu_custom_call.1} parent=1 // pred_fallthru
      _
    // Predicated region
    $region58: #{tpu_custom_call.1} parent=1 // pred_check
      _
    $region59: #{tpu_custom_call.1} parent=1 // pred_check_branch
      %111 = sbr.rel (0) target = $region61
    $region60: #{tpu_custom_call.1} parent=1 // pred_region
      %112 = dma.done [#allocation10], 8192
    $region61: #{tpu_custom_call.1} parent=1 // pred_fallthru
      _
    // Predicated region
    $region62: #{tpu_custom_call.1} parent=1 // pred_check
      _
    $region63: #{tpu_custom_call.1} parent=1 // pred_check_branch
      %114 = sbr.rel (0) target = $region65
    $region64: #{tpu_custom_call.1} parent=1 // pred_region
      %115 = dma.done [#allocation10], 8192
    $region65: #{tpu_custom_call.1} parent=1 // pred_fallthru
      _
    // Predicated region
    $region66: #{tpu_custom_call.1} parent=1 // pred_check
      _
    $region67: #{tpu_custom_call.1} parent=1 // pred_check_branch
      %117 = sbr.rel (0) target = $region69
    $region68: #{tpu_custom_call.1} parent=1 // pred_region
      %118 = dma.done [#allocation13], 8192
    $region69: #{tpu_custom_call.1} parent=1 // pred_fallthru
      _
    %v119 = vld [vmem:[#allocation8] sm:$0xff]
    %v120 = vld [vmem:[#allocation8 + $0x8] sm:$0xff]
    %v121 = vld [vmem:[#allocation8 + $0x10] sm:$0xff]
    %v122 = vld [vmem:[#allocation8 + $0x18] sm:$0xff]
    %v123 = vld [vmem:[#allocation8 + $0x20] sm:$0xff]
    %v124 = vld [vmem:[#allocation8 + $0x28] sm:$0xff]
    %v125 = vld [vmem:[#allocation8 + $0x30] sm:$0xff]
    %v126 = vld [vmem:[#allocation8 + $0x38] sm:$0xff]
    %v127 = vld [vmem:[#allocation8 + $0x40] sm:$0xff]
    %v128 = vld [vmem:[#allocation8 + $0x48] sm:$0xff]
    %v129 = vld [vmem:[#allocation8 + $0x50] sm:$0xff]
    %v130 = vld [vmem:[#allocation8 + $0x58] sm:$0xff]
    %v131 = vld [vmem:[#allocation8 + $0x60] sm:$0xff]
    %v132 = vld [vmem:[#allocation8 + $0x68] sm:$0xff]
    %v133 = vld [vmem:[#allocation8 + $0x70] sm:$0xff]
    %v134 = vld [vmem:[#allocation8 + $0x78] sm:$0xff]
    %v135 = vld [vmem:[#allocation8 + $0x80] sm:$0xff]
    %v136 = vld [vmem:[#allocation8 + $0x88] sm:$0xff]
    %v137 = vld [vmem:[#allocation8 + $0x90] sm:$0xff]
    %v138 = vld [vmem:[#allocation8 + $0x98] sm:$0xff]
    %v139 = vld [vmem:[#allocation8 + $0xa0] sm:$0xff]
    %v140 = vld [vmem:[#allocation8 + $0xa8] sm:$0xff]
    %v141 = vld [vmem:[#allocation8 + $0xb0] sm:$0xff]
    %v142 = vld [vmem:[#allocation8 + $0xb8] sm:$0xff]
    %v143 = vld [vmem:[#allocation8 + $0xc0] sm:$0xff]
    %v144 = vld [vmem:[#allocation8 + $0xc8] sm:$0xff]
    %v145 = vld [vmem:[#allocation8 + $0xd0] sm:$0xff]
    %v146 = vld [vmem:[#allocation8 + $0xd8] sm:$0xff]
    %v147 = vld [vmem:[#allocation8 + $0xe0] sm:$0xff]
    %v148 = vld [vmem:[#allocation8 + $0xe8] sm:$0xff]
    %v149 = vld [vmem:[#allocation8 + $0xf0] sm:$0xff]
    %v150 = vld [vmem:[#allocation8 + $0xf8] sm:$0xff]
    %v151 = vld [vmem:[#allocation8 + $0x100] sm:$0xff]
    %v152 = vld [vmem:[#allocation8 + $0x108] sm:$0xff]
    %v153 = vld [vmem:[#allocation8 + $0x110] sm:$0xff]
    %v154 = vld [vmem:[#allocation8 + $0x118] sm:$0xff]
    %v155 = vld [vmem:[#allocation8 + $0x120] sm:$0xff]
    %v156 = vld [vmem:[#allocation8 + $0x128] sm:$0xff]
    %v157 = vld [vmem:[#allocation8 + $0x130] sm:$0xff]
    %v158 = vld [vmem:[#allocation8 + $0x138] sm:$0xff]
    %v159 = vld [vmem:[#allocation8 + $0x140] sm:$0xff]
    %v160 = vld [vmem:[#allocation8 + $0x148] sm:$0xff]
    %v161 = vld [vmem:[#allocation8 + $0x150] sm:$0xff]
    %v162 = vld [vmem:[#allocation8 + $0x158] sm:$0xff]
    %v163 = vld [vmem:[#allocation8 + $0x160] sm:$0xff]
    %v164 = vld [vmem:[#allocation8 + $0x168] sm:$0xff]
    %v165 = vld [vmem:[#allocation8 + $0x170] sm:$0xff]
    %v166 = vld [vmem:[#allocation8 + $0x178] sm:$0xff]
    %v167 = vld [vmem:[#allocation8 + $0x180] sm:$0xff]
    %v168 = vld [vmem:[#allocation8 + $0x188] sm:$0xff]
    %v169 = vld [vmem:[#allocation8 + $0x190] sm:$0xff]
    %v170 = vld [vmem:[#allocation8 + $0x198] sm:$0xff]
    %v171 = vld [vmem:[#allocation8 + $0x1a0] sm:$0xff]
    %v172 = vld [vmem:[#allocation8 + $0x1a8] sm:$0xff]
    %v173 = vld [vmem:[#allocation8 + $0x1b0] sm:$0xff]
    %v174 = vld [vmem:[#allocation8 + $0x1b8] sm:$0xff]
    %v175 = vld [vmem:[#allocation8 + $0x1c0] sm:$0xff]
    %v176 = vld [vmem:[#allocation8 + $0x1c8] sm:$0xff]
    %v177 = vld [vmem:[#allocation8 + $0x1d0] sm:$0xff]
    %v178 = vld [vmem:[#allocation8 + $0x1d8] sm:$0xff]
    %v179 = vld [vmem:[#allocation8 + $0x1e0] sm:$0xff]
    %v180 = vld [vmem:[#allocation8 + $0x1e8] sm:$0xff]
    %v181 = vld [vmem:[#allocation8 + $0x1f0] sm:$0xff]
    %v182 = vld [vmem:[#allocation8 + $0x1f8] sm:$0xff]
    %v183 = vld [vmem:[#allocation9] sm:$0xff]
    %v184 = vld [vmem:[#allocation9 + $0x8] sm:$0xff]
    %v185 = vld [vmem:[#allocation9 + $0x10] sm:$0xff]
    %v186 = vld [vmem:[#allocation9 + $0x18] sm:$0xff]
    %v187 = vld [vmem:[#allocation9 + $0x20] sm:$0xff]
    %v188 = vld [vmem:[#allocation9 + $0x28] sm:$0xff]
    %v189 = vld [vmem:[#allocation9 + $0x30] sm:$0xff]
    %v190 = vld [vmem:[#allocation9 + $0x38] sm:$0xff]
    %v191 = vld [vmem:[#allocation9 + $0x40] sm:$0xff]
    %v192 = vld [vmem:[#allocation9 + $0x48] sm:$0xff]
    %v193 = vld [vmem:[#allocation9 + $0x50] sm:$0xff]
    %v194 = vld [vmem:[#allocation9 + $0x58] sm:$0xff]
    %v195 = vld [vmem:[#allocation9 + $0x60] sm:$0xff]
    %v196 = vld [vmem:[#allocation9 + $0x68] sm:$0xff]
    %v197 = vld [vmem:[#allocation9 + $0x70] sm:$0xff]
    %v198 = vld [vmem:[#allocation9 + $0x78] sm:$0xff]
    %v199 = vld [vmem:[#allocation9 + $0x80] sm:$0xff]
    %v200 = vld [vmem:[#allocation9 + $0x88] sm:$0xff]
    %v201 = vld [vmem:[#allocation9 + $0x90] sm:$0xff]
    %v202 = vld [vmem:[#allocation9 + $0x98] sm:$0xff]
    %v203 = vld [vmem:[#allocation9 + $0xa0] sm:$0xff]
    %v204 = vld [vmem:[#allocation9 + $0xa8] sm:$0xff]
    %v205 = vld [vmem:[#allocation9 + $0xb0] sm:$0xff]
    %v206 = vld [vmem:[#allocation9 + $0xb8] sm:$0xff]
    %v207 = vld [vmem:[#allocation9 + $0xc0] sm:$0xff]
    %v208 = vld [vmem:[#allocation9 + $0xc8] sm:$0xff]
    %v209 = vld [vmem:[#allocation9 + $0xd0] sm:$0xff]
    %v210 = vld [vmem:[#allocation9 + $0xd8] sm:$0xff]
    %v211 = vld [vmem:[#allocation9 + $0xe0] sm:$0xff]
    %v212 = vld [vmem:[#allocation9 + $0xe8] sm:$0xff]
    %v213 = vld [vmem:[#allocation9 + $0xf0] sm:$0xff]
    %v214 = vld [vmem:[#allocation9 + $0xf8] sm:$0xff]
    %v215 = vld [vmem:[#allocation9 + $0x100] sm:$0xff]
    %v216 = vld [vmem:[#allocation9 + $0x108] sm:$0xff]
    %v217 = vld [vmem:[#allocation9 + $0x110] sm:$0xff]
    %v218 = vld [vmem:[#allocation9 + $0x118] sm:$0xff]
    %v219 = vld [vmem:[#allocation9 + $0x120] sm:$0xff]
    %v220 = vld [vmem:[#allocation9 + $0x128] sm:$0xff]
    %v221 = vld [vmem:[#allocation9 + $0x130] sm:$0xff]
    %v222 = vld [vmem:[#allocation9 + $0x138] sm:$0xff]
    %v223 = vld [vmem:[#allocation9 + $0x140] sm:$0xff]
    %v224 = vld [vmem:[#allocation9 + $0x148] sm:$0xff]
    %v225 = vld [vmem:[#allocation9 + $0x150] sm:$0xff]
    %v226 = vld [vmem:[#allocation9 + $0x158] sm:$0xff]
    %v227 = vld [vmem:[#allocation9 + $0x160] sm:$0xff]
    %v228 = vld [vmem:[#allocation9 + $0x168] sm:$0xff]
    %v229 = vld [vmem:[#allocation9 + $0x170] sm:$0xff]
    %v230 = vld [vmem:[#allocation9 + $0x178] sm:$0xff]
    %v231 = vld [vmem:[#allocation9 + $0x180] sm:$0xff]
    %v232 = vld [vmem:[#allocation9 + $0x188] sm:$0xff]
    %v233 = vld [vmem:[#allocation9 + $0x190] sm:$0xff]
    %v234 = vld [vmem:[#allocation9 + $0x198] sm:$0xff]
    %v235 = vld [vmem:[#allocation9 + $0x1a0] sm:$0xff]
    %v236 = vld [vmem:[#allocation9 + $0x1a8] sm:$0xff]
    %v237 = vld [vmem:[#allocation9 + $0x1b0] sm:$0xff]
    %v238 = vld [vmem:[#allocation9 + $0x1b8] sm:$0xff]
    %v239 = vld [vmem:[#allocation9 + $0x1c0] sm:$0xff]
    %v240 = vld [vmem:[#allocation9 + $0x1c8] sm:$0xff]
    %v241 = vld [vmem:[#allocation9 + $0x1d0] sm:$0xff]
    %v242 = vld [vmem:[#allocation9 + $0x1d8] sm:$0xff]
    %v243 = vld [vmem:[#allocation9 + $0x1e0] sm:$0xff]
    %v244 = vld [vmem:[#allocation9 + $0x1e8] sm:$0xff]
    %v245 = vld [vmem:[#allocation9 + $0x1f0] sm:$0xff]
    %v246 = vld [vmem:[#allocation9 + $0x1f8] sm:$0xff]
    %v247 = vld [vmem:[#allocation11] sm:$0xff]
    %v248 = vld [vmem:[#allocation11 + $0x8] sm:$0xff]
    %v249 = vld [vmem:[#allocation11 + $0x10] sm:$0xff]
    %v250 = vld [vmem:[#allocation11 + $0x18] sm:$0xff]
    %v251 = vld [vmem:[#allocation11 + $0x20] sm:$0xff]
    %v252 = vld [vmem:[#allocation11 + $0x28] sm:$0xff]
    %v253 = vld [vmem:[#allocation11 + $0x30] sm:$0xff]
    %v254 = vld [vmem:[#allocation11 + $0x38] sm:$0xff]
    %v255 = vld [vmem:[#allocation11 + $0x40] sm:$0xff]
    %v256 = vld [vmem:[#allocation11 + $0x48] sm:$0xff]
    %v257 = vld [vmem:[#allocation11 + $0x50] sm:$0xff]
    %v258 = vld [vmem:[#allocation11 + $0x58] sm:$0xff]
    %v259 = vld [vmem:[#allocation11 + $0x60] sm:$0xff]
    %v260 = vld [vmem:[#allocation11 + $0x68] sm:$0xff]
    %v261 = vld [vmem:[#allocation11 + $0x70] sm:$0xff]
    %v262 = vld [vmem:[#allocation11 + $0x78] sm:$0xff]
    %v263 = vld [vmem:[#allocation11 + $0x80] sm:$0xff]
    %v264 = vld [vmem:[#allocation11 + $0x88] sm:$0xff]
    %v265 = vld [vmem:[#allocation11 + $0x90] sm:$0xff]
    %v266 = vld [vmem:[#allocation11 + $0x98] sm:$0xff]
    %v267 = vld [vmem:[#allocation11 + $0xa0] sm:$0xff]
    %v268 = vld [vmem:[#allocation11 + $0xa8] sm:$0xff]
    %v269 = vld [vmem:[#allocation11 + $0xb0] sm:$0xff]
    %v270 = vld [vmem:[#allocation11 + $0xb8] sm:$0xff]
    %v271 = vld [vmem:[#allocation11 + $0xc0] sm:$0xff]
    %v272 = vld [vmem:[#allocation11 + $0xc8] sm:$0xff]
    %v273 = vld [vmem:[#allocation11 + $0xd0] sm:$0xff]
    %v274 = vld [vmem:[#allocation11 + $0xd8] sm:$0xff]
    %v275 = vld [vmem:[#allocation11 + $0xe0] sm:$0xff]
    %v276 = vld [vmem:[#allocation11 + $0xe8] sm:$0xff]
    %v277 = vld [vmem:[#allocation11 + $0xf0] sm:$0xff]
    %v278 = vld [vmem:[#allocation11 + $0xf8] sm:$0xff]
    %v279 = vld [vmem:[#allocation11 + $0x100] sm:$0xff]
    %v280 = vld [vmem:[#allocation11 + $0x108] sm:$0xff]
    %v281 = vld [vmem:[#allocation11 + $0x110] sm:$0xff]
    %v282 = vld [vmem:[#allocation11 + $0x118] sm:$0xff]
    %v283 = vld [vmem:[#allocation11 + $0x120] sm:$0xff]
    %v284 = vld [vmem:[#allocation11 + $0x128] sm:$0xff]
    %v285 = vld [vmem:[#allocation11 + $0x130] sm:$0xff]
    %v286 = vld [vmem:[#allocation11 + $0x138] sm:$0xff]
    %v287 = vld [vmem:[#allocation11 + $0x140] sm:$0xff]
    %v288 = vld [vmem:[#allocation11 + $0x148] sm:$0xff]
    %v289 = vld [vmem:[#allocation11 + $0x150] sm:$0xff]
    %v290 = vld [vmem:[#allocation11 + $0x158] sm:$0xff]
    %v291 = vld [vmem:[#allocation11 + $0x160] sm:$0xff]
    %v292 = vld [vmem:[#allocation11 + $0x168] sm:$0xff]
    %v293 = vld [vmem:[#allocation11 + $0x170] sm:$0xff]
    %v294 = vld [vmem:[#allocation11 + $0x178] sm:$0xff]
    %v295 = vld [vmem:[#allocation11 + $0x180] sm:$0xff]
    %v296 = vld [vmem:[#allocation11 + $0x188] sm:$0xff]
    %v297 = vld [vmem:[#allocation11 + $0x190] sm:$0xff]
    %v298 = vld [vmem:[#allocation11 + $0x198] sm:$0xff]
    %v299 = vld [vmem:[#allocation11 + $0x1a0] sm:$0xff]
    %v300 = vld [vmem:[#allocation11 + $0x1a8] sm:$0xff]
    %v301 = vld [vmem:[#allocation11 + $0x1b0] sm:$0xff]
    %v302 = vld [vmem:[#allocation11 + $0x1b8] sm:$0xff]
    %v303 = vld [vmem:[#allocation11 + $0x1c0] sm:$0xff]
    %v304 = vld [vmem:[#allocation11 + $0x1c8] sm:$0xff]
    %v305 = vld [vmem:[#allocation11 + $0x1d0] sm:$0xff]
    %v306 = vld [vmem:[#allocation11 + $0x1d8] sm:$0xff]
    %v307 = vld [vmem:[#allocation11 + $0x1e0] sm:$0xff]
    %v308 = vld [vmem:[#allocation11 + $0x1e8] sm:$0xff]
    %v309 = vld [vmem:[#allocation11 + $0x1f0] sm:$0xff]
    %v310 = vld [vmem:[#allocation11 + $0x1f8] sm:$0xff]
    %v311 = vld [vmem:[#allocation12] sm:$0xff]
    %v312 = vld [vmem:[#allocation12 + $0x8] sm:$0xff]
    %v313 = vld [vmem:[#allocation12 + $0x10] sm:$0xff]
    %v314 = vld [vmem:[#allocation12 + $0x18] sm:$0xff]
    %v315 = vld [vmem:[#allocation12 + $0x20] sm:$0xff]
    %v316 = vld [vmem:[#allocation12 + $0x28] sm:$0xff]
    %v317 = vld [vmem:[#allocation12 + $0x30] sm:$0xff]
    %v318 = vld [vmem:[#allocation12 + $0x38] sm:$0xff]
    %v319 = vld [vmem:[#allocation12 + $0x40] sm:$0xff]
    %v320 = vld [vmem:[#allocation12 + $0x48] sm:$0xff]
    %v321 = vld [vmem:[#allocation12 + $0x50] sm:$0xff]
    %v322 = vld [vmem:[#allocation12 + $0x58] sm:$0xff]
    %v323 = vld [vmem:[#allocation12 + $0x60] sm:$0xff]
    %v324 = vld [vmem:[#allocation12 + $0x68] sm:$0xff]
    %v325 = vld [vmem:[#allocation12 + $0x70] sm:$0xff]
    %v326 = vld [vmem:[#allocation12 + $0x78] sm:$0xff]
    %v327 = vld [vmem:[#allocation12 + $0x80] sm:$0xff]
    %v328 = vld [vmem:[#allocation12 + $0x88] sm:$0xff]
    %v329 = vld [vmem:[#allocation12 + $0x90] sm:$0xff]
    %v330 = vld [vmem:[#allocation12 + $0x98] sm:$0xff]
    %v331 = vld [vmem:[#allocation12 + $0xa0] sm:$0xff]
    %v332 = vld [vmem:[#allocation12 + $0xa8] sm:$0xff]
    %v333 = vld [vmem:[#allocation12 + $0xb0] sm:$0xff]
    %v334 = vld [vmem:[#allocation12 + $0xb8] sm:$0xff]
    %v335 = vld [vmem:[#allocation12 + $0xc0] sm:$0xff]
    %v336 = vld [vmem:[#allocation12 + $0xc8] sm:$0xff]
    %v337 = vld [vmem:[#allocation12 + $0xd0] sm:$0xff]
    %v338 = vld [vmem:[#allocation12 + $0xd8] sm:$0xff]
    %v339 = vld [vmem:[#allocation12 + $0xe0] sm:$0xff]
    %v340 = vld [vmem:[#allocation12 + $0xe8] sm:$0xff]
    %v341 = vld [vmem:[#allocation12 + $0xf0] sm:$0xff]
    %v342 = vld [vmem:[#allocation12 + $0xf8] sm:$0xff]
    %v343 = vld [vmem:[#allocation12 + $0x100] sm:$0xff]
    %v344 = vld [vmem:[#allocation12 + $0x108] sm:$0xff]
    %v345 = vld [vmem:[#allocation12 + $0x110] sm:$0xff]
    %v346 = vld [vmem:[#allocation12 + $0x118] sm:$0xff]
    %v347 = vld [vmem:[#allocation12 + $0x120] sm:$0xff]
    %v348 = vld [vmem:[#allocation12 + $0x128] sm:$0xff]
    %v349 = vld [vmem:[#allocation12 + $0x130] sm:$0xff]
    %v350 = vld [vmem:[#allocation12 + $0x138] sm:$0xff]
    %v351 = vld [vmem:[#allocation12 + $0x140] sm:$0xff]
    %v352 = vld [vmem:[#allocation12 + $0x148] sm:$0xff]
    %v353 = vld [vmem:[#allocation12 + $0x150] sm:$0xff]
    %v354 = vld [vmem:[#allocation12 + $0x158] sm:$0xff]
    %v355 = vld [vmem:[#allocation12 + $0x160] sm:$0xff]
    %v356 = vld [vmem:[#allocation12 + $0x168] sm:$0xff]
    %v357 = vld [vmem:[#allocation12 + $0x170] sm:$0xff]
    %v358 = vld [vmem:[#allocation12 + $0x178] sm:$0xff]
    %v359 = vld [vmem:[#allocation12 + $0x180] sm:$0xff]
    %v360 = vld [vmem:[#allocation12 + $0x188] sm:$0xff]
    %v361 = vld [vmem:[#allocation12 + $0x190] sm:$0xff]
    %v362 = vld [vmem:[#allocation12 + $0x198] sm:$0xff]
    %v363 = vld [vmem:[#allocation12 + $0x1a0] sm:$0xff]
    %v364 = vld [vmem:[#allocation12 + $0x1a8] sm:$0xff]
    %v365 = vld [vmem:[#allocation12 + $0x1b0] sm:$0xff]
    %v366 = vld [vmem:[#allocation12 + $0x1b8] sm:$0xff]
    %v367 = vld [vmem:[#allocation12 + $0x1c0] sm:$0xff]
    %v368 = vld [vmem:[#allocation12 + $0x1c8] sm:$0xff]
    %v369 = vld [vmem:[#allocation12 + $0x1d0] sm:$0xff]
    %v370 = vld [vmem:[#allocation12 + $0x1d8] sm:$0xff]
    %v371 = vld [vmem:[#allocation12 + $0x1e0] sm:$0xff]
    %v372 = vld [vmem:[#allocation12 + $0x1e8] sm:$0xff]
    %v373 = vld [vmem:[#allocation12 + $0x1f0] sm:$0xff]
    %v374 = vld [vmem:[#allocation12 + $0x1f8] sm:$0xff]
    %v375 = vld [vmem:[%s3] sm:$0xf]
    %v377 = vlaneseq
    %v378 = vshrl.u32 %v377, 7
    %v379 = vsub.s32 0, %v378
    %v380 = vrot.slane %v375, %v379
    %v381 = vlaneseq
    %v382 = vshrl.u32 %v381, 7
    %v383 = vsub.s32 1, %v382
    %v384 = vrot.slane %v375, %v383
    %v385 = vlaneseq
    %v386 = vshrl.u32 %v385, 7
    %v387 = vsub.s32 2, %v386
    %v388 = vrot.slane %v375, %v387
    %v389 = vlaneseq
    %v390 = vshrl.u32 %v389, 7
    %v391 = vsub.s32 3, %v390
    %v392 = vrot.slane %v375, %v391
    %v397 = vld [vmem:[%s6] sm:$0xf]
    %v399 = vlaneseq
    %v400 = vshrl.u32 %v399, 7
    %v401 = vsub.s32 0, %v400
    %v402 = vrot.slane %v397, %v401
    %v403 = vlaneseq
    %v404 = vshrl.u32 %v403, 7
    %v405 = vsub.s32 1, %v404
    %v406 = vrot.slane %v397, %v405
    %v407 = vlaneseq
    %v408 = vshrl.u32 %v407, 7
    %v409 = vsub.s32 2, %v408
    %v410 = vrot.slane %v397, %v409
    %v411 = vlaneseq
    %v412 = vshrl.u32 %v411, 7
    %v413 = vsub.s32 3, %v412
    %v414 = vrot.slane %v397, %v413
    %v419 = vld [vmem:[%s8] sm:$0xf]
    %v421 = vlaneseq
    %v422 = vshrl.u32 %v421, 7
    %v423 = vsub.s32 0, %v422
    %v424 = vrot.slane %v419, %v423
    %v425 = vlaneseq
    %v426 = vshrl.u32 %v425, 7
    %v427 = vsub.s32 1, %v426
    %v428 = vrot.slane %v419, %v427
    %v429 = vlaneseq
    %v430 = vshrl.u32 %v429, 7
    %v431 = vsub.s32 2, %v430
    %v432 = vrot.slane %v419, %v431
    %v433 = vlaneseq
    %v434 = vshrl.u32 %v433, 7
    %v435 = vsub.s32 3, %v434
    %v436 = vrot.slane %v419, %v435
    %v441 = vld [vmem:[%s9] sm:$0x1]
    %v443 = vlaneseq
    %v444 = vshrl.u32 %v443, 7
    %v445 = vsub.s32 0, %v444
    %v446 = vrot.slane %v441, %v445
    %v448 = vld [vmem:[#allocation2] sm:$0x1]
    %v450 = vlaneseq
    %v451 = vshrl.u32 %v450, 7
    %v452 = vsub.s32 0, %v451
    %v453 = vrot.slane %v448, %v452
    %v455 = vld [vmem:[#allocation6] sm:$0xf]
    %456 = vst [vmem:[#allocation14] sm:$0xff] 0.0
    %v457 = vld [vmem:[#allocation3] sm:$0xff]
    %459 = vset.pattern.permute.xlu0 0
    %460 = vperm.xlu0 %459, %v457
    %v461 = vpop.permute.xlu0 %460
    %v464 = vlaneseq
    %v465 = vshrl.u32 %v464, 7
    %v466 = vsub.s32 0, %v465
    %v467 = vrot.slane %v455, %v466
    %v468 = vlaneseq
    %v469 = vshrl.u32 %v468, 7
    %v470 = vsub.s32 1, %v469
    %v471 = vrot.slane %v455, %v470
    %v472 = vlaneseq
    %v473 = vshrl.u32 %v472, 7
    %v474 = vsub.s32 2, %v473
    %v475 = vrot.slane %v455, %v474
    %v476 = vlaneseq
    %v477 = vshrl.u32 %v476, 7
    %v478 = vsub.s32 3, %v477
    %v479 = vrot.slane %v455, %v478
    %v484 = vmul.f32 %v461, %v467
    %v485 = vmul.f32 %v461, %v471
    %v486 = vmul.f32 %v461, %v475
    %v487 = vmul.f32 %v461, %v479
    %v488 = vadd.f32 %v484, %v380
    %v489 = vadd.f32 %v485, %v384
    %v490 = vadd.f32 %v486, %v388
    %v491 = vadd.f32 %v487, %v392
    %492 = vmatprep.subr.mxu0 %v180
    %493 = vmatpush1.msra.mxu0 %v179
    %494 = vmatprep.subr.mxu0 %v176
    %495 = vmatpush1.msra.mxu0 %v175
    %496 = vmatprep.subr.mxu0 %v172
    %497 = vmatpush1.msra.mxu0 %v171
    %498 = vmatprep.subr.mxu0 %v168
    %499 = vmatpush1.msra.mxu0 %v167
    %500 = vmatprep.subr.mxu0 %v164
    %501 = vmatpush1.msra.mxu0 %v163
    %502 = vmatprep.subr.mxu0 %v160
    %503 = vmatpush1.msra.mxu0 %v159
    %504 = vmatprep.subr.mxu0 %v156
    %505 = vmatpush1.msra.mxu0 %v155
    %506 = vmatprep.subr.mxu0 %v152
    %507 = vmatpush1.msra.mxu0 %v151
    %508 = vmatprep.subr.mxu0 %v148
    %509 = vmatpush1.msra.mxu0 %v147
    %510 = vmatprep.subr.mxu0 %v144
    %511 = vmatpush1.msra.mxu0 %v143
    %512 = vmatprep.subr.mxu0 %v140
    %513 = vmatpush1.msra.mxu0 %v139
    %514 = vmatprep.subr.mxu0 %v136
    %515 = vmatpush1.msra.mxu0 %v135
    %516 = vmatprep.subr.mxu0 %v132
    %517 = vmatpush1.msra.mxu0 %v131
    %518 = vmatprep.subr.mxu0 %v128
    %519 = vmatpush1.msra.mxu0 %v127
    %520 = vmatprep.subr.mxu0 %v124
    %521 = vmatpush1.msra.mxu0 %v123
    %522 = vmatprep.subr.mxu0 %v120
    %523 = vmatpush1.msra.mxu0 %v119
    %524 = vmatprep.subr.mxu0 0.0
    %525 = vmatpush2.msra.mxu0 0.0
    %526 = vmatprep.subr.mxu0 0.0
    %527 = vmatpush2.msra.mxu0 0.0
    %528 = vmatprep.subr.mxu0 0.0
    %529 = vmatpush2.msra.mxu0 0.0
    %530 = vmatprep.subr.mxu0 0.0
    %531 = vmatpush2.msra.mxu0 0.0
    %532 = vmatprep.subr.mxu0 0.0
    %533 = vmatpush2.msra.mxu0 0.0
    %534 = vmatprep.subr.mxu0 0.0
    %535 = vmatpush2.msra.mxu0 0.0
    %536 = vmatprep.subr.mxu0 0.0
    %537 = vmatpush2.msra.mxu0 0.0
    %538 = vmatprep.subr.mxu0 0.0
    %539 = vmatpush2.msra.mxu0 0.0
    %540 = vmatprep.subr.mxu0 0.0
    %541 = vmatpush2.msra.mxu0 0.0
    %542 = vmatprep.subr.mxu0 0.0
    %543 = vmatpush2.msra.mxu0 0.0
    %544 = vmatprep.subr.mxu0 0.0
    %545 = vmatpush2.msra.mxu0 0.0
    %546 = vmatprep.subr.mxu0 0.0
    %547 = vmatpush2.msra.mxu0 0.0
    %548 = vmatprep.subr.mxu0 0.0
    %549 = vmatpush2.msra.mxu0 0.0
    %550 = vmatprep.subr.mxu0 0.0
    %551 = vmatpush2.msra.mxu0 0.0
    %552 = vmatprep.subr.mxu0 0.0
    %553 = vmatpush2.msra.mxu0 0.0
    %554 = vmatprep.subr.mxu0 0.0
    %555 = vmatpush2.msra.mxu0 0.0
    %556 = vmatprep.mubr.f32.mxu0 0.0
    %557 = vmatmul.mubr.f32.gmra.mxu0 0.0
    %v558 = vpop.f32.mrf.mxu0
    %v559 = vadd.f32 0.0, %v558
    %v560 = vpop.f32.mrf.mxu0
    %v561 = vadd.f32 0.0, %v560
    %562 = vdwg.mxu0
    %563 = vmatprep.subr.mxu0 %v182
    %564 = vmatpush1.msra.mxu0 %v181
    %565 = vmatprep.subr.mxu0 %v178
    %566 = vmatpush1.msra.mxu0 %v177
    %567 = vmatprep.subr.mxu0 %v174
    %568 = vmatpush1.msra.mxu0 %v173
    %569 = vmatprep.subr.mxu0 %v170
    %570 = vmatpush1.msra.mxu0 %v169
    %571 = vmatprep.subr.mxu0 %v166
    %572 = vmatpush1.msra.mxu0 %v165
    %573 = vmatprep.subr.mxu0 %v162
    %574 = vmatpush1.msra.mxu0 %v161
    %575 = vmatprep.subr.mxu0 %v158
    %576 = vmatpush1.msra.mxu0 %v157
    %577 = vmatprep.subr.mxu0 %v154
    %578 = vmatpush1.msra.mxu0 %v153
    %579 = vmatprep.subr.mxu0 %v150
    %580 = vmatpush1.msra.mxu0 %v149
    %581 = vmatprep.subr.mxu0 %v146
    %582 = vmatpush1.msra.mxu0 %v145
    %583 = vmatprep.subr.mxu0 %v142
    %584 = vmatpush1.msra.mxu0 %v141
    %585 = vmatprep.subr.mxu0 %v138
    %586 = vmatpush1.msra.mxu0 %v137
    %587 = vmatprep.subr.mxu0 %v134
    %588 = vmatpush1.msra.mxu0 %v133
    %589 = vmatprep.subr.mxu0 %v130
    %590 = vmatpush1.msra.mxu0 %v129
    %591 = vmatprep.subr.mxu0 %v126
    %592 = vmatpush1.msra.mxu0 %v125
    %593 = vmatprep.subr.mxu0 %v122
    %594 = vmatpush1.msra.mxu0 %v121
    %595 = vmatprep.subr.mxu0 0.0
    %596 = vmatpush2.msra.mxu0 0.0
    %597 = vmatprep.subr.mxu0 0.0
    %598 = vmatpush2.msra.mxu0 0.0
    %599 = vmatprep.subr.mxu0 0.0
    %600 = vmatpush2.msra.mxu0 0.0
    %601 = vmatprep.subr.mxu0 0.0
    %602 = vmatpush2.msra.mxu0 0.0
    %603 = vmatprep.subr.mxu0 0.0
    %604 = vmatpush2.msra.mxu0 0.0
    %605 = vmatprep.subr.mxu0 0.0
    %606 = vmatpush2.msra.mxu0 0.0
    %607 = vmatprep.subr.mxu0 0.0
    %608 = vmatpush2.msra.mxu0 0.0
    %609 = vmatprep.subr.mxu0 0.0
    %610 = vmatpush2.msra.mxu0 0.0
    %611 = vmatprep.subr.mxu0 0.0
    %612 = vmatpush2.msra.mxu0 0.0
    %613 = vmatprep.subr.mxu0 0.0
    %614 = vmatpush2.msra.mxu0 0.0
    %615 = vmatprep.subr.mxu0 0.0
    %616 = vmatpush2.msra.mxu0 0.0
    %617 = vmatprep.subr.mxu0 0.0
    %618 = vmatpush2.msra.mxu0 0.0
    %619 = vmatprep.subr.mxu0 0.0
    %620 = vmatpush2.msra.mxu0 0.0
    %621 = vmatprep.subr.mxu0 0.0
    %622 = vmatpush2.msra.mxu0 0.0
    %623 = vmatprep.subr.mxu0 0.0
    %624 = vmatpush2.msra.mxu0 0.0
    %625 = vmatprep.subr.mxu0 0.0
    %626 = vmatpush2.msra.mxu0 0.0
    %627 = vmatprep.mubr.f32.mxu0 0.0
    %628 = vmatmul.mubr.f32.gmra.mxu0 0.0
    %v629 = vpop.f32.mrf.mxu0
    %v630 = vadd.f32 0.0, %v629
    %v631 = vpop.f32.mrf.mxu0
    %v632 = vadd.f32 0.0, %v631
    %633 = vdwg.mxu0
    %v634 = vadd.f32 %v488, %v559
    %v635 = vadd.f32 %v489, %v561
    %v636 = vadd.f32 %v490, %v630
    %v637 = vadd.f32 %v491, %v632
    %v638 = vxor.u32 %v634, 2147483648
    %v639 = vmul.f32 %v638, 1.442695
    %v640 = vpow.pop %v639
    %v641 = vadd.f32 %v640, 1.0
    %v642 = vrcp.pop %v641
    %v643 = vmul.f32 1.0, %v642
    %v644 = vxor.u32 %v635, 2147483648
    %v645 = vmul.f32 %v644, 1.442695
    %v646 = vpow.pop %v645
    %v647 = vadd.f32 %v646, 1.0
    %v648 = vrcp.pop %v647
    %v649 = vmul.f32 1.0, %v648
    %v650 = vtanh.pop %v636
    %v651 = vxor.u32 %v637, 2147483648
    %v652 = vmul.f32 %v651, 1.442695
    %v653 = vpow.pop %v652
    %v654 = vadd.f32 %v653, 1.0
    %v655 = vrcp.pop %v654
    %v656 = vmul.f32 1.0, %v655
    %v657 = vmul.f32 %v649, 0.0
    %v658 = vmul.f32 %v643, %v650
    %v659 = vadd.f32 %v657, %v658
    %v660 = vtanh.pop %v659
    %v661 = vmul.f32 %v656, %v660
    %662 = vmatprep.subr.mxu0 %v308
    %663 = vmatpush1.msra.mxu0 %v307
    %664 = vmatprep.subr.mxu0 %v304
    %665 = vmatpush1.msra.mxu0 %v303
    %666 = vmatprep.subr.mxu0 %v300
    %667 = vmatpush1.msra.mxu0 %v299
    %668 = vmatprep.subr.mxu0 %v296
    %669 = vmatpush1.msra.mxu0 %v295
    %670 = vmatprep.subr.mxu0 %v292
    %671 = vmatpush1.msra.mxu0 %v291
    %672 = vmatprep.subr.mxu0 %v288
    %673 = vmatpush1.msra.mxu0 %v287
    %674 = vmatprep.subr.mxu0 %v284
    %675 = vmatpush1.msra.mxu0 %v283
    %676 = vmatprep.subr.mxu0 %v280
    %677 = vmatpush1.msra.mxu0 %v279
    %678 = vmatprep.subr.mxu0 %v276
    %679 = vmatpush1.msra.mxu0 %v275
    %680 = vmatprep.subr.mxu0 %v272
    %681 = vmatpush1.msra.mxu0 %v271
    %682 = vmatprep.subr.mxu0 %v268
    %683 = vmatpush1.msra.mxu0 %v267
    %684 = vmatprep.subr.mxu0 %v264
    %685 = vmatpush1.msra.mxu0 %v263
    %686 = vmatprep.subr.mxu0 %v260
    %687 = vmatpush1.msra.mxu0 %v259
    %688 = vmatprep.subr.mxu0 %v256
    %689 = vmatpush1.msra.mxu0 %v255
    %690 = vmatprep.subr.mxu0 %v252
    %691 = vmatpush1.msra.mxu0 %v251
    %692 = vmatprep.subr.mxu0 %v248
    %693 = vmatpush1.msra.mxu0 %v247
    %694 = vmatprep.subr.mxu0 0.0
    %695 = vmatpush2.msra.mxu0 0.0
    %696 = vmatprep.subr.mxu0 0.0
    %697 = vmatpush2.msra.mxu0 0.0
    %698 = vmatprep.subr.mxu0 0.0
    %699 = vmatpush2.msra.mxu0 0.0
    %700 = vmatprep.subr.mxu0 0.0
    %701 = vmatpush2.msra.mxu0 0.0
    %702 = vmatprep.subr.mxu0 0.0
    %703 = vmatpush2.msra.mxu0 0.0
    %704 = vmatprep.subr.mxu0 0.0
    %705 = vmatpush2.msra.mxu0 0.0
    %706 = vmatprep.subr.mxu0 0.0
    %707 = vmatpush2.msra.mxu0 0.0
    %708 = vmatprep.subr.mxu0 0.0
    %709 = vmatpush2.msra.mxu0 0.0
    %710 = vmatprep.subr.mxu0 0.0
    %711 = vmatpush2.msra.mxu0 0.0
    %712 = vmatprep.subr.mxu0 0.0
    %713 = vmatpush2.msra.mxu0 0.0
    %714 = vmatprep.subr.mxu0 0.0
    %715 = vmatpush2.msra.mxu0 0.0
    %716 = vmatprep.subr.mxu0 0.0
    %717 = vmatpush2.msra.mxu0 0.0
    %718 = vmatprep.subr.mxu0 0.0
    %719 = vmatpush2.msra.mxu0 0.0
    %720 = vmatprep.subr.mxu0 0.0
    %721 = vmatpush2.msra.mxu0 0.0
    %722 = vmatprep.subr.mxu0 0.0
    %723 = vmatpush2.msra.mxu0 0.0
    %724 = vmatprep.subr.mxu0 0.0
    %725 = vmatpush2.msra.mxu0 0.0
    %726 = vmatprep.mubr.f32.mxu0 0.0
    %727 = vmatmul.mubr.f32.gmra.mxu0 0.0
    %v728 = vpop.f32.mrf.mxu0
    %v729 = vadd.f32 %v402, %v728
    %v730 = vpop.f32.mrf.mxu0
    %v731 = vadd.f32 %v406, %v730
    %732 = vdwg.mxu0
    %733 = vmatprep.subr.mxu0 %v310
    %734 = vmatpush1.msra.mxu0 %v309
    %735 = vmatprep.subr.mxu0 %v306
    %736 = vmatpush1.msra.mxu0 %v305
    %737 = vmatprep.subr.mxu0 %v302
    %738 = vmatpush1.msra.mxu0 %v301
    %739 = vmatprep.subr.mxu0 %v298
    %740 = vmatpush1.msra.mxu0 %v297
    %741 = vmatprep.subr.mxu0 %v294
    %742 = vmatpush1.msra.mxu0 %v293
    %743 = vmatprep.subr.mxu0 %v290
    %744 = vmatpush1.msra.mxu0 %v289
    %745 = vmatprep.subr.mxu0 %v286
    %746 = vmatpush1.msra.mxu0 %v285
    %747 = vmatprep.subr.mxu0 %v282
    %748 = vmatpush1.msra.mxu0 %v281
    %749 = vmatprep.subr.mxu0 %v278
    %750 = vmatpush1.msra.mxu0 %v277
    %751 = vmatprep.subr.mxu0 %v274
    %752 = vmatpush1.msra.mxu0 %v273
    %753 = vmatprep.subr.mxu0 %v270
    %754 = vmatpush1.msra.mxu0 %v269
    %755 = vmatprep.subr.mxu0 %v266
    %756 = vmatpush1.msra.mxu0 %v265
    %757 = vmatprep.subr.mxu0 %v262
    %758 = vmatpush1.msra.mxu0 %v261
    %759 = vmatprep.subr.mxu0 %v258
    %760 = vmatpush1.msra.mxu0 %v257
    %761 = vmatprep.subr.mxu0 %v254
    %762 = vmatpush1.msra.mxu0 %v253
    %763 = vmatprep.subr.mxu0 %v250
    %764 = vmatpush1.msra.mxu0 %v249
    %765 = vmatprep.subr.mxu0 0.0
    %766 = vmatpush2.msra.mxu0 0.0
    %767 = vmatprep.subr.mxu0 0.0
    %768 = vmatpush2.msra.mxu0 0.0
    %769 = vmatprep.subr.mxu0 0.0
    %770 = vmatpush2.msra.mxu0 0.0
    %771 = vmatprep.subr.mxu0 0.0
    %772 = vmatpush2.msra.mxu0 0.0
    %773 = vmatprep.subr.mxu0 0.0
    %774 = vmatpush2.msra.mxu0 0.0
    %775 = vmatprep.subr.mxu0 0.0
    %776 = vmatpush2.msra.mxu0 0.0
    %777 = vmatprep.subr.mxu0 0.0
    %778 = vmatpush2.msra.mxu0 0.0
    %779 = vmatprep.subr.mxu0 0.0
    %780 = vmatpush2.msra.mxu0 0.0
    %781 = vmatprep.subr.mxu0 0.0
    %782 = vmatpush2.msra.mxu0 0.0
    %783 = vmatprep.subr.mxu0 0.0
    %784 = vmatpush2.msra.mxu0 0.0
    %785 = vmatprep.subr.mxu0 0.0
    %786 = vmatpush2.msra.mxu0 0.0
    %787 = vmatprep.subr.mxu0 0.0
    %788 = vmatpush2.msra.mxu0 0.0
    %789 = vmatprep.subr.mxu0 0.0
    %790 = vmatpush2.msra.mxu0 0.0
    %791 = vmatprep.subr.mxu0 0.0
    %792 = vmatpush2.msra.mxu0 0.0
    %793 = vmatprep.subr.mxu0 0.0
    %794 = vmatpush2.msra.mxu0 0.0
    %795 = vmatprep.subr.mxu0 0.0
    %796 = vmatpush2.msra.mxu0 0.0
    %797 = vmatprep.mubr.f32.mxu0 0.0
    %798 = vmatmul.mubr.f32.gmra.mxu0 0.0
    %v799 = vpop.f32.mrf.mxu0
    %v800 = vadd.f32 %v410, %v799
    %v801 = vpop.f32.mrf.mxu0
    %v802 = vadd.f32 %v414, %v801
    %803 = vdwg.mxu0
    %804 = vmatprep.subr.mxu0 %v244
    %805 = vmatpush1.msra.mxu0 %v243
    %806 = vmatprep.subr.mxu0 %v240
    %807 = vmatpush1.msra.mxu0 %v239
    %808 = vmatprep.subr.mxu0 %v236
    %809 = vmatpush1.msra.mxu0 %v235
    %810 = vmatprep.subr.mxu0 %v232
    %811 = vmatpush1.msra.mxu0 %v231
    %812 = vmatprep.subr.mxu0 %v228
    %813 = vmatpush1.msra.mxu0 %v227
    %814 = vmatprep.subr.mxu0 %v224
    %815 = vmatpush1.msra.mxu0 %v223
    %816 = vmatprep.subr.mxu0 %v220
    %817 = vmatpush1.msra.mxu0 %v219
    %818 = vmatprep.subr.mxu0 %v216
    %819 = vmatpush1.msra.mxu0 %v215
    %820 = vmatprep.subr.mxu0 %v212
    %821 = vmatpush1.msra.mxu0 %v211
    %822 = vmatprep.subr.mxu0 %v208
    %823 = vmatpush1.msra.mxu0 %v207
    %824 = vmatprep.subr.mxu0 %v204
    %825 = vmatpush1.msra.mxu0 %v203
    %826 = vmatprep.subr.mxu0 %v200
    %827 = vmatpush1.msra.mxu0 %v199
    %828 = vmatprep.subr.mxu0 %v196
    %829 = vmatpush1.msra.mxu0 %v195
    %830 = vmatprep.subr.mxu0 %v192
    %831 = vmatpush1.msra.mxu0 %v191
    %832 = vmatprep.subr.mxu0 %v188
    %833 = vmatpush1.msra.mxu0 %v187
    %834 = vmatprep.subr.mxu0 %v184
    %835 = vmatpush1.msra.mxu0 %v183
    %836 = vmatprep.subr.mxu0 0.0
    %837 = vmatpush2.msra.mxu0 0.0
    %838 = vmatprep.subr.mxu0 0.0
    %839 = vmatpush2.msra.mxu0 0.0
    %840 = vmatprep.subr.mxu0 0.0
    %841 = vmatpush2.msra.mxu0 0.0
    %842 = vmatprep.subr.mxu0 0.0
    %843 = vmatpush2.msra.mxu0 0.0
    %844 = vmatprep.subr.mxu0 0.0
    %845 = vmatpush2.msra.mxu0 0.0
    %846 = vmatprep.subr.mxu0 0.0
    %847 = vmatpush2.msra.mxu0 0.0
    %848 = vmatprep.subr.mxu0 0.0
    %849 = vmatpush2.msra.mxu0 0.0
    %850 = vmatprep.subr.mxu0 0.0
    %851 = vmatpush2.msra.mxu0 0.0
    %852 = vmatprep.subr.mxu0 0.0
    %853 = vmatpush2.msra.mxu0 0.0
    %854 = vmatprep.subr.mxu0 0.0
    %855 = vmatpush2.msra.mxu0 0.0
    %856 = vmatprep.subr.mxu0 0.0
    %857 = vmatpush2.msra.mxu0 0.0
    %858 = vmatprep.subr.mxu0 0.0
    %859 = vmatpush2.msra.mxu0 0.0
    %860 = vmatprep.subr.mxu0 0.0
    %861 = vmatpush2.msra.mxu0 0.0
    %862 = vmatprep.subr.mxu0 0.0
    %863 = vmatpush2.msra.mxu0 0.0
    %864 = vmatprep.subr.mxu0 0.0
    %865 = vmatpush2.msra.mxu0 0.0
    %866 = vmatprep.subr.mxu0 0.0
    %867 = vmatpush2.msra.mxu0 0.0
    %868 = vmatprep.mubr.f32.mxu0 0.0
    %869 = vmatmul.mubr.f32.gmra.mxu0 %v661
    %v870 = vpop.f32.mrf.mxu0
    %v871 = vadd.f32 0.0, %v870
    %v872 = vpop.f32.mrf.mxu0
    %v873 = vadd.f32 0.0, %v872
    %874 = vdwg.mxu0
    %875 = vmatprep.subr.mxu0 %v246
    %876 = vmatpush1.msra.mxu0 %v245
    %877 = vmatprep.subr.mxu0 %v242
    %878 = vmatpush1.msra.mxu0 %v241
    %879 = vmatprep.subr.mxu0 %v238
    %880 = vmatpush1.msra.mxu0 %v237
    %881 = vmatprep.subr.mxu0 %v234
    %882 = vmatpush1.msra.mxu0 %v233
    %883 = vmatprep.subr.mxu0 %v230
    %884 = vmatpush1.msra.mxu0 %v229
    %885 = vmatprep.subr.mxu0 %v226
    %886 = vmatpush1.msra.mxu0 %v225
    %887 = vmatprep.subr.mxu0 %v222
    %888 = vmatpush1.msra.mxu0 %v221
    %889 = vmatprep.subr.mxu0 %v218
    %890 = vmatpush1.msra.mxu0 %v217
    %891 = vmatprep.subr.mxu0 %v214
    %892 = vmatpush1.msra.mxu0 %v213
    %893 = vmatprep.subr.mxu0 %v210
    %894 = vmatpush1.msra.mxu0 %v209
    %895 = vmatprep.subr.mxu0 %v206
    %896 = vmatpush1.msra.mxu0 %v205
    %897 = vmatprep.subr.mxu0 %v202
    %898 = vmatpush1.msra.mxu0 %v201
    %899 = vmatprep.subr.mxu0 %v198
    %900 = vmatpush1.msra.mxu0 %v197
    %901 = vmatprep.subr.mxu0 %v194
    %902 = vmatpush1.msra.mxu0 %v193
    %903 = vmatprep.subr.mxu0 %v190
    %904 = vmatpush1.msra.mxu0 %v189
    %905 = vmatprep.subr.mxu0 %v186
    %906 = vmatpush1.msra.mxu0 %v185
    %907 = vmatprep.subr.mxu0 0.0
    %908 = vmatpush2.msra.mxu0 0.0
    %909 = vmatprep.subr.mxu0 0.0
    %910 = vmatpush2.msra.mxu0 0.0
    %911 = vmatprep.subr.mxu0 0.0
    %912 = vmatpush2.msra.mxu0 0.0
    %913 = vmatprep.subr.mxu0 0.0
    %914 = vmatpush2.msra.mxu0 0.0
    %915 = vmatprep.subr.mxu0 0.0
    %916 = vmatpush2.msra.mxu0 0.0
    %917 = vmatprep.subr.mxu0 0.0
    %918 = vmatpush2.msra.mxu0 0.0
    %919 = vmatprep.subr.mxu0 0.0
    %920 = vmatpush2.msra.mxu0 0.0
    %921 = vmatprep.subr.mxu0 0.0
    %922 = vmatpush2.msra.mxu0 0.0
    %923 = vmatprep.subr.mxu0 0.0
    %924 = vmatpush2.msra.mxu0 0.0
    %925 = vmatprep.subr.mxu0 0.0
    %926 = vmatpush2.msra.mxu0 0.0
    %927 = vmatprep.subr.mxu0 0.0
    %928 = vmatpush2.msra.mxu0 0.0
    %929 = vmatprep.subr.mxu0 0.0
    %930 = vmatpush2.msra.mxu0 0.0
    %931 = vmatprep.subr.mxu0 0.0
    %932 = vmatpush2.msra.mxu0 0.0
    %933 = vmatprep.subr.mxu0 0.0
    %934 = vmatpush2.msra.mxu0 0.0
    %935 = vmatprep.subr.mxu0 0.0
    %936 = vmatpush2.msra.mxu0 0.0
    %937 = vmatprep.subr.mxu0 0.0
    %938 = vmatpush2.msra.mxu0 0.0
    %939 = vmatprep.mubr.f32.mxu0 0.0
    %940 = vmatmul.mubr.f32.gmra.mxu0 %v661
    %v941 = vpop.f32.mrf.mxu0
    %v942 = vadd.f32 0.0, %v941
    %v943 = vpop.f32.mrf.mxu0
    %v944 = vadd.f32 0.0, %v943
    %945 = vdwg.mxu0
    %v946 = vadd.f32 %v729, %v871
    %v947 = vadd.f32 %v731, %v873
    %v948 = vadd.f32 %v800, %v942
    %v949 = vadd.f32 %v802, %v944
    %v950 = vxor.u32 %v946, 2147483648
    %v951 = vmul.f32 %v950, 1.442695
    %v952 = vpow.pop %v951
    %v953 = vadd.f32 %v952, 1.0
    %v954 = vrcp.pop %v953
    %v955 = vmul.f32 1.0, %v954
    %v956 = vxor.u32 %v947, 2147483648
    %v957 = vmul.f32 %v956, 1.442695
    %v958 = vpow.pop %v957
    %v959 = vadd.f32 %v958, 1.0
    %v960 = vrcp.pop %v959
    %v961 = vmul.f32 1.0, %v960
    %v962 = vtanh.pop %v948
    %v963 = vxor.u32 %v949, 2147483648
    %v964 = vmul.f32 %v963, 1.442695
    %v965 = vpow.pop %v964
    %v966 = vadd.f32 %v965, 1.0
    %v967 = vrcp.pop %v966
    %v968 = vmul.f32 1.0, %v967
    %v969 = vmul.f32 %v961, 0.0
    %v970 = vmul.f32 %v955, %v962
    %v971 = vadd.f32 %v969, %v970
    %v972 = vtanh.pop %v971
    %v973 = vmul.f32 %v968, %v972
    %v974 = vmul.f32 %v973, %v446
    %975 = vadd.xlane.f32.xlu0 %v974
    %v976 = vpop.xlane.xlu0 %975
    %v977 = vadd.f32 %v976, %v453
    %vm978 = vcmask 7168
    %979 = vst.msk [vmem:[#allocation14] sm:$0xff] %vm978, %v977
    %v980 = vld [vmem:[#allocation3] sm:$0xff]
    %982 = vset.pattern.permute.xlu0 1
    %983 = vperm.xlu0 %982, %v980
    %v984 = vpop.permute.xlu0 %983
    %v986 = vmul.f32 %v984, %v467
    %v987 = vmul.f32 %v984, %v471
    %v988 = vmul.f32 %v984, %v475
    %v989 = vmul.f32 %v984, %v479
    %v990 = vadd.f32 %v986, %v380
    %v991 = vadd.f32 %v987, %v384
    %v992 = vadd.f32 %v988, %v388
    %v993 = vadd.f32 %v989, %v392
    %994 = vmatprep.subr.mxu0 %v180
    %995 = vmatpush1.msra.mxu0 %v179
    %996 = vmatprep.subr.mxu0 %v176
    %997 = vmatpush1.msra.mxu0 %v175
    %998 = vmatprep.subr.mxu0 %v172
    %999 = vmatpush1.msra.mxu0 %v171
    %1000 = vmatprep.subr.mxu0 %v168
    %1001 = vmatpush1.msra.mxu0 %v167
    %1002 = vmatprep.subr.mxu0 %v164
    %1003 = vmatpush1.msra.mxu0 %v163
    %1004 = vmatprep.subr.mxu0 %v160
    %1005 = vmatpush1.msra.mxu0 %v159
    %1006 = vmatprep.subr.mxu0 %v156
    %1007 = vmatpush1.msra.mxu0 %v155
    %1008 = vmatprep.subr.mxu0 %v152
    %1009 = vmatpush1.msra.mxu0 %v151
    %1010 = vmatprep.subr.mxu0 %v148
    %1011 = vmatpush1.msra.mxu0 %v147
    %1012 = vmatprep.subr.mxu0 %v144
    %1013 = vmatpush1.msra.mxu0 %v143
    %1014 = vmatprep.subr.mxu0 %v140
    %1015 = vmatpush1.msra.mxu0 %v139
    %1016 = vmatprep.subr.mxu0 %v136
    %1017 = vmatpush1.msra.mxu0 %v135
    %1018 = vmatprep.subr.mxu0 %v132
    %1019 = vmatpush1.msra.mxu0 %v131
    %1020 = vmatprep.subr.mxu0 %v128
    %1021 = vmatpush1.msra.mxu0 %v127
    %1022 = vmatprep.subr.mxu0 %v124
    %1023 = vmatpush1.msra.mxu0 %v123
    %1024 = vmatprep.subr.mxu0 %v120
    %1025 = vmatpush1.msra.mxu0 %v119
    %1026 = vmatprep.subr.mxu0 0.0
    %1027 = vmatpush2.msra.mxu0 0.0
    %1028 = vmatprep.subr.mxu0 0.0
    %1029 = vmatpush2.msra.mxu0 0.0
    %1030 = vmatprep.subr.mxu0 0.0
    %1031 = vmatpush2.msra.mxu0 0.0
    %1032 = vmatprep.subr.mxu0 0.0
    %1033 = vmatpush2.msra.mxu0 0.0
    %1034 = vmatprep.subr.mxu0 0.0
    %1035 = vmatpush2.msra.mxu0 0.0
    %1036 = vmatprep.subr.mxu0 0.0
    %1037 = vmatpush2.msra.mxu0 0.0
    %1038 = vmatprep.subr.mxu0 0.0
    %1039 = vmatpush2.msra.mxu0 0.0
    %1040 = vmatprep.subr.mxu0 0.0
    %1041 = vmatpush2.msra.mxu0 0.0
    %1042 = vmatprep.subr.mxu0 0.0
    %1043 = vmatpush2.msra.mxu0 0.0
    %1044 = vmatprep.subr.mxu0 0.0
    %1045 = vmatpush2.msra.mxu0 0.0
    %1046 = vmatprep.subr.mxu0 0.0
    %1047 = vmatpush2.msra.mxu0 0.0
    %1048 = vmatprep.subr.mxu0 0.0
    %1049 = vmatpush2.msra.mxu0 0.0
    %1050 = vmatprep.subr.mxu0 0.0
    %1051 = vmatpush2.msra.mxu0 0.0
    %1052 = vmatprep.subr.mxu0 0.0
    %1053 = vmatpush2.msra.mxu0 0.0
    %1054 = vmatprep.subr.mxu0 0.0
    %1055 = vmatpush2.msra.mxu0 0.0
    %1056 = vmatprep.subr.mxu0 0.0
    %1057 = vmatpush2.msra.mxu0 0.0
    %1058 = vmatprep.mubr.f32.mxu0 0.0
    %1059 = vmatmul.mubr.f32.gmra.mxu0 %v661
    %v1060 = vpop.f32.mrf.mxu0
    %v1061 = vadd.f32 0.0, %v1060
    %v1062 = vpop.f32.mrf.mxu0
    %v1063 = vadd.f32 0.0, %v1062
    %1064 = vdwg.mxu0
    %1065 = vmatprep.subr.mxu0 %v182
    %1066 = vmatpush1.msra.mxu0 %v181
    %1067 = vmatprep.subr.mxu0 %v178
    %1068 = vmatpush1.msra.mxu0 %v177
    %1069 = vmatprep.subr.mxu0 %v174
    %1070 = vmatpush1.msra.mxu0 %v173
    %1071 = vmatprep.subr.mxu0 %v170
    %1072 = vmatpush1.msra.mxu0 %v169
    %1073 = vmatprep.subr.mxu0 %v166
    %1074 = vmatpush1.msra.mxu0 %v165
    %1075 = vmatprep.subr.mxu0 %v162
    %1076 = vmatpush1.msra.mxu0 %v161
    %1077 = vmatprep.subr.mxu0 %v158
    %1078 = vmatpush1.msra.mxu0 %v157
    %1079 = vmatprep.subr.mxu0 %v154
    %1080 = vmatpush1.msra.mxu0 %v153
    %1081 = vmatprep.subr.mxu0 %v150
    %1082 = vmatpush1.msra.mxu0 %v149
    %1083 = vmatprep.subr.mxu0 %v146
    %1084 = vmatpush1.msra.mxu0 %v145
    %1085 = vmatprep.subr.mxu0 %v142
    %1086 = vmatpush1.msra.mxu0 %v141
    %1087 = vmatprep.subr.mxu0 %v138
    %1088 = vmatpush1.msra.mxu0 %v137
    %1089 = vmatprep.subr.mxu0 %v134
    %1090 = vmatpush1.msra.mxu0 %v133
    %1091 = vmatprep.subr.mxu0 %v130
    %1092 = vmatpush1.msra.mxu0 %v129
    %1093 = vmatprep.subr.mxu0 %v126
    %1094 = vmatpush1.msra.mxu0 %v125
    %1095 = vmatprep.subr.mxu0 %v122
    %1096 = vmatpush1.msra.mxu0 %v121
    %1097 = vmatprep.subr.mxu0 0.0
    %1098 = vmatpush2.msra.mxu0 0.0
    %1099 = vmatprep.subr.mxu0 0.0
    %1100 = vmatpush2.msra.mxu0 0.0
    %1101 = vmatprep.subr.mxu0 0.0
    %1102 = vmatpush2.msra.mxu0 0.0
    %1103 = vmatprep.subr.mxu0 0.0
    %1104 = vmatpush2.msra.mxu0 0.0
    %1105 = vmatprep.subr.mxu0 0.0
    %1106 = vmatpush2.msra.mxu0 0.0
    %1107 = vmatprep.subr.mxu0 0.0
    %1108 = vmatpush2.msra.mxu0 0.0
    %1109 = vmatprep.subr.mxu0 0.0
    %1110 = vmatpush2.msra.mxu0 0.0
    %1111 = vmatprep.subr.mxu0 0.0
    %1112 = vmatpush2.msra.mxu0 0.0
    %1113 = vmatprep.subr.mxu0 0.0
    %1114 = vmatpush2.msra.mxu0 0.0
    %1115 = vmatprep.subr.mxu0 0.0
    %1116 = vmatpush2.msra.mxu0 0.0
    %1117 = vmatprep.subr.mxu0 0.0
    %1118 = vmatpush2.msra.mxu0 0.0
    %1119 = vmatprep.subr.mxu0 0.0
    %1120 = vmatpush2.msra.mxu0 0.0
    %1121 = vmatprep.subr.mxu0 0.0
    %1122 = vmatpush2.msra.mxu0 0.0
    %1123 = vmatprep.subr.mxu0 0.0
    %1124 = vmatpush2.msra.mxu0 0.0
    %1125 = vmatprep.subr.mxu0 0.0
    %1126 = vmatpush2.msra.mxu0 0.0
    %1127 = vmatprep.subr.mxu0 0.0
    %1128 = vmatpush2.msra.mxu0 0.0
    %1129 = vmatprep.mubr.f32.mxu0 0.0
    %1130 = vmatmul.mubr.f32.gmra.mxu0 %v661
    %v1131 = vpop.f32.mrf.mxu0
    %v1132 = vadd.f32 0.0, %v1131
    %v1133 = vpop.f32.mrf.mxu0
    %v1134 = vadd.f32 0.0, %v1133
    %1135 = vdwg.mxu0
    %v1136 = vadd.f32 %v990, %v1061
    %v1137 = vadd.f32 %v991, %v1063
    %v1138 = vadd.f32 %v992, %v1132
    %v1139 = vadd.f32 %v993, %v1134
    %v1140 = vxor.u32 %v1136, 2147483648
    %v1141 = vmul.f32 %v1140, 1.442695
    %v1142 = vpow.pop %v1141
    %v1143 = vadd.f32 %v1142, 1.0
    %v1144 = vrcp.pop %v1143
    %v1145 = vmul.f32 1.0, %v1144
    %v1146 = vxor.u32 %v1137, 2147483648
    %v1147 = vmul.f32 %v1146, 1.442695
    %v1148 = vpow.pop %v1147
    %v1149 = vadd.f32 %v1148, 1.0
    %v1150 = vrcp.pop %v1149
    %v1151 = vmul.f32 1.0, %v1150
    %v1152 = vtanh.pop %v1138
    %v1153 = vxor.u32 %v1139, 2147483648
    %v1154 = vmul.f32 %v1153, 1.442695
    %v1155 = vpow.pop %v1154
    %v1156 = vadd.f32 %v1155, 1.0
    %v1157 = vrcp.pop %v1156
    %v1158 = vmul.f32 1.0, %v1157
    %v1159 = vmul.f32 %v1151, %v659
    %v1160 = vmul.f32 %v1145, %v1152
    %v1161 = vadd.f32 %v1159, %v1160
    %v1162 = vtanh.pop %v1161
    %v1163 = vmul.f32 %v1158, %v1162
    %1164 = vmatprep.subr.mxu0 %v308
    %1165 = vmatpush1.msra.mxu0 %v307
    %1166 = vmatprep.subr.mxu0 %v304
    %1167 = vmatpush1.msra.mxu0 %v303
    %1168 = vmatprep.subr.mxu0 %v300
    %1169 = vmatpush1.msra.mxu0 %v299
    %1170 = vmatprep.subr.mxu0 %v296
    %1171 = vmatpush1.msra.mxu0 %v295
    %1172 = vmatprep.subr.mxu0 %v292
    %1173 = vmatpush1.msra.mxu0 %v291
    %1174 = vmatprep.subr.mxu0 %v288
    %1175 = vmatpush1.msra.mxu0 %v287
    %1176 = vmatprep.subr.mxu0 %v284
    %1177 = vmatpush1.msra.mxu0 %v283
    %1178 = vmatprep.subr.mxu0 %v280
    %1179 = vmatpush1.msra.mxu0 %v279
    %1180 = vmatprep.subr.mxu0 %v276
    %1181 = vmatpush1.msra.mxu0 %v275
    %1182 = vmatprep.subr.mxu0 %v272
    %1183 = vmatpush1.msra.mxu0 %v271
    %1184 = vmatprep.subr.mxu0 %v268
    %1185 = vmatpush1.msra.mxu0 %v267
    %1186 = vmatprep.subr.mxu0 %v264
    %1187 = vmatpush1.msra.mxu0 %v263
    %1188 = vmatprep.subr.mxu0 %v260
    %1189 = vmatpush1.msra.mxu0 %v259
    %1190 = vmatprep.subr.mxu0 %v256
    %1191 = vmatpush1.msra.mxu0 %v255
    %1192 = vmatprep.subr.mxu0 %v252
    %1193 = vmatpush1.msra.mxu0 %v251
    %1194 = vmatprep.subr.mxu0 %v248
    %1195 = vmatpush1.msra.mxu0 %v247
    %1196 = vmatprep.subr.mxu0 0.0
    %1197 = vmatpush2.msra.mxu0 0.0
    %1198 = vmatprep.subr.mxu0 0.0
    %1199 = vmatpush2.msra.mxu0 0.0
    %1200 = vmatprep.subr.mxu0 0.0
    %1201 = vmatpush2.msra.mxu0 0.0
    %1202 = vmatprep.subr.mxu0 0.0
    %1203 = vmatpush2.msra.mxu0 0.0
    %1204 = vmatprep.subr.mxu0 0.0
    %1205 = vmatpush2.msra.mxu0 0.0
    %1206 = vmatprep.subr.mxu0 0.0
    %1207 = vmatpush2.msra.mxu0 0.0
    %1208 = vmatprep.subr.mxu0 0.0
    %1209 = vmatpush2.msra.mxu0 0.0
    %1210 = vmatprep.subr.mxu0 0.0
    %1211 = vmatpush2.msra.mxu0 0.0
    %1212 = vmatprep.subr.mxu0 0.0
    %1213 = vmatpush2.msra.mxu0 0.0
    %1214 = vmatprep.subr.mxu0 0.0
    %1215 = vmatpush2.msra.mxu0 0.0
    %1216 = vmatprep.subr.mxu0 0.0
    %1217 = vmatpush2.msra.mxu0 0.0
    %1218 = vmatprep.subr.mxu0 0.0
    %1219 = vmatpush2.msra.mxu0 0.0
    %1220 = vmatprep.subr.mxu0 0.0
    %1221 = vmatpush2.msra.mxu0 0.0
    %1222 = vmatprep.subr.mxu0 0.0
    %1223 = vmatpush2.msra.mxu0 0.0
    %1224 = vmatprep.subr.mxu0 0.0
    %1225 = vmatpush2.msra.mxu0 0.0
    %1226 = vmatprep.subr.mxu0 0.0
    %1227 = vmatpush2.msra.mxu0 0.0
    %1228 = vmatprep.mubr.f32.mxu0 0.0
    %1229 = vmatmul.mubr.f32.gmra.mxu0 %v973
    %v1230 = vpop.f32.mrf.mxu0
    %v1231 = vadd.f32 %v402, %v1230
    %v1232 = vpop.f32.mrf.mxu0
    %v1233 = vadd.f32 %v406, %v1232
    %1234 = vdwg.mxu0
    %1235 = vmatprep.subr.mxu0 %v310
    %1236 = vmatpush1.msra.mxu0 %v309
    %1237 = vmatprep.subr.mxu0 %v306
    %1238 = vmatpush1.msra.mxu0 %v305
    %1239 = vmatprep.subr.mxu0 %v302
    %1240 = vmatpush1.msra.mxu0 %v301
    %1241 = vmatprep.subr.mxu0 %v298
    %1242 = vmatpush1.msra.mxu0 %v297
    %1243 = vmatprep.subr.mxu0 %v294
    %1244 = vmatpush1.msra.mxu0 %v293
    %1245 = vmatprep.subr.mxu0 %v290
    %1246 = vmatpush1.msra.mxu0 %v289
    %1247 = vmatprep.subr.mxu0 %v286
    %1248 = vmatpush1.msra.mxu0 %v285
    %1249 = vmatprep.subr.mxu0 %v282
    %1250 = vmatpush1.msra.mxu0 %v281
    %1251 = vmatprep.subr.mxu0 %v278
    %1252 = vmatpush1.msra.mxu0 %v277
    %1253 = vmatprep.subr.mxu0 %v274
    %1254 = vmatpush1.msra.mxu0 %v273
    %1255 = vmatprep.subr.mxu0 %v270
    %1256 = vmatpush1.msra.mxu0 %v269
    %1257 = vmatprep.subr.mxu0 %v266
    %1258 = vmatpush1.msra.mxu0 %v265
    %1259 = vmatprep.subr.mxu0 %v262
    %1260 = vmatpush1.msra.mxu0 %v261
    %1261 = vmatprep.subr.mxu0 %v258
    %1262 = vmatpush1.msra.mxu0 %v257
    %1263 = vmatprep.subr.mxu0 %v254
    %1264 = vmatpush1.msra.mxu0 %v253
    %1265 = vmatprep.subr.mxu0 %v250
    %1266 = vmatpush1.msra.mxu0 %v249
    %1267 = vmatprep.subr.mxu0 0.0
    %1268 = vmatpush2.msra.mxu0 0.0
    %1269 = vmatprep.subr.mxu0 0.0
    %1270 = vmatpush2.msra.mxu0 0.0
    %1271 = vmatprep.subr.mxu0 0.0
    %1272 = vmatpush2.msra.mxu0 0.0
    %1273 = vmatprep.subr.mxu0 0.0
    %1274 = vmatpush2.msra.mxu0 0.0
    %1275 = vmatprep.subr.mxu0 0.0
    %1276 = vmatpush2.msra.mxu0 0.0
    %1277 = vmatprep.subr.mxu0 0.0
    %1278 = vmatpush2.msra.mxu0 0.0
    %1279 = vmatprep.subr.mxu0 0.0
    %1280 = vmatpush2.msra.mxu0 0.0
    %1281 = vmatprep.subr.mxu0 0.0
    %1282 = vmatpush2.msra.mxu0 0.0
    %1283 = vmatprep.subr.mxu0 0.0
    %1284 = vmatpush2.msra.mxu0 0.0
    %1285 = vmatprep.subr.mxu0 0.0
    %1286 = vmatpush2.msra.mxu0 0.0
    %1287 = vmatprep.subr.mxu0 0.0
    %1288 = vmatpush2.msra.mxu0 0.0
    %1289 = vmatprep.subr.mxu0 0.0
    %1290 = vmatpush2.msra.mxu0 0.0
    %1291 = vmatprep.subr.mxu0 0.0
    %1292 = vmatpush2.msra.mxu0 0.0
    %1293 = vmatprep.subr.mxu0 0.0
    %1294 = vmatpush2.msra.mxu0 0.0
    %1295 = vmatprep.subr.mxu0 0.0
    %1296 = vmatpush2.msra.mxu0 0.0
    %1297 = vmatprep.subr.mxu0 0.0
    %1298 = vmatpush2.msra.mxu0 0.0
    %1299 = vmatprep.mubr.f32.mxu0 0.0
    %1300 = vmatmul.mubr.f32.gmra.mxu0 %v973
    %v1301 = vpop.f32.mrf.mxu0
    %v1302 = vadd.f32 %v410, %v1301
    %v1303 = vpop.f32.mrf.mxu0
    %v1304 = vadd.f32 %v414, %v1303
    %1305 = vdwg.mxu0
    %1306 = vmatprep.subr.mxu0 %v244
    %1307 = vmatpush1.msra.mxu0 %v243
    %1308 = vmatprep.subr.mxu0 %v240
    %1309 = vmatpush1.msra.mxu0 %v239
    %1310 = vmatprep.subr.mxu0 %v236
    %1311 = vmatpush1.msra.mxu0 %v235
    %1312 = vmatprep.subr.mxu0 %v232
    %1313 = vmatpush1.msra.mxu0 %v231
    %1314 = vmatprep.subr.mxu0 %v228
    %1315 = vmatpush1.msra.mxu0 %v227
    %1316 = vmatprep.subr.mxu0 %v224
    %1317 = vmatpush1.msra.mxu0 %v223
    %1318 = vmatprep.subr.mxu0 %v220
    %1319 = vmatpush1.msra.mxu0 %v219
    %1320 = vmatprep.subr.mxu0 %v216
    %1321 = vmatpush1.msra.mxu0 %v215
    %1322 = vmatprep.subr.mxu0 %v212
    %1323 = vmatpush1.msra.mxu0 %v211
    %1324 = vmatprep.subr.mxu0 %v208
    %1325 = vmatpush1.msra.mxu0 %v207
    %1326 = vmatprep.subr.mxu0 %v204
    %1327 = vmatpush1.msra.mxu0 %v203
    %1328 = vmatprep.subr.mxu0 %v200
    %1329 = vmatpush1.msra.mxu0 %v199
    %1330 = vmatprep.subr.mxu0 %v196
    %1331 = vmatpush1.msra.mxu0 %v195
    %1332 = vmatprep.subr.mxu0 %v192
    %1333 = vmatpush1.msra.mxu0 %v191
    %1334 = vmatprep.subr.mxu0 %v188
    %1335 = vmatpush1.msra.mxu0 %v187
    %1336 = vmatprep.subr.mxu0 %v184
    %1337 = vmatpush1.msra.mxu0 %v183
    %1338 = vmatprep.subr.mxu0 0.0
    %1339 = vmatpush2.msra.mxu0 0.0
    %1340 = vmatprep.subr.mxu0 0.0
    %1341 = vmatpush2.msra.mxu0 0.0
    %1342 = vmatprep.subr.mxu0 0.0
    %1343 = vmatpush2.msra.mxu0 0.0
    %1344 = vmatprep.subr.mxu0 0.0
    %1345 = vmatpush2.msra.mxu0 0.0
    %1346 = vmatprep.subr.mxu0 0.0
    %1347 = vmatpush2.msra.mxu0 0.0
    %1348 = vmatprep.subr.mxu0 0.0
    %1349 = vmatpush2.msra.mxu0 0.0
    %1350 = vmatprep.subr.mxu0 0.0
    %1351 = vmatpush2.msra.mxu0 0.0
    %1352 = vmatprep.subr.mxu0 0.0
    %1353 = vmatpush2.msra.mxu0 0.0
    %1354 = vmatprep.subr.mxu0 0.0
    %1355 = vmatpush2.msra.mxu0 0.0
    %1356 = vmatprep.subr.mxu0 0.0
    %1357 = vmatpush2.msra.mxu0 0.0
    %1358 = vmatprep.subr.mxu0 0.0
    %1359 = vmatpush2.msra.mxu0 0.0
    %1360 = vmatprep.subr.mxu0 0.0
    %1361 = vmatpush2.msra.mxu0 0.0
    %1362 = vmatprep.subr.mxu0 0.0
    %1363 = vmatpush2.msra.mxu0 0.0
    %1364 = vmatprep.subr.mxu0 0.0
    %1365 = vmatpush2.msra.mxu0 0.0
    %1366 = vmatprep.subr.mxu0 0.0
    %1367 = vmatpush2.msra.mxu0 0.0
    %1368 = vmatprep.subr.mxu0 0.0
    %1369 = vmatpush2.msra.mxu0 0.0
    %1370 = vmatprep.mubr.f32.mxu0 0.0
    %1371 = vmatmul.mubr.f32.gmra.mxu0 %v1163
    %v1372 = vpop.f32.mrf.mxu0
    %v1373 = vadd.f32 0.0, %v1372
    %v1374 = vpop.f32.mrf.mxu0
    %v1375 = vadd.f32 0.0, %v1374
    %1376 = vdwg.mxu0
    %1377 = vmatprep.subr.mxu0 %v246
    %1378 = vmatpush1.msra.mxu0 %v245
    %1379 = vmatprep.subr.mxu0 %v242
    %1380 = vmatpush1.msra.mxu0 %v241
    %1381 = vmatprep.subr.mxu0 %v238
    %1382 = vmatpush1.msra.mxu0 %v237
    %1383 = vmatprep.subr.mxu0 %v234
    %1384 = vmatpush1.msra.mxu0 %v233
    %1385 = vmatprep.subr.mxu0 %v230
    %1386 = vmatpush1.msra.mxu0 %v229
    %1387 = vmatprep.subr.mxu0 %v226
    %1388 = vmatpush1.msra.mxu0 %v225
    %1389 = vmatprep.subr.mxu0 %v222
    %1390 = vmatpush1.msra.mxu0 %v221
    %1391 = vmatprep.subr.mxu0 %v218
    %1392 = vmatpush1.msra.mxu0 %v217
    %1393 = vmatprep.subr.mxu0 %v214
    %1394 = vmatpush1.msra.mxu0 %v213
    %1395 = vmatprep.subr.mxu0 %v210
    %1396 = vmatpush1.msra.mxu0 %v209
    %1397 = vmatprep.subr.mxu0 %v206
    %1398 = vmatpush1.msra.mxu0 %v205
    %1399 = vmatprep.subr.mxu0 %v202
    %1400 = vmatpush1.msra.mxu0 %v201
    %1401 = vmatprep.subr.mxu0 %v198
    %1402 = vmatpush1.msra.mxu0 %v197
    %1403 = vmatprep.subr.mxu0 %v194
    %1404 = vmatpush1.msra.mxu0 %v193
    %1405 = vmatprep.subr.mxu0 %v190
    %1406 = vmatpush1.msra.mxu0 %v189
    %1407 = vmatprep.subr.mxu0 %v186
    %1408 = vmatpush1.msra.mxu0 %v185
    %1409 = vmatprep.subr.mxu0 0.0
    %1410 = vmatpush2.msra.mxu0 0.0
    %1411 = vmatprep.subr.mxu0 0.0
    %1412 = vmatpush2.msra.mxu0 0.0
    %1413 = vmatprep.subr.mxu0 0.0
    %1414 = vmatpush2.msra.mxu0 0.0
    %1415 = vmatprep.subr.mxu0 0.0
    %1416 = vmatpush2.msra.mxu0 0.0
    %1417 = vmatprep.subr.mxu0 0.0
    %1418 = vmatpush2.msra.mxu0 0.0
    %1419 = vmatprep.subr.mxu0 0.0
    %1420 = vmatpush2.msra.mxu0 0.0
    %1421 = vmatprep.subr.mxu0 0.0
    %1422 = vmatpush2.msra.mxu0 0.0
    %1423 = vmatprep.subr.mxu0 0.0
    %1424 = vmatpush2.msra.mxu0 0.0
    %1425 = vmatprep.subr.mxu0 0.0
    %1426 = vmatpush2.msra.mxu0 0.0
    %1427 = vmatprep.subr.mxu0 0.0
    %1428 = vmatpush2.msra.mxu0 0.0
    %1429 = vmatprep.subr.mxu0 0.0
    %1430 = vmatpush2.msra.mxu0 0.0
    %1431 = vmatprep.subr.mxu0 0.0
    %1432 = vmatpush2.msra.mxu0 0.0
    %1433 = vmatprep.subr.mxu0 0.0
    %1434 = vmatpush2.msra.mxu0 0.0
    %1435 = vmatprep.subr.mxu0 0.0
    %1436 = vmatpush2.msra.mxu0 0.0
    %1437 = vmatprep.subr.mxu0 0.0
    %1438 = vmatpush2.msra.mxu0 0.0
    %1439 = vmatprep.subr.mxu0 0.0
    %1440 = vmatpush2.msra.mxu0 0.0
    %1441 = vmatprep.mubr.f32.mxu0 0.0
    %1442 = vmatmul.mubr.f32.gmra.mxu0 %v1163
    %v1443 = vpop.f32.mrf.mxu0
    %v1444 = vadd.f32 0.0, %v1443
    %v1445 = vpop.f32.mrf.mxu0
    %v1446 = vadd.f32 0.0, %v1445
    %1447 = vdwg.mxu0
    %v1448 = vadd.f32 %v1231, %v1373
    %v1449 = vadd.f32 %v1233, %v1375
    %v1450 = vadd.f32 %v1302, %v1444
    %v1451 = vadd.f32 %v1304, %v1446
    %v1452 = vxor.u32 %v1448, 2147483648
    %v1453 = vmul.f32 %v1452, 1.442695
    %v1454 = vpow.pop %v1453
    %v1455 = vadd.f32 %v1454, 1.0
    %v1456 = vrcp.pop %v1455
    %v1457 = vmul.f32 1.0, %v1456
    %v1458 = vxor.u32 %v1449, 2147483648
    %v1459 = vmul.f32 %v1458, 1.442695
    %v1460 = vpow.pop %v1459
    %v1461 = vadd.f32 %v1460, 1.0
    %v1462 = vrcp.pop %v1461
    %v1463 = vmul.f32 1.0, %v1462
    %v1464 = vtanh.pop %v1450
    %v1465 = vxor.u32 %v1451, 2147483648
    %v1466 = vmul.f32 %v1465, 1.442695
    %v1467 = vpow.pop %v1466
    %v1468 = vadd.f32 %v1467, 1.0
    %v1469 = vrcp.pop %v1468
    %v1470 = vmul.f32 1.0, %v1469
    %v1471 = vmul.f32 %v1463, %v971
    %v1472 = vmul.f32 %v1457, %v1464
    %v1473 = vadd.f32 %v1471, %v1472
    %v1474 = vtanh.pop %v1473
    %v1475 = vmul.f32 %v1470, %v1474
    %v1476 = vmul.f32 %v1475, %v446
    %1477 = vadd.xlane.f32.xlu0 %v1476
    %v1478 = vpop.xlane.xlu0 %1477
    %v1479 = vadd.f32 %v1478, %v453
    %1481 = vrot.lane.b32.xlu0 %v1479, 1
    %v1482 = vpop.permute.xlu0 %1481
    %vm1484 = vcmask 15368
    %1485 = vst.msk [vmem:[#allocation14] sm:$0xff] %vm1484, %v1482
    %v1486 = vld [vmem:[#allocation3] sm:$0xff]
    %1488 = vset.pattern.permute.xlu0 2
    %1489 = vperm.xlu0 %1488, %v1486
    %v1490 = vpop.permute.xlu0 %1489
    %v1492 = vmul.f32 %v1490, %v467
    %v1493 = vmul.f32 %v1490, %v471
    %v1494 = vmul.f32 %v1490, %v475
    %v1495 = vmul.f32 %v1490, %v479
    %v1496 = vadd.f32 %v1492, %v380
    %v1497 = vadd.f32 %v1493, %v384
    %v1498 = vadd.f32 %v1494, %v388
    %v1499 = vadd.f32 %v1495, %v392
    %1500 = vmatprep.subr.mxu0 %v180
    %1501 = vmatpush1.msra.mxu0 %v179
    %1502 = vmatprep.subr.mxu0 %v176
    %1503 = vmatpush1.msra.mxu0 %v175
    %1504 = vmatprep.subr.mxu0 %v172
    %1505 = vmatpush1.msra.mxu0 %v171
    %1506 = vmatprep.subr.mxu0 %v168
    %1507 = vmatpush1.msra.mxu0 %v167
    %1508 = vmatprep.subr.mxu0 %v164
    %1509 = vmatpush1.msra.mxu0 %v163
    %1510 = vmatprep.subr.mxu0 %v160
    %1511 = vmatpush1.msra.mxu0 %v159
    %1512 = vmatprep.subr.mxu0 %v156
    %1513 = vmatpush1.msra.mxu0 %v155
    %1514 = vmatprep.subr.mxu0 %v152
    %1515 = vmatpush1.msra.mxu0 %v151
    %1516 = vmatprep.subr.mxu0 %v148
    %1517 = vmatpush1.msra.mxu0 %v147
    %1518 = vmatprep.subr.mxu0 %v144
    %1519 = vmatpush1.msra.mxu0 %v143
    %1520 = vmatprep.subr.mxu0 %v140
    %1521 = vmatpush1.msra.mxu0 %v139
    %1522 = vmatprep.subr.mxu0 %v136
    %1523 = vmatpush1.msra.mxu0 %v135
    %1524 = vmatprep.subr.mxu0 %v132
    %1525 = vmatpush1.msra.mxu0 %v131
    %1526 = vmatprep.subr.mxu0 %v128
    %1527 = vmatpush1.msra.mxu0 %v127
    %1528 = vmatprep.subr.mxu0 %v124
    %1529 = vmatpush1.msra.mxu0 %v123
    %1530 = vmatprep.subr.mxu0 %v120
    %1531 = vmatpush1.msra.mxu0 %v119
    %1532 = vmatprep.subr.mxu0 0.0
    %1533 = vmatpush2.msra.mxu0 0.0
    %1534 = vmatprep.subr.mxu0 0.0
    %1535 = vmatpush2.msra.mxu0 0.0
    %1536 = vmatprep.subr.mxu0 0.0
    %1537 = vmatpush2.msra.mxu0 0.0
    %1538 = vmatprep.subr.mxu0 0.0
    %1539 = vmatpush2.msra.mxu0 0.0
    %1540 = vmatprep.subr.mxu0 0.0
    %1541 = vmatpush2.msra.mxu0 0.0
    %1542 = vmatprep.subr.mxu0 0.0
    %1543 = vmatpush2.msra.mxu0 0.0
    %1544 = vmatprep.subr.mxu0 0.0
    %1545 = vmatpush2.msra.mxu0 0.0
    %1546 = vmatprep.subr.mxu0 0.0
    %1547 = vmatpush2.msra.mxu0 0.0
    %1548 = vmatprep.subr.mxu0 0.0
    %1549 = vmatpush2.msra.mxu0 0.0
    %1550 = vmatprep.subr.mxu0 0.0
    %1551 = vmatpush2.msra.mxu0 0.0
    %1552 = vmatprep.subr.mxu0 0.0
    %1553 = vmatpush2.msra.mxu0 0.0
    %1554 = vmatprep.subr.mxu0 0.0
    %1555 = vmatpush2.msra.mxu0 0.0
    %1556 = vmatprep.subr.mxu0 0.0
    %1557 = vmatpush2.msra.mxu0 0.0
    %1558 = vmatprep.subr.mxu0 0.0
    %1559 = vmatpush2.msra.mxu0 0.0
    %1560 = vmatprep.subr.mxu0 0.0
    %1561 = vmatpush2.msra.mxu0 0.0
    %1562 = vmatprep.subr.mxu0 0.0
    %1563 = vmatpush2.msra.mxu0 0.0
    %1564 = vmatprep.mubr.f32.mxu0 0.0
    %1565 = vmatmul.mubr.f32.gmra.mxu0 %v1163
    %v1566 = vpop.f32.mrf.mxu0
    %v1567 = vadd.f32 0.0, %v1566
    %v1568 = vpop.f32.mrf.mxu0
    %v1569 = vadd.f32 0.0, %v1568
    %1570 = vdwg.mxu0
    %1571 = vmatprep.subr.mxu0 %v182
    %1572 = vmatpush1.msra.mxu0 %v181
    %1573 = vmatprep.subr.mxu0 %v178
    %1574 = vmatpush1.msra.mxu0 %v177
    %1575 = vmatprep.subr.mxu0 %v174
    %1576 = vmatpush1.msra.mxu0 %v173
    %1577 = vmatprep.subr.mxu0 %v170
    %1578 = vmatpush1.msra.mxu0 %v169
    %1579 = vmatprep.subr.mxu0 %v166
    %1580 = vmatpush1.msra.mxu0 %v165
    %1581 = vmatprep.subr.mxu0 %v162
    %1582 = vmatpush1.msra.mxu0 %v161
    %1583 = vmatprep.subr.mxu0 %v158
    %1584 = vmatpush1.msra.mxu0 %v157
    %1585 = vmatprep.subr.mxu0 %v154
    %1586 = vmatpush1.msra.mxu0 %v153
    %1587 = vmatprep.subr.mxu0 %v150
    %1588 = vmatpush1.msra.mxu0 %v149
    %1589 = vmatprep.subr.mxu0 %v146
    %1590 = vmatpush1.msra.mxu0 %v145
    %1591 = vmatprep.subr.mxu0 %v142
    %1592 = vmatpush1.msra.mxu0 %v141
    %1593 = vmatprep.subr.mxu0 %v138
    %1594 = vmatpush1.msra.mxu0 %v137
    %1595 = vmatprep.subr.mxu0 %v134
    %1596 = vmatpush1.msra.mxu0 %v133
    %1597 = vmatprep.subr.mxu0 %v130
    %1598 = vmatpush1.msra.mxu0 %v129
    %1599 = vmatprep.subr.mxu0 %v126
    %1600 = vmatpush1.msra.mxu0 %v125
    %1601 = vmatprep.subr.mxu0 %v122
    %1602 = vmatpush1.msra.mxu0 %v121
    %1603 = vmatprep.subr.mxu0 0.0
    %1604 = vmatpush2.msra.mxu0 0.0
    %1605 = vmatprep.subr.mxu0 0.0
    %1606 = vmatpush2.msra.mxu0 0.0
    %1607 = vmatprep.subr.mxu0 0.0
    %1608 = vmatpush2.msra.mxu0 0.0
    %1609 = vmatprep.subr.mxu0 0.0
    %1610 = vmatpush2.msra.mxu0 0.0
    %1611 = vmatprep.subr.mxu0 0.0
    %1612 = vmatpush2.msra.mxu0 0.0
    %1613 = vmatprep.subr.mxu0 0.0
    %1614 = vmatpush2.msra.mxu0 0.0
    %1615 = vmatprep.subr.mxu0 0.0
    %1616 = vmatpush2.msra.mxu0 0.0
    %1617 = vmatprep.subr.mxu0 0.0
    %1618 = vmatpush2.msra.mxu0 0.0
    %1619 = vmatprep.subr.mxu0 0.0
    %1620 = vmatpush2.msra.mxu0 0.0
    %1621 = vmatprep.subr.mxu0 0.0
    %1622 = vmatpush2.msra.mxu0 0.0
    %1623 = vmatprep.subr.mxu0 0.0
    %1624 = vmatpush2.msra.mxu0 0.0
    %1625 = vmatprep.subr.mxu0 0.0
    %1626 = vmatpush2.msra.mxu0 0.0
    %1627 = vmatprep.subr.mxu0 0.0
    %1628 = vmatpush2.msra.mxu0 0.0
    %1629 = vmatprep.subr.mxu0 0.0
    %1630 = vmatpush2.msra.mxu0 0.0
    %1631 = vmatprep.subr.mxu0 0.0
    %1632 = vmatpush2.msra.mxu0 0.0
    %1633 = vmatprep.subr.mxu0 0.0
    %1634 = vmatpush2.msra.mxu0 0.0
    %1635 = vmatprep.mubr.f32.mxu0 0.0
    %1636 = vmatmul.mubr.f32.gmra.mxu0 %v1163
    %v1637 = vpop.f32.mrf.mxu0
    %v1638 = vadd.f32 0.0, %v1637
    %v1639 = vpop.f32.mrf.mxu0
    %v1640 = vadd.f32 0.0, %v1639
    %1641 = vdwg.mxu0
    %v1642 = vadd.f32 %v1496, %v1567
    %v1643 = vadd.f32 %v1497, %v1569
    %v1644 = vadd.f32 %v1498, %v1638
    %v1645 = vadd.f32 %v1499, %v1640
    %v1646 = vxor.u32 %v1642, 2147483648
    %v1647 = vmul.f32 %v1646, 1.442695
    %v1648 = vpow.pop %v1647
    %v1649 = vadd.f32 %v1648, 1.0
    %v1650 = vrcp.pop %v1649
    %v1651 = vmul.f32 1.0, %v1650
    %v1652 = vxor.u32 %v1643, 2147483648
    %v1653 = vmul.f32 %v1652, 1.442695
    %v1654 = vpow.pop %v1653
    %v1655 = vadd.f32 %v1654, 1.0
    %v1656 = vrcp.pop %v1655
    %v1657 = vmul.f32 1.0, %v1656
    %v1658 = vtanh.pop %v1644
    %v1659 = vxor.u32 %v1645, 2147483648
    %v1660 = vmul.f32 %v1659, 1.442695
    %v1661 = vpow.pop %v1660
    %v1662 = vadd.f32 %v1661, 1.0
    %v1663 = vrcp.pop %v1662
    %v1664 = vmul.f32 1.0, %v1663
    %v1665 = vmul.f32 %v1657, %v1161
    %v1666 = vmul.f32 %v1651, %v1658
    %v1667 = vadd.f32 %v1665, %v1666
    %v1668 = vtanh.pop %v1667
    %v1669 = vmul.f32 %v1664, %v1668
    %1670 = vmatprep.subr.mxu0 %v308
    %1671 = vmatpush1.msra.mxu0 %v307
    %1672 = vmatprep.subr.mxu0 %v304
    %1673 = vmatpush1.msra.mxu0 %v303
    %1674 = vmatprep.subr.mxu0 %v300
    %1675 = vmatpush1.msra.mxu0 %v299
    %1676 = vmatprep.subr.mxu0 %v296
    %1677 = vmatpush1.msra.mxu0 %v295
    %1678 = vmatprep.subr.mxu0 %v292
    %1679 = vmatpush1.msra.mxu0 %v291
    %1680 = vmatprep.subr.mxu0 %v288
    %1681 = vmatpush1.msra.mxu0 %v287
    %1682 = vmatprep.subr.mxu0 %v284
    %1683 = vmatpush1.msra.mxu0 %v283
    %1684 = vmatprep.subr.mxu0 %v280
    %1685 = vmatpush1.msra.mxu0 %v279
    %1686 = vmatprep.subr.mxu0 %v276
    %1687 = vmatpush1.msra.mxu0 %v275
    %1688 = vmatprep.subr.mxu0 %v272
    %1689 = vmatpush1.msra.mxu0 %v271
    %1690 = vmatprep.subr.mxu0 %v268
    %1691 = vmatpush1.msra.mxu0 %v267
    %1692 = vmatprep.subr.mxu0 %v264
    %1693 = vmatpush1.msra.mxu0 %v263
    %1694 = vmatprep.subr.mxu0 %v260
    %1695 = vmatpush1.msra.mxu0 %v259
    %1696 = vmatprep.subr.mxu0 %v256
    %1697 = vmatpush1.msra.mxu0 %v255
    %1698 = vmatprep.subr.mxu0 %v252
    %1699 = vmatpush1.msra.mxu0 %v251
    %1700 = vmatprep.subr.mxu0 %v248
    %1701 = vmatpush1.msra.mxu0 %v247
    %1702 = vmatprep.subr.mxu0 0.0
    %1703 = vmatpush2.msra.mxu0 0.0
    %1704 = vmatprep.subr.mxu0 0.0
    %1705 = vmatpush2.msra.mxu0 0.0
    %1706 = vmatprep.subr.mxu0 0.0
    %1707 = vmatpush2.msra.mxu0 0.0
    %1708 = vmatprep.subr.mxu0 0.0
    %1709 = vmatpush2.msra.mxu0 0.0
    %1710 = vmatprep.subr.mxu0 0.0
    %1711 = vmatpush2.msra.mxu0 0.0
    %1712 = vmatprep.subr.mxu0 0.0
    %1713 = vmatpush2.msra.mxu0 0.0
    %1714 = vmatprep.subr.mxu0 0.0
    %1715 = vmatpush2.msra.mxu0 0.0
    %1716 = vmatprep.subr.mxu0 0.0
    %1717 = vmatpush2.msra.mxu0 0.0
    %1718 = vmatprep.subr.mxu0 0.0
    %1719 = vmatpush2.msra.mxu0 0.0
    %1720 = vmatprep.subr.mxu0 0.0
    %1721 = vmatpush2.msra.mxu0 0.0
    %1722 = vmatprep.subr.mxu0 0.0
    %1723 = vmatpush2.msra.mxu0 0.0
    %1724 = vmatprep.subr.mxu0 0.0
    %1725 = vmatpush2.msra.mxu0 0.0
    %1726 = vmatprep.subr.mxu0 0.0
    %1727 = vmatpush2.msra.mxu0 0.0
    %1728 = vmatprep.subr.mxu0 0.0
    %1729 = vmatpush2.msra.mxu0 0.0
    %1730 = vmatprep.subr.mxu0 0.0
    %1731 = vmatpush2.msra.mxu0 0.0
    %1732 = vmatprep.subr.mxu0 0.0
    %1733 = vmatpush2.msra.mxu0 0.0
    %1734 = vmatprep.mubr.f32.mxu0 0.0
    %1735 = vmatmul.mubr.f32.gmra.mxu0 %v1475
    %v1736 = vpop.f32.mrf.mxu0
    %v1737 = vadd.f32 %v402, %v1736
    %v1738 = vpop.f32.mrf.mxu0
    %v1739 = vadd.f32 %v406, %v1738
    %1740 = vdwg.mxu0
    %1741 = vmatprep.subr.mxu0 %v310
    %1742 = vmatpush1.msra.mxu0 %v309
    %1743 = vmatprep.subr.mxu0 %v306
    %1744 = vmatpush1.msra.mxu0 %v305
    %1745 = vmatprep.subr.mxu0 %v302
    %1746 = vmatpush1.msra.mxu0 %v301
    %1747 = vmatprep.subr.mxu0 %v298
    %1748 = vmatpush1.msra.mxu0 %v297
    %1749 = vmatprep.subr.mxu0 %v294
    %1750 = vmatpush1.msra.mxu0 %v293
    %1751 = vmatprep.subr.mxu0 %v290
    %1752 = vmatpush1.msra.mxu0 %v289
    %1753 = vmatprep.subr.mxu0 %v286
    %1754 = vmatpush1.msra.mxu0 %v285
    %1755 = vmatprep.subr.mxu0 %v282
    %1756 = vmatpush1.msra.mxu0 %v281
    %1757 = vmatprep.subr.mxu0 %v278
    %1758 = vmatpush1.msra.mxu0 %v277
    %1759 = vmatprep.subr.mxu0 %v274
    %1760 = vmatpush1.msra.mxu0 %v273
    %1761 = vmatprep.subr.mxu0 %v270
    %1762 = vmatpush1.msra.mxu0 %v269
    %1763 = vmatprep.subr.mxu0 %v266
    %1764 = vmatpush1.msra.mxu0 %v265
    %1765 = vmatprep.subr.mxu0 %v262
    %1766 = vmatpush1.msra.mxu0 %v261
    %1767 = vmatprep.subr.mxu0 %v258
    %1768 = vmatpush1.msra.mxu0 %v257
    %1769 = vmatprep.subr.mxu0 %v254
    %1770 = vmatpush1.msra.mxu0 %v253
    %1771 = vmatprep.subr.mxu0 %v250
    %1772 = vmatpush1.msra.mxu0 %v249
    %1773 = vmatprep.subr.mxu0 0.0
    %1774 = vmatpush2.msra.mxu0 0.0
    %1775 = vmatprep.subr.mxu0 0.0
    %1776 = vmatpush2.msra.mxu0 0.0
    %1777 = vmatprep.subr.mxu0 0.0
    %1778 = vmatpush2.msra.mxu0 0.0
    %1779 = vmatprep.subr.mxu0 0.0
    %1780 = vmatpush2.msra.mxu0 0.0
    %1781 = vmatprep.subr.mxu0 0.0
    %1782 = vmatpush2.msra.mxu0 0.0
    %1783 = vmatprep.subr.mxu0 0.0
    %1784 = vmatpush2.msra.mxu0 0.0
    %1785 = vmatprep.subr.mxu0 0.0
    %1786 = vmatpush2.msra.mxu0 0.0
    %1787 = vmatprep.subr.mxu0 0.0
    %1788 = vmatpush2.msra.mxu0 0.0
    %1789 = vmatprep.subr.mxu0 0.0
    %1790 = vmatpush2.msra.mxu0 0.0
    %1791 = vmatprep.subr.mxu0 0.0
    %1792 = vmatpush2.msra.mxu0 0.0
    %1793 = vmatprep.subr.mxu0 0.0
    %1794 = vmatpush2.msra.mxu0 0.0
    %1795 = vmatprep.subr.mxu0 0.0
    %1796 = vmatpush2.msra.mxu0 0.0
    %1797 = vmatprep.subr.mxu0 0.0
    %1798 = vmatpush2.msra.mxu0 0.0
    %1799 = vmatprep.subr.mxu0 0.0
    %1800 = vmatpush2.msra.mxu0 0.0
    %1801 = vmatprep.subr.mxu0 0.0
    %1802 = vmatpush2.msra.mxu0 0.0
    %1803 = vmatprep.subr.mxu0 0.0
    %1804 = vmatpush2.msra.mxu0 0.0
    %1805 = vmatprep.mubr.f32.mxu0 0.0
    %1806 = vmatmul.mubr.f32.gmra.mxu0 %v1475
    %v1807 = vpop.f32.mrf.mxu0
    %v1808 = vadd.f32 %v410, %v1807
    %v1809 = vpop.f32.mrf.mxu0
    %v1810 = vadd.f32 %v414, %v1809
    %1811 = vdwg.mxu0
    %1812 = vmatprep.subr.mxu0 %v244
    %1813 = vmatpush1.msra.mxu0 %v243
    %1814 = vmatprep.subr.mxu0 %v240
    %1815 = vmatpush1.msra.mxu0 %v239
    %1816 = vmatprep.subr.mxu0 %v236
    %1817 = vmatpush1.msra.mxu0 %v235
    %1818 = vmatprep.subr.mxu0 %v232
    %1819 = vmatpush1.msra.mxu0 %v231
    %1820 = vmatprep.subr.mxu0 %v228
    %1821 = vmatpush1.msra.mxu0 %v227
    %1822 = vmatprep.subr.mxu0 %v224
    %1823 = vmatpush1.msra.mxu0 %v223
    %1824 = vmatprep.subr.mxu0 %v220
    %1825 = vmatpush1.msra.mxu0 %v219
    %1826 = vmatprep.subr.mxu0 %v216
    %1827 = vmatpush1.msra.mxu0 %v215
    %1828 = vmatprep.subr.mxu0 %v212
    %1829 = vmatpush1.msra.mxu0 %v211
    %1830 = vmatprep.subr.mxu0 %v208
    %1831 = vmatpush1.msra.mxu0 %v207
    %1832 = vmatprep.subr.mxu0 %v204
    %1833 = vmatpush1.msra.mxu0 %v203
    %1834 = vmatprep.subr.mxu0 %v200
    %1835 = vmatpush1.msra.mxu0 %v199
    %1836 = vmatprep.subr.mxu0 %v196
    %1837 = vmatpush1.msra.mxu0 %v195
    %1838 = vmatprep.subr.mxu0 %v192
    %1839 = vmatpush1.msra.mxu0 %v191
    %1840 = vmatprep.subr.mxu0 %v188
    %1841 = vmatpush1.msra.mxu0 %v187
    %1842 = vmatprep.subr.mxu0 %v184
    %1843 = vmatpush1.msra.mxu0 %v183
    %1844 = vmatprep.subr.mxu0 0.0
    %1845 = vmatpush2.msra.mxu0 0.0
    %1846 = vmatprep.subr.mxu0 0.0
    %1847 = vmatpush2.msra.mxu0 0.0
    %1848 = vmatprep.subr.mxu0 0.0
    %1849 = vmatpush2.msra.mxu0 0.0
    %1850 = vmatprep.subr.mxu0 0.0
    %1851 = vmatpush2.msra.mxu0 0.0
    %1852 = vmatprep.subr.mxu0 0.0
    %1853 = vmatpush2.msra.mxu0 0.0
    %1854 = vmatprep.subr.mxu0 0.0
    %1855 = vmatpush2.msra.mxu0 0.0
    %1856 = vmatprep.subr.mxu0 0.0
    %1857 = vmatpush2.msra.mxu0 0.0
    %1858 = vmatprep.subr.mxu0 0.0
    %1859 = vmatpush2.msra.mxu0 0.0
    %1860 = vmatprep.subr.mxu0 0.0
    %1861 = vmatpush2.msra.mxu0 0.0
    %1862 = vmatprep.subr.mxu0 0.0
    %1863 = vmatpush2.msra.mxu0 0.0
    %1864 = vmatprep.subr.mxu0 0.0
    %1865 = vmatpush2.msra.mxu0 0.0
    %1866 = vmatprep.subr.mxu0 0.0
    %1867 = vmatpush2.msra.mxu0 0.0
    %1868 = vmatprep.subr.mxu0 0.0
    %1869 = vmatpush2.msra.mxu0 0.0
    %1870 = vmatprep.subr.mxu0 0.0
    %1871 = vmatpush2.msra.mxu0 0.0
    %1872 = vmatprep.subr.mxu0 0.0
    %1873 = vmatpush2.msra.mxu0 0.0
    %1874 = vmatprep.subr.mxu0 0.0
    %1875 = vmatpush2.msra.mxu0 0.0
    %1876 = vmatprep.mubr.f32.mxu0 0.0
    %1877 = vmatmul.mubr.f32.gmra.mxu0 %v1669
    %v1878 = vpop.f32.mrf.mxu0
    %v1879 = vadd.f32 0.0, %v1878
    %v1880 = vpop.f32.mrf.mxu0
    %v1881 = vadd.f32 0.0, %v1880
    %1882 = vdwg.mxu0
    %1883 = vmatprep.subr.mxu0 %v246
    %1884 = vmatpush1.msra.mxu0 %v245
    %1885 = vmatprep.subr.mxu0 %v242
    %1886 = vmatpush1.msra.mxu0 %v241
    %1887 = vmatprep.subr.mxu0 %v238
    %1888 = vmatpush1.msra.mxu0 %v237
    %1889 = vmatprep.subr.mxu0 %v234
    %1890 = vmatpush1.msra.mxu0 %v233
    %1891 = vmatprep.subr.mxu0 %v230
    %1892 = vmatpush1.msra.mxu0 %v229
    %1893 = vmatprep.subr.mxu0 %v226
    %1894 = vmatpush1.msra.mxu0 %v225
    %1895 = vmatprep.subr.mxu0 %v222
    %1896 = vmatpush1.msra.mxu0 %v221
    %1897 = vmatprep.subr.mxu0 %v218
    %1898 = vmatpush1.msra.mxu0 %v217
    %1899 = vmatprep.subr.mxu0 %v214
    %1900 = vmatpush1.msra.mxu0 %v213
    %1901 = vmatprep.subr.mxu0 %v210
    %1902 = vmatpush1.msra.mxu0 %v209
    %1903 = vmatprep.subr.mxu0 %v206
    %1904 = vmatpush1.msra.mxu0 %v205
    %1905 = vmatprep.subr.mxu0 %v202
    %1906 = vmatpush1.msra.mxu0 %v201
    %1907 = vmatprep.subr.mxu0 %v198
    %1908 = vmatpush1.msra.mxu0 %v197
    %1909 = vmatprep.subr.mxu0 %v194
    %1910 = vmatpush1.msra.mxu0 %v193
    %1911 = vmatprep.subr.mxu0 %v190
    %1912 = vmatpush1.msra.mxu0 %v189
    %1913 = vmatprep.subr.mxu0 %v186
    %1914 = vmatpush1.msra.mxu0 %v185
    %1915 = vmatprep.subr.mxu0 0.0
    %1916 = vmatpush2.msra.mxu0 0.0
    %1917 = vmatprep.subr.mxu0 0.0
    %1918 = vmatpush2.msra.mxu0 0.0
    %1919 = vmatprep.subr.mxu0 0.0
    %1920 = vmatpush2.msra.mxu0 0.0
    %1921 = vmatprep.subr.mxu0 0.0
    %1922 = vmatpush2.msra.mxu0 0.0
    %1923 = vmatprep.subr.mxu0 0.0
    %1924 = vmatpush2.msra.mxu0 0.0
    %1925 = vmatprep.subr.mxu0 0.0
    %1926 = vmatpush2.msra.mxu0 0.0
    %1927 = vmatprep.subr.mxu0 0.0
    %1928 = vmatpush2.msra.mxu0 0.0
    %1929 = vmatprep.subr.mxu0 0.0
    %1930 = vmatpush2.msra.mxu0 0.0
    %1931 = vmatprep.subr.mxu0 0.0
    %1932 = vmatpush2.msra.mxu0 0.0
    %1933 = vmatprep.subr.mxu0 0.0
    %1934 = vmatpush2.msra.mxu0 0.0
    %1935 = vmatprep.subr.mxu0 0.0
    %1936 = vmatpush2.msra.mxu0 0.0
    %1937 = vmatprep.subr.mxu0 0.0
    %1938 = vmatpush2.msra.mxu0 0.0
    %1939 = vmatprep.subr.mxu0 0.0
    %1940 = vmatpush2.msra.mxu0 0.0
    %1941 = vmatprep.subr.mxu0 0.0
    %1942 = vmatpush2.msra.mxu0 0.0
    %1943 = vmatprep.subr.mxu0 0.0
    %1944 = vmatpush2.msra.mxu0 0.0
    %1945 = vmatprep.subr.mxu0 0.0
    %1946 = vmatpush2.msra.mxu0 0.0
    %1947 = vmatprep.mubr.f32.mxu0 0.0
    %1948 = vmatmul.mubr.f32.gmra.mxu0 %v1669
    %v1949 = vpop.f32.mrf.mxu0
    %v1950 = vadd.f32 0.0, %v1949
    %v1951 = vpop.f32.mrf.mxu0
    %v1952 = vadd.f32 0.0, %v1951
    %1953 = vdwg.mxu0
    %v1954 = vadd.f32 %v1737, %v1879
    %v1955 = vadd.f32 %v1739, %v1881
    %v1956 = vadd.f32 %v1808, %v1950
    %v1957 = vadd.f32 %v1810, %v1952
    %v1958 = vxor.u32 %v1954, 2147483648
    %v1959 = vmul.f32 %v1958, 1.442695
    %v1960 = vpow.pop %v1959
    %v1961 = vadd.f32 %v1960, 1.0
    %v1962 = vrcp.pop %v1961
    %v1963 = vmul.f32 1.0, %v1962
    %v1964 = vxor.u32 %v1955, 2147483648
    %v1965 = vmul.f32 %v1964, 1.442695
    %v1966 = vpow.pop %v1965
    %v1967 = vadd.f32 %v1966, 1.0
    %v1968 = vrcp.pop %v1967
    %v1969 = vmul.f32 1.0, %v1968
    %v1970 = vtanh.pop %v1956
    %v1971 = vxor.u32 %v1957, 2147483648
    %v1972 = vmul.f32 %v1971, 1.442695
    %v1973 = vpow.pop %v1972
    %v1974 = vadd.f32 %v1973, 1.0
    %v1975 = vrcp.pop %v1974
    %v1976 = vmul.f32 1.0, %v1975
    %v1977 = vmul.f32 %v1969, %v1473
    %v1978 = vmul.f32 %v1963, %v1970
    %v1979 = vadd.f32 %v1977, %v1978
    %v1980 = vtanh.pop %v1979
    %v1981 = vmul.f32 %v1976, %v1980
    %v1982 = vmul.f32 %v1981, %v446
    %1983 = vadd.xlane.f32.xlu0 %v1982
    %v1984 = vpop.xlane.xlu0 %1983
    %v1985 = vadd.f32 %v1984, %v453
    %1987 = vrot.lane.b32.xlu0 %v1985, 2
    %v1988 = vpop.permute.xlu0 %1987
    %vm1990 = vcmask 23568
    %1991 = vst.msk [vmem:[#allocation14] sm:$0xff] %vm1990, %v1988
    %v1992 = vld [vmem:[#allocation3] sm:$0xff]
    %1994 = vset.pattern.permute.xlu0 3
    %1995 = vperm.xlu0 %1994, %v1992
    %v1996 = vpop.permute.xlu0 %1995
    %v1998 = vmul.f32 %v1996, %v467
    %v1999 = vmul.f32 %v1996, %v471
    %v2000 = vmul.f32 %v1996, %v475
    %v2001 = vmul.f32 %v1996, %v479
    %v2002 = vadd.f32 %v1998, %v380
    %v2003 = vadd.f32 %v1999, %v384
    %v2004 = vadd.f32 %v2000, %v388
    %v2005 = vadd.f32 %v2001, %v392
    %2006 = vmatprep.subr.mxu0 %v180
    %2007 = vmatpush1.msra.mxu0 %v179
    %2008 = vmatprep.subr.mxu0 %v176
    %2009 = vmatpush1.msra.mxu0 %v175
    %2010 = vmatprep.subr.mxu0 %v172
    %2011 = vmatpush1.msra.mxu0 %v171
    %2012 = vmatprep.subr.mxu0 %v168
    %2013 = vmatpush1.msra.mxu0 %v167
    %2014 = vmatprep.subr.mxu0 %v164
    %2015 = vmatpush1.msra.mxu0 %v163
    %2016 = vmatprep.subr.mxu0 %v160
    %2017 = vmatpush1.msra.mxu0 %v159
    %2018 = vmatprep.subr.mxu0 %v156
    %2019 = vmatpush1.msra.mxu0 %v155
    %2020 = vmatprep.subr.mxu0 %v152
    %2021 = vmatpush1.msra.mxu0 %v151
    %2022 = vmatprep.subr.mxu0 %v148
    %2023 = vmatpush1.msra.mxu0 %v147
    %2024 = vmatprep.subr.mxu0 %v144
    %2025 = vmatpush1.msra.mxu0 %v143
    %2026 = vmatprep.subr.mxu0 %v140
    %2027 = vmatpush1.msra.mxu0 %v139
    %2028 = vmatprep.subr.mxu0 %v136
    %2029 = vmatpush1.msra.mxu0 %v135
    %2030 = vmatprep.subr.mxu0 %v132
    %2031 = vmatpush1.msra.mxu0 %v131
    %2032 = vmatprep.subr.mxu0 %v128
    %2033 = vmatpush1.msra.mxu0 %v127
    %2034 = vmatprep.subr.mxu0 %v124
    %2035 = vmatpush1.msra.mxu0 %v123
    %2036 = vmatprep.subr.mxu0 %v120
    %2037 = vmatpush1.msra.mxu0 %v119
    %2038 = vmatprep.subr.mxu0 0.0
    %2039 = vmatpush2.msra.mxu0 0.0
    %2040 = vmatprep.subr.mxu0 0.0
    %2041 = vmatpush2.msra.mxu0 0.0
    %2042 = vmatprep.subr.mxu0 0.0
    %2043 = vmatpush2.msra.mxu0 0.0
    %2044 = vmatprep.subr.mxu0 0.0
    %2045 = vmatpush2.msra.mxu0 0.0
    %2046 = vmatprep.subr.mxu0 0.0
    %2047 = vmatpush2.msra.mxu0 0.0
    %2048 = vmatprep.subr.mxu0 0.0
    %2049 = vmatpush2.msra.mxu0 0.0
    %2050 = vmatprep.subr.mxu0 0.0
    %2051 = vmatpush2.msra.mxu0 0.0
    %2052 = vmatprep.subr.mxu0 0.0
    %2053 = vmatpush2.msra.mxu0 0.0
    %2054 = vmatprep.subr.mxu0 0.0
    %2055 = vmatpush2.msra.mxu0 0.0
    %2056 = vmatprep.subr.mxu0 0.0
    %2057 = vmatpush2.msra.mxu0 0.0
    %2058 = vmatprep.subr.mxu0 0.0
    %2059 = vmatpush2.msra.mxu0 0.0
    %2060 = vmatprep.subr.mxu0 0.0
    %2061 = vmatpush2.msra.mxu0 0.0
    %2062 = vmatprep.subr.mxu0 0.0
    %2063 = vmatpush2.msra.mxu0 0.0
    %2064 = vmatprep.subr.mxu0 0.0
    %2065 = vmatpush2.msra.mxu0 0.0
    %2066 = vmatprep.subr.mxu0 0.0
    %2067 = vmatpush2.msra.mxu0 0.0
    %2068 = vmatprep.subr.mxu0 0.0
    %2069 = vmatpush2.msra.mxu0 0.0
    %2070 = vmatprep.mubr.f32.mxu0 0.0
    %2071 = vmatmul.mubr.f32.gmra.mxu0 %v1669
    %v2072 = vpop.f32.mrf.mxu0
    %v2073 = vadd.f32 0.0, %v2072
    %v2074 = vpop.f32.mrf.mxu0
    %v2075 = vadd.f32 0.0, %v2074
    %2076 = vdwg.mxu0
    %2077 = vmatprep.subr.mxu0 %v182
    %2078 = vmatpush1.msra.mxu0 %v181
    %2079 = vmatprep.subr.mxu0 %v178
    %2080 = vmatpush1.msra.mxu0 %v177
    %2081 = vmatprep.subr.mxu0 %v174
    %2082 = vmatpush1.msra.mxu0 %v173
    %2083 = vmatprep.subr.mxu0 %v170
    %2084 = vmatpush1.msra.mxu0 %v169
    %2085 = vmatprep.subr.mxu0 %v166
    %2086 = vmatpush1.msra.mxu0 %v165
    %2087 = vmatprep.subr.mxu0 %v162
    %2088 = vmatpush1.msra.mxu0 %v161
    %2089 = vmatprep.subr.mxu0 %v158
    %2090 = vmatpush1.msra.mxu0 %v157
    %2091 = vmatprep.subr.mxu0 %v154
    %2092 = vmatpush1.msra.mxu0 %v153
    %2093 = vmatprep.subr.mxu0 %v150
    %2094 = vmatpush1.msra.mxu0 %v149
    %2095 = vmatprep.subr.mxu0 %v146
    %2096 = vmatpush1.msra.mxu0 %v145
    %2097 = vmatprep.subr.mxu0 %v142
    %2098 = vmatpush1.msra.mxu0 %v141
    %2099 = vmatprep.subr.mxu0 %v138
    %2100 = vmatpush1.msra.mxu0 %v137
    %2101 = vmatprep.subr.mxu0 %v134
    %2102 = vmatpush1.msra.mxu0 %v133
    %2103 = vmatprep.subr.mxu0 %v130
    %2104 = vmatpush1.msra.mxu0 %v129
    %2105 = vmatprep.subr.mxu0 %v126
    %2106 = vmatpush1.msra.mxu0 %v125
    %2107 = vmatprep.subr.mxu0 %v122
    %2108 = vmatpush1.msra.mxu0 %v121
    %2109 = vmatprep.subr.mxu0 0.0
    %2110 = vmatpush2.msra.mxu0 0.0
    %2111 = vmatprep.subr.mxu0 0.0
    %2112 = vmatpush2.msra.mxu0 0.0
    %2113 = vmatprep.subr.mxu0 0.0
    %2114 = vmatpush2.msra.mxu0 0.0
    %2115 = vmatprep.subr.mxu0 0.0
    %2116 = vmatpush2.msra.mxu0 0.0
    %2117 = vmatprep.subr.mxu0 0.0
    %2118 = vmatpush2.msra.mxu0 0.0
    %2119 = vmatprep.subr.mxu0 0.0
    %2120 = vmatpush2.msra.mxu0 0.0
    %2121 = vmatprep.subr.mxu0 0.0
    %2122 = vmatpush2.msra.mxu0 0.0
    %2123 = vmatprep.subr.mxu0 0.0
    %2124 = vmatpush2.msra.mxu0 0.0
    %2125 = vmatprep.subr.mxu0 0.0
    %2126 = vmatpush2.msra.mxu0 0.0
    %2127 = vmatprep.subr.mxu0 0.0
    %2128 = vmatpush2.msra.mxu0 0.0
    %2129 = vmatprep.subr.mxu0 0.0
    %2130 = vmatpush2.msra.mxu0 0.0
    %2131 = vmatprep.subr.mxu0 0.0
    %2132 = vmatpush2.msra.mxu0 0.0
    %2133 = vmatprep.subr.mxu0 0.0
    %2134 = vmatpush2.msra.mxu0 0.0
    %2135 = vmatprep.subr.mxu0 0.0
    %2136 = vmatpush2.msra.mxu0 0.0
    %2137 = vmatprep.subr.mxu0 0.0
    %2138 = vmatpush2.msra.mxu0 0.0
    %2139 = vmatprep.subr.mxu0 0.0
    %2140 = vmatpush2.msra.mxu0 0.0
    %2141 = vmatprep.mubr.f32.mxu0 0.0
    %2142 = vmatmul.mubr.f32.gmra.mxu0 %v1669
    %v2143 = vpop.f32.mrf.mxu0
    %v2144 = vadd.f32 0.0, %v2143
    %v2145 = vpop.f32.mrf.mxu0
    %v2146 = vadd.f32 0.0, %v2145
    %2147 = vdwg.mxu0
    %v2148 = vadd.f32 %v2002, %v2073
    %v2149 = vadd.f32 %v2003, %v2075
    %v2150 = vadd.f32 %v2004, %v2144
    %v2151 = vadd.f32 %v2005, %v2146
    %v2152 = vxor.u32 %v2148, 2147483648
    %v2153 = vmul.f32 %v2152, 1.442695
    %v2154 = vpow.pop %v2153
    %v2155 = vadd.f32 %v2154, 1.0
    %v2156 = vrcp.pop %v2155
    %v2157 = vmul.f32 1.0, %v2156
    %v2158 = vxor.u32 %v2149, 2147483648
    %v2159 = vmul.f32 %v2158, 1.442695
    %v2160 = vpow.pop %v2159
    %v2161 = vadd.f32 %v2160, 1.0
    %v2162 = vrcp.pop %v2161
    %v2163 = vmul.f32 1.0, %v2162
    %v2164 = vtanh.pop %v2150
    %v2165 = vxor.u32 %v2151, 2147483648
    %v2166 = vmul.f32 %v2165, 1.442695
    %v2167 = vpow.pop %v2166
    %v2168 = vadd.f32 %v2167, 1.0
    %v2169 = vrcp.pop %v2168
    %v2170 = vmul.f32 1.0, %v2169
    %v2171 = vmul.f32 %v2163, %v1667
    %v2172 = vmul.f32 %v2157, %v2164
    %v2173 = vadd.f32 %v2171, %v2172
    %v2174 = vtanh.pop %v2173
    %v2175 = vmul.f32 %v2170, %v2174
    %2176 = vmatprep.subr.mxu0 %v308
    %2177 = vmatpush1.msra.mxu0 %v307
    %2178 = vmatprep.subr.mxu0 %v304
    %2179 = vmatpush1.msra.mxu0 %v303
    %2180 = vmatprep.subr.mxu0 %v300
    %2181 = vmatpush1.msra.mxu0 %v299
    %2182 = vmatprep.subr.mxu0 %v296
    %2183 = vmatpush1.msra.mxu0 %v295
    %2184 = vmatprep.subr.mxu0 %v292
    %2185 = vmatpush1.msra.mxu0 %v291
    %2186 = vmatprep.subr.mxu0 %v288
    %2187 = vmatpush1.msra.mxu0 %v287
    %2188 = vmatprep.subr.mxu0 %v284
    %2189 = vmatpush1.msra.mxu0 %v283
    %2190 = vmatprep.subr.mxu0 %v280
    %2191 = vmatpush1.msra.mxu0 %v279
    %2192 = vmatprep.subr.mxu0 %v276
    %2193 = vmatpush1.msra.mxu0 %v275
    %2194 = vmatprep.subr.mxu0 %v272
    %2195 = vmatpush1.msra.mxu0 %v271
    %2196 = vmatprep.subr.mxu0 %v268
    %2197 = vmatpush1.msra.mxu0 %v267
    %2198 = vmatprep.subr.mxu0 %v264
    %2199 = vmatpush1.msra.mxu0 %v263
    %2200 = vmatprep.subr.mxu0 %v260
    %2201 = vmatpush1.msra.mxu0 %v259
    %2202 = vmatprep.subr.mxu0 %v256
    %2203 = vmatpush1.msra.mxu0 %v255
    %2204 = vmatprep.subr.mxu0 %v252
    %2205 = vmatpush1.msra.mxu0 %v251
    %2206 = vmatprep.subr.mxu0 %v248
    %2207 = vmatpush1.msra.mxu0 %v247
    %2208 = vmatprep.subr.mxu0 0.0
    %2209 = vmatpush2.msra.mxu0 0.0
    %2210 = vmatprep.subr.mxu0 0.0
    %2211 = vmatpush2.msra.mxu0 0.0
    %2212 = vmatprep.subr.mxu0 0.0
    %2213 = vmatpush2.msra.mxu0 0.0
    %2214 = vmatprep.subr.mxu0 0.0
    %2215 = vmatpush2.msra.mxu0 0.0
    %2216 = vmatprep.subr.mxu0 0.0
    %2217 = vmatpush2.msra.mxu0 0.0
    %2218 = vmatprep.subr.mxu0 0.0
    %2219 = vmatpush2.msra.mxu0 0.0
    %2220 = vmatprep.subr.mxu0 0.0
    %2221 = vmatpush2.msra.mxu0 0.0
    %2222 = vmatprep.subr.mxu0 0.0
    %2223 = vmatpush2.msra.mxu0 0.0
    %2224 = vmatprep.subr.mxu0 0.0
    %2225 = vmatpush2.msra.mxu0 0.0
    %2226 = vmatprep.subr.mxu0 0.0
    %2227 = vmatpush2.msra.mxu0 0.0
    %2228 = vmatprep.subr.mxu0 0.0
    %2229 = vmatpush2.msra.mxu0 0.0
    %2230 = vmatprep.subr.mxu0 0.0
    %2231 = vmatpush2.msra.mxu0 0.0
    %2232 = vmatprep.subr.mxu0 0.0
    %2233 = vmatpush2.msra.mxu0 0.0
    %2234 = vmatprep.subr.mxu0 0.0
    %2235 = vmatpush2.msra.mxu0 0.0
    %2236 = vmatprep.subr.mxu0 0.0
    %2237 = vmatpush2.msra.mxu0 0.0
    %2238 = vmatprep.subr.mxu0 0.0
    %2239 = vmatpush2.msra.mxu0 0.0
    %2240 = vmatprep.mubr.f32.mxu0 0.0
    %2241 = vmatmul.mubr.f32.gmra.mxu0 %v1981
    %v2242 = vpop.f32.mrf.mxu0
    %v2243 = vadd.f32 %v402, %v2242
    %v2244 = vpop.f32.mrf.mxu0
    %v2245 = vadd.f32 %v406, %v2244
    %2246 = vdwg.mxu0
    %2247 = vmatprep.subr.mxu0 %v310
    %2248 = vmatpush1.msra.mxu0 %v309
    %2249 = vmatprep.subr.mxu0 %v306
    %2250 = vmatpush1.msra.mxu0 %v305
    %2251 = vmatprep.subr.mxu0 %v302
    %2252 = vmatpush1.msra.mxu0 %v301
    %2253 = vmatprep.subr.mxu0 %v298
    %2254 = vmatpush1.msra.mxu0 %v297
    %2255 = vmatprep.subr.mxu0 %v294
    %2256 = vmatpush1.msra.mxu0 %v293
    %2257 = vmatprep.subr.mxu0 %v290
    %2258 = vmatpush1.msra.mxu0 %v289
    %2259 = vmatprep.subr.mxu0 %v286
    %2260 = vmatpush1.msra.mxu0 %v285
    %2261 = vmatprep.subr.mxu0 %v282
    %2262 = vmatpush1.msra.mxu0 %v281
    %2263 = vmatprep.subr.mxu0 %v278
    %2264 = vmatpush1.msra.mxu0 %v277
    %2265 = vmatprep.subr.mxu0 %v274
    %2266 = vmatpush1.msra.mxu0 %v273
    %2267 = vmatprep.subr.mxu0 %v270
    %2268 = vmatpush1.msra.mxu0 %v269
    %2269 = vmatprep.subr.mxu0 %v266
    %2270 = vmatpush1.msra.mxu0 %v265
    %2271 = vmatprep.subr.mxu0 %v262
    %2272 = vmatpush1.msra.mxu0 %v261
    %2273 = vmatprep.subr.mxu0 %v258
    %2274 = vmatpush1.msra.mxu0 %v257
    %2275 = vmatprep.subr.mxu0 %v254
    %2276 = vmatpush1.msra.mxu0 %v253
    %2277 = vmatprep.subr.mxu0 %v250
    %2278 = vmatpush1.msra.mxu0 %v249
    %2279 = vmatprep.subr.mxu0 0.0
    %2280 = vmatpush2.msra.mxu0 0.0
    %2281 = vmatprep.subr.mxu0 0.0
    %2282 = vmatpush2.msra.mxu0 0.0
    %2283 = vmatprep.subr.mxu0 0.0
    %2284 = vmatpush2.msra.mxu0 0.0
    %2285 = vmatprep.subr.mxu0 0.0
    %2286 = vmatpush2.msra.mxu0 0.0
    %2287 = vmatprep.subr.mxu0 0.0
    %2288 = vmatpush2.msra.mxu0 0.0
    %2289 = vmatprep.subr.mxu0 0.0
    %2290 = vmatpush2.msra.mxu0 0.0
    %2291 = vmatprep.subr.mxu0 0.0
    %2292 = vmatpush2.msra.mxu0 0.0
    %2293 = vmatprep.subr.mxu0 0.0
    %2294 = vmatpush2.msra.mxu0 0.0
    %2295 = vmatprep.subr.mxu0 0.0
    %2296 = vmatpush2.msra.mxu0 0.0
    %2297 = vmatprep.subr.mxu0 0.0
    %2298 = vmatpush2.msra.mxu0 0.0
    %2299 = vmatprep.subr.mxu0 0.0
    %2300 = vmatpush2.msra.mxu0 0.0
    %2301 = vmatprep.subr.mxu0 0.0
    %2302 = vmatpush2.msra.mxu0 0.0
    %2303 = vmatprep.subr.mxu0 0.0
    %2304 = vmatpush2.msra.mxu0 0.0
    %2305 = vmatprep.subr.mxu0 0.0
    %2306 = vmatpush2.msra.mxu0 0.0
    %2307 = vmatprep.subr.mxu0 0.0
    %2308 = vmatpush2.msra.mxu0 0.0
    %2309 = vmatprep.subr.mxu0 0.0
    %2310 = vmatpush2.msra.mxu0 0.0
    %2311 = vmatprep.mubr.f32.mxu0 0.0
    %2312 = vmatmul.mubr.f32.gmra.mxu0 %v1981
    %v2313 = vpop.f32.mrf.mxu0
    %v2314 = vadd.f32 %v410, %v2313
    %v2315 = vpop.f32.mrf.mxu0
    %v2316 = vadd.f32 %v414, %v2315
    %2317 = vdwg.mxu0
    %2318 = vmatprep.subr.mxu0 %v244
    %2319 = vmatpush1.msra.mxu0 %v243
    %2320 = vmatprep.subr.mxu0 %v240
    %2321 = vmatpush1.msra.mxu0 %v239
    %2322 = vmatprep.subr.mxu0 %v236
    %2323 = vmatpush1.msra.mxu0 %v235
    %2324 = vmatprep.subr.mxu0 %v232
    %2325 = vmatpush1.msra.mxu0 %v231
    %2326 = vmatprep.subr.mxu0 %v228
    %2327 = vmatpush1.msra.mxu0 %v227
    %2328 = vmatprep.subr.mxu0 %v224
    %2329 = vmatpush1.msra.mxu0 %v223
    %2330 = vmatprep.subr.mxu0 %v220
    %2331 = vmatpush1.msra.mxu0 %v219
    %2332 = vmatprep.subr.mxu0 %v216
    %2333 = vmatpush1.msra.mxu0 %v215
    %2334 = vmatprep.subr.mxu0 %v212
    %2335 = vmatpush1.msra.mxu0 %v211
    %2336 = vmatprep.subr.mxu0 %v208
    %2337 = vmatpush1.msra.mxu0 %v207
    %2338 = vmatprep.subr.mxu0 %v204
    %2339 = vmatpush1.msra.mxu0 %v203
    %2340 = vmatprep.subr.mxu0 %v200
    %2341 = vmatpush1.msra.mxu0 %v199
    %2342 = vmatprep.subr.mxu0 %v196
    %2343 = vmatpush1.msra.mxu0 %v195
    %2344 = vmatprep.subr.mxu0 %v192
    %2345 = vmatpush1.msra.mxu0 %v191
    %2346 = vmatprep.subr.mxu0 %v188
    %2347 = vmatpush1.msra.mxu0 %v187
    %2348 = vmatprep.subr.mxu0 %v184
    %2349 = vmatpush1.msra.mxu0 %v183
    %2350 = vmatprep.subr.mxu0 0.0
    %2351 = vmatpush2.msra.mxu0 0.0
    %2352 = vmatprep.subr.mxu0 0.0
    %2353 = vmatpush2.msra.mxu0 0.0
    %2354 = vmatprep.subr.mxu0 0.0
    %2355 = vmatpush2.msra.mxu0 0.0
    %2356 = vmatprep.subr.mxu0 0.0
    %2357 = vmatpush2.msra.mxu0 0.0
    %2358 = vmatprep.subr.mxu0 0.0
    %2359 = vmatpush2.msra.mxu0 0.0
    %2360 = vmatprep.subr.mxu0 0.0
    %2361 = vmatpush2.msra.mxu0 0.0
    %2362 = vmatprep.subr.mxu0 0.0
    %2363 = vmatpush2.msra.mxu0 0.0
    %2364 = vmatprep.subr.mxu0 0.0
    %2365 = vmatpush2.msra.mxu0 0.0
    %2366 = vmatprep.subr.mxu0 0.0
    %2367 = vmatpush2.msra.mxu0 0.0
    %2368 = vmatprep.subr.mxu0 0.0
    %2369 = vmatpush2.msra.mxu0 0.0
    %2370 = vmatprep.subr.mxu0 0.0
    %2371 = vmatpush2.msra.mxu0 0.0
    %2372 = vmatprep.subr.mxu0 0.0
    %2373 = vmatpush2.msra.mxu0 0.0
    %2374 = vmatprep.subr.mxu0 0.0
    %2375 = vmatpush2.msra.mxu0 0.0
    %2376 = vmatprep.subr.mxu0 0.0
    %2377 = vmatpush2.msra.mxu0 0.0
    %2378 = vmatprep.subr.mxu0 0.0
    %2379 = vmatpush2.msra.mxu0 0.0
    %2380 = vmatprep.subr.mxu0 0.0
    %2381 = vmatpush2.msra.mxu0 0.0
    %2382 = vmatprep.mubr.f32.mxu0 0.0
    %2383 = vmatmul.mubr.f32.gmra.mxu0 %v2175
    %v2384 = vpop.f32.mrf.mxu0
    %v2385 = vadd.f32 0.0, %v2384
    %v2386 = vpop.f32.mrf.mxu0
    %v2387 = vadd.f32 0.0, %v2386
    %2388 = vdwg.mxu0
    %2389 = vmatprep.subr.mxu0 %v246
    %2390 = vmatpush1.msra.mxu0 %v245
    %2391 = vmatprep.subr.mxu0 %v242
    %2392 = vmatpush1.msra.mxu0 %v241
    %2393 = vmatprep.subr.mxu0 %v238
    %2394 = vmatpush1.msra.mxu0 %v237
    %2395 = vmatprep.subr.mxu0 %v234
    %2396 = vmatpush1.msra.mxu0 %v233
    %2397 = vmatprep.subr.mxu0 %v230
    %2398 = vmatpush1.msra.mxu0 %v229
    %2399 = vmatprep.subr.mxu0 %v226
    %2400 = vmatpush1.msra.mxu0 %v225
    %2401 = vmatprep.subr.mxu0 %v222
    %2402 = vmatpush1.msra.mxu0 %v221
    %2403 = vmatprep.subr.mxu0 %v218
    %2404 = vmatpush1.msra.mxu0 %v217
    %2405 = vmatprep.subr.mxu0 %v214
    %2406 = vmatpush1.msra.mxu0 %v213
    %2407 = vmatprep.subr.mxu0 %v210
    %2408 = vmatpush1.msra.mxu0 %v209
    %2409 = vmatprep.subr.mxu0 %v206
    %2410 = vmatpush1.msra.mxu0 %v205
    %2411 = vmatprep.subr.mxu0 %v202
    %2412 = vmatpush1.msra.mxu0 %v201
    %2413 = vmatprep.subr.mxu0 %v198
    %2414 = vmatpush1.msra.mxu0 %v197
    %2415 = vmatprep.subr.mxu0 %v194
    %2416 = vmatpush1.msra.mxu0 %v193
    %2417 = vmatprep.subr.mxu0 %v190
    %2418 = vmatpush1.msra.mxu0 %v189
    %2419 = vmatprep.subr.mxu0 %v186
    %2420 = vmatpush1.msra.mxu0 %v185
    %2421 = vmatprep.subr.mxu0 0.0
    %2422 = vmatpush2.msra.mxu0 0.0
    %2423 = vmatprep.subr.mxu0 0.0
    %2424 = vmatpush2.msra.mxu0 0.0
    %2425 = vmatprep.subr.mxu0 0.0
    %2426 = vmatpush2.msra.mxu0 0.0
    %2427 = vmatprep.subr.mxu0 0.0
    %2428 = vmatpush2.msra.mxu0 0.0
    %2429 = vmatprep.subr.mxu0 0.0
    %2430 = vmatpush2.msra.mxu0 0.0
    %2431 = vmatprep.subr.mxu0 0.0
    %2432 = vmatpush2.msra.mxu0 0.0
    %2433 = vmatprep.subr.mxu0 0.0
    %2434 = vmatpush2.msra.mxu0 0.0
    %2435 = vmatprep.subr.mxu0 0.0
    %2436 = vmatpush2.msra.mxu0 0.0
    %2437 = vmatprep.subr.mxu0 0.0
    %2438 = vmatpush2.msra.mxu0 0.0
    %2439 = vmatprep.subr.mxu0 0.0
    %2440 = vmatpush2.msra.mxu0 0.0
    %2441 = vmatprep.subr.mxu0 0.0
    %2442 = vmatpush2.msra.mxu0 0.0
    %2443 = vmatprep.subr.mxu0 0.0
    %2444 = vmatpush2.msra.mxu0 0.0
    %2445 = vmatprep.subr.mxu0 0.0
    %2446 = vmatpush2.msra.mxu0 0.0
    %2447 = vmatprep.subr.mxu0 0.0
    %2448 = vmatpush2.msra.mxu0 0.0
    %2449 = vmatprep.subr.mxu0 0.0
    %2450 = vmatpush2.msra.mxu0 0.0
    %2451 = vmatprep.subr.mxu0 0.0
    %2452 = vmatpush2.msra.mxu0 0.0
    %2453 = vmatprep.mubr.f32.mxu0 0.0
    %2454 = vmatmul.mubr.f32.gmra.mxu0 %v2175
    %v2455 = vpop.f32.mrf.mxu0
    %v2456 = vadd.f32 0.0, %v2455
    %v2457 = vpop.f32.mrf.mxu0
    %v2458 = vadd.f32 0.0, %v2457
    %2459 = vdwg.mxu0
    %v2460 = vadd.f32 %v2243, %v2385
    %v2461 = vadd.f32 %v2245, %v2387
    %v2462 = vadd.f32 %v2314, %v2456
    %v2463 = vadd.f32 %v2316, %v2458
    %v2464 = vxor.u32 %v2460, 2147483648
    %v2465 = vmul.f32 %v2464, 1.442695
    %v2466 = vpow.pop %v2465
    %v2467 = vadd.f32 %v2466, 1.0
    %v2468 = vrcp.pop %v2467
    %v2469 = vmul.f32 1.0, %v2468
    %v2470 = vxor.u32 %v2461, 2147483648
    %v2471 = vmul.f32 %v2470, 1.442695
    %v2472 = vpow.pop %v2471
    %v2473 = vadd.f32 %v2472, 1.0
    %v2474 = vrcp.pop %v2473
    %v2475 = vmul.f32 1.0, %v2474
    %v2476 = vtanh.pop %v2462
    %v2477 = vxor.u32 %v2463, 2147483648
    %v2478 = vmul.f32 %v2477, 1.442695
    %v2479 = vpow.pop %v2478
    %v2480 = vadd.f32 %v2479, 1.0
    %v2481 = vrcp.pop %v2480
    %v2482 = vmul.f32 1.0, %v2481
    %v2483 = vmul.f32 %v2475, %v1979
    %v2484 = vmul.f32 %v2469, %v2476
    %v2485 = vadd.f32 %v2483, %v2484
    %v2486 = vtanh.pop %v2485
    %v2487 = vmul.f32 %v2482, %v2486
    %v2488 = vmul.f32 %v2487, %v446
    %2489 = vadd.xlane.f32.xlu0 %v2488
    %v2490 = vpop.xlane.xlu0 %2489
    %v2491 = vadd.f32 %v2490, %v453
    %2493 = vrot.lane.b32.xlu0 %v2491, 3
    %v2494 = vpop.permute.xlu0 %2493
    %vm2496 = vcmask 31768
    %2497 = vst.msk [vmem:[#allocation14] sm:$0xff] %vm2496, %v2494
    %v2498 = vld [vmem:[#allocation3] sm:$0xff]
    %2500 = vset.pattern.permute.xlu0 4
    %2501 = vperm.xlu0 %2500, %v2498
    %v2502 = vpop.permute.xlu0 %2501
    %v2504 = vmul.f32 %v2502, %v467
    %v2505 = vmul.f32 %v2502, %v471
    %v2506 = vmul.f32 %v2502, %v475
    %v2507 = vmul.f32 %v2502, %v479
    %v2508 = vadd.f32 %v2504, %v380
    %v2509 = vadd.f32 %v2505, %v384
    %v2510 = vadd.f32 %v2506, %v388
    %v2511 = vadd.f32 %v2507, %v392
    %2512 = vmatprep.subr.mxu0 %v180
    %2513 = vmatpush1.msra.mxu0 %v179
    %2514 = vmatprep.subr.mxu0 %v176
    %2515 = vmatpush1.msra.mxu0 %v175
    %2516 = vmatprep.subr.mxu0 %v172
    %2517 = vmatpush1.msra.mxu0 %v171
    %2518 = vmatprep.subr.mxu0 %v168
    %2519 = vmatpush1.msra.mxu0 %v167
    %2520 = vmatprep.subr.mxu0 %v164
    %2521 = vmatpush1.msra.mxu0 %v163
    %2522 = vmatprep.subr.mxu0 %v160
    %2523 = vmatpush1.msra.mxu0 %v159
    %2524 = vmatprep.subr.mxu0 %v156
    %2525 = vmatpush1.msra.mxu0 %v155
    %2526 = vmatprep.subr.mxu0 %v152
    %2527 = vmatpush1.msra.mxu0 %v151
    %2528 = vmatprep.subr.mxu0 %v148
    %2529 = vmatpush1.msra.mxu0 %v147
    %2530 = vmatprep.subr.mxu0 %v144
    %2531 = vmatpush1.msra.mxu0 %v143
    %2532 = vmatprep.subr.mxu0 %v140
    %2533 = vmatpush1.msra.mxu0 %v139
    %2534 = vmatprep.subr.mxu0 %v136
    %2535 = vmatpush1.msra.mxu0 %v135
    %2536 = vmatprep.subr.mxu0 %v132
    %2537 = vmatpush1.msra.mxu0 %v131
    %2538 = vmatprep.subr.mxu0 %v128
    %2539 = vmatpush1.msra.mxu0 %v127
    %2540 = vmatprep.subr.mxu0 %v124
    %2541 = vmatpush1.msra.mxu0 %v123
    %2542 = vmatprep.subr.mxu0 %v120
    %2543 = vmatpush1.msra.mxu0 %v119
    %2544 = vmatprep.subr.mxu0 0.0
    %2545 = vmatpush2.msra.mxu0 0.0
    %2546 = vmatprep.subr.mxu0 0.0
    %2547 = vmatpush2.msra.mxu0 0.0
    %2548 = vmatprep.subr.mxu0 0.0
    %2549 = vmatpush2.msra.mxu0 0.0
    %2550 = vmatprep.subr.mxu0 0.0
    %2551 = vmatpush2.msra.mxu0 0.0
    %2552 = vmatprep.subr.mxu0 0.0
    %2553 = vmatpush2.msra.mxu0 0.0
    %2554 = vmatprep.subr.mxu0 0.0
    %2555 = vmatpush2.msra.mxu0 0.0
    %2556 = vmatprep.subr.mxu0 0.0
    %2557 = vmatpush2.msra.mxu0 0.0
    %2558 = vmatprep.subr.mxu0 0.0
    %2559 = vmatpush2.msra.mxu0 0.0
    %2560 = vmatprep.subr.mxu0 0.0
    %2561 = vmatpush2.msra.mxu0 0.0
    %2562 = vmatprep.subr.mxu0 0.0
    %2563 = vmatpush2.msra.mxu0 0.0
    %2564 = vmatprep.subr.mxu0 0.0
    %2565 = vmatpush2.msra.mxu0 0.0
    %2566 = vmatprep.subr.mxu0 0.0
    %2567 = vmatpush2.msra.mxu0 0.0
    %2568 = vmatprep.subr.mxu0 0.0
    %2569 = vmatpush2.msra.mxu0 0.0
    %2570 = vmatprep.subr.mxu0 0.0
    %2571 = vmatpush2.msra.mxu0 0.0
    %2572 = vmatprep.subr.mxu0 0.0
    %2573 = vmatpush2.msra.mxu0 0.0
    %2574 = vmatprep.subr.mxu0 0.0
    %2575 = vmatpush2.msra.mxu0 0.0
    %2576 = vmatprep.mubr.f32.mxu0 0.0
    %2577 = vmatmul.mubr.f32.gmra.mxu0 %v2175
    %v2578 = vpop.f32.mrf.mxu0
    %v2579 = vadd.f32 0.0, %v2578
    %v2580 = vpop.f32.mrf.mxu0
    %v2581 = vadd.f32 0.0, %v2580
    %2582 = vdwg.mxu0
    %2583 = vmatprep.subr.mxu0 %v182
    %2584 = vmatpush1.msra.mxu0 %v181
    %2585 = vmatprep.subr.mxu0 %v178
    %2586 = vmatpush1.msra.mxu0 %v177
    %2587 = vmatprep.subr.mxu0 %v174
    %2588 = vmatpush1.msra.mxu0 %v173
    %2589 = vmatprep.subr.mxu0 %v170
    %2590 = vmatpush1.msra.mxu0 %v169
    %2591 = vmatprep.subr.mxu0 %v166
    %2592 = vmatpush1.msra.mxu0 %v165
    %2593 = vmatprep.subr.mxu0 %v162
    %2594 = vmatpush1.msra.mxu0 %v161
    %2595 = vmatprep.subr.mxu0 %v158
    %2596 = vmatpush1.msra.mxu0 %v157
    %2597 = vmatprep.subr.mxu0 %v154
    %2598 = vmatpush1.msra.mxu0 %v153
    %2599 = vmatprep.subr.mxu0 %v150
    %2600 = vmatpush1.msra.mxu0 %v149
    %2601 = vmatprep.subr.mxu0 %v146
    %2602 = vmatpush1.msra.mxu0 %v145
    %2603 = vmatprep.subr.mxu0 %v142
    %2604 = vmatpush1.msra.mxu0 %v141
    %2605 = vmatprep.subr.mxu0 %v138
    %2606 = vmatpush1.msra.mxu0 %v137
    %2607 = vmatprep.subr.mxu0 %v134
    %2608 = vmatpush1.msra.mxu0 %v133
    %2609 = vmatprep.subr.mxu0 %v130
    %2610 = vmatpush1.msra.mxu0 %v129
    %2611 = vmatprep.subr.mxu0 %v126
    %2612 = vmatpush1.msra.mxu0 %v125
    %2613 = vmatprep.subr.mxu0 %v122
    %2614 = vmatpush1.msra.mxu0 %v121
    %2615 = vmatprep.subr.mxu0 0.0
    %2616 = vmatpush2.msra.mxu0 0.0
    %2617 = vmatprep.subr.mxu0 0.0
    %2618 = vmatpush2.msra.mxu0 0.0
    %2619 = vmatprep.subr.mxu0 0.0
    %2620 = vmatpush2.msra.mxu0 0.0
    %2621 = vmatprep.subr.mxu0 0.0
    %2622 = vmatpush2.msra.mxu0 0.0
    %2623 = vmatprep.subr.mxu0 0.0
    %2624 = vmatpush2.msra.mxu0 0.0
    %2625 = vmatprep.subr.mxu0 0.0
    %2626 = vmatpush2.msra.mxu0 0.0
    %2627 = vmatprep.subr.mxu0 0.0
    %2628 = vmatpush2.msra.mxu0 0.0
    %2629 = vmatprep.subr.mxu0 0.0
    %2630 = vmatpush2.msra.mxu0 0.0
    %2631 = vmatprep.subr.mxu0 0.0
    %2632 = vmatpush2.msra.mxu0 0.0
    %2633 = vmatprep.subr.mxu0 0.0
    %2634 = vmatpush2.msra.mxu0 0.0
    %2635 = vmatprep.subr.mxu0 0.0
    %2636 = vmatpush2.msra.mxu0 0.0
    %2637 = vmatprep.subr.mxu0 0.0
    %2638 = vmatpush2.msra.mxu0 0.0
    %2639 = vmatprep.subr.mxu0 0.0
    %2640 = vmatpush2.msra.mxu0 0.0
    %2641 = vmatprep.subr.mxu0 0.0
    %2642 = vmatpush2.msra.mxu0 0.0
    %2643 = vmatprep.subr.mxu0 0.0
    %2644 = vmatpush2.msra.mxu0 0.0
    %2645 = vmatprep.subr.mxu0 0.0
    %2646 = vmatpush2.msra.mxu0 0.0
    %2647 = vmatprep.mubr.f32.mxu0 0.0
    %2648 = vmatmul.mubr.f32.gmra.mxu0 %v2175
    %v2649 = vpop.f32.mrf.mxu0
    %v2650 = vadd.f32 0.0, %v2649
    %v2651 = vpop.f32.mrf.mxu0
    %v2652 = vadd.f32 0.0, %v2651
    %2653 = vdwg.mxu0
    %v2654 = vadd.f32 %v2508, %v2579
    %v2655 = vadd.f32 %v2509, %v2581
    %v2656 = vadd.f32 %v2510, %v2650
    %v2657 = vadd.f32 %v2511, %v2652
    %v2658 = vxor.u32 %v2654, 2147483648
    %v2659 = vmul.f32 %v2658, 1.442695
    %v2660 = vpow.pop %v2659
    %v2661 = vadd.f32 %v2660, 1.0
    %v2662 = vrcp.pop %v2661
    %v2663 = vmul.f32 1.0, %v2662
    %v2664 = vxor.u32 %v2655, 2147483648
    %v2665 = vmul.f32 %v2664, 1.442695
    %v2666 = vpow.pop %v2665
    %v2667 = vadd.f32 %v2666, 1.0
    %v2668 = vrcp.pop %v2667
    %v2669 = vmul.f32 1.0, %v2668
    %v2670 = vtanh.pop %v2656
    %v2671 = vxor.u32 %v2657, 2147483648
    %v2672 = vmul.f32 %v2671, 1.442695
    %v2673 = vpow.pop %v2672
    %v2674 = vadd.f32 %v2673, 1.0
    %v2675 = vrcp.pop %v2674
    %v2676 = vmul.f32 1.0, %v2675
    %v2677 = vmul.f32 %v2669, %v2173
    %v2678 = vmul.f32 %v2663, %v2670
    %v2679 = vadd.f32 %v2677, %v2678
    %v2680 = vtanh.pop %v2679
    %v2681 = vmul.f32 %v2676, %v2680
    %2682 = vmatprep.subr.mxu0 %v308
    %2683 = vmatpush1.msra.mxu0 %v307
    %2684 = vmatprep.subr.mxu0 %v304
    %2685 = vmatpush1.msra.mxu0 %v303
    %2686 = vmatprep.subr.mxu0 %v300
    %2687 = vmatpush1.msra.mxu0 %v299
    %2688 = vmatprep.subr.mxu0 %v296
    %2689 = vmatpush1.msra.mxu0 %v295
    %2690 = vmatprep.subr.mxu0 %v292
    %2691 = vmatpush1.msra.mxu0 %v291
    %2692 = vmatprep.subr.mxu0 %v288
    %2693 = vmatpush1.msra.mxu0 %v287
    %2694 = vmatprep.subr.mxu0 %v284
    %2695 = vmatpush1.msra.mxu0 %v283
    %2696 = vmatprep.subr.mxu0 %v280
    %2697 = vmatpush1.msra.mxu0 %v279
    %2698 = vmatprep.subr.mxu0 %v276
    %2699 = vmatpush1.msra.mxu0 %v275
    %2700 = vmatprep.subr.mxu0 %v272
    %2701 = vmatpush1.msra.mxu0 %v271
    %2702 = vmatprep.subr.mxu0 %v268
    %2703 = vmatpush1.msra.mxu0 %v267
    %2704 = vmatprep.subr.mxu0 %v264
    %2705 = vmatpush1.msra.mxu0 %v263
    %2706 = vmatprep.subr.mxu0 %v260
    %2707 = vmatpush1.msra.mxu0 %v259
    %2708 = vmatprep.subr.mxu0 %v256
    %2709 = vmatpush1.msra.mxu0 %v255
    %2710 = vmatprep.subr.mxu0 %v252
    %2711 = vmatpush1.msra.mxu0 %v251
    %2712 = vmatprep.subr.mxu0 %v248
    %2713 = vmatpush1.msra.mxu0 %v247
    %2714 = vmatprep.subr.mxu0 0.0
    %2715 = vmatpush2.msra.mxu0 0.0
    %2716 = vmatprep.subr.mxu0 0.0
    %2717 = vmatpush2.msra.mxu0 0.0
    %2718 = vmatprep.subr.mxu0 0.0
    %2719 = vmatpush2.msra.mxu0 0.0
    %2720 = vmatprep.subr.mxu0 0.0
    %2721 = vmatpush2.msra.mxu0 0.0
    %2722 = vmatprep.subr.mxu0 0.0
    %2723 = vmatpush2.msra.mxu0 0.0
    %2724 = vmatprep.subr.mxu0 0.0
    %2725 = vmatpush2.msra.mxu0 0.0
    %2726 = vmatprep.subr.mxu0 0.0
    %2727 = vmatpush2.msra.mxu0 0.0
    %2728 = vmatprep.subr.mxu0 0.0
    %2729 = vmatpush2.msra.mxu0 0.0
    %2730 = vmatprep.subr.mxu0 0.0
    %2731 = vmatpush2.msra.mxu0 0.0
    %2732 = vmatprep.subr.mxu0 0.0
    %2733 = vmatpush2.msra.mxu0 0.0
    %2734 = vmatprep.subr.mxu0 0.0
    %2735 = vmatpush2.msra.mxu0 0.0
    %2736 = vmatprep.subr.mxu0 0.0
    %2737 = vmatpush2.msra.mxu0 0.0
    %2738 = vmatprep.subr.mxu0 0.0
    %2739 = vmatpush2.msra.mxu0 0.0
    %2740 = vmatprep.subr.mxu0 0.0
    %2741 = vmatpush2.msra.mxu0 0.0
    %2742 = vmatprep.subr.mxu0 0.0
    %2743 = vmatpush2.msra.mxu0 0.0
    %2744 = vmatprep.subr.mxu0 0.0
    %2745 = vmatpush2.msra.mxu0 0.0
    %2746 = vmatprep.mubr.f32.mxu0 0.0
    %2747 = vmatmul.mubr.f32.gmra.mxu0 %v2487
    %v2748 = vpop.f32.mrf.mxu0
    %v2749 = vadd.f32 %v402, %v2748
    %v2750 = vpop.f32.mrf.mxu0
    %v2751 = vadd.f32 %v406, %v2750
    %2752 = vdwg.mxu0
    %2753 = vmatprep.subr.mxu0 %v310
    %2754 = vmatpush1.msra.mxu0 %v309
    %2755 = vmatprep.subr.mxu0 %v306
    %2756 = vmatpush1.msra.mxu0 %v305
    %2757 = vmatprep.subr.mxu0 %v302
    %2758 = vmatpush1.msra.mxu0 %v301
    %2759 = vmatprep.subr.mxu0 %v298
    %2760 = vmatpush1.msra.mxu0 %v297
    %2761 = vmatprep.subr.mxu0 %v294
    %2762 = vmatpush1.msra.mxu0 %v293
    %2763 = vmatprep.subr.mxu0 %v290
    %2764 = vmatpush1.msra.mxu0 %v289
    %2765 = vmatprep.subr.mxu0 %v286
    %2766 = vmatpush1.msra.mxu0 %v285
    %2767 = vmatprep.subr.mxu0 %v282
    %2768 = vmatpush1.msra.mxu0 %v281
    %2769 = vmatprep.subr.mxu0 %v278
    %2770 = vmatpush1.msra.mxu0 %v277
    %2771 = vmatprep.subr.mxu0 %v274
    %2772 = vmatpush1.msra.mxu0 %v273
    %2773 = vmatprep.subr.mxu0 %v270
    %2774 = vmatpush1.msra.mxu0 %v269
    %2775 = vmatprep.subr.mxu0 %v266
    %2776 = vmatpush1.msra.mxu0 %v265
    %2777 = vmatprep.subr.mxu0 %v262
    %2778 = vmatpush1.msra.mxu0 %v261
    %2779 = vmatprep.subr.mxu0 %v258
    %2780 = vmatpush1.msra.mxu0 %v257
    %2781 = vmatprep.subr.mxu0 %v254
    %2782 = vmatpush1.msra.mxu0 %v253
    %2783 = vmatprep.subr.mxu0 %v250
    %2784 = vmatpush1.msra.mxu0 %v249
    %2785 = vmatprep.subr.mxu0 0.0
    %2786 = vmatpush2.msra.mxu0 0.0
    %2787 = vmatprep.subr.mxu0 0.0
    %2788 = vmatpush2.msra.mxu0 0.0
    %2789 = vmatprep.subr.mxu0 0.0
    %2790 = vmatpush2.msra.mxu0 0.0
    %2791 = vmatprep.subr.mxu0 0.0
    %2792 = vmatpush2.msra.mxu0 0.0
    %2793 = vmatprep.subr.mxu0 0.0
    %2794 = vmatpush2.msra.mxu0 0.0
    %2795 = vmatprep.subr.mxu0 0.0
    %2796 = vmatpush2.msra.mxu0 0.0
    %2797 = vmatprep.subr.mxu0 0.0
    %2798 = vmatpush2.msra.mxu0 0.0
    %2799 = vmatprep.subr.mxu0 0.0
    %2800 = vmatpush2.msra.mxu0 0.0
    %2801 = vmatprep.subr.mxu0 0.0
    %2802 = vmatpush2.msra.mxu0 0.0
    %2803 = vmatprep.subr.mxu0 0.0
    %2804 = vmatpush2.msra.mxu0 0.0
    %2805 = vmatprep.subr.mxu0 0.0
    %2806 = vmatpush2.msra.mxu0 0.0
    %2807 = vmatprep.subr.mxu0 0.0
    %2808 = vmatpush2.msra.mxu0 0.0
    %2809 = vmatprep.subr.mxu0 0.0
    %2810 = vmatpush2.msra.mxu0 0.0
    %2811 = vmatprep.subr.mxu0 0.0
    %2812 = vmatpush2.msra.mxu0 0.0
    %2813 = vmatprep.subr.mxu0 0.0
    %2814 = vmatpush2.msra.mxu0 0.0
    %2815 = vmatprep.subr.mxu0 0.0
    %2816 = vmatpush2.msra.mxu0 0.0
    %2817 = vmatprep.mubr.f32.mxu0 0.0
    %2818 = vmatmul.mubr.f32.gmra.mxu0 %v2487
    %v2819 = vpop.f32.mrf.mxu0
    %v2820 = vadd.f32 %v410, %v2819
    %v2821 = vpop.f32.mrf.mxu0
    %v2822 = vadd.f32 %v414, %v2821
    %2823 = vdwg.mxu0
    %2824 = vmatprep.subr.mxu0 %v244
    %2825 = vmatpush1.msra.mxu0 %v243
    %2826 = vmatprep.subr.mxu0 %v240
    %2827 = vmatpush1.msra.mxu0 %v239
    %2828 = vmatprep.subr.mxu0 %v236
    %2829 = vmatpush1.msra.mxu0 %v235
    %2830 = vmatprep.subr.mxu0 %v232
    %2831 = vmatpush1.msra.mxu0 %v231
    %2832 = vmatprep.subr.mxu0 %v228
    %2833 = vmatpush1.msra.mxu0 %v227
    %2834 = vmatprep.subr.mxu0 %v224
    %2835 = vmatpush1.msra.mxu0 %v223
    %2836 = vmatprep.subr.mxu0 %v220
    %2837 = vmatpush1.msra.mxu0 %v219
    %2838 = vmatprep.subr.mxu0 %v216
    %2839 = vmatpush1.msra.mxu0 %v215
    %2840 = vmatprep.subr.mxu0 %v212
    %2841 = vmatpush1.msra.mxu0 %v211
    %2842 = vmatprep.subr.mxu0 %v208
    %2843 = vmatpush1.msra.mxu0 %v207
    %2844 = vmatprep.subr.mxu0 %v204
    %2845 = vmatpush1.msra.mxu0 %v203
    %2846 = vmatprep.subr.mxu0 %v200
    %2847 = vmatpush1.msra.mxu0 %v199
    %2848 = vmatprep.subr.mxu0 %v196
    %2849 = vmatpush1.msra.mxu0 %v195
    %2850 = vmatprep.subr.mxu0 %v192
    %2851 = vmatpush1.msra.mxu0 %v191
    %2852 = vmatprep.subr.mxu0 %v188
    %2853 = vmatpush1.msra.mxu0 %v187
    %2854 = vmatprep.subr.mxu0 %v184
    %2855 = vmatpush1.msra.mxu0 %v183
    %2856 = vmatprep.subr.mxu0 0.0
    %2857 = vmatpush2.msra.mxu0 0.0
    %2858 = vmatprep.subr.mxu0 0.0
    %2859 = vmatpush2.msra.mxu0 0.0
    %2860 = vmatprep.subr.mxu0 0.0
    %2861 = vmatpush2.msra.mxu0 0.0
    %2862 = vmatprep.subr.mxu0 0.0
    %2863 = vmatpush2.msra.mxu0 0.0
    %2864 = vmatprep.subr.mxu0 0.0
    %2865 = vmatpush2.msra.mxu0 0.0
    %2866 = vmatprep.subr.mxu0 0.0
    %2867 = vmatpush2.msra.mxu0 0.0
    %2868 = vmatprep.subr.mxu0 0.0
    %2869 = vmatpush2.msra.mxu0 0.0
    %2870 = vmatprep.subr.mxu0 0.0
    %2871 = vmatpush2.msra.mxu0 0.0
    %2872 = vmatprep.subr.mxu0 0.0
    %2873 = vmatpush2.msra.mxu0 0.0
    %2874 = vmatprep.subr.mxu0 0.0
    %2875 = vmatpush2.msra.mxu0 0.0
    %2876 = vmatprep.subr.mxu0 0.0
    %2877 = vmatpush2.msra.mxu0 0.0
    %2878 = vmatprep.subr.mxu0 0.0
    %2879 = vmatpush2.msra.mxu0 0.0
    %2880 = vmatprep.subr.mxu0 0.0
    %2881 = vmatpush2.msra.mxu0 0.0
    %2882 = vmatprep.subr.mxu0 0.0
    %2883 = vmatpush2.msra.mxu0 0.0
    %2884 = vmatprep.subr.mxu0 0.0
    %2885 = vmatpush2.msra.mxu0 0.0
    %2886 = vmatprep.subr.mxu0 0.0
    %2887 = vmatpush2.msra.mxu0 0.0
    %2888 = vmatprep.mubr.f32.mxu0 0.0
    %2889 = vmatmul.mubr.f32.gmra.mxu0 %v2681
    %v2890 = vpop.f32.mrf.mxu0
    %v2891 = vadd.f32 0.0, %v2890
    %v2892 = vpop.f32.mrf.mxu0
    %v2893 = vadd.f32 0.0, %v2892
    %2894 = vdwg.mxu0
    %2895 = vmatprep.subr.mxu0 %v246
    %2896 = vmatpush1.msra.mxu0 %v245
    %2897 = vmatprep.subr.mxu0 %v242
    %2898 = vmatpush1.msra.mxu0 %v241
    %2899 = vmatprep.subr.mxu0 %v238
    %2900 = vmatpush1.msra.mxu0 %v237
    %2901 = vmatprep.subr.mxu0 %v234
    %2902 = vmatpush1.msra.mxu0 %v233
    %2903 = vmatprep.subr.mxu0 %v230
    %2904 = vmatpush1.msra.mxu0 %v229
    %2905 = vmatprep.subr.mxu0 %v226
    %2906 = vmatpush1.msra.mxu0 %v225
    %2907 = vmatprep.subr.mxu0 %v222
    %2908 = vmatpush1.msra.mxu0 %v221
    %2909 = vmatprep.subr.mxu0 %v218
    %2910 = vmatpush1.msra.mxu0 %v217
    %2911 = vmatprep.subr.mxu0 %v214
    %2912 = vmatpush1.msra.mxu0 %v213
    %2913 = vmatprep.subr.mxu0 %v210
    %2914 = vmatpush1.msra.mxu0 %v209
    %2915 = vmatprep.subr.mxu0 %v206
    %2916 = vmatpush1.msra.mxu0 %v205
    %2917 = vmatprep.subr.mxu0 %v202
    %2918 = vmatpush1.msra.mxu0 %v201
    %2919 = vmatprep.subr.mxu0 %v198
    %2920 = vmatpush1.msra.mxu0 %v197
    %2921 = vmatprep.subr.mxu0 %v194
    %2922 = vmatpush1.msra.mxu0 %v193
    %2923 = vmatprep.subr.mxu0 %v190
    %2924 = vmatpush1.msra.mxu0 %v189
    %2925 = vmatprep.subr.mxu0 %v186
    %2926 = vmatpush1.msra.mxu0 %v185
    %2927 = vmatprep.subr.mxu0 0.0
    %2928 = vmatpush2.msra.mxu0 0.0
    %2929 = vmatprep.subr.mxu0 0.0
    %2930 = vmatpush2.msra.mxu0 0.0
    %2931 = vmatprep.subr.mxu0 0.0
    %2932 = vmatpush2.msra.mxu0 0.0
    %2933 = vmatprep.subr.mxu0 0.0
    %2934 = vmatpush2.msra.mxu0 0.0
    %2935 = vmatprep.subr.mxu0 0.0
    %2936 = vmatpush2.msra.mxu0 0.0
    %2937 = vmatprep.subr.mxu0 0.0
    %2938 = vmatpush2.msra.mxu0 0.0
    %2939 = vmatprep.subr.mxu0 0.0
    %2940 = vmatpush2.msra.mxu0 0.0
    %2941 = vmatprep.subr.mxu0 0.0
    %2942 = vmatpush2.msra.mxu0 0.0
    %2943 = vmatprep.subr.mxu0 0.0
    %2944 = vmatpush2.msra.mxu0 0.0
    %2945 = vmatprep.subr.mxu0 0.0
    %2946 = vmatpush2.msra.mxu0 0.0
    %2947 = vmatprep.subr.mxu0 0.0
    %2948 = vmatpush2.msra.mxu0 0.0
    %2949 = vmatprep.subr.mxu0 0.0
    %2950 = vmatpush2.msra.mxu0 0.0
    %2951 = vmatprep.subr.mxu0 0.0
    %2952 = vmatpush2.msra.mxu0 0.0
    %2953 = vmatprep.subr.mxu0 0.0
    %2954 = vmatpush2.msra.mxu0 0.0
    %2955 = vmatprep.subr.mxu0 0.0
    %2956 = vmatpush2.msra.mxu0 0.0
    %2957 = vmatprep.subr.mxu0 0.0
    %2958 = vmatpush2.msra.mxu0 0.0
    %2959 = vmatprep.mubr.f32.mxu0 0.0
    %2960 = vmatmul.mubr.f32.gmra.mxu0 %v2681
    %v2961 = vpop.f32.mrf.mxu0
    %v2962 = vadd.f32 0.0, %v2961
    %v2963 = vpop.f32.mrf.mxu0
    %v2964 = vadd.f32 0.0, %v2963
    %2965 = vdwg.mxu0
    %v2966 = vadd.f32 %v2749, %v2891
    %v2967 = vadd.f32 %v2751, %v2893
    %v2968 = vadd.f32 %v2820, %v2962
    %v2969 = vadd.f32 %v2822, %v2964
    %v2970 = vxor.u32 %v2966, 2147483648
    %v2971 = vmul.f32 %v2970, 1.442695
    %v2972 = vpow.pop %v2971
    %v2973 = vadd.f32 %v2972, 1.0
    %v2974 = vrcp.pop %v2973
    %v2975 = vmul.f32 1.0, %v2974
    %v2976 = vxor.u32 %v2967, 2147483648
    %v2977 = vmul.f32 %v2976, 1.442695
    %v2978 = vpow.pop %v2977
    %v2979 = vadd.f32 %v2978, 1.0
    %v2980 = vrcp.pop %v2979
    %v2981 = vmul.f32 1.0, %v2980
    %v2982 = vtanh.pop %v2968
    %v2983 = vxor.u32 %v2969, 2147483648
    %v2984 = vmul.f32 %v2983, 1.442695
    %v2985 = vpow.pop %v2984
    %v2986 = vadd.f32 %v2985, 1.0
    %v2987 = vrcp.pop %v2986
    %v2988 = vmul.f32 1.0, %v2987
    %v2989 = vmul.f32 %v2981, %v2485
    %v2990 = vmul.f32 %v2975, %v2982
    %v2991 = vadd.f32 %v2989, %v2990
    %v2992 = vtanh.pop %v2991
    %v2993 = vmul.f32 %v2988, %v2992
    %v2994 = vmul.f32 %v2993, %v446
    %2995 = vadd.xlane.f32.xlu0 %v2994
    %v2996 = vpop.xlane.xlu0 %2995
    %v2997 = vadd.f32 %v2996, %v453
    %2999 = vrot.lane.b32.xlu0 %v2997, 4
    %v3000 = vpop.permute.xlu0 %2999
    %vm3002 = vcmask 39968
    %3003 = vst.msk [vmem:[#allocation14] sm:$0xff] %vm3002, %v3000
    %v3004 = vld [vmem:[#allocation3] sm:$0xff]
    %3006 = vset.pattern.permute.xlu0 5
    %3007 = vperm.xlu0 %3006, %v3004
    %v3008 = vpop.permute.xlu0 %3007
    %v3010 = vmul.f32 %v3008, %v467
    %v3011 = vmul.f32 %v3008, %v471
    %v3012 = vmul.f32 %v3008, %v475
    %v3013 = vmul.f32 %v3008, %v479
    %v3014 = vadd.f32 %v3010, %v380
    %v3015 = vadd.f32 %v3011, %v384
    %v3016 = vadd.f32 %v3012, %v388
    %v3017 = vadd.f32 %v3013, %v392
    %3018 = vmatprep.subr.mxu0 %v180
    %3019 = vmatpush1.msra.mxu0 %v179
    %3020 = vmatprep.subr.mxu0 %v176
    %3021 = vmatpush1.msra.mxu0 %v175
    %3022 = vmatprep.subr.mxu0 %v172
    %3023 = vmatpush1.msra.mxu0 %v171
    %3024 = vmatprep.subr.mxu0 %v168
    %3025 = vmatpush1.msra.mxu0 %v167
    %3026 = vmatprep.subr.mxu0 %v164
    %3027 = vmatpush1.msra.mxu0 %v163
    %3028 = vmatprep.subr.mxu0 %v160
    %3029 = vmatpush1.msra.mxu0 %v159
    %3030 = vmatprep.subr.mxu0 %v156
    %3031 = vmatpush1.msra.mxu0 %v155
    %3032 = vmatprep.subr.mxu0 %v152
    %3033 = vmatpush1.msra.mxu0 %v151
    %3034 = vmatprep.subr.mxu0 %v148
    %3035 = vmatpush1.msra.mxu0 %v147
    %3036 = vmatprep.subr.mxu0 %v144
    %3037 = vmatpush1.msra.mxu0 %v143
    %3038 = vmatprep.subr.mxu0 %v140
    %3039 = vmatpush1.msra.mxu0 %v139
    %3040 = vmatprep.subr.mxu0 %v136
    %3041 = vmatpush1.msra.mxu0 %v135
    %3042 = vmatprep.subr.mxu0 %v132
    %3043 = vmatpush1.msra.mxu0 %v131
    %3044 = vmatprep.subr.mxu0 %v128
    %3045 = vmatpush1.msra.mxu0 %v127
    %3046 = vmatprep.subr.mxu0 %v124
    %3047 = vmatpush1.msra.mxu0 %v123
    %3048 = vmatprep.subr.mxu0 %v120
    %3049 = vmatpush1.msra.mxu0 %v119
    %3050 = vmatprep.subr.mxu0 0.0
    %3051 = vmatpush2.msra.mxu0 0.0
    %3052 = vmatprep.subr.mxu0 0.0
    %3053 = vmatpush2.msra.mxu0 0.0
    %3054 = vmatprep.subr.mxu0 0.0
    %3055 = vmatpush2.msra.mxu0 0.0
    %3056 = vmatprep.subr.mxu0 0.0
    %3057 = vmatpush2.msra.mxu0 0.0
    %3058 = vmatprep.subr.mxu0 0.0
    %3059 = vmatpush2.msra.mxu0 0.0
    %3060 = vmatprep.subr.mxu0 0.0
    %3061 = vmatpush2.msra.mxu0 0.0
    %3062 = vmatprep.subr.mxu0 0.0
    %3063 = vmatpush2.msra.mxu0 0.0
    %3064 = vmatprep.subr.mxu0 0.0
    %3065 = vmatpush2.msra.mxu0 0.0
    %3066 = vmatprep.subr.mxu0 0.0
    %3067 = vmatpush2.msra.mxu0 0.0
    %3068 = vmatprep.subr.mxu0 0.0
    %3069 = vmatpush2.msra.mxu0 0.0
    %3070 = vmatprep.subr.mxu0 0.0
    %3071 = vmatpush2.msra.mxu0 0.0
    %3072 = vmatprep.subr.mxu0 0.0
    %3073 = vmatpush2.msra.mxu0 0.0
    %3074 = vmatprep.subr.mxu0 0.0
    %3075 = vmatpush2.msra.mxu0 0.0
    %3076 = vmatprep.subr.mxu0 0.0
    %3077 = vmatpush2.msra.mxu0 0.0
    %3078 = vmatprep.subr.mxu0 0.0
    %3079 = vmatpush2.msra.mxu0 0.0
    %3080 = vmatprep.subr.mxu0 0.0
    %3081 = vmatpush2.msra.mxu0 0.0
    %3082 = vmatprep.mubr.f32.mxu0 0.0
    %3083 = vmatmul.mubr.f32.gmra.mxu0 %v2681
    %v3084 = vpop.f32.mrf.mxu0
    %v3085 = vadd.f32 0.0, %v3084
    %v3086 = vpop.f32.mrf.mxu0
    %v3087 = vadd.f32 0.0, %v3086
    %3088 = vdwg.mxu0
    %3089 = vmatprep.subr.mxu0 %v182
    %3090 = vmatpush1.msra.mxu0 %v181
    %3091 = vmatprep.subr.mxu0 %v178
    %3092 = vmatpush1.msra.mxu0 %v177
    %3093 = vmatprep.subr.mxu0 %v174
    %3094 = vmatpush1.msra.mxu0 %v173
    %3095 = vmatprep.subr.mxu0 %v170
    %3096 = vmatpush1.msra.mxu0 %v169
    %3097 = vmatprep.subr.mxu0 %v166
    %3098 = vmatpush1.msra.mxu0 %v165
    %3099 = vmatprep.subr.mxu0 %v162
    %3100 = vmatpush1.msra.mxu0 %v161
    %3101 = vmatprep.subr.mxu0 %v158
    %3102 = vmatpush1.msra.mxu0 %v157
    %3103 = vmatprep.subr.mxu0 %v154
    %3104 = vmatpush1.msra.mxu0 %v153
    %3105 = vmatprep.subr.mxu0 %v150
    %3106 = vmatpush1.msra.mxu0 %v149
    %3107 = vmatprep.subr.mxu0 %v146
    %3108 = vmatpush1.msra.mxu0 %v145
    %3109 = vmatprep.subr.mxu0 %v142
    %3110 = vmatpush1.msra.mxu0 %v141
    %3111 = vmatprep.subr.mxu0 %v138
    %3112 = vmatpush1.msra.mxu0 %v137
    %3113 = vmatprep.subr.mxu0 %v134
    %3114 = vmatpush1.msra.mxu0 %v133
    %3115 = vmatprep.subr.mxu0 %v130
    %3116 = vmatpush1.msra.mxu0 %v129
    %3117 = vmatprep.subr.mxu0 %v126
    %3118 = vmatpush1.msra.mxu0 %v125
    %3119 = vmatprep.subr.mxu0 %v122
    %3120 = vmatpush1.msra.mxu0 %v121
    %3121 = vmatprep.subr.mxu0 0.0
    %3122 = vmatpush2.msra.mxu0 0.0
    %3123 = vmatprep.subr.mxu0 0.0
    %3124 = vmatpush2.msra.mxu0 0.0
    %3125 = vmatprep.subr.mxu0 0.0
    %3126 = vmatpush2.msra.mxu0 0.0
    %3127 = vmatprep.subr.mxu0 0.0
    %3128 = vmatpush2.msra.mxu0 0.0
    %3129 = vmatprep.subr.mxu0 0.0
    %3130 = vmatpush2.msra.mxu0 0.0
    %3131 = vmatprep.subr.mxu0 0.0
    %3132 = vmatpush2.msra.mxu0 0.0
    %3133 = vmatprep.subr.mxu0 0.0
    %3134 = vmatpush2.msra.mxu0 0.0
    %3135 = vmatprep.subr.mxu0 0.0
    %3136 = vmatpush2.msra.mxu0 0.0
    %3137 = vmatprep.subr.mxu0 0.0
    %3138 = vmatpush2.msra.mxu0 0.0
    %3139 = vmatprep.subr.mxu0 0.0
    %3140 = vmatpush2.msra.mxu0 0.0
    %3141 = vmatprep.subr.mxu0 0.0
    %3142 = vmatpush2.msra.mxu0 0.0
    %3143 = vmatprep.subr.mxu0 0.0
    %3144 = vmatpush2.msra.mxu0 0.0
    %3145 = vmatprep.subr.mxu0 0.0
    %3146 = vmatpush2.msra.mxu0 0.0
    %3147 = vmatprep.subr.mxu0 0.0
    %3148 = vmatpush2.msra.mxu0 0.0
    %3149 = vmatprep.subr.mxu0 0.0
    %3150 = vmatpush2.msra.mxu0 0.0
    %3151 = vmatprep.subr.mxu0 0.0
    %3152 = vmatpush2.msra.mxu0 0.0
    %3153 = vmatprep.mubr.f32.mxu0 0.0
    %3154 = vmatmul.mubr.f32.gmra.mxu0 %v2681
    %v3155 = vpop.f32.mrf.mxu0
    %v3156 = vadd.f32 0.0, %v3155
    %v3157 = vpop.f32.mrf.mxu0
    %v3158 = vadd.f32 0.0, %v3157
    %3159 = vdwg.mxu0
    %v3160 = vadd.f32 %v3014, %v3085
    %v3161 = vadd.f32 %v3015, %v3087
    %v3162 = vadd.f32 %v3016, %v3156
    %v3163 = vadd.f32 %v3017, %v3158
    %v3164 = vxor.u32 %v3160, 2147483648
    %v3165 = vmul.f32 %v3164, 1.442695
    %v3166 = vpow.pop %v3165
    %v3167 = vadd.f32 %v3166, 1.0
    %v3168 = vrcp.pop %v3167
    %v3169 = vmul.f32 1.0, %v3168
    %v3170 = vxor.u32 %v3161, 2147483648
    %v3171 = vmul.f32 %v3170, 1.442695
    %v3172 = vpow.pop %v3171
    %v3173 = vadd.f32 %v3172, 1.0
    %v3174 = vrcp.pop %v3173
    %v3175 = vmul.f32 1.0, %v3174
    %v3176 = vtanh.pop %v3162
    %v3177 = vxor.u32 %v3163, 2147483648
    %v3178 = vmul.f32 %v3177, 1.442695
    %v3179 = vpow.pop %v3178
    %v3180 = vadd.f32 %v3179, 1.0
    %v3181 = vrcp.pop %v3180
    %v3182 = vmul.f32 1.0, %v3181
    %v3183 = vmul.f32 %v3175, %v2679
    %v3184 = vmul.f32 %v3169, %v3176
    %v3185 = vadd.f32 %v3183, %v3184
    %v3186 = vtanh.pop %v3185
    %v3187 = vmul.f32 %v3182, %v3186
    %3188 = vmatprep.subr.mxu0 %v308
    %3189 = vmatpush1.msra.mxu0 %v307
    %3190 = vmatprep.subr.mxu0 %v304
    %3191 = vmatpush1.msra.mxu0 %v303
    %3192 = vmatprep.subr.mxu0 %v300
    %3193 = vmatpush1.msra.mxu0 %v299
    %3194 = vmatprep.subr.mxu0 %v296
    %3195 = vmatpush1.msra.mxu0 %v295
    %3196 = vmatprep.subr.mxu0 %v292
    %3197 = vmatpush1.msra.mxu0 %v291
    %3198 = vmatprep.subr.mxu0 %v288
    %3199 = vmatpush1.msra.mxu0 %v287
    %3200 = vmatprep.subr.mxu0 %v284
    %3201 = vmatpush1.msra.mxu0 %v283
    %3202 = vmatprep.subr.mxu0 %v280
    %3203 = vmatpush1.msra.mxu0 %v279
    %3204 = vmatprep.subr.mxu0 %v276
    %3205 = vmatpush1.msra.mxu0 %v275
    %3206 = vmatprep.subr.mxu0 %v272
    %3207 = vmatpush1.msra.mxu0 %v271
    %3208 = vmatprep.subr.mxu0 %v268
    %3209 = vmatpush1.msra.mxu0 %v267
    %3210 = vmatprep.subr.mxu0 %v264
    %3211 = vmatpush1.msra.mxu0 %v263
    %3212 = vmatprep.subr.mxu0 %v260
    %3213 = vmatpush1.msra.mxu0 %v259
    %3214 = vmatprep.subr.mxu0 %v256
    %3215 = vmatpush1.msra.mxu0 %v255
    %3216 = vmatprep.subr.mxu0 %v252
    %3217 = vmatpush1.msra.mxu0 %v251
    %3218 = vmatprep.subr.mxu0 %v248
    %3219 = vmatpush1.msra.mxu0 %v247
    %3220 = vmatprep.subr.mxu0 0.0
    %3221 = vmatpush2.msra.mxu0 0.0
    %3222 = vmatprep.subr.mxu0 0.0
    %3223 = vmatpush2.msra.mxu0 0.0
    %3224 = vmatprep.subr.mxu0 0.0
    %3225 = vmatpush2.msra.mxu0 0.0
    %3226 = vmatprep.subr.mxu0 0.0
    %3227 = vmatpush2.msra.mxu0 0.0
    %3228 = vmatprep.subr.mxu0 0.0
    %3229 = vmatpush2.msra.mxu0 0.0
    %3230 = vmatprep.subr.mxu0 0.0
    %3231 = vmatpush2.msra.mxu0 0.0
    %3232 = vmatprep.subr.mxu0 0.0
    %3233 = vmatpush2.msra.mxu0 0.0
    %3234 = vmatprep.subr.mxu0 0.0
    %3235 = vmatpush2.msra.mxu0 0.0
    %3236 = vmatprep.subr.mxu0 0.0
    %3237 = vmatpush2.msra.mxu0 0.0
    %3238 = vmatprep.subr.mxu0 0.0
    %3239 = vmatpush2.msra.mxu0 0.0
    %3240 = vmatprep.subr.mxu0 0.0
    %3241 = vmatpush2.msra.mxu0 0.0
    %3242 = vmatprep.subr.mxu0 0.0
    %3243 = vmatpush2.msra.mxu0 0.0
    %3244 = vmatprep.subr.mxu0 0.0
    %3245 = vmatpush2.msra.mxu0 0.0
    %3246 = vmatprep.subr.mxu0 0.0
    %3247 = vmatpush2.msra.mxu0 0.0
    %3248 = vmatprep.subr.mxu0 0.0
    %3249 = vmatpush2.msra.mxu0 0.0
    %3250 = vmatprep.subr.mxu0 0.0
    %3251 = vmatpush2.msra.mxu0 0.0
    %3252 = vmatprep.mubr.f32.mxu0 0.0
    %3253 = vmatmul.mubr.f32.gmra.mxu0 %v2993
    %v3254 = vpop.f32.mrf.mxu0
    %v3255 = vadd.f32 %v402, %v3254
    %v3256 = vpop.f32.mrf.mxu0
    %v3257 = vadd.f32 %v406, %v3256
    %3258 = vdwg.mxu0
    %3259 = vmatprep.subr.mxu0 %v310
    %3260 = vmatpush1.msra.mxu0 %v309
    %3261 = vmatprep.subr.mxu0 %v306
    %3262 = vmatpush1.msra.mxu0 %v305
    %3263 = vmatprep.subr.mxu0 %v302
    %3264 = vmatpush1.msra.mxu0 %v301
    %3265 = vmatprep.subr.mxu0 %v298
    %3266 = vmatpush1.msra.mxu0 %v297
    %3267 = vmatprep.subr.mxu0 %v294
    %3268 = vmatpush1.msra.mxu0 %v293
    %3269 = vmatprep.subr.mxu0 %v290
    %3270 = vmatpush1.msra.mxu0 %v289
    %3271 = vmatprep.subr.mxu0 %v286
    %3272 = vmatpush1.msra.mxu0 %v285
    %3273 = vmatprep.subr.mxu0 %v282
    %3274 = vmatpush1.msra.mxu0 %v281
    %3275 = vmatprep.subr.mxu0 %v278
    %3276 = vmatpush1.msra.mxu0 %v277
    %3277 = vmatprep.subr.mxu0 %v274
    %3278 = vmatpush1.msra.mxu0 %v273
    %3279 = vmatprep.subr.mxu0 %v270
    %3280 = vmatpush1.msra.mxu0 %v269
    %3281 = vmatprep.subr.mxu0 %v266
    %3282 = vmatpush1.msra.mxu0 %v265
    %3283 = vmatprep.subr.mxu0 %v262
    %3284 = vmatpush1.msra.mxu0 %v261
    %3285 = vmatprep.subr.mxu0 %v258
    %3286 = vmatpush1.msra.mxu0 %v257
    %3287 = vmatprep.subr.mxu0 %v254
    %3288 = vmatpush1.msra.mxu0 %v253
    %3289 = vmatprep.subr.mxu0 %v250
    %3290 = vmatpush1.msra.mxu0 %v249
    %3291 = vmatprep.subr.mxu0 0.0
    %3292 = vmatpush2.msra.mxu0 0.0
    %3293 = vmatprep.subr.mxu0 0.0
    %3294 = vmatpush2.msra.mxu0 0.0
    %3295 = vmatprep.subr.mxu0 0.0
    %3296 = vmatpush2.msra.mxu0 0.0
    %3297 = vmatprep.subr.mxu0 0.0
    %3298 = vmatpush2.msra.mxu0 0.0
    %3299 = vmatprep.subr.mxu0 0.0
    %3300 = vmatpush2.msra.mxu0 0.0
    %3301 = vmatprep.subr.mxu0 0.0
    %3302 = vmatpush2.msra.mxu0 0.0
    %3303 = vmatprep.subr.mxu0 0.0
    %3304 = vmatpush2.msra.mxu0 0.0
    %3305 = vmatprep.subr.mxu0 0.0
    %3306 = vmatpush2.msra.mxu0 0.0
    %3307 = vmatprep.subr.mxu0 0.0
    %3308 = vmatpush2.msra.mxu0 0.0
    %3309 = vmatprep.subr.mxu0 0.0
    %3310 = vmatpush2.msra.mxu0 0.0
    %3311 = vmatprep.subr.mxu0 0.0
    %3312 = vmatpush2.msra.mxu0 0.0
    %3313 = vmatprep.subr.mxu0 0.0
    %3314 = vmatpush2.msra.mxu0 0.0
    %3315 = vmatprep.subr.mxu0 0.0
    %3316 = vmatpush2.msra.mxu0 0.0
    %3317 = vmatprep.subr.mxu0 0.0
    %3318 = vmatpush2.msra.mxu0 0.0
    %3319 = vmatprep.subr.mxu0 0.0
    %3320 = vmatpush2.msra.mxu0 0.0
    %3321 = vmatprep.subr.mxu0 0.0
    %3322 = vmatpush2.msra.mxu0 0.0
    %3323 = vmatprep.mubr.f32.mxu0 0.0
    %3324 = vmatmul.mubr.f32.gmra.mxu0 %v2993
    %v3325 = vpop.f32.mrf.mxu0
    %v3326 = vadd.f32 %v410, %v3325
    %v3327 = vpop.f32.mrf.mxu0
    %v3328 = vadd.f32 %v414, %v3327
    %3329 = vdwg.mxu0
    %3330 = vmatprep.subr.mxu0 %v244
    %3331 = vmatpush1.msra.mxu0 %v243
    %3332 = vmatprep.subr.mxu0 %v240
    %3333 = vmatpush1.msra.mxu0 %v239
    %3334 = vmatprep.subr.mxu0 %v236
    %3335 = vmatpush1.msra.mxu0 %v235
    %3336 = vmatprep.subr.mxu0 %v232
    %3337 = vmatpush1.msra.mxu0 %v231
    %3338 = vmatprep.subr.mxu0 %v228
    %3339 = vmatpush1.msra.mxu0 %v227
    %3340 = vmatprep.subr.mxu0 %v224
    %3341 = vmatpush1.msra.mxu0 %v223
    %3342 = vmatprep.subr.mxu0 %v220
    %3343 = vmatpush1.msra.mxu0 %v219
    %3344 = vmatprep.subr.mxu0 %v216
    %3345 = vmatpush1.msra.mxu0 %v215
    %3346 = vmatprep.subr.mxu0 %v212
    %3347 = vmatpush1.msra.mxu0 %v211
    %3348 = vmatprep.subr.mxu0 %v208
    %3349 = vmatpush1.msra.mxu0 %v207
    %3350 = vmatprep.subr.mxu0 %v204
    %3351 = vmatpush1.msra.mxu0 %v203
    %3352 = vmatprep.subr.mxu0 %v200
    %3353 = vmatpush1.msra.mxu0 %v199
    %3354 = vmatprep.subr.mxu0 %v196
    %3355 = vmatpush1.msra.mxu0 %v195
    %3356 = vmatprep.subr.mxu0 %v192
    %3357 = vmatpush1.msra.mxu0 %v191
    %3358 = vmatprep.subr.mxu0 %v188
    %3359 = vmatpush1.msra.mxu0 %v187
    %3360 = vmatprep.subr.mxu0 %v184
    %3361 = vmatpush1.msra.mxu0 %v183
    %3362 = vmatprep.subr.mxu0 0.0
    %3363 = vmatpush2.msra.mxu0 0.0
    %3364 = vmatprep.subr.mxu0 0.0
    %3365 = vmatpush2.msra.mxu0 0.0
    %3366 = vmatprep.subr.mxu0 0.0
    %3367 = vmatpush2.msra.mxu0 0.0
    %3368 = vmatprep.subr.mxu0 0.0
    %3369 = vmatpush2.msra.mxu0 0.0
    %3370 = vmatprep.subr.mxu0 0.0
    %3371 = vmatpush2.msra.mxu0 0.0
    %3372 = vmatprep.subr.mxu0 0.0
    %3373 = vmatpush2.msra.mxu0 0.0
    %3374 = vmatprep.subr.mxu0 0.0
    %3375 = vmatpush2.msra.mxu0 0.0
    %3376 = vmatprep.subr.mxu0 0.0
    %3377 = vmatpush2.msra.mxu0 0.0
    %3378 = vmatprep.subr.mxu0 0.0
    %3379 = vmatpush2.msra.mxu0 0.0
    %3380 = vmatprep.subr.mxu0 0.0
    %3381 = vmatpush2.msra.mxu0 0.0
    %3382 = vmatprep.subr.mxu0 0.0
    %3383 = vmatpush2.msra.mxu0 0.0
    %3384 = vmatprep.subr.mxu0 0.0
    %3385 = vmatpush2.msra.mxu0 0.0
    %3386 = vmatprep.subr.mxu0 0.0
    %3387 = vmatpush2.msra.mxu0 0.0
    %3388 = vmatprep.subr.mxu0 0.0
    %3389 = vmatpush2.msra.mxu0 0.0
    %3390 = vmatprep.subr.mxu0 0.0
    %3391 = vmatpush2.msra.mxu0 0.0
    %3392 = vmatprep.subr.mxu0 0.0
    %3393 = vmatpush2.msra.mxu0 0.0
    %3394 = vmatprep.mubr.f32.mxu0 0.0
    %3395 = vmatmul.mubr.f32.gmra.mxu0 %v3187
    %v3396 = vpop.f32.mrf.mxu0
    %v3397 = vadd.f32 0.0, %v3396
    %v3398 = vpop.f32.mrf.mxu0
    %v3399 = vadd.f32 0.0, %v3398
    %3400 = vdwg.mxu0
    %3401 = vmatprep.subr.mxu0 %v246
    %3402 = vmatpush1.msra.mxu0 %v245
    %3403 = vmatprep.subr.mxu0 %v242
    %3404 = vmatpush1.msra.mxu0 %v241
    %3405 = vmatprep.subr.mxu0 %v238
    %3406 = vmatpush1.msra.mxu0 %v237
    %3407 = vmatprep.subr.mxu0 %v234
    %3408 = vmatpush1.msra.mxu0 %v233
    %3409 = vmatprep.subr.mxu0 %v230
    %3410 = vmatpush1.msra.mxu0 %v229
    %3411 = vmatprep.subr.mxu0 %v226
    %3412 = vmatpush1.msra.mxu0 %v225
    %3413 = vmatprep.subr.mxu0 %v222
    %3414 = vmatpush1.msra.mxu0 %v221
    %3415 = vmatprep.subr.mxu0 %v218
    %3416 = vmatpush1.msra.mxu0 %v217
    %3417 = vmatprep.subr.mxu0 %v214
    %3418 = vmatpush1.msra.mxu0 %v213
    %3419 = vmatprep.subr.mxu0 %v210
    %3420 = vmatpush1.msra.mxu0 %v209
    %3421 = vmatprep.subr.mxu0 %v206
    %3422 = vmatpush1.msra.mxu0 %v205
    %3423 = vmatprep.subr.mxu0 %v202
    %3424 = vmatpush1.msra.mxu0 %v201
    %3425 = vmatprep.subr.mxu0 %v198
    %3426 = vmatpush1.msra.mxu0 %v197
    %3427 = vmatprep.subr.mxu0 %v194
    %3428 = vmatpush1.msra.mxu0 %v193
    %3429 = vmatprep.subr.mxu0 %v190
    %3430 = vmatpush1.msra.mxu0 %v189
    %3431 = vmatprep.subr.mxu0 %v186
    %3432 = vmatpush1.msra.mxu0 %v185
    %3433 = vmatprep.subr.mxu0 0.0
    %3434 = vmatpush2.msra.mxu0 0.0
    %3435 = vmatprep.subr.mxu0 0.0
    %3436 = vmatpush2.msra.mxu0 0.0
    %3437 = vmatprep.subr.mxu0 0.0
    %3438 = vmatpush2.msra.mxu0 0.0
    %3439 = vmatprep.subr.mxu0 0.0
    %3440 = vmatpush2.msra.mxu0 0.0
    %3441 = vmatprep.subr.mxu0 0.0
    %3442 = vmatpush2.msra.mxu0 0.0
    %3443 = vmatprep.subr.mxu0 0.0
    %3444 = vmatpush2.msra.mxu0 0.0
    %3445 = vmatprep.subr.mxu0 0.0
    %3446 = vmatpush2.msra.mxu0 0.0
    %3447 = vmatprep.subr.mxu0 0.0
    %3448 = vmatpush2.msra.mxu0 0.0
    %3449 = vmatprep.subr.mxu0 0.0
    %3450 = vmatpush2.msra.mxu0 0.0
    %3451 = vmatprep.subr.mxu0 0.0
    %3452 = vmatpush2.msra.mxu0 0.0
    %3453 = vmatprep.subr.mxu0 0.0
    %3454 = vmatpush2.msra.mxu0 0.0
    %3455 = vmatprep.subr.mxu0 0.0
    %3456 = vmatpush2.msra.mxu0 0.0
    %3457 = vmatprep.subr.mxu0 0.0
    %3458 = vmatpush2.msra.mxu0 0.0
    %3459 = vmatprep.subr.mxu0 0.0
    %3460 = vmatpush2.msra.mxu0 0.0
    %3461 = vmatprep.subr.mxu0 0.0
    %3462 = vmatpush2.msra.mxu0 0.0
    %3463 = vmatprep.subr.mxu0 0.0
    %3464 = vmatpush2.msra.mxu0 0.0
    %3465 = vmatprep.mubr.f32.mxu0 0.0
    %3466 = vmatmul.mubr.f32.gmra.mxu0 %v3187
    %v3467 = vpop.f32.mrf.mxu0
    %v3468 = vadd.f32 0.0, %v3467
    %v3469 = vpop.f32.mrf.mxu0
    %v3470 = vadd.f32 0.0, %v3469
    %3471 = vdwg.mxu0
    %v3472 = vadd.f32 %v3255, %v3397
    %v3473 = vadd.f32 %v3257, %v3399
    %v3474 = vadd.f32 %v3326, %v3468
    %v3475 = vadd.f32 %v3328, %v3470
    %v3476 = vxor.u32 %v3472, 2147483648
    %v3477 = vmul.f32 %v3476, 1.442695
    %v3478 = vpow.pop %v3477
    %v3479 = vadd.f32 %v3478, 1.0
    %v3480 = vrcp.pop %v3479
    %v3481 = vmul.f32 1.0, %v3480
    %v3482 = vxor.u32 %v3473, 2147483648
    %v3483 = vmul.f32 %v3482, 1.442695
    %v3484 = vpow.pop %v3483
    %v3485 = vadd.f32 %v3484, 1.0
    %v3486 = vrcp.pop %v3485
    %v3487 = vmul.f32 1.0, %v3486
    %v3488 = vtanh.pop %v3474
    %v3489 = vxor.u32 %v3475, 2147483648
    %v3490 = vmul.f32 %v3489, 1.442695
    %v3491 = vpow.pop %v3490
    %v3492 = vadd.f32 %v3491, 1.0
    %v3493 = vrcp.pop %v3492
    %v3494 = vmul.f32 1.0, %v3493
    %v3495 = vmul.f32 %v3487, %v2991
    %v3496 = vmul.f32 %v3481, %v3488
    %v3497 = vadd.f32 %v3495, %v3496
    %v3498 = vtanh.pop %v3497
    %v3499 = vmul.f32 %v3494, %v3498
    %v3500 = vmul.f32 %v3499, %v446
    %3501 = vadd.xlane.f32.xlu0 %v3500
    %v3502 = vpop.xlane.xlu0 %3501
    %v3503 = vadd.f32 %v3502, %v453
    %3505 = vrot.lane.b32.xlu0 %v3503, 5
    %v3506 = vpop.permute.xlu0 %3505
    %vm3508 = vcmask 48168
    %3509 = vst.msk [vmem:[#allocation14] sm:$0xff] %vm3508, %v3506
    %v3510 = vld [vmem:[#allocation3] sm:$0xff]
    %3512 = vset.pattern.permute.xlu0 6
    %3513 = vperm.xlu0 %3512, %v3510
    %v3514 = vpop.permute.xlu0 %3513
    %v3516 = vmul.f32 %v3514, %v467
    %v3517 = vmul.f32 %v3514, %v471
    %v3518 = vmul.f32 %v3514, %v475
    %v3519 = vmul.f32 %v3514, %v479
    %v3520 = vadd.f32 %v3516, %v380
    %v3521 = vadd.f32 %v3517, %v384
    %v3522 = vadd.f32 %v3518, %v388
    %v3523 = vadd.f32 %v3519, %v392
    %3524 = vmatprep.subr.mxu0 %v180
    %3525 = vmatpush1.msra.mxu0 %v179
    %3526 = vmatprep.subr.mxu0 %v176
    %3527 = vmatpush1.msra.mxu0 %v175
    %3528 = vmatprep.subr.mxu0 %v172
    %3529 = vmatpush1.msra.mxu0 %v171
    %3530 = vmatprep.subr.mxu0 %v168
    %3531 = vmatpush1.msra.mxu0 %v167
    %3532 = vmatprep.subr.mxu0 %v164
    %3533 = vmatpush1.msra.mxu0 %v163
    %3534 = vmatprep.subr.mxu0 %v160
    %3535 = vmatpush1.msra.mxu0 %v159
    %3536 = vmatprep.subr.mxu0 %v156
    %3537 = vmatpush1.msra.mxu0 %v155
    %3538 = vmatprep.subr.mxu0 %v152
    %3539 = vmatpush1.msra.mxu0 %v151
    %3540 = vmatprep.subr.mxu0 %v148
    %3541 = vmatpush1.msra.mxu0 %v147
    %3542 = vmatprep.subr.mxu0 %v144
    %3543 = vmatpush1.msra.mxu0 %v143
    %3544 = vmatprep.subr.mxu0 %v140
    %3545 = vmatpush1.msra.mxu0 %v139
    %3546 = vmatprep.subr.mxu0 %v136
    %3547 = vmatpush1.msra.mxu0 %v135
    %3548 = vmatprep.subr.mxu0 %v132
    %3549 = vmatpush1.msra.mxu0 %v131
    %3550 = vmatprep.subr.mxu0 %v128
    %3551 = vmatpush1.msra.mxu0 %v127
    %3552 = vmatprep.subr.mxu0 %v124
    %3553 = vmatpush1.msra.mxu0 %v123
    %3554 = vmatprep.subr.mxu0 %v120
    %3555 = vmatpush1.msra.mxu0 %v119
    %3556 = vmatprep.subr.mxu0 0.0
    %3557 = vmatpush2.msra.mxu0 0.0
    %3558 = vmatprep.subr.mxu0 0.0
    %3559 = vmatpush2.msra.mxu0 0.0
    %3560 = vmatprep.subr.mxu0 0.0
    %3561 = vmatpush2.msra.mxu0 0.0
    %3562 = vmatprep.subr.mxu0 0.0
    %3563 = vmatpush2.msra.mxu0 0.0
    %3564 = vmatprep.subr.mxu0 0.0
    %3565 = vmatpush2.msra.mxu0 0.0
    %3566 = vmatprep.subr.mxu0 0.0
    %3567 = vmatpush2.msra.mxu0 0.0
    %3568 = vmatprep.subr.mxu0 0.0
    %3569 = vmatpush2.msra.mxu0 0.0
    %3570 = vmatprep.subr.mxu0 0.0
    %3571 = vmatpush2.msra.mxu0 0.0
    %3572 = vmatprep.subr.mxu0 0.0
    %3573 = vmatpush2.msra.mxu0 0.0
    %3574 = vmatprep.subr.mxu0 0.0
    %3575 = vmatpush2.msra.mxu0 0.0
    %3576 = vmatprep.subr.mxu0 0.0
    %3577 = vmatpush2.msra.mxu0 0.0
    %3578 = vmatprep.subr.mxu0 0.0
    %3579 = vmatpush2.msra.mxu0 0.0
    %3580 = vmatprep.subr.mxu0 0.0
    %3581 = vmatpush2.msra.mxu0 0.0
    %3582 = vmatprep.subr.mxu0 0.0
    %3583 = vmatpush2.msra.mxu0 0.0
    %3584 = vmatprep.subr.mxu0 0.0
    %3585 = vmatpush2.msra.mxu0 0.0
    %3586 = vmatprep.subr.mxu0 0.0
    %3587 = vmatpush2.msra.mxu0 0.0
    %3588 = vmatprep.mubr.f32.mxu0 0.0
    %3589 = vmatmul.mubr.f32.gmra.mxu0 %v3187
    %v3590 = vpop.f32.mrf.mxu0
    %v3591 = vadd.f32 0.0, %v3590
    %v3592 = vpop.f32.mrf.mxu0
    %v3593 = vadd.f32 0.0, %v3592
    %3594 = vdwg.mxu0
    %3595 = vmatprep.subr.mxu0 %v182
    %3596 = vmatpush1.msra.mxu0 %v181
    %3597 = vmatprep.subr.mxu0 %v178
    %3598 = vmatpush1.msra.mxu0 %v177
    %3599 = vmatprep.subr.mxu0 %v174
    %3600 = vmatpush1.msra.mxu0 %v173
    %3601 = vmatprep.subr.mxu0 %v170
    %3602 = vmatpush1.msra.mxu0 %v169
    %3603 = vmatprep.subr.mxu0 %v166
    %3604 = vmatpush1.msra.mxu0 %v165
    %3605 = vmatprep.subr.mxu0 %v162
    %3606 = vmatpush1.msra.mxu0 %v161
    %3607 = vmatprep.subr.mxu0 %v158
    %3608 = vmatpush1.msra.mxu0 %v157
    %3609 = vmatprep.subr.mxu0 %v154
    %3610 = vmatpush1.msra.mxu0 %v153
    %3611 = vmatprep.subr.mxu0 %v150
    %3612 = vmatpush1.msra.mxu0 %v149
    %3613 = vmatprep.subr.mxu0 %v146
    %3614 = vmatpush1.msra.mxu0 %v145
    %3615 = vmatprep.subr.mxu0 %v142
    %3616 = vmatpush1.msra.mxu0 %v141
    %3617 = vmatprep.subr.mxu0 %v138
    %3618 = vmatpush1.msra.mxu0 %v137
    %3619 = vmatprep.subr.mxu0 %v134
    %3620 = vmatpush1.msra.mxu0 %v133
    %3621 = vmatprep.subr.mxu0 %v130
    %3622 = vmatpush1.msra.mxu0 %v129
    %3623 = vmatprep.subr.mxu0 %v126
    %3624 = vmatpush1.msra.mxu0 %v125
    %3625 = vmatprep.subr.mxu0 %v122
    %3626 = vmatpush1.msra.mxu0 %v121
    %3627 = vmatprep.subr.mxu0 0.0
    %3628 = vmatpush2.msra.mxu0 0.0
    %3629 = vmatprep.subr.mxu0 0.0
    %3630 = vmatpush2.msra.mxu0 0.0
    %3631 = vmatprep.subr.mxu0 0.0
    %3632 = vmatpush2.msra.mxu0 0.0
    %3633 = vmatprep.subr.mxu0 0.0
    %3634 = vmatpush2.msra.mxu0 0.0
    %3635 = vmatprep.subr.mxu0 0.0
    %3636 = vmatpush2.msra.mxu0 0.0
    %3637 = vmatprep.subr.mxu0 0.0
    %3638 = vmatpush2.msra.mxu0 0.0
    %3639 = vmatprep.subr.mxu0 0.0
    %3640 = vmatpush2.msra.mxu0 0.0
    %3641 = vmatprep.subr.mxu0 0.0
    %3642 = vmatpush2.msra.mxu0 0.0
    %3643 = vmatprep.subr.mxu0 0.0
    %3644 = vmatpush2.msra.mxu0 0.0
    %3645 = vmatprep.subr.mxu0 0.0
    %3646 = vmatpush2.msra.mxu0 0.0
    %3647 = vmatprep.subr.mxu0 0.0
    %3648 = vmatpush2.msra.mxu0 0.0
    %3649 = vmatprep.subr.mxu0 0.0
    %3650 = vmatpush2.msra.mxu0 0.0
    %3651 = vmatprep.subr.mxu0 0.0
    %3652 = vmatpush2.msra.mxu0 0.0
    %3653 = vmatprep.subr.mxu0 0.0
    %3654 = vmatpush2.msra.mxu0 0.0
    %3655 = vmatprep.subr.mxu0 0.0
    %3656 = vmatpush2.msra.mxu0 0.0
    %3657 = vmatprep.subr.mxu0 0.0
    %3658 = vmatpush2.msra.mxu0 0.0
    %3659 = vmatprep.mubr.f32.mxu0 0.0
    %3660 = vmatmul.mubr.f32.gmra.mxu0 %v3187
    %v3661 = vpop.f32.mrf.mxu0
    %v3662 = vadd.f32 0.0, %v3661
    %v3663 = vpop.f32.mrf.mxu0
    %v3664 = vadd.f32 0.0, %v3663
    %3665 = vdwg.mxu0
    %v3666 = vadd.f32 %v3520, %v3591
    %v3667 = vadd.f32 %v3521, %v3593
    %v3668 = vadd.f32 %v3522, %v3662
    %v3669 = vadd.f32 %v3523, %v3664
    %v3670 = vxor.u32 %v3666, 2147483648
    %v3671 = vmul.f32 %v3670, 1.442695
    %v3672 = vpow.pop %v3671
    %v3673 = vadd.f32 %v3672, 1.0
    %v3674 = vrcp.pop %v3673
    %v3675 = vmul.f32 1.0, %v3674
    %v3676 = vxor.u32 %v3667, 2147483648
    %v3677 = vmul.f32 %v3676, 1.442695
    %v3678 = vpow.pop %v3677
    %v3679 = vadd.f32 %v3678, 1.0
    %v3680 = vrcp.pop %v3679
    %v3681 = vmul.f32 1.0, %v3680
    %v3682 = vtanh.pop %v3668
    %v3683 = vxor.u32 %v3669, 2147483648
    %v3684 = vmul.f32 %v3683, 1.442695
    %v3685 = vpow.pop %v3684
    %v3686 = vadd.f32 %v3685, 1.0
    %v3687 = vrcp.pop %v3686
    %v3688 = vmul.f32 1.0, %v3687
    %v3689 = vmul.f32 %v3681, %v3185
    %v3690 = vmul.f32 %v3675, %v3682
    %v3691 = vadd.f32 %v3689, %v3690
    %v3692 = vtanh.pop %v3691
    %v3693 = vmul.f32 %v3688, %v3692
    %3694 = vmatprep.subr.mxu0 %v308
    %3695 = vmatpush1.msra.mxu0 %v307
    %3696 = vmatprep.subr.mxu0 %v304
    %3697 = vmatpush1.msra.mxu0 %v303
    %3698 = vmatprep.subr.mxu0 %v300
    %3699 = vmatpush1.msra.mxu0 %v299
    %3700 = vmatprep.subr.mxu0 %v296
    %3701 = vmatpush1.msra.mxu0 %v295
    %3702 = vmatprep.subr.mxu0 %v292
    %3703 = vmatpush1.msra.mxu0 %v291
    %3704 = vmatprep.subr.mxu0 %v288
    %3705 = vmatpush1.msra.mxu0 %v287
    %3706 = vmatprep.subr.mxu0 %v284
    %3707 = vmatpush1.msra.mxu0 %v283
    %3708 = vmatprep.subr.mxu0 %v280
    %3709 = vmatpush1.msra.mxu0 %v279
    %3710 = vmatprep.subr.mxu0 %v276
    %3711 = vmatpush1.msra.mxu0 %v275
    %3712 = vmatprep.subr.mxu0 %v272
    %3713 = vmatpush1.msra.mxu0 %v271
    %3714 = vmatprep.subr.mxu0 %v268
    %3715 = vmatpush1.msra.mxu0 %v267
    %3716 = vmatprep.subr.mxu0 %v264
    %3717 = vmatpush1.msra.mxu0 %v263
    %3718 = vmatprep.subr.mxu0 %v260
    %3719 = vmatpush1.msra.mxu0 %v259
    %3720 = vmatprep.subr.mxu0 %v256
    %3721 = vmatpush1.msra.mxu0 %v255
    %3722 = vmatprep.subr.mxu0 %v252
    %3723 = vmatpush1.msra.mxu0 %v251
    %3724 = vmatprep.subr.mxu0 %v248
    %3725 = vmatpush1.msra.mxu0 %v247
    %3726 = vmatprep.subr.mxu0 0.0
    %3727 = vmatpush2.msra.mxu0 0.0
    %3728 = vmatprep.subr.mxu0 0.0
    %3729 = vmatpush2.msra.mxu0 0.0
    %3730 = vmatprep.subr.mxu0 0.0
    %3731 = vmatpush2.msra.mxu0 0.0
    %3732 = vmatprep.subr.mxu0 0.0
    %3733 = vmatpush2.msra.mxu0 0.0
    %3734 = vmatprep.subr.mxu0 0.0
    %3735 = vmatpush2.msra.mxu0 0.0
    %3736 = vmatprep.subr.mxu0 0.0
    %3737 = vmatpush2.msra.mxu0 0.0
    %3738 = vmatprep.subr.mxu0 0.0
    %3739 = vmatpush2.msra.mxu0 0.0
    %3740 = vmatprep.subr.mxu0 0.0
    %3741 = vmatpush2.msra.mxu0 0.0
    %3742 = vmatprep.subr.mxu0 0.0
    %3743 = vmatpush2.msra.mxu0 0.0
    %3744 = vmatprep.subr.mxu0 0.0
    %3745 = vmatpush2.msra.mxu0 0.0
    %3746 = vmatprep.subr.mxu0 0.0
    %3747 = vmatpush2.msra.mxu0 0.0
    %3748 = vmatprep.subr.mxu0 0.0
    %3749 = vmatpush2.msra.mxu0 0.0
    %3750 = vmatprep.subr.mxu0 0.0
    %3751 = vmatpush2.msra.mxu0 0.0
    %3752 = vmatprep.subr.mxu0 0.0
    %3753 = vmatpush2.msra.mxu0 0.0
    %3754 = vmatprep.subr.mxu0 0.0
    %3755 = vmatpush2.msra.mxu0 0.0
    %3756 = vmatprep.subr.mxu0 0.0
    %3757 = vmatpush2.msra.mxu0 0.0
    %3758 = vmatprep.mubr.f32.mxu0 0.0
    %3759 = vmatmul.mubr.f32.gmra.mxu0 %v3499
    %v3760 = vpop.f32.mrf.mxu0
    %v3761 = vadd.f32 %v402, %v3760
    %v3762 = vpop.f32.mrf.mxu0
    %v3763 = vadd.f32 %v406, %v3762
    %3764 = vdwg.mxu0
    %3765 = vmatprep.subr.mxu0 %v310
    %3766 = vmatpush1.msra.mxu0 %v309
    %3767 = vmatprep.subr.mxu0 %v306
    %3768 = vmatpush1.msra.mxu0 %v305
    %3769 = vmatprep.subr.mxu0 %v302
    %3770 = vmatpush1.msra.mxu0 %v301
    %3771 = vmatprep.subr.mxu0 %v298
    %3772 = vmatpush1.msra.mxu0 %v297
    %3773 = vmatprep.subr.mxu0 %v294
    %3774 = vmatpush1.msra.mxu0 %v293
    %3775 = vmatprep.subr.mxu0 %v290
    %3776 = vmatpush1.msra.mxu0 %v289
    %3777 = vmatprep.subr.mxu0 %v286
    %3778 = vmatpush1.msra.mxu0 %v285
    %3779 = vmatprep.subr.mxu0 %v282
    %3780 = vmatpush1.msra.mxu0 %v281
    %3781 = vmatprep.subr.mxu0 %v278
    %3782 = vmatpush1.msra.mxu0 %v277
    %3783 = vmatprep.subr.mxu0 %v274
    %3784 = vmatpush1.msra.mxu0 %v273
    %3785 = vmatprep.subr.mxu0 %v270
    %3786 = vmatpush1.msra.mxu0 %v269
    %3787 = vmatprep.subr.mxu0 %v266
    %3788 = vmatpush1.msra.mxu0 %v265
    %3789 = vmatprep.subr.mxu0 %v262
    %3790 = vmatpush1.msra.mxu0 %v261
    %3791 = vmatprep.subr.mxu0 %v258
    %3792 = vmatpush1.msra.mxu0 %v257
    %3793 = vmatprep.subr.mxu0 %v254
    %3794 = vmatpush1.msra.mxu0 %v253
    %3795 = vmatprep.subr.mxu0 %v250
    %3796 = vmatpush1.msra.mxu0 %v249
    %3797 = vmatprep.subr.mxu0 0.0
    %3798 = vmatpush2.msra.mxu0 0.0
    %3799 = vmatprep.subr.mxu0 0.0
    %3800 = vmatpush2.msra.mxu0 0.0
    %3801 = vmatprep.subr.mxu0 0.0
    %3802 = vmatpush2.msra.mxu0 0.0
    %3803 = vmatprep.subr.mxu0 0.0
    %3804 = vmatpush2.msra.mxu0 0.0
    %3805 = vmatprep.subr.mxu0 0.0
    %3806 = vmatpush2.msra.mxu0 0.0
    %3807 = vmatprep.subr.mxu0 0.0
    %3808 = vmatpush2.msra.mxu0 0.0
    %3809 = vmatprep.subr.mxu0 0.0
    %3810 = vmatpush2.msra.mxu0 0.0
    %3811 = vmatprep.subr.mxu0 0.0
    %3812 = vmatpush2.msra.mxu0 0.0
    %3813 = vmatprep.subr.mxu0 0.0
    %3814 = vmatpush2.msra.mxu0 0.0
    %3815 = vmatprep.subr.mxu0 0.0
    %3816 = vmatpush2.msra.mxu0 0.0
    %3817 = vmatprep.subr.mxu0 0.0
    %3818 = vmatpush2.msra.mxu0 0.0
    %3819 = vmatprep.subr.mxu0 0.0
    %3820 = vmatpush2.msra.mxu0 0.0
    %3821 = vmatprep.subr.mxu0 0.0
    %3822 = vmatpush2.msra.mxu0 0.0
    %3823 = vmatprep.subr.mxu0 0.0
    %3824 = vmatpush2.msra.mxu0 0.0
    %3825 = vmatprep.subr.mxu0 0.0
    %3826 = vmatpush2.msra.mxu0 0.0
    %3827 = vmatprep.subr.mxu0 0.0
    %3828 = vmatpush2.msra.mxu0 0.0
    %3829 = vmatprep.mubr.f32.mxu0 0.0
    %3830 = vmatmul.mubr.f32.gmra.mxu0 %v3499
    %v3831 = vpop.f32.mrf.mxu0
    %v3832 = vadd.f32 %v410, %v3831
    %v3833 = vpop.f32.mrf.mxu0
    %v3834 = vadd.f32 %v414, %v3833
    %3835 = vdwg.mxu0
    %3836 = vmatprep.subr.mxu0 %v244
    %3837 = vmatpush1.msra.mxu0 %v243
    %3838 = vmatprep.subr.mxu0 %v240
    %3839 = vmatpush1.msra.mxu0 %v239
    %3840 = vmatprep.subr.mxu0 %v236
    %3841 = vmatpush1.msra.mxu0 %v235
    %3842 = vmatprep.subr.mxu0 %v232
    %3843 = vmatpush1.msra.mxu0 %v231
    %3844 = vmatprep.subr.mxu0 %v228
    %3845 = vmatpush1.msra.mxu0 %v227
    %3846 = vmatprep.subr.mxu0 %v224
    %3847 = vmatpush1.msra.mxu0 %v223
    %3848 = vmatprep.subr.mxu0 %v220
    %3849 = vmatpush1.msra.mxu0 %v219
    %3850 = vmatprep.subr.mxu0 %v216
    %3851 = vmatpush1.msra.mxu0 %v215
    %3852 = vmatprep.subr.mxu0 %v212
    %3853 = vmatpush1.msra.mxu0 %v211
    %3854 = vmatprep.subr.mxu0 %v208
    %3855 = vmatpush1.msra.mxu0 %v207
    %3856 = vmatprep.subr.mxu0 %v204
    %3857 = vmatpush1.msra.mxu0 %v203
    %3858 = vmatprep.subr.mxu0 %v200
    %3859 = vmatpush1.msra.mxu0 %v199
    %3860 = vmatprep.subr.mxu0 %v196
    %3861 = vmatpush1.msra.mxu0 %v195
    %3862 = vmatprep.subr.mxu0 %v192
    %3863 = vmatpush1.msra.mxu0 %v191
    %3864 = vmatprep.subr.mxu0 %v188
    %3865 = vmatpush1.msra.mxu0 %v187
    %3866 = vmatprep.subr.mxu0 %v184
    %3867 = vmatpush1.msra.mxu0 %v183
    %3868 = vmatprep.subr.mxu0 0.0
    %3869 = vmatpush2.msra.mxu0 0.0
    %3870 = vmatprep.subr.mxu0 0.0
    %3871 = vmatpush2.msra.mxu0 0.0
    %3872 = vmatprep.subr.mxu0 0.0
    %3873 = vmatpush2.msra.mxu0 0.0
    %3874 = vmatprep.subr.mxu0 0.0
    %3875 = vmatpush2.msra.mxu0 0.0
    %3876 = vmatprep.subr.mxu0 0.0
    %3877 = vmatpush2.msra.mxu0 0.0
    %3878 = vmatprep.subr.mxu0 0.0
    %3879 = vmatpush2.msra.mxu0 0.0
    %3880 = vmatprep.subr.mxu0 0.0
    %3881 = vmatpush2.msra.mxu0 0.0
    %3882 = vmatprep.subr.mxu0 0.0
    %3883 = vmatpush2.msra.mxu0 0.0
    %3884 = vmatprep.subr.mxu0 0.0
    %3885 = vmatpush2.msra.mxu0 0.0
    %3886 = vmatprep.subr.mxu0 0.0
    %3887 = vmatpush2.msra.mxu0 0.0
    %3888 = vmatprep.subr.mxu0 0.0
    %3889 = vmatpush2.msra.mxu0 0.0
    %3890 = vmatprep.subr.mxu0 0.0
    %3891 = vmatpush2.msra.mxu0 0.0
    %3892 = vmatprep.subr.mxu0 0.0
    %3893 = vmatpush2.msra.mxu0 0.0
    %3894 = vmatprep.subr.mxu0 0.0
    %3895 = vmatpush2.msra.mxu0 0.0
    %3896 = vmatprep.subr.mxu0 0.0
    %3897 = vmatpush2.msra.mxu0 0.0
    %3898 = vmatprep.subr.mxu0 0.0
    %3899 = vmatpush2.msra.mxu0 0.0
    %3900 = vmatprep.mubr.f32.mxu0 0.0
    %3901 = vmatmul.mubr.f32.gmra.mxu0 %v3693
    %v3902 = vpop.f32.mrf.mxu0
    %v3903 = vadd.f32 0.0, %v3902
    %v3904 = vpop.f32.mrf.mxu0
    %v3905 = vadd.f32 0.0, %v3904
    %3906 = vdwg.mxu0
    %3907 = vmatprep.subr.mxu0 %v246
    %3908 = vmatpush1.msra.mxu0 %v245
    %3909 = vmatprep.subr.mxu0 %v242
    %3910 = vmatpush1.msra.mxu0 %v241
    %3911 = vmatprep.subr.mxu0 %v238
    %3912 = vmatpush1.msra.mxu0 %v237
    %3913 = vmatprep.subr.mxu0 %v234
    %3914 = vmatpush1.msra.mxu0 %v233
    %3915 = vmatprep.subr.mxu0 %v230
    %3916 = vmatpush1.msra.mxu0 %v229
    %3917 = vmatprep.subr.mxu0 %v226
    %3918 = vmatpush1.msra.mxu0 %v225
    %3919 = vmatprep.subr.mxu0 %v222
    %3920 = vmatpush1.msra.mxu0 %v221
    %3921 = vmatprep.subr.mxu0 %v218
    %3922 = vmatpush1.msra.mxu0 %v217
    %3923 = vmatprep.subr.mxu0 %v214
    %3924 = vmatpush1.msra.mxu0 %v213
    %3925 = vmatprep.subr.mxu0 %v210
    %3926 = vmatpush1.msra.mxu0 %v209
    %3927 = vmatprep.subr.mxu0 %v206
    %3928 = vmatpush1.msra.mxu0 %v205
    %3929 = vmatprep.subr.mxu0 %v202
    %3930 = vmatpush1.msra.mxu0 %v201
    %3931 = vmatprep.subr.mxu0 %v198
    %3932 = vmatpush1.msra.mxu0 %v197
    %3933 = vmatprep.subr.mxu0 %v194
    %3934 = vmatpush1.msra.mxu0 %v193
    %3935 = vmatprep.subr.mxu0 %v190
    %3936 = vmatpush1.msra.mxu0 %v189
    %3937 = vmatprep.subr.mxu0 %v186
    %3938 = vmatpush1.msra.mxu0 %v185
    %3939 = vmatprep.subr.mxu0 0.0
    %3940 = vmatpush2.msra.mxu0 0.0
    %3941 = vmatprep.subr.mxu0 0.0
    %3942 = vmatpush2.msra.mxu0 0.0
    %3943 = vmatprep.subr.mxu0 0.0
    %3944 = vmatpush2.msra.mxu0 0.0
    %3945 = vmatprep.subr.mxu0 0.0
    %3946 = vmatpush2.msra.mxu0 0.0
    %3947 = vmatprep.subr.mxu0 0.0
    %3948 = vmatpush2.msra.mxu0 0.0
    %3949 = vmatprep.subr.mxu0 0.0
    %3950 = vmatpush2.msra.mxu0 0.0
    %3951 = vmatprep.subr.mxu0 0.0
    %3952 = vmatpush2.msra.mxu0 0.0
    %3953 = vmatprep.subr.mxu0 0.0
    %3954 = vmatpush2.msra.mxu0 0.0
    %3955 = vmatprep.subr.mxu0 0.0
    %3956 = vmatpush2.msra.mxu0 0.0
    %3957 = vmatprep.subr.mxu0 0.0
    %3958 = vmatpush2.msra.mxu0 0.0
    %3959 = vmatprep.subr.mxu0 0.0
    %3960 = vmatpush2.msra.mxu0 0.0
    %3961 = vmatprep.subr.mxu0 0.0
    %3962 = vmatpush2.msra.mxu0 0.0
    %3963 = vmatprep.subr.mxu0 0.0
    %3964 = vmatpush2.msra.mxu0 0.0
    %3965 = vmatprep.subr.mxu0 0.0
    %3966 = vmatpush2.msra.mxu0 0.0
    %3967 = vmatprep.subr.mxu0 0.0
    %3968 = vmatpush2.msra.mxu0 0.0
    %3969 = vmatprep.subr.mxu0 0.0
    %3970 = vmatpush2.msra.mxu0 0.0
    %3971 = vmatprep.mubr.f32.mxu0 0.0
    %3972 = vmatmul.mubr.f32.gmra.mxu0 %v3693
    %v3973 = vpop.f32.mrf.mxu0
    %v3974 = vadd.f32 0.0, %v3973
    %v3975 = vpop.f32.mrf.mxu0
    %v3976 = vadd.f32 0.0, %v3975
    %3977 = vdwg.mxu0
    %v3978 = vadd.f32 %v3761, %v3903
    %v3979 = vadd.f32 %v3763, %v3905
    %v3980 = vadd.f32 %v3832, %v3974
    %v3981 = vadd.f32 %v3834, %v3976
    %v3982 = vxor.u32 %v3978, 2147483648
    %v3983 = vmul.f32 %v3982, 1.442695
    %v3984 = vpow.pop %v3983
    %v3985 = vadd.f32 %v3984, 1.0
    %v3986 = vrcp.pop %v3985
    %v3987 = vmul.f32 1.0, %v3986
    %v3988 = vxor.u32 %v3979, 2147483648
    %v3989 = vmul.f32 %v3988, 1.442695
    %v3990 = vpow.pop %v3989
    %v3991 = vadd.f32 %v3990, 1.0
    %v3992 = vrcp.pop %v3991
    %v3993 = vmul.f32 1.0, %v3992
    %v3994 = vtanh.pop %v3980
    %v3995 = vxor.u32 %v3981, 2147483648
    %v3996 = vmul.f32 %v3995, 1.442695
    %v3997 = vpow.pop %v3996
    %v3998 = vadd.f32 %v3997, 1.0
    %v3999 = vrcp.pop %v3998
    %v4000 = vmul.f32 1.0, %v3999
    %v4001 = vmul.f32 %v3993, %v3497
    %v4002 = vmul.f32 %v3987, %v3994
    %v4003 = vadd.f32 %v4001, %v4002
    %v4004 = vtanh.pop %v4003
    %v4005 = vmul.f32 %v4000, %v4004
    %v4006 = vmul.f32 %v4005, %v446
    %4007 = vadd.xlane.f32.xlu0 %v4006
    %v4008 = vpop.xlane.xlu0 %4007
    %v4009 = vadd.f32 %v4008, %v453
    %4011 = vrot.lane.b32.xlu0 %v4009, 6
    %v4012 = vpop.permute.xlu0 %4011
    %vm4014 = vcmask 56368
    %4015 = vst.msk [vmem:[#allocation14] sm:$0xff] %vm4014, %v4012
    %v4016 = vld [vmem:[#allocation3] sm:$0xff]
    %4018 = vset.pattern.permute.xlu0 7
    %4019 = vperm.xlu0 %4018, %v4016
    %v4020 = vpop.permute.xlu0 %4019
    %v4022 = vmul.f32 %v4020, %v467
    %v4023 = vmul.f32 %v4020, %v471
    %v4024 = vmul.f32 %v4020, %v475
    %v4025 = vmul.f32 %v4020, %v479
    %v4026 = vadd.f32 %v4022, %v380
    %v4027 = vadd.f32 %v4023, %v384
    %v4028 = vadd.f32 %v4024, %v388
    %v4029 = vadd.f32 %v4025, %v392
    %4030 = vmatprep.subr.mxu0 %v180
    %4031 = vmatpush1.msra.mxu0 %v179
    %4032 = vmatprep.subr.mxu0 %v176
    %4033 = vmatpush1.msra.mxu0 %v175
    %4034 = vmatprep.subr.mxu0 %v172
    %4035 = vmatpush1.msra.mxu0 %v171
    %4036 = vmatprep.subr.mxu0 %v168
    %4037 = vmatpush1.msra.mxu0 %v167
    %4038 = vmatprep.subr.mxu0 %v164
    %4039 = vmatpush1.msra.mxu0 %v163
    %4040 = vmatprep.subr.mxu0 %v160
    %4041 = vmatpush1.msra.mxu0 %v159
    %4042 = vmatprep.subr.mxu0 %v156
    %4043 = vmatpush1.msra.mxu0 %v155
    %4044 = vmatprep.subr.mxu0 %v152
    %4045 = vmatpush1.msra.mxu0 %v151
    %4046 = vmatprep.subr.mxu0 %v148
    %4047 = vmatpush1.msra.mxu0 %v147
    %4048 = vmatprep.subr.mxu0 %v144
    %4049 = vmatpush1.msra.mxu0 %v143
    %4050 = vmatprep.subr.mxu0 %v140
    %4051 = vmatpush1.msra.mxu0 %v139
    %4052 = vmatprep.subr.mxu0 %v136
    %4053 = vmatpush1.msra.mxu0 %v135
    %4054 = vmatprep.subr.mxu0 %v132
    %4055 = vmatpush1.msra.mxu0 %v131
    %4056 = vmatprep.subr.mxu0 %v128
    %4057 = vmatpush1.msra.mxu0 %v127
    %4058 = vmatprep.subr.mxu0 %v124
    %4059 = vmatpush1.msra.mxu0 %v123
    %4060 = vmatprep.subr.mxu0 %v120
    %4061 = vmatpush1.msra.mxu0 %v119
    %4062 = vmatprep.subr.mxu0 0.0
    %4063 = vmatpush2.msra.mxu0 0.0
    %4064 = vmatprep.subr.mxu0 0.0
    %4065 = vmatpush2.msra.mxu0 0.0
    %4066 = vmatprep.subr.mxu0 0.0
    %4067 = vmatpush2.msra.mxu0 0.0
    %4068 = vmatprep.subr.mxu0 0.0
    %4069 = vmatpush2.msra.mxu0 0.0
    %4070 = vmatprep.subr.mxu0 0.0
    %4071 = vmatpush2.msra.mxu0 0.0
    %4072 = vmatprep.subr.mxu0 0.0
    %4073 = vmatpush2.msra.mxu0 0.0
    %4074 = vmatprep.subr.mxu0 0.0
    %4075 = vmatpush2.msra.mxu0 0.0
    %4076 = vmatprep.subr.mxu0 0.0
    %4077 = vmatpush2.msra.mxu0 0.0
    %4078 = vmatprep.subr.mxu0 0.0
    %4079 = vmatpush2.msra.mxu0 0.0
    %4080 = vmatprep.subr.mxu0 0.0
    %4081 = vmatpush2.msra.mxu0 0.0
    %4082 = vmatprep.subr.mxu0 0.0
    %4083 = vmatpush2.msra.mxu0 0.0
    %4084 = vmatprep.subr.mxu0 0.0
    %4085 = vmatpush2.msra.mxu0 0.0
    %4086 = vmatprep.subr.mxu0 0.0
    %4087 = vmatpush2.msra.mxu0 0.0
    %4088 = vmatprep.subr.mxu0 0.0
    %4089 = vmatpush2.msra.mxu0 0.0
    %4090 = vmatprep.subr.mxu0 0.0
    %4091 = vmatpush2.msra.mxu0 0.0
    %4092 = vmatprep.subr.mxu0 0.0
    %4093 = vmatpush2.msra.mxu0 0.0
    %4094 = vmatprep.mubr.f32.mxu0 0.0
    %4095 = vmatmul.mubr.f32.gmra.mxu0 %v3693
    %v4096 = vpop.f32.mrf.mxu0
    %v4097 = vadd.f32 0.0, %v4096
    %v4098 = vpop.f32.mrf.mxu0
    %v4099 = vadd.f32 0.0, %v4098
    %4100 = vdwg.mxu0
    %4101 = vmatprep.subr.mxu0 %v182
    %4102 = vmatpush1.msra.mxu0 %v181
    %4103 = vmatprep.subr.mxu0 %v178
    %4104 = vmatpush1.msra.mxu0 %v177
    %4105 = vmatprep.subr.mxu0 %v174
    %4106 = vmatpush1.msra.mxu0 %v173
    %4107 = vmatprep.subr.mxu0 %v170
    %4108 = vmatpush1.msra.mxu0 %v169
    %4109 = vmatprep.subr.mxu0 %v166
    %4110 = vmatpush1.msra.mxu0 %v165
    %4111 = vmatprep.subr.mxu0 %v162
    %4112 = vmatpush1.msra.mxu0 %v161
    %4113 = vmatprep.subr.mxu0 %v158
    %4114 = vmatpush1.msra.mxu0 %v157
    %4115 = vmatprep.subr.mxu0 %v154
    %4116 = vmatpush1.msra.mxu0 %v153
    %4117 = vmatprep.subr.mxu0 %v150
    %4118 = vmatpush1.msra.mxu0 %v149
    %4119 = vmatprep.subr.mxu0 %v146
    %4120 = vmatpush1.msra.mxu0 %v145
    %4121 = vmatprep.subr.mxu0 %v142
    %4122 = vmatpush1.msra.mxu0 %v141
    %4123 = vmatprep.subr.mxu0 %v138
    %4124 = vmatpush1.msra.mxu0 %v137
    %4125 = vmatprep.subr.mxu0 %v134
    %4126 = vmatpush1.msra.mxu0 %v133
    %4127 = vmatprep.subr.mxu0 %v130
    %4128 = vmatpush1.msra.mxu0 %v129
    %4129 = vmatprep.subr.mxu0 %v126
    %4130 = vmatpush1.msra.mxu0 %v125
    %4131 = vmatprep.subr.mxu0 %v122
    %4132 = vmatpush1.msra.mxu0 %v121
    %4133 = vmatprep.subr.mxu0 0.0
    %4134 = vmatpush2.msra.mxu0 0.0
    %4135 = vmatprep.subr.mxu0 0.0
    %4136 = vmatpush2.msra.mxu0 0.0
    %4137 = vmatprep.subr.mxu0 0.0
    %4138 = vmatpush2.msra.mxu0 0.0
    %4139 = vmatprep.subr.mxu0 0.0
    %4140 = vmatpush2.msra.mxu0 0.0
    %4141 = vmatprep.subr.mxu0 0.0
    %4142 = vmatpush2.msra.mxu0 0.0
    %4143 = vmatprep.subr.mxu0 0.0
    %4144 = vmatpush2.msra.mxu0 0.0
    %4145 = vmatprep.subr.mxu0 0.0
    %4146 = vmatpush2.msra.mxu0 0.0
    %4147 = vmatprep.subr.mxu0 0.0
    %4148 = vmatpush2.msra.mxu0 0.0
    %4149 = vmatprep.subr.mxu0 0.0
    %4150 = vmatpush2.msra.mxu0 0.0
    %4151 = vmatprep.subr.mxu0 0.0
    %4152 = vmatpush2.msra.mxu0 0.0
    %4153 = vmatprep.subr.mxu0 0.0
    %4154 = vmatpush2.msra.mxu0 0.0
    %4155 = vmatprep.subr.mxu0 0.0
    %4156 = vmatpush2.msra.mxu0 0.0
    %4157 = vmatprep.subr.mxu0 0.0
    %4158 = vmatpush2.msra.mxu0 0.0
    %4159 = vmatprep.subr.mxu0 0.0
    %4160 = vmatpush2.msra.mxu0 0.0
    %4161 = vmatprep.subr.mxu0 0.0
    %4162 = vmatpush2.msra.mxu0 0.0
    %4163 = vmatprep.subr.mxu0 0.0
    %4164 = vmatpush2.msra.mxu0 0.0
    %4165 = vmatprep.mubr.f32.mxu0 0.0
    %4166 = vmatmul.mubr.f32.gmra.mxu0 %v3693
    %v4167 = vpop.f32.mrf.mxu0
    %v4168 = vadd.f32 0.0, %v4167
    %v4169 = vpop.f32.mrf.mxu0
    %v4170 = vadd.f32 0.0, %v4169
    %4171 = vdwg.mxu0
    %v4172 = vadd.f32 %v4026, %v4097
    %v4173 = vadd.f32 %v4027, %v4099
    %v4174 = vadd.f32 %v4028, %v4168
    %v4175 = vadd.f32 %v4029, %v4170
    %v4176 = vxor.u32 %v4172, 2147483648
    %v4177 = vmul.f32 %v4176, 1.442695
    %v4178 = vpow.pop %v4177
    %v4179 = vadd.f32 %v4178, 1.0
    %v4180 = vrcp.pop %v4179
    %v4181 = vmul.f32 1.0, %v4180
    %v4182 = vxor.u32 %v4173, 2147483648
    %v4183 = vmul.f32 %v4182, 1.442695
    %v4184 = vpow.pop %v4183
    %v4185 = vadd.f32 %v4184, 1.0
    %v4186 = vrcp.pop %v4185
    %v4187 = vmul.f32 1.0, %v4186
    %v4188 = vtanh.pop %v4174
    %v4189 = vxor.u32 %v4175, 2147483648
    %v4190 = vmul.f32 %v4189, 1.442695
    %v4191 = vpow.pop %v4190
    %v4192 = vadd.f32 %v4191, 1.0
    %v4193 = vrcp.pop %v4192
    %v4194 = vmul.f32 1.0, %v4193
    %v4195 = vmul.f32 %v4187, %v3691
    %v4196 = vmul.f32 %v4181, %v4188
    %v4197 = vadd.f32 %v4195, %v4196
    %v4198 = vtanh.pop %v4197
    %v4199 = vmul.f32 %v4194, %v4198
    %4200 = vmatprep.subr.mxu0 %v308
    %4201 = vmatpush1.msra.mxu0 %v307
    %4202 = vmatprep.subr.mxu0 %v304
    %4203 = vmatpush1.msra.mxu0 %v303
    %4204 = vmatprep.subr.mxu0 %v300
    %4205 = vmatpush1.msra.mxu0 %v299
    %4206 = vmatprep.subr.mxu0 %v296
    %4207 = vmatpush1.msra.mxu0 %v295
    %4208 = vmatprep.subr.mxu0 %v292
    %4209 = vmatpush1.msra.mxu0 %v291
    %4210 = vmatprep.subr.mxu0 %v288
    %4211 = vmatpush1.msra.mxu0 %v287
    %4212 = vmatprep.subr.mxu0 %v284
    %4213 = vmatpush1.msra.mxu0 %v283
    %4214 = vmatprep.subr.mxu0 %v280
    %4215 = vmatpush1.msra.mxu0 %v279
    %4216 = vmatprep.subr.mxu0 %v276
    %4217 = vmatpush1.msra.mxu0 %v275
    %4218 = vmatprep.subr.mxu0 %v272
    %4219 = vmatpush1.msra.mxu0 %v271
    %4220 = vmatprep.subr.mxu0 %v268
    %4221 = vmatpush1.msra.mxu0 %v267
    %4222 = vmatprep.subr.mxu0 %v264
    %4223 = vmatpush1.msra.mxu0 %v263
    %4224 = vmatprep.subr.mxu0 %v260
    %4225 = vmatpush1.msra.mxu0 %v259
    %4226 = vmatprep.subr.mxu0 %v256
    %4227 = vmatpush1.msra.mxu0 %v255
    %4228 = vmatprep.subr.mxu0 %v252
    %4229 = vmatpush1.msra.mxu0 %v251
    %4230 = vmatprep.subr.mxu0 %v248
    %4231 = vmatpush1.msra.mxu0 %v247
    %4232 = vmatprep.subr.mxu0 0.0
    %4233 = vmatpush2.msra.mxu0 0.0
    %4234 = vmatprep.subr.mxu0 0.0
    %4235 = vmatpush2.msra.mxu0 0.0
    %4236 = vmatprep.subr.mxu0 0.0
    %4237 = vmatpush2.msra.mxu0 0.0
    %4238 = vmatprep.subr.mxu0 0.0
    %4239 = vmatpush2.msra.mxu0 0.0
    %4240 = vmatprep.subr.mxu0 0.0
    %4241 = vmatpush2.msra.mxu0 0.0
    %4242 = vmatprep.subr.mxu0 0.0
    %4243 = vmatpush2.msra.mxu0 0.0
    %4244 = vmatprep.subr.mxu0 0.0
    %4245 = vmatpush2.msra.mxu0 0.0
    %4246 = vmatprep.subr.mxu0 0.0
    %4247 = vmatpush2.msra.mxu0 0.0
    %4248 = vmatprep.subr.mxu0 0.0
    %4249 = vmatpush2.msra.mxu0 0.0
    %4250 = vmatprep.subr.mxu0 0.0
    %4251 = vmatpush2.msra.mxu0 0.0
    %4252 = vmatprep.subr.mxu0 0.0
    %4253 = vmatpush2.msra.mxu0 0.0
    %4254 = vmatprep.subr.mxu0 0.0
    %4255 = vmatpush2.msra.mxu0 0.0
    %4256 = vmatprep.subr.mxu0 0.0
    %4257 = vmatpush2.msra.mxu0 0.0
    %4258 = vmatprep.subr.mxu0 0.0
    %4259 = vmatpush2.msra.mxu0 0.0
    %4260 = vmatprep.subr.mxu0 0.0
    %4261 = vmatpush2.msra.mxu0 0.0
    %4262 = vmatprep.subr.mxu0 0.0
    %4263 = vmatpush2.msra.mxu0 0.0
    %4264 = vmatprep.mubr.f32.mxu0 0.0
    %4265 = vmatmul.mubr.f32.gmra.mxu0 %v4005
    %v4266 = vpop.f32.mrf.mxu0
    %v4267 = vadd.f32 %v402, %v4266
    %v4268 = vpop.f32.mrf.mxu0
    %v4269 = vadd.f32 %v406, %v4268
    %4270 = vdwg.mxu0
    %4271 = vmatprep.subr.mxu0 %v310
    %4272 = vmatpush1.msra.mxu0 %v309
    %4273 = vmatprep.subr.mxu0 %v306
    %4274 = vmatpush1.msra.mxu0 %v305
    %4275 = vmatprep.subr.mxu0 %v302
    %4276 = vmatpush1.msra.mxu0 %v301
    %4277 = vmatprep.subr.mxu0 %v298
    %4278 = vmatpush1.msra.mxu0 %v297
    %4279 = vmatprep.subr.mxu0 %v294
    %4280 = vmatpush1.msra.mxu0 %v293
    %4281 = vmatprep.subr.mxu0 %v290
    %4282 = vmatpush1.msra.mxu0 %v289
    %4283 = vmatprep.subr.mxu0 %v286
    %4284 = vmatpush1.msra.mxu0 %v285
    %4285 = vmatprep.subr.mxu0 %v282
    %4286 = vmatpush1.msra.mxu0 %v281
    %4287 = vmatprep.subr.mxu0 %v278
    %4288 = vmatpush1.msra.mxu0 %v277
    %4289 = vmatprep.subr.mxu0 %v274
    %4290 = vmatpush1.msra.mxu0 %v273
    %4291 = vmatprep.subr.mxu0 %v270
    %4292 = vmatpush1.msra.mxu0 %v269
    %4293 = vmatprep.subr.mxu0 %v266
    %4294 = vmatpush1.msra.mxu0 %v265
    %4295 = vmatprep.subr.mxu0 %v262
    %4296 = vmatpush1.msra.mxu0 %v261
    %4297 = vmatprep.subr.mxu0 %v258
    %4298 = vmatpush1.msra.mxu0 %v257
    %4299 = vmatprep.subr.mxu0 %v254
    %4300 = vmatpush1.msra.mxu0 %v253
    %4301 = vmatprep.subr.mxu0 %v250
    %4302 = vmatpush1.msra.mxu0 %v249
    %4303 = vmatprep.subr.mxu0 0.0
    %4304 = vmatpush2.msra.mxu0 0.0
    %4305 = vmatprep.subr.mxu0 0.0
    %4306 = vmatpush2.msra.mxu0 0.0
    %4307 = vmatprep.subr.mxu0 0.0
    %4308 = vmatpush2.msra.mxu0 0.0
    %4309 = vmatprep.subr.mxu0 0.0
    %4310 = vmatpush2.msra.mxu0 0.0
    %4311 = vmatprep.subr.mxu0 0.0
    %4312 = vmatpush2.msra.mxu0 0.0
    %4313 = vmatprep.subr.mxu0 0.0
    %4314 = vmatpush2.msra.mxu0 0.0
    %4315 = vmatprep.subr.mxu0 0.0
    %4316 = vmatpush2.msra.mxu0 0.0
    %4317 = vmatprep.subr.mxu0 0.0
    %4318 = vmatpush2.msra.mxu0 0.0
    %4319 = vmatprep.subr.mxu0 0.0
    %4320 = vmatpush2.msra.mxu0 0.0
    %4321 = vmatprep.subr.mxu0 0.0
    %4322 = vmatpush2.msra.mxu0 0.0
    %4323 = vmatprep.subr.mxu0 0.0
    %4324 = vmatpush2.msra.mxu0 0.0
    %4325 = vmatprep.subr.mxu0 0.0
    %4326 = vmatpush2.msra.mxu0 0.0
    %4327 = vmatprep.subr.mxu0 0.0
    %4328 = vmatpush2.msra.mxu0 0.0
    %4329 = vmatprep.subr.mxu0 0.0
    %4330 = vmatpush2.msra.mxu0 0.0
    %4331 = vmatprep.subr.mxu0 0.0
    %4332 = vmatpush2.msra.mxu0 0.0
    %4333 = vmatprep.subr.mxu0 0.0
    %4334 = vmatpush2.msra.mxu0 0.0
    %4335 = vmatprep.mubr.f32.mxu0 0.0
    %4336 = vmatmul.mubr.f32.gmra.mxu0 %v4005
    %v4337 = vpop.f32.mrf.mxu0
    %v4338 = vadd.f32 %v410, %v4337
    %v4339 = vpop.f32.mrf.mxu0
    %v4340 = vadd.f32 %v414, %v4339
    %4341 = vdwg.mxu0
    %4342 = vmatprep.subr.mxu0 %v244
    %4343 = vmatpush1.msra.mxu0 %v243
    %4344 = vmatprep.subr.mxu0 %v240
    %4345 = vmatpush1.msra.mxu0 %v239
    %4346 = vmatprep.subr.mxu0 %v236
    %4347 = vmatpush1.msra.mxu0 %v235
    %4348 = vmatprep.subr.mxu0 %v232
    %4349 = vmatpush1.msra.mxu0 %v231
    %4350 = vmatprep.subr.mxu0 %v228
    %4351 = vmatpush1.msra.mxu0 %v227
    %4352 = vmatprep.subr.mxu0 %v224
    %4353 = vmatpush1.msra.mxu0 %v223
    %4354 = vmatprep.subr.mxu0 %v220
    %4355 = vmatpush1.msra.mxu0 %v219
    %4356 = vmatprep.subr.mxu0 %v216
    %4357 = vmatpush1.msra.mxu0 %v215
    %4358 = vmatprep.subr.mxu0 %v212
    %4359 = vmatpush1.msra.mxu0 %v211
    %4360 = vmatprep.subr.mxu0 %v208
    %4361 = vmatpush1.msra.mxu0 %v207
    %4362 = vmatprep.subr.mxu0 %v204
    %4363 = vmatpush1.msra.mxu0 %v203
    %4364 = vmatprep.subr.mxu0 %v200
    %4365 = vmatpush1.msra.mxu0 %v199
    %4366 = vmatprep.subr.mxu0 %v196
    %4367 = vmatpush1.msra.mxu0 %v195
    %4368 = vmatprep.subr.mxu0 %v192
    %4369 = vmatpush1.msra.mxu0 %v191
    %4370 = vmatprep.subr.mxu0 %v188
    %4371 = vmatpush1.msra.mxu0 %v187
    %4372 = vmatprep.subr.mxu0 %v184
    %4373 = vmatpush1.msra.mxu0 %v183
    %4374 = vmatprep.subr.mxu0 0.0
    %4375 = vmatpush2.msra.mxu0 0.0
    %4376 = vmatprep.subr.mxu0 0.0
    %4377 = vmatpush2.msra.mxu0 0.0
    %4378 = vmatprep.subr.mxu0 0.0
    %4379 = vmatpush2.msra.mxu0 0.0
    %4380 = vmatprep.subr.mxu0 0.0
    %4381 = vmatpush2.msra.mxu0 0.0
    %4382 = vmatprep.subr.mxu0 0.0
    %4383 = vmatpush2.msra.mxu0 0.0
    %4384 = vmatprep.subr.mxu0 0.0
    %4385 = vmatpush2.msra.mxu0 0.0
    %4386 = vmatprep.subr.mxu0 0.0
    %4387 = vmatpush2.msra.mxu0 0.0
    %4388 = vmatprep.subr.mxu0 0.0
    %4389 = vmatpush2.msra.mxu0 0.0
    %4390 = vmatprep.subr.mxu0 0.0
    %4391 = vmatpush2.msra.mxu0 0.0
    %4392 = vmatprep.subr.mxu0 0.0
    %4393 = vmatpush2.msra.mxu0 0.0
    %4394 = vmatprep.subr.mxu0 0.0
    %4395 = vmatpush2.msra.mxu0 0.0
    %4396 = vmatprep.subr.mxu0 0.0
    %4397 = vmatpush2.msra.mxu0 0.0
    %4398 = vmatprep.subr.mxu0 0.0
    %4399 = vmatpush2.msra.mxu0 0.0
    %4400 = vmatprep.subr.mxu0 0.0
    %4401 = vmatpush2.msra.mxu0 0.0
    %4402 = vmatprep.subr.mxu0 0.0
    %4403 = vmatpush2.msra.mxu0 0.0
    %4404 = vmatprep.subr.mxu0 0.0
    %4405 = vmatpush2.msra.mxu0 0.0
    %4406 = vmatprep.mubr.f32.mxu0 0.0
    %4407 = vmatmul.mubr.f32.gmra.mxu0 %v4199
    %v4408 = vpop.f32.mrf.mxu0
    %v4409 = vadd.f32 0.0, %v4408
    %v4410 = vpop.f32.mrf.mxu0
    %v4411 = vadd.f32 0.0, %v4410
    %4412 = vdwg.mxu0
    %4413 = vmatprep.subr.mxu0 %v246
    %4414 = vmatpush1.msra.mxu0 %v245
    %4415 = vmatprep.subr.mxu0 %v242
    %4416 = vmatpush1.msra.mxu0 %v241
    %4417 = vmatprep.subr.mxu0 %v238
    %4418 = vmatpush1.msra.mxu0 %v237
    %4419 = vmatprep.subr.mxu0 %v234
    %4420 = vmatpush1.msra.mxu0 %v233
    %4421 = vmatprep.subr.mxu0 %v230
    %4422 = vmatpush1.msra.mxu0 %v229
    %4423 = vmatprep.subr.mxu0 %v226
    %4424 = vmatpush1.msra.mxu0 %v225
    %4425 = vmatprep.subr.mxu0 %v222
    %4426 = vmatpush1.msra.mxu0 %v221
    %4427 = vmatprep.subr.mxu0 %v218
    %4428 = vmatpush1.msra.mxu0 %v217
    %4429 = vmatprep.subr.mxu0 %v214
    %4430 = vmatpush1.msra.mxu0 %v213
    %4431 = vmatprep.subr.mxu0 %v210
    %4432 = vmatpush1.msra.mxu0 %v209
    %4433 = vmatprep.subr.mxu0 %v206
    %4434 = vmatpush1.msra.mxu0 %v205
    %4435 = vmatprep.subr.mxu0 %v202
    %4436 = vmatpush1.msra.mxu0 %v201
    %4437 = vmatprep.subr.mxu0 %v198
    %4438 = vmatpush1.msra.mxu0 %v197
    %4439 = vmatprep.subr.mxu0 %v194
    %4440 = vmatpush1.msra.mxu0 %v193
    %4441 = vmatprep.subr.mxu0 %v190
    %4442 = vmatpush1.msra.mxu0 %v189
    %4443 = vmatprep.subr.mxu0 %v186
    %4444 = vmatpush1.msra.mxu0 %v185
    %4445 = vmatprep.subr.mxu0 0.0
    %4446 = vmatpush2.msra.mxu0 0.0
    %4447 = vmatprep.subr.mxu0 0.0
    %4448 = vmatpush2.msra.mxu0 0.0
    %4449 = vmatprep.subr.mxu0 0.0
    %4450 = vmatpush2.msra.mxu0 0.0
    %4451 = vmatprep.subr.mxu0 0.0
    %4452 = vmatpush2.msra.mxu0 0.0
    %4453 = vmatprep.subr.mxu0 0.0
    %4454 = vmatpush2.msra.mxu0 0.0
    %4455 = vmatprep.subr.mxu0 0.0
    %4456 = vmatpush2.msra.mxu0 0.0
    %4457 = vmatprep.subr.mxu0 0.0
    %4458 = vmatpush2.msra.mxu0 0.0
    %4459 = vmatprep.subr.mxu0 0.0
    %4460 = vmatpush2.msra.mxu0 0.0
    %4461 = vmatprep.subr.mxu0 0.0
    %4462 = vmatpush2.msra.mxu0 0.0
    %4463 = vmatprep.subr.mxu0 0.0
    %4464 = vmatpush2.msra.mxu0 0.0
    %4465 = vmatprep.subr.mxu0 0.0
    %4466 = vmatpush2.msra.mxu0 0.0
    %4467 = vmatprep.subr.mxu0 0.0
    %4468 = vmatpush2.msra.mxu0 0.0
    %4469 = vmatprep.subr.mxu0 0.0
    %4470 = vmatpush2.msra.mxu0 0.0
    %4471 = vmatprep.subr.mxu0 0.0
    %4472 = vmatpush2.msra.mxu0 0.0
    %4473 = vmatprep.subr.mxu0 0.0
    %4474 = vmatpush2.msra.mxu0 0.0
    %4475 = vmatprep.subr.mxu0 0.0
    %4476 = vmatpush2.msra.mxu0 0.0
    %4477 = vmatprep.mubr.f32.mxu0 0.0
    %4478 = vmatmul.mubr.f32.gmra.mxu0 %v4199
    %v4479 = vpop.f32.mrf.mxu0
    %v4480 = vadd.f32 0.0, %v4479
    %v4481 = vpop.f32.mrf.mxu0
    %v4482 = vadd.f32 0.0, %v4481
    %4483 = vdwg.mxu0
    %v4484 = vadd.f32 %v4267, %v4409
    %v4485 = vadd.f32 %v4269, %v4411
    %v4486 = vadd.f32 %v4338, %v4480
    %v4487 = vadd.f32 %v4340, %v4482
    %v4488 = vxor.u32 %v4484, 2147483648
    %v4489 = vmul.f32 %v4488, 1.442695
    %v4490 = vpow.pop %v4489
    %v4491 = vadd.f32 %v4490, 1.0
    %v4492 = vrcp.pop %v4491
    %v4493 = vmul.f32 1.0, %v4492
    %v4494 = vxor.u32 %v4485, 2147483648
    %v4495 = vmul.f32 %v4494, 1.442695
    %v4496 = vpow.pop %v4495
    %v4497 = vadd.f32 %v4496, 1.0
    %v4498 = vrcp.pop %v4497
    %v4499 = vmul.f32 1.0, %v4498
    %v4500 = vtanh.pop %v4486
    %v4501 = vxor.u32 %v4487, 2147483648
    %v4502 = vmul.f32 %v4501, 1.442695
    %v4503 = vpow.pop %v4502
    %v4504 = vadd.f32 %v4503, 1.0
    %v4505 = vrcp.pop %v4504
    %v4506 = vmul.f32 1.0, %v4505
    %v4507 = vmul.f32 %v4499, %v4003
    %v4508 = vmul.f32 %v4493, %v4500
    %v4509 = vadd.f32 %v4507, %v4508
    %v4510 = vtanh.pop %v4509
    %v4511 = vmul.f32 %v4506, %v4510
    %v4512 = vmul.f32 %v4511, %v446
    %4513 = vadd.xlane.f32.xlu0 %v4512
    %v4514 = vpop.xlane.xlu0 %4513
    %v4515 = vadd.f32 %v4514, %v453
    %4517 = vrot.lane.b32.xlu0 %v4515, 7
    %v4518 = vpop.permute.xlu0 %4517
    %vm4520 = vcmask 64568
    %4521 = vst.msk [vmem:[#allocation14] sm:$0xff] %vm4520, %v4518
    %4522 = vmatprep.subr.mxu0 %v372
    %4523 = vmatpush1.msra.mxu0 %v371
    %4524 = vmatprep.subr.mxu0 %v368
    %4525 = vmatpush1.msra.mxu0 %v367
    %4526 = vmatprep.subr.mxu0 %v364
    %4527 = vmatpush1.msra.mxu0 %v363
    %4528 = vmatprep.subr.mxu0 %v360
    %4529 = vmatpush1.msra.mxu0 %v359
    %4530 = vmatprep.subr.mxu0 %v356
    %4531 = vmatpush1.msra.mxu0 %v355
    %4532 = vmatprep.subr.mxu0 %v352
    %4533 = vmatpush1.msra.mxu0 %v351
    %4534 = vmatprep.subr.mxu0 %v348
    %4535 = vmatpush1.msra.mxu0 %v347
    %4536 = vmatprep.subr.mxu0 %v344
    %4537 = vmatpush1.msra.mxu0 %v343
    %4538 = vmatprep.subr.mxu0 %v340
    %4539 = vmatpush1.msra.mxu0 %v339
    %4540 = vmatprep.subr.mxu0 %v336
    %4541 = vmatpush1.msra.mxu0 %v335
    %4542 = vmatprep.subr.mxu0 %v332
    %4543 = vmatpush1.msra.mxu0 %v331
    %4544 = vmatprep.subr.mxu0 %v328
    %4545 = vmatpush1.msra.mxu0 %v327
    %4546 = vmatprep.subr.mxu0 %v324
    %4547 = vmatpush1.msra.mxu0 %v323
    %4548 = vmatprep.subr.mxu0 %v320
    %4549 = vmatpush1.msra.mxu0 %v319
    %4550 = vmatprep.subr.mxu0 %v316
    %4551 = vmatpush1.msra.mxu0 %v315
    %4552 = vmatprep.subr.mxu0 %v312
    %4553 = vmatpush1.msra.mxu0 %v311
    %4554 = vmatprep.subr.mxu0 0.0
    %4555 = vmatpush2.msra.mxu0 0.0
    %4556 = vmatprep.subr.mxu0 0.0
    %4557 = vmatpush2.msra.mxu0 0.0
    %4558 = vmatprep.subr.mxu0 0.0
    %4559 = vmatpush2.msra.mxu0 0.0
    %4560 = vmatprep.subr.mxu0 0.0
    %4561 = vmatpush2.msra.mxu0 0.0
    %4562 = vmatprep.subr.mxu0 0.0
    %4563 = vmatpush2.msra.mxu0 0.0
    %4564 = vmatprep.subr.mxu0 0.0
    %4565 = vmatpush2.msra.mxu0 0.0
    %4566 = vmatprep.subr.mxu0 0.0
    %4567 = vmatpush2.msra.mxu0 0.0
    %4568 = vmatprep.subr.mxu0 0.0
    %4569 = vmatpush2.msra.mxu0 0.0
    %4570 = vmatprep.subr.mxu0 0.0
    %4571 = vmatpush2.msra.mxu0 0.0
    %4572 = vmatprep.subr.mxu0 0.0
    %4573 = vmatpush2.msra.mxu0 0.0
    %4574 = vmatprep.subr.mxu0 0.0
    %4575 = vmatpush2.msra.mxu0 0.0
    %4576 = vmatprep.subr.mxu0 0.0
    %4577 = vmatpush2.msra.mxu0 0.0
    %4578 = vmatprep.subr.mxu0 0.0
    %4579 = vmatpush2.msra.mxu0 0.0
    %4580 = vmatprep.subr.mxu0 0.0
    %4581 = vmatpush2.msra.mxu0 0.0
    %4582 = vmatprep.subr.mxu0 0.0
    %4583 = vmatpush2.msra.mxu0 0.0
    %4584 = vmatprep.subr.mxu0 0.0
    %4585 = vmatpush2.msra.mxu0 0.0
    %4586 = vmatprep.mubr.f32.mxu0 0.0
    %4587 = vmatmul.mubr.f32.gmra.mxu0 %v4511
    %v4588 = vpop.f32.mrf.mxu0
    %v4589 = vadd.f32 %v424, %v4588
    %v4590 = vpop.f32.mrf.mxu0
    %v4591 = vadd.f32 %v428, %v4590
    %4592 = vdwg.mxu0
    %4593 = vmatprep.subr.mxu0 %v374
    %4594 = vmatpush1.msra.mxu0 %v373
    %4595 = vmatprep.subr.mxu0 %v370
    %4596 = vmatpush1.msra.mxu0 %v369
    %4597 = vmatprep.subr.mxu0 %v366
    %4598 = vmatpush1.msra.mxu0 %v365
    %4599 = vmatprep.subr.mxu0 %v362
    %4600 = vmatpush1.msra.mxu0 %v361
    %4601 = vmatprep.subr.mxu0 %v358
    %4602 = vmatpush1.msra.mxu0 %v357
    %4603 = vmatprep.subr.mxu0 %v354
    %4604 = vmatpush1.msra.mxu0 %v353
    %4605 = vmatprep.subr.mxu0 %v350
    %4606 = vmatpush1.msra.mxu0 %v349
    %4607 = vmatprep.subr.mxu0 %v346
    %4608 = vmatpush1.msra.mxu0 %v345
    %4609 = vmatprep.subr.mxu0 %v342
    %4610 = vmatpush1.msra.mxu0 %v341
    %4611 = vmatprep.subr.mxu0 %v338
    %4612 = vmatpush1.msra.mxu0 %v337
    %4613 = vmatprep.subr.mxu0 %v334
    %4614 = vmatpush1.msra.mxu0 %v333
    %4615 = vmatprep.subr.mxu0 %v330
    %4616 = vmatpush1.msra.mxu0 %v329
    %4617 = vmatprep.subr.mxu0 %v326
    %4618 = vmatpush1.msra.mxu0 %v325
    %4619 = vmatprep.subr.mxu0 %v322
    %4620 = vmatpush1.msra.mxu0 %v321
    %4621 = vmatprep.subr.mxu0 %v318
    %4622 = vmatpush1.msra.mxu0 %v317
    %4623 = vmatprep.subr.mxu0 %v314
    %4624 = vmatpush1.msra.mxu0 %v313
    %4625 = vmatprep.subr.mxu0 0.0
    %4626 = vmatpush2.msra.mxu0 0.0
    %4627 = vmatprep.subr.mxu0 0.0
    %4628 = vmatpush2.msra.mxu0 0.0
    %4629 = vmatprep.subr.mxu0 0.0
    %4630 = vmatpush2.msra.mxu0 0.0
    %4631 = vmatprep.subr.mxu0 0.0
    %4632 = vmatpush2.msra.mxu0 0.0
    %4633 = vmatprep.subr.mxu0 0.0
    %4634 = vmatpush2.msra.mxu0 0.0
    %4635 = vmatprep.subr.mxu0 0.0
    %4636 = vmatpush2.msra.mxu0 0.0
    %4637 = vmatprep.subr.mxu0 0.0
    %4638 = vmatpush2.msra.mxu0 0.0
    %4639 = vmatprep.subr.mxu0 0.0
    %4640 = vmatpush2.msra.mxu0 0.0
    %4641 = vmatprep.subr.mxu0 0.0
    %4642 = vmatpush2.msra.mxu0 0.0
    %4643 = vmatprep.subr.mxu0 0.0
    %4644 = vmatpush2.msra.mxu0 0.0
    %4645 = vmatprep.subr.mxu0 0.0
    %4646 = vmatpush2.msra.mxu0 0.0
    %4647 = vmatprep.subr.mxu0 0.0
    %4648 = vmatpush2.msra.mxu0 0.0
    %4649 = vmatprep.subr.mxu0 0.0
    %4650 = vmatpush2.msra.mxu0 0.0
    %4651 = vmatprep.subr.mxu0 0.0
    %4652 = vmatpush2.msra.mxu0 0.0
    %4653 = vmatprep.subr.mxu0 0.0
    %4654 = vmatpush2.msra.mxu0 0.0
    %4655 = vmatprep.subr.mxu0 0.0
    %4656 = vmatpush2.msra.mxu0 0.0
    %4657 = vmatprep.mubr.f32.mxu0 0.0
    %4658 = vmatmul.mubr.f32.gmra.mxu0 %v4511
    %v4659 = vpop.f32.mrf.mxu0
    %v4660 = vadd.f32 %v432, %v4659
    %v4661 = vpop.f32.mrf.mxu0
    %v4662 = vadd.f32 %v436, %v4661
    %4663 = vdwg.mxu0
    %4664 = vmatprep.subr.mxu0 %v180
    %4665 = vmatpush1.msra.mxu0 %v179
    %4666 = vmatprep.subr.mxu0 %v176
    %4667 = vmatpush1.msra.mxu0 %v175
    %4668 = vmatprep.subr.mxu0 %v172
    %4669 = vmatpush1.msra.mxu0 %v171
    %4670 = vmatprep.subr.mxu0 %v168
    %4671 = vmatpush1.msra.mxu0 %v167
    %4672 = vmatprep.subr.mxu0 %v164
    %4673 = vmatpush1.msra.mxu0 %v163
    %4674 = vmatprep.subr.mxu0 %v160
    %4675 = vmatpush1.msra.mxu0 %v159
    %4676 = vmatprep.subr.mxu0 %v156
    %4677 = vmatpush1.msra.mxu0 %v155
    %4678 = vmatprep.subr.mxu0 %v152
    %4679 = vmatpush1.msra.mxu0 %v151
    %4680 = vmatprep.subr.mxu0 %v148
    %4681 = vmatpush1.msra.mxu0 %v147
    %4682 = vmatprep.subr.mxu0 %v144
    %4683 = vmatpush1.msra.mxu0 %v143
    %4684 = vmatprep.subr.mxu0 %v140
    %4685 = vmatpush1.msra.mxu0 %v139
    %4686 = vmatprep.subr.mxu0 %v136
    %4687 = vmatpush1.msra.mxu0 %v135
    %4688 = vmatprep.subr.mxu0 %v132
    %4689 = vmatpush1.msra.mxu0 %v131
    %4690 = vmatprep.subr.mxu0 %v128
    %4691 = vmatpush1.msra.mxu0 %v127
    %4692 = vmatprep.subr.mxu0 %v124
    %4693 = vmatpush1.msra.mxu0 %v123
    %4694 = vmatprep.subr.mxu0 %v120
    %4695 = vmatpush1.msra.mxu0 %v119
    %4696 = vmatprep.subr.mxu0 0.0
    %4697 = vmatpush2.msra.mxu0 0.0
    %4698 = vmatprep.subr.mxu0 0.0
    %4699 = vmatpush2.msra.mxu0 0.0
    %4700 = vmatprep.subr.mxu0 0.0
    %4701 = vmatpush2.msra.mxu0 0.0
    %4702 = vmatprep.subr.mxu0 0.0
    %4703 = vmatpush2.msra.mxu0 0.0
    %4704 = vmatprep.subr.mxu0 0.0
    %4705 = vmatpush2.msra.mxu0 0.0
    %4706 = vmatprep.subr.mxu0 0.0
    %4707 = vmatpush2.msra.mxu0 0.0
    %4708 = vmatprep.subr.mxu0 0.0
    %4709 = vmatpush2.msra.mxu0 0.0
    %4710 = vmatprep.subr.mxu0 0.0
    %4711 = vmatpush2.msra.mxu0 0.0
    %4712 = vmatprep.subr.mxu0 0.0
    %4713 = vmatpush2.msra.mxu0 0.0
    %4714 = vmatprep.subr.mxu0 0.0
    %4715 = vmatpush2.msra.mxu0 0.0
    %4716 = vmatprep.subr.mxu0 0.0
    %4717 = vmatpush2.msra.mxu0 0.0
    %4718 = vmatprep.subr.mxu0 0.0
    %4719 = vmatpush2.msra.mxu0 0.0
    %4720 = vmatprep.subr.mxu0 0.0
    %4721 = vmatpush2.msra.mxu0 0.0
    %4722 = vmatprep.subr.mxu0 0.0
    %4723 = vmatpush2.msra.mxu0 0.0
    %4724 = vmatprep.subr.mxu0 0.0
    %4725 = vmatpush2.msra.mxu0 0.0
    %4726 = vmatprep.subr.mxu0 0.0
    %4727 = vmatpush2.msra.mxu0 0.0
    %4728 = vmatprep.mubr.f32.mxu0 0.0
    %4729 = vmatmul.mubr.f32.gmra.mxu0 %v4199
    %v4730 = vpop.f32.mrf.mxu0
    %v4731 = vadd.f32 0.0, %v4730
    %v4732 = vpop.f32.mrf.mxu0
    %v4733 = vadd.f32 0.0, %v4732
    %4734 = vdwg.mxu0
    %4735 = vmatprep.subr.mxu0 %v182
    %4736 = vmatpush1.msra.mxu0 %v181
    %4737 = vmatprep.subr.mxu0 %v178
    %4738 = vmatpush1.msra.mxu0 %v177
    %4739 = vmatprep.subr.mxu0 %v174
    %4740 = vmatpush1.msra.mxu0 %v173
    %4741 = vmatprep.subr.mxu0 %v170
    %4742 = vmatpush1.msra.mxu0 %v169
    %4743 = vmatprep.subr.mxu0 %v166
    %4744 = vmatpush1.msra.mxu0 %v165
    %4745 = vmatprep.subr.mxu0 %v162
    %4746 = vmatpush1.msra.mxu0 %v161
    %4747 = vmatprep.subr.mxu0 %v158
    %4748 = vmatpush1.msra.mxu0 %v157
    %4749 = vmatprep.subr.mxu0 %v154
    %4750 = vmatpush1.msra.mxu0 %v153
    %4751 = vmatprep.subr.mxu0 %v150
    %4752 = vmatpush1.msra.mxu0 %v149
    %4753 = vmatprep.subr.mxu0 %v146
    %4754 = vmatpush1.msra.mxu0 %v145
    %4755 = vmatprep.subr.mxu0 %v142
    %4756 = vmatpush1.msra.mxu0 %v141
    %4757 = vmatprep.subr.mxu0 %v138
    %4758 = vmatpush1.msra.mxu0 %v137
    %4759 = vmatprep.subr.mxu0 %v134
    %4760 = vmatpush1.msra.mxu0 %v133
    %4761 = vmatprep.subr.mxu0 %v130
    %4762 = vmatpush1.msra.mxu0 %v129
    %4763 = vmatprep.subr.mxu0 %v126
    %4764 = vmatpush1.msra.mxu0 %v125
    %4765 = vmatprep.subr.mxu0 %v122
    %4766 = vmatpush1.msra.mxu0 %v121
    %4767 = vmatprep.subr.mxu0 0.0
    %4768 = vmatpush2.msra.mxu0 0.0
    %4769 = vmatprep.subr.mxu0 0.0
    %4770 = vmatpush2.msra.mxu0 0.0
    %4771 = vmatprep.subr.mxu0 0.0
    %4772 = vmatpush2.msra.mxu0 0.0
    %4773 = vmatprep.subr.mxu0 0.0
    %4774 = vmatpush2.msra.mxu0 0.0
    %4775 = vmatprep.subr.mxu0 0.0
    %4776 = vmatpush2.msra.mxu0 0.0
    %4777 = vmatprep.subr.mxu0 0.0
    %4778 = vmatpush2.msra.mxu0 0.0
    %4779 = vmatprep.subr.mxu0 0.0
    %4780 = vmatpush2.msra.mxu0 0.0
    %4781 = vmatprep.subr.mxu0 0.0
    %4782 = vmatpush2.msra.mxu0 0.0
    %4783 = vmatprep.subr.mxu0 0.0
    %4784 = vmatpush2.msra.mxu0 0.0
    %4785 = vmatprep.subr.mxu0 0.0
    %4786 = vmatpush2.msra.mxu0 0.0
    %4787 = vmatprep.subr.mxu0 0.0
    %4788 = vmatpush2.msra.mxu0 0.0
    %4789 = vmatprep.subr.mxu0 0.0
    %4790 = vmatpush2.msra.mxu0 0.0
    %4791 = vmatprep.subr.mxu0 0.0
    %4792 = vmatpush2.msra.mxu0 0.0
    %4793 = vmatprep.subr.mxu0 0.0
    %4794 = vmatpush2.msra.mxu0 0.0
    %4795 = vmatprep.subr.mxu0 0.0
    %4796 = vmatpush2.msra.mxu0 0.0
    %4797 = vmatprep.subr.mxu0 0.0
    %4798 = vmatpush2.msra.mxu0 0.0
    %4799 = vmatprep.mubr.f32.mxu0 0.0
    %4800 = vmatmul.mubr.f32.gmra.mxu0 %v4199
    %v4801 = vpop.f32.mrf.mxu0
    %v4802 = vadd.f32 0.0, %v4801
    %v4803 = vpop.f32.mrf.mxu0
    %v4804 = vadd.f32 0.0, %v4803
    %4805 = vdwg.mxu0
    %v4806 = vadd.f32 %v4589, %v4731
    %v4807 = vadd.f32 %v4591, %v4733
    %v4808 = vadd.f32 %v4660, %v4802
    %v4809 = vadd.f32 %v4662, %v4804
    %v4810 = vxor.u32 %v4806, 2147483648
    %v4811 = vmul.f32 %v4810, 1.442695
    %v4812 = vpow.pop %v4811
    %v4813 = vadd.f32 %v4812, 1.0
    %v4814 = vrcp.pop %v4813
    %v4815 = vmul.f32 1.0, %v4814
    %v4816 = vxor.u32 %v4807, 2147483648
    %v4817 = vmul.f32 %v4816, 1.442695
    %v4818 = vpow.pop %v4817
    %v4819 = vadd.f32 %v4818, 1.0
    %v4820 = vrcp.pop %v4819
    %v4821 = vmul.f32 1.0, %v4820
    %v4822 = vtanh.pop %v4808
    %v4823 = vxor.u32 %v4809, 2147483648
    %v4824 = vmul.f32 %v4823, 1.442695
    %v4825 = vpow.pop %v4824
    %v4826 = vadd.f32 %v4825, 1.0
    %v4827 = vrcp.pop %v4826
    %v4828 = vmul.f32 1.0, %v4827
    %v4829 = vmul.f32 %v4821, %v4197
    %v4830 = vmul.f32 %v4815, %v4822
    %v4831 = vadd.f32 %v4829, %v4830
    %v4832 = vtanh.pop %v4831
    %v4833 = vmul.f32 %v4828, %v4832
    %4834 = vmatprep.subr.mxu0 %v308
    %4835 = vmatpush1.msra.mxu0 %v307
    %4836 = vmatprep.subr.mxu0 %v304
    %4837 = vmatpush1.msra.mxu0 %v303
    %4838 = vmatprep.subr.mxu0 %v300
    %4839 = vmatpush1.msra.mxu0 %v299
    %4840 = vmatprep.subr.mxu0 %v296
    %4841 = vmatpush1.msra.mxu0 %v295
    %4842 = vmatprep.subr.mxu0 %v292
    %4843 = vmatpush1.msra.mxu0 %v291
    %4844 = vmatprep.subr.mxu0 %v288
    %4845 = vmatpush1.msra.mxu0 %v287
    %4846 = vmatprep.subr.mxu0 %v284
    %4847 = vmatpush1.msra.mxu0 %v283
    %4848 = vmatprep.subr.mxu0 %v280
    %4849 = vmatpush1.msra.mxu0 %v279
    %4850 = vmatprep.subr.mxu0 %v276
    %4851 = vmatpush1.msra.mxu0 %v275
    %4852 = vmatprep.subr.mxu0 %v272
    %4853 = vmatpush1.msra.mxu0 %v271
    %4854 = vmatprep.subr.mxu0 %v268
    %4855 = vmatpush1.msra.mxu0 %v267
    %4856 = vmatprep.subr.mxu0 %v264
    %4857 = vmatpush1.msra.mxu0 %v263
    %4858 = vmatprep.subr.mxu0 %v260
    %4859 = vmatpush1.msra.mxu0 %v259
    %4860 = vmatprep.subr.mxu0 %v256
    %4861 = vmatpush1.msra.mxu0 %v255
    %4862 = vmatprep.subr.mxu0 %v252
    %4863 = vmatpush1.msra.mxu0 %v251
    %4864 = vmatprep.subr.mxu0 %v248
    %4865 = vmatpush1.msra.mxu0 %v247
    %4866 = vmatprep.subr.mxu0 0.0
    %4867 = vmatpush2.msra.mxu0 0.0
    %4868 = vmatprep.subr.mxu0 0.0
    %4869 = vmatpush2.msra.mxu0 0.0
    %4870 = vmatprep.subr.mxu0 0.0
    %4871 = vmatpush2.msra.mxu0 0.0
    %4872 = vmatprep.subr.mxu0 0.0
    %4873 = vmatpush2.msra.mxu0 0.0
    %4874 = vmatprep.subr.mxu0 0.0
    %4875 = vmatpush2.msra.mxu0 0.0
    %4876 = vmatprep.subr.mxu0 0.0
    %4877 = vmatpush2.msra.mxu0 0.0
    %4878 = vmatprep.subr.mxu0 0.0
    %4879 = vmatpush2.msra.mxu0 0.0
    %4880 = vmatprep.subr.mxu0 0.0
    %4881 = vmatpush2.msra.mxu0 0.0
    %4882 = vmatprep.subr.mxu0 0.0
    %4883 = vmatpush2.msra.mxu0 0.0
    %4884 = vmatprep.subr.mxu0 0.0
    %4885 = vmatpush2.msra.mxu0 0.0
    %4886 = vmatprep.subr.mxu0 0.0
    %4887 = vmatpush2.msra.mxu0 0.0
    %4888 = vmatprep.subr.mxu0 0.0
    %4889 = vmatpush2.msra.mxu0 0.0
    %4890 = vmatprep.subr.mxu0 0.0
    %4891 = vmatpush2.msra.mxu0 0.0
    %4892 = vmatprep.subr.mxu0 0.0
    %4893 = vmatpush2.msra.mxu0 0.0
    %4894 = vmatprep.subr.mxu0 0.0
    %4895 = vmatpush2.msra.mxu0 0.0
    %4896 = vmatprep.subr.mxu0 0.0
    %4897 = vmatpush2.msra.mxu0 0.0
    %4898 = vmatprep.mubr.f32.mxu0 0.0
    %4899 = vmatmul.mubr.f32.gmra.mxu0 %v4511
    %v4900 = vpop.f32.mrf.mxu0
    %v4901 = vadd.f32 %v402, %v4900
    %v4902 = vpop.f32.mrf.mxu0
    %v4903 = vadd.f32 %v406, %v4902
    %4904 = vdwg.mxu0
    %4905 = vmatprep.subr.mxu0 %v310
    %4906 = vmatpush1.msra.mxu0 %v309
    %4907 = vmatprep.subr.mxu0 %v306
    %4908 = vmatpush1.msra.mxu0 %v305
    %4909 = vmatprep.subr.mxu0 %v302
    %4910 = vmatpush1.msra.mxu0 %v301
    %4911 = vmatprep.subr.mxu0 %v298
    %4912 = vmatpush1.msra.mxu0 %v297
    %4913 = vmatprep.subr.mxu0 %v294
    %4914 = vmatpush1.msra.mxu0 %v293
    %4915 = vmatprep.subr.mxu0 %v290
    %4916 = vmatpush1.msra.mxu0 %v289
    %4917 = vmatprep.subr.mxu0 %v286
    %4918 = vmatpush1.msra.mxu0 %v285
    %4919 = vmatprep.subr.mxu0 %v282
    %4920 = vmatpush1.msra.mxu0 %v281
    %4921 = vmatprep.subr.mxu0 %v278
    %4922 = vmatpush1.msra.mxu0 %v277
    %4923 = vmatprep.subr.mxu0 %v274
    %4924 = vmatpush1.msra.mxu0 %v273
    %4925 = vmatprep.subr.mxu0 %v270
    %4926 = vmatpush1.msra.mxu0 %v269
    %4927 = vmatprep.subr.mxu0 %v266
    %4928 = vmatpush1.msra.mxu0 %v265
    %4929 = vmatprep.subr.mxu0 %v262
    %4930 = vmatpush1.msra.mxu0 %v261
    %4931 = vmatprep.subr.mxu0 %v258
    %4932 = vmatpush1.msra.mxu0 %v257
    %4933 = vmatprep.subr.mxu0 %v254
    %4934 = vmatpush1.msra.mxu0 %v253
    %4935 = vmatprep.subr.mxu0 %v250
    %4936 = vmatpush1.msra.mxu0 %v249
    %4937 = vmatprep.subr.mxu0 0.0
    %4938 = vmatpush2.msra.mxu0 0.0
    %4939 = vmatprep.subr.mxu0 0.0
    %4940 = vmatpush2.msra.mxu0 0.0
    %4941 = vmatprep.subr.mxu0 0.0
    %4942 = vmatpush2.msra.mxu0 0.0
    %4943 = vmatprep.subr.mxu0 0.0
    %4944 = vmatpush2.msra.mxu0 0.0
    %4945 = vmatprep.subr.mxu0 0.0
    %4946 = vmatpush2.msra.mxu0 0.0
    %4947 = vmatprep.subr.mxu0 0.0
    %4948 = vmatpush2.msra.mxu0 0.0
    %4949 = vmatprep.subr.mxu0 0.0
    %4950 = vmatpush2.msra.mxu0 0.0
    %4951 = vmatprep.subr.mxu0 0.0
    %4952 = vmatpush2.msra.mxu0 0.0
    %4953 = vmatprep.subr.mxu0 0.0
    %4954 = vmatpush2.msra.mxu0 0.0
    %4955 = vmatprep.subr.mxu0 0.0
    %4956 = vmatpush2.msra.mxu0 0.0
    %4957 = vmatprep.subr.mxu0 0.0
    %4958 = vmatpush2.msra.mxu0 0.0
    %4959 = vmatprep.subr.mxu0 0.0
    %4960 = vmatpush2.msra.mxu0 0.0
    %4961 = vmatprep.subr.mxu0 0.0
    %4962 = vmatpush2.msra.mxu0 0.0
    %4963 = vmatprep.subr.mxu0 0.0
    %4964 = vmatpush2.msra.mxu0 0.0
    %4965 = vmatprep.subr.mxu0 0.0
    %4966 = vmatpush2.msra.mxu0 0.0
    %4967 = vmatprep.subr.mxu0 0.0
    %4968 = vmatpush2.msra.mxu0 0.0
    %4969 = vmatprep.mubr.f32.mxu0 0.0
    %4970 = vmatmul.mubr.f32.gmra.mxu0 %v4511
    %v4971 = vpop.f32.mrf.mxu0
    %v4972 = vadd.f32 %v410, %v4971
    %v4973 = vpop.f32.mrf.mxu0
    %v4974 = vadd.f32 %v414, %v4973
    %4975 = vdwg.mxu0
    %4976 = vmatprep.subr.mxu0 %v244
    %4977 = vmatpush1.msra.mxu0 %v243
    %4978 = vmatprep.subr.mxu0 %v240
    %4979 = vmatpush1.msra.mxu0 %v239
    %4980 = vmatprep.subr.mxu0 %v236
    %4981 = vmatpush1.msra.mxu0 %v235
    %4982 = vmatprep.subr.mxu0 %v232
    %4983 = vmatpush1.msra.mxu0 %v231
    %4984 = vmatprep.subr.mxu0 %v228
    %4985 = vmatpush1.msra.mxu0 %v227
    %4986 = vmatprep.subr.mxu0 %v224
    %4987 = vmatpush1.msra.mxu0 %v223
    %4988 = vmatprep.subr.mxu0 %v220
    %4989 = vmatpush1.msra.mxu0 %v219
    %4990 = vmatprep.subr.mxu0 %v216
    %4991 = vmatpush1.msra.mxu0 %v215
    %4992 = vmatprep.subr.mxu0 %v212
    %4993 = vmatpush1.msra.mxu0 %v211
    %4994 = vmatprep.subr.mxu0 %v208
    %4995 = vmatpush1.msra.mxu0 %v207
    %4996 = vmatprep.subr.mxu0 %v204
    %4997 = vmatpush1.msra.mxu0 %v203
    %4998 = vmatprep.subr.mxu0 %v200
    %4999 = vmatpush1.msra.mxu0 %v199
    %5000 = vmatprep.subr.mxu0 %v196
    %5001 = vmatpush1.msra.mxu0 %v195
    %5002 = vmatprep.subr.mxu0 %v192
    %5003 = vmatpush1.msra.mxu0 %v191
    %5004 = vmatprep.subr.mxu0 %v188
    %5005 = vmatpush1.msra.mxu0 %v187
    %5006 = vmatprep.subr.mxu0 %v184
    %5007 = vmatpush1.msra.mxu0 %v183
    %5008 = vmatprep.subr.mxu0 0.0
    %5009 = vmatpush2.msra.mxu0 0.0
    %5010 = vmatprep.subr.mxu0 0.0
    %5011 = vmatpush2.msra.mxu0 0.0
    %5012 = vmatprep.subr.mxu0 0.0
    %5013 = vmatpush2.msra.mxu0 0.0
    %5014 = vmatprep.subr.mxu0 0.0
    %5015 = vmatpush2.msra.mxu0 0.0
    %5016 = vmatprep.subr.mxu0 0.0
    %5017 = vmatpush2.msra.mxu0 0.0
    %5018 = vmatprep.subr.mxu0 0.0
    %5019 = vmatpush2.msra.mxu0 0.0
    %5020 = vmatprep.subr.mxu0 0.0
    %5021 = vmatpush2.msra.mxu0 0.0
    %5022 = vmatprep.subr.mxu0 0.0
    %5023 = vmatpush2.msra.mxu0 0.0
    %5024 = vmatprep.subr.mxu0 0.0
    %5025 = vmatpush2.msra.mxu0 0.0
    %5026 = vmatprep.subr.mxu0 0.0
    %5027 = vmatpush2.msra.mxu0 0.0
    %5028 = vmatprep.subr.mxu0 0.0
    %5029 = vmatpush2.msra.mxu0 0.0
    %5030 = vmatprep.subr.mxu0 0.0
    %5031 = vmatpush2.msra.mxu0 0.0
    %5032 = vmatprep.subr.mxu0 0.0
    %5033 = vmatpush2.msra.mxu0 0.0
    %5034 = vmatprep.subr.mxu0 0.0
    %5035 = vmatpush2.msra.mxu0 0.0
    %5036 = vmatprep.subr.mxu0 0.0
    %5037 = vmatpush2.msra.mxu0 0.0
    %5038 = vmatprep.subr.mxu0 0.0
    %5039 = vmatpush2.msra.mxu0 0.0
    %5040 = vmatprep.mubr.f32.mxu0 0.0
    %5041 = vmatmul.mubr.f32.gmra.mxu0 %v4833
    %v5042 = vpop.f32.mrf.mxu0
    %v5043 = vadd.f32 0.0, %v5042
    %v5044 = vpop.f32.mrf.mxu0
    %v5045 = vadd.f32 0.0, %v5044
    %5046 = vdwg.mxu0
    %5047 = vmatprep.subr.mxu0 %v246
    %5048 = vmatpush1.msra.mxu0 %v245
    %5049 = vmatprep.subr.mxu0 %v242
    %5050 = vmatpush1.msra.mxu0 %v241
    %5051 = vmatprep.subr.mxu0 %v238
    %5052 = vmatpush1.msra.mxu0 %v237
    %5053 = vmatprep.subr.mxu0 %v234
    %5054 = vmatpush1.msra.mxu0 %v233
    %5055 = vmatprep.subr.mxu0 %v230
    %5056 = vmatpush1.msra.mxu0 %v229
    %5057 = vmatprep.subr.mxu0 %v226
    %5058 = vmatpush1.msra.mxu0 %v225
    %5059 = vmatprep.subr.mxu0 %v222
    %5060 = vmatpush1.msra.mxu0 %v221
    %5061 = vmatprep.subr.mxu0 %v218
    %5062 = vmatpush1.msra.mxu0 %v217
    %5063 = vmatprep.subr.mxu0 %v214
    %5064 = vmatpush1.msra.mxu0 %v213
    %5065 = vmatprep.subr.mxu0 %v210
    %5066 = vmatpush1.msra.mxu0 %v209
    %5067 = vmatprep.subr.mxu0 %v206
    %5068 = vmatpush1.msra.mxu0 %v205
    %5069 = vmatprep.subr.mxu0 %v202
    %5070 = vmatpush1.msra.mxu0 %v201
    %5071 = vmatprep.subr.mxu0 %v198
    %5072 = vmatpush1.msra.mxu0 %v197
    %5073 = vmatprep.subr.mxu0 %v194
    %5074 = vmatpush1.msra.mxu0 %v193
    %5075 = vmatprep.subr.mxu0 %v190
    %5076 = vmatpush1.msra.mxu0 %v189
    %5077 = vmatprep.subr.mxu0 %v186
    %5078 = vmatpush1.msra.mxu0 %v185
    %5079 = vmatprep.subr.mxu0 0.0
    %5080 = vmatpush2.msra.mxu0 0.0
    %5081 = vmatprep.subr.mxu0 0.0
    %5082 = vmatpush2.msra.mxu0 0.0
    %5083 = vmatprep.subr.mxu0 0.0
    %5084 = vmatpush2.msra.mxu0 0.0
    %5085 = vmatprep.subr.mxu0 0.0
    %5086 = vmatpush2.msra.mxu0 0.0
    %5087 = vmatprep.subr.mxu0 0.0
    %5088 = vmatpush2.msra.mxu0 0.0
    %5089 = vmatprep.subr.mxu0 0.0
    %5090 = vmatpush2.msra.mxu0 0.0
    %5091 = vmatprep.subr.mxu0 0.0
    %5092 = vmatpush2.msra.mxu0 0.0
    %5093 = vmatprep.subr.mxu0 0.0
    %5094 = vmatpush2.msra.mxu0 0.0
    %5095 = vmatprep.subr.mxu0 0.0
    %5096 = vmatpush2.msra.mxu0 0.0
    %5097 = vmatprep.subr.mxu0 0.0
    %5098 = vmatpush2.msra.mxu0 0.0
    %5099 = vmatprep.subr.mxu0 0.0
    %5100 = vmatpush2.msra.mxu0 0.0
    %5101 = vmatprep.subr.mxu0 0.0
    %5102 = vmatpush2.msra.mxu0 0.0
    %5103 = vmatprep.subr.mxu0 0.0
    %5104 = vmatpush2.msra.mxu0 0.0
    %5105 = vmatprep.subr.mxu0 0.0
    %5106 = vmatpush2.msra.mxu0 0.0
    %5107 = vmatprep.subr.mxu0 0.0
    %5108 = vmatpush2.msra.mxu0 0.0
    %5109 = vmatprep.subr.mxu0 0.0
    %5110 = vmatpush2.msra.mxu0 0.0
    %5111 = vmatprep.mubr.f32.mxu0 0.0
    %5112 = vmatmul.mubr.f32.gmra.mxu0 %v4833
    %v5113 = vpop.f32.mrf.mxu0
    %v5114 = vadd.f32 0.0, %v5113
    %v5115 = vpop.f32.mrf.mxu0
    %v5116 = vadd.f32 0.0, %v5115
    %5117 = vdwg.mxu0
    %v5118 = vadd.f32 %v4901, %v5043
    %v5119 = vadd.f32 %v4903, %v5045
    %v5120 = vadd.f32 %v4972, %v5114
    %v5121 = vadd.f32 %v4974, %v5116
    %v5122 = vxor.u32 %v5118, 2147483648
    %v5123 = vmul.f32 %v5122, 1.442695
    %v5124 = vpow.pop %v5123
    %v5125 = vadd.f32 %v5124, 1.0
    %v5126 = vrcp.pop %v5125
    %v5127 = vmul.f32 1.0, %v5126
    %v5128 = vxor.u32 %v5119, 2147483648
    %v5129 = vmul.f32 %v5128, 1.442695
    %v5130 = vpow.pop %v5129
    %v5131 = vadd.f32 %v5130, 1.0
    %v5132 = vrcp.pop %v5131
    %v5133 = vmul.f32 1.0, %v5132
    %v5134 = vtanh.pop %v5120
    %v5135 = vxor.u32 %v5121, 2147483648
    %v5136 = vmul.f32 %v5135, 1.442695
    %v5137 = vpow.pop %v5136
    %v5138 = vadd.f32 %v5137, 1.0
    %v5139 = vrcp.pop %v5138
    %v5140 = vmul.f32 1.0, %v5139
    %v5141 = vmul.f32 %v5133, %v4509
    %v5142 = vmul.f32 %v5127, %v5134
    %v5143 = vadd.f32 %v5141, %v5142
    %v5144 = vtanh.pop %v5143
    %v5145 = vmul.f32 %v5140, %v5144
    %v5146 = vmul.f32 %v5145, %v446
    %5147 = vadd.xlane.f32.xlu0 %v5146
    %v5148 = vpop.xlane.xlu0 %5147
    %v5149 = vadd.f32 %v5148, %v453
    %5151 = vrot.lane.b32.xlu0 %v5149, 8
    %v5152 = vpop.permute.xlu0 %5151
    %vm5154 = vcmask 72768
    %5155 = vst.msk [vmem:[#allocation14] sm:$0xff] %vm5154, %v5152
    %5156 = vmatprep.subr.mxu0 %v372
    %5157 = vmatpush1.msra.mxu0 %v371
    %5158 = vmatprep.subr.mxu0 %v368
    %5159 = vmatpush1.msra.mxu0 %v367
    %5160 = vmatprep.subr.mxu0 %v364
    %5161 = vmatpush1.msra.mxu0 %v363
    %5162 = vmatprep.subr.mxu0 %v360
    %5163 = vmatpush1.msra.mxu0 %v359
    %5164 = vmatprep.subr.mxu0 %v356
    %5165 = vmatpush1.msra.mxu0 %v355
    %5166 = vmatprep.subr.mxu0 %v352
    %5167 = vmatpush1.msra.mxu0 %v351
    %5168 = vmatprep.subr.mxu0 %v348
    %5169 = vmatpush1.msra.mxu0 %v347
    %5170 = vmatprep.subr.mxu0 %v344
    %5171 = vmatpush1.msra.mxu0 %v343
    %5172 = vmatprep.subr.mxu0 %v340
    %5173 = vmatpush1.msra.mxu0 %v339
    %5174 = vmatprep.subr.mxu0 %v336
    %5175 = vmatpush1.msra.mxu0 %v335
    %5176 = vmatprep.subr.mxu0 %v332
    %5177 = vmatpush1.msra.mxu0 %v331
    %5178 = vmatprep.subr.mxu0 %v328
    %5179 = vmatpush1.msra.mxu0 %v327
    %5180 = vmatprep.subr.mxu0 %v324
    %5181 = vmatpush1.msra.mxu0 %v323
    %5182 = vmatprep.subr.mxu0 %v320
    %5183 = vmatpush1.msra.mxu0 %v319
    %5184 = vmatprep.subr.mxu0 %v316
    %5185 = vmatpush1.msra.mxu0 %v315
    %5186 = vmatprep.subr.mxu0 %v312
    %5187 = vmatpush1.msra.mxu0 %v311
    %5188 = vmatprep.subr.mxu0 0.0
    %5189 = vmatpush2.msra.mxu0 0.0
    %5190 = vmatprep.subr.mxu0 0.0
    %5191 = vmatpush2.msra.mxu0 0.0
    %5192 = vmatprep.subr.mxu0 0.0
    %5193 = vmatpush2.msra.mxu0 0.0
    %5194 = vmatprep.subr.mxu0 0.0
    %5195 = vmatpush2.msra.mxu0 0.0
    %5196 = vmatprep.subr.mxu0 0.0
    %5197 = vmatpush2.msra.mxu0 0.0
    %5198 = vmatprep.subr.mxu0 0.0
    %5199 = vmatpush2.msra.mxu0 0.0
    %5200 = vmatprep.subr.mxu0 0.0
    %5201 = vmatpush2.msra.mxu0 0.0
    %5202 = vmatprep.subr.mxu0 0.0
    %5203 = vmatpush2.msra.mxu0 0.0
    %5204 = vmatprep.subr.mxu0 0.0
    %5205 = vmatpush2.msra.mxu0 0.0
    %5206 = vmatprep.subr.mxu0 0.0
    %5207 = vmatpush2.msra.mxu0 0.0
    %5208 = vmatprep.subr.mxu0 0.0
    %5209 = vmatpush2.msra.mxu0 0.0
    %5210 = vmatprep.subr.mxu0 0.0
    %5211 = vmatpush2.msra.mxu0 0.0
    %5212 = vmatprep.subr.mxu0 0.0
    %5213 = vmatpush2.msra.mxu0 0.0
    %5214 = vmatprep.subr.mxu0 0.0
    %5215 = vmatpush2.msra.mxu0 0.0
    %5216 = vmatprep.subr.mxu0 0.0
    %5217 = vmatpush2.msra.mxu0 0.0
    %5218 = vmatprep.subr.mxu0 0.0
    %5219 = vmatpush2.msra.mxu0 0.0
    %5220 = vmatprep.mubr.f32.mxu0 0.0
    %5221 = vmatmul.mubr.f32.gmra.mxu0 %v5145
    %v5222 = vpop.f32.mrf.mxu0
    %v5223 = vadd.f32 %v424, %v5222
    %v5224 = vpop.f32.mrf.mxu0
    %v5225 = vadd.f32 %v428, %v5224
    %5226 = vdwg.mxu0
    %5227 = vmatprep.subr.mxu0 %v374
    %5228 = vmatpush1.msra.mxu0 %v373
    %5229 = vmatprep.subr.mxu0 %v370
    %5230 = vmatpush1.msra.mxu0 %v369
    %5231 = vmatprep.subr.mxu0 %v366
    %5232 = vmatpush1.msra.mxu0 %v365
    %5233 = vmatprep.subr.mxu0 %v362
    %5234 = vmatpush1.msra.mxu0 %v361
    %5235 = vmatprep.subr.mxu0 %v358
    %5236 = vmatpush1.msra.mxu0 %v357
    %5237 = vmatprep.subr.mxu0 %v354
    %5238 = vmatpush1.msra.mxu0 %v353
    %5239 = vmatprep.subr.mxu0 %v350
    %5240 = vmatpush1.msra.mxu0 %v349
    %5241 = vmatprep.subr.mxu0 %v346
    %5242 = vmatpush1.msra.mxu0 %v345
    %5243 = vmatprep.subr.mxu0 %v342
    %5244 = vmatpush1.msra.mxu0 %v341
    %5245 = vmatprep.subr.mxu0 %v338
    %5246 = vmatpush1.msra.mxu0 %v337
    %5247 = vmatprep.subr.mxu0 %v334
    %5248 = vmatpush1.msra.mxu0 %v333
    %5249 = vmatprep.subr.mxu0 %v330
    %5250 = vmatpush1.msra.mxu0 %v329
    %5251 = vmatprep.subr.mxu0 %v326
    %5252 = vmatpush1.msra.mxu0 %v325
    %5253 = vmatprep.subr.mxu0 %v322
    %5254 = vmatpush1.msra.mxu0 %v321
    %5255 = vmatprep.subr.mxu0 %v318
    %5256 = vmatpush1.msra.mxu0 %v317
    %5257 = vmatprep.subr.mxu0 %v314
    %5258 = vmatpush1.msra.mxu0 %v313
    %5259 = vmatprep.subr.mxu0 0.0
    %5260 = vmatpush2.msra.mxu0 0.0
    %5261 = vmatprep.subr.mxu0 0.0
    %5262 = vmatpush2.msra.mxu0 0.0
    %5263 = vmatprep.subr.mxu0 0.0
    %5264 = vmatpush2.msra.mxu0 0.0
    %5265 = vmatprep.subr.mxu0 0.0
    %5266 = vmatpush2.msra.mxu0 0.0
    %5267 = vmatprep.subr.mxu0 0.0
    %5268 = vmatpush2.msra.mxu0 0.0
    %5269 = vmatprep.subr.mxu0 0.0
    %5270 = vmatpush2.msra.mxu0 0.0
    %5271 = vmatprep.subr.mxu0 0.0
    %5272 = vmatpush2.msra.mxu0 0.0
    %5273 = vmatprep.subr.mxu0 0.0
    %5274 = vmatpush2.msra.mxu0 0.0
    %5275 = vmatprep.subr.mxu0 0.0
    %5276 = vmatpush2.msra.mxu0 0.0
    %5277 = vmatprep.subr.mxu0 0.0
    %5278 = vmatpush2.msra.mxu0 0.0
    %5279 = vmatprep.subr.mxu0 0.0
    %5280 = vmatpush2.msra.mxu0 0.0
    %5281 = vmatprep.subr.mxu0 0.0
    %5282 = vmatpush2.msra.mxu0 0.0
    %5283 = vmatprep.subr.mxu0 0.0
    %5284 = vmatpush2.msra.mxu0 0.0
    %5285 = vmatprep.subr.mxu0 0.0
    %5286 = vmatpush2.msra.mxu0 0.0
    %5287 = vmatprep.subr.mxu0 0.0
    %5288 = vmatpush2.msra.mxu0 0.0
    %5289 = vmatprep.subr.mxu0 0.0
    %5290 = vmatpush2.msra.mxu0 0.0
    %5291 = vmatprep.mubr.f32.mxu0 0.0
    %5292 = vmatmul.mubr.f32.gmra.mxu0 %v5145
    %v5293 = vpop.f32.mrf.mxu0
    %v5294 = vadd.f32 %v432, %v5293
    %v5295 = vpop.f32.mrf.mxu0
    %v5296 = vadd.f32 %v436, %v5295
    %5297 = vdwg.mxu0
    %5298 = vmatprep.subr.mxu0 %v180
    %5299 = vmatpush1.msra.mxu0 %v179
    %5300 = vmatprep.subr.mxu0 %v176
    %5301 = vmatpush1.msra.mxu0 %v175
    %5302 = vmatprep.subr.mxu0 %v172
    %5303 = vmatpush1.msra.mxu0 %v171
    %5304 = vmatprep.subr.mxu0 %v168
    %5305 = vmatpush1.msra.mxu0 %v167
    %5306 = vmatprep.subr.mxu0 %v164
    %5307 = vmatpush1.msra.mxu0 %v163
    %5308 = vmatprep.subr.mxu0 %v160
    %5309 = vmatpush1.msra.mxu0 %v159
    %5310 = vmatprep.subr.mxu0 %v156
    %5311 = vmatpush1.msra.mxu0 %v155
    %5312 = vmatprep.subr.mxu0 %v152
    %5313 = vmatpush1.msra.mxu0 %v151
    %5314 = vmatprep.subr.mxu0 %v148
    %5315 = vmatpush1.msra.mxu0 %v147
    %5316 = vmatprep.subr.mxu0 %v144
    %5317 = vmatpush1.msra.mxu0 %v143
    %5318 = vmatprep.subr.mxu0 %v140
    %5319 = vmatpush1.msra.mxu0 %v139
    %5320 = vmatprep.subr.mxu0 %v136
    %5321 = vmatpush1.msra.mxu0 %v135
    %5322 = vmatprep.subr.mxu0 %v132
    %5323 = vmatpush1.msra.mxu0 %v131
    %5324 = vmatprep.subr.mxu0 %v128
    %5325 = vmatpush1.msra.mxu0 %v127
    %5326 = vmatprep.subr.mxu0 %v124
    %5327 = vmatpush1.msra.mxu0 %v123
    %5328 = vmatprep.subr.mxu0 %v120
    %5329 = vmatpush1.msra.mxu0 %v119
    %5330 = vmatprep.subr.mxu0 0.0
    %5331 = vmatpush2.msra.mxu0 0.0
    %5332 = vmatprep.subr.mxu0 0.0
    %5333 = vmatpush2.msra.mxu0 0.0
    %5334 = vmatprep.subr.mxu0 0.0
    %5335 = vmatpush2.msra.mxu0 0.0
    %5336 = vmatprep.subr.mxu0 0.0
    %5337 = vmatpush2.msra.mxu0 0.0
    %5338 = vmatprep.subr.mxu0 0.0
    %5339 = vmatpush2.msra.mxu0 0.0
    %5340 = vmatprep.subr.mxu0 0.0
    %5341 = vmatpush2.msra.mxu0 0.0
    %5342 = vmatprep.subr.mxu0 0.0
    %5343 = vmatpush2.msra.mxu0 0.0
    %5344 = vmatprep.subr.mxu0 0.0
    %5345 = vmatpush2.msra.mxu0 0.0
    %5346 = vmatprep.subr.mxu0 0.0
    %5347 = vmatpush2.msra.mxu0 0.0
    %5348 = vmatprep.subr.mxu0 0.0
    %5349 = vmatpush2.msra.mxu0 0.0
    %5350 = vmatprep.subr.mxu0 0.0
    %5351 = vmatpush2.msra.mxu0 0.0
    %5352 = vmatprep.subr.mxu0 0.0
    %5353 = vmatpush2.msra.mxu0 0.0
    %5354 = vmatprep.subr.mxu0 0.0
    %5355 = vmatpush2.msra.mxu0 0.0
    %5356 = vmatprep.subr.mxu0 0.0
    %5357 = vmatpush2.msra.mxu0 0.0
    %5358 = vmatprep.subr.mxu0 0.0
    %5359 = vmatpush2.msra.mxu0 0.0
    %5360 = vmatprep.subr.mxu0 0.0
    %5361 = vmatpush2.msra.mxu0 0.0
    %5362 = vmatprep.mubr.f32.mxu0 0.0
    %5363 = vmatmul.mubr.f32.gmra.mxu0 %v4833
    %v5364 = vpop.f32.mrf.mxu0
    %v5365 = vadd.f32 0.0, %v5364
    %v5366 = vpop.f32.mrf.mxu0
    %v5367 = vadd.f32 0.0, %v5366
    %5368 = vdwg.mxu0
    %5369 = vmatprep.subr.mxu0 %v182
    %5370 = vmatpush1.msra.mxu0 %v181
    %5371 = vmatprep.subr.mxu0 %v178
    %5372 = vmatpush1.msra.mxu0 %v177
    %5373 = vmatprep.subr.mxu0 %v174
    %5374 = vmatpush1.msra.mxu0 %v173
    %5375 = vmatprep.subr.mxu0 %v170
    %5376 = vmatpush1.msra.mxu0 %v169
    %5377 = vmatprep.subr.mxu0 %v166
    %5378 = vmatpush1.msra.mxu0 %v165
    %5379 = vmatprep.subr.mxu0 %v162
    %5380 = vmatpush1.msra.mxu0 %v161
    %5381 = vmatprep.subr.mxu0 %v158
    %5382 = vmatpush1.msra.mxu0 %v157
    %5383 = vmatprep.subr.mxu0 %v154
    %5384 = vmatpush1.msra.mxu0 %v153
    %5385 = vmatprep.subr.mxu0 %v150
    %5386 = vmatpush1.msra.mxu0 %v149
    %5387 = vmatprep.subr.mxu0 %v146
    %5388 = vmatpush1.msra.mxu0 %v145
    %5389 = vmatprep.subr.mxu0 %v142
    %5390 = vmatpush1.msra.mxu0 %v141
    %5391 = vmatprep.subr.mxu0 %v138
    %5392 = vmatpush1.msra.mxu0 %v137
    %5393 = vmatprep.subr.mxu0 %v134
    %5394 = vmatpush1.msra.mxu0 %v133
    %5395 = vmatprep.subr.mxu0 %v130
    %5396 = vmatpush1.msra.mxu0 %v129
    %5397 = vmatprep.subr.mxu0 %v126
    %5398 = vmatpush1.msra.mxu0 %v125
    %5399 = vmatprep.subr.mxu0 %v122
    %5400 = vmatpush1.msra.mxu0 %v121
    %5401 = vmatprep.subr.mxu0 0.0
    %5402 = vmatpush2.msra.mxu0 0.0
    %5403 = vmatprep.subr.mxu0 0.0
    %5404 = vmatpush2.msra.mxu0 0.0
    %5405 = vmatprep.subr.mxu0 0.0
    %5406 = vmatpush2.msra.mxu0 0.0
    %5407 = vmatprep.subr.mxu0 0.0
    %5408 = vmatpush2.msra.mxu0 0.0
    %5409 = vmatprep.subr.mxu0 0.0
    %5410 = vmatpush2.msra.mxu0 0.0
    %5411 = vmatprep.subr.mxu0 0.0
    %5412 = vmatpush2.msra.mxu0 0.0
    %5413 = vmatprep.subr.mxu0 0.0
    %5414 = vmatpush2.msra.mxu0 0.0
    %5415 = vmatprep.subr.mxu0 0.0
    %5416 = vmatpush2.msra.mxu0 0.0
    %5417 = vmatprep.subr.mxu0 0.0
    %5418 = vmatpush2.msra.mxu0 0.0
    %5419 = vmatprep.subr.mxu0 0.0
    %5420 = vmatpush2.msra.mxu0 0.0
    %5421 = vmatprep.subr.mxu0 0.0
    %5422 = vmatpush2.msra.mxu0 0.0
    %5423 = vmatprep.subr.mxu0 0.0
    %5424 = vmatpush2.msra.mxu0 0.0
    %5425 = vmatprep.subr.mxu0 0.0
    %5426 = vmatpush2.msra.mxu0 0.0
    %5427 = vmatprep.subr.mxu0 0.0
    %5428 = vmatpush2.msra.mxu0 0.0
    %5429 = vmatprep.subr.mxu0 0.0
    %5430 = vmatpush2.msra.mxu0 0.0
    %5431 = vmatprep.subr.mxu0 0.0
    %5432 = vmatpush2.msra.mxu0 0.0
    %5433 = vmatprep.mubr.f32.mxu0 0.0
    %5434 = vmatmul.mubr.f32.gmra.mxu0 %v4833
    %v5435 = vpop.f32.mrf.mxu0
    %v5436 = vadd.f32 0.0, %v5435
    %v5437 = vpop.f32.mrf.mxu0
    %v5438 = vadd.f32 0.0, %v5437
    %5439 = vdwg.mxu0
    %v5440 = vadd.f32 %v5223, %v5365
    %v5441 = vadd.f32 %v5225, %v5367
    %v5442 = vadd.f32 %v5294, %v5436
    %v5443 = vadd.f32 %v5296, %v5438
    %v5444 = vxor.u32 %v5440, 2147483648
    %v5445 = vmul.f32 %v5444, 1.442695
    %v5446 = vpow.pop %v5445
    %v5447 = vadd.f32 %v5446, 1.0
    %v5448 = vrcp.pop %v5447
    %v5449 = vmul.f32 1.0, %v5448
    %v5450 = vxor.u32 %v5441, 2147483648
    %v5451 = vmul.f32 %v5450, 1.442695
    %v5452 = vpow.pop %v5451
    %v5453 = vadd.f32 %v5452, 1.0
    %v5454 = vrcp.pop %v5453
    %v5455 = vmul.f32 1.0, %v5454
    %v5456 = vtanh.pop %v5442
    %v5457 = vxor.u32 %v5443, 2147483648
    %v5458 = vmul.f32 %v5457, 1.442695
    %v5459 = vpow.pop %v5458
    %v5460 = vadd.f32 %v5459, 1.0
    %v5461 = vrcp.pop %v5460
    %v5462 = vmul.f32 1.0, %v5461
    %v5463 = vmul.f32 %v5455, %v4831
    %v5464 = vmul.f32 %v5449, %v5456
    %v5465 = vadd.f32 %v5463, %v5464
    %v5466 = vtanh.pop %v5465
    %v5467 = vmul.f32 %v5462, %v5466
    %5468 = vmatprep.subr.mxu0 %v308
    %5469 = vmatpush1.msra.mxu0 %v307
    %5470 = vmatprep.subr.mxu0 %v304
    %5471 = vmatpush1.msra.mxu0 %v303
    %5472 = vmatprep.subr.mxu0 %v300
    %5473 = vmatpush1.msra.mxu0 %v299
    %5474 = vmatprep.subr.mxu0 %v296
    %5475 = vmatpush1.msra.mxu0 %v295
    %5476 = vmatprep.subr.mxu0 %v292
    %5477 = vmatpush1.msra.mxu0 %v291
    %5478 = vmatprep.subr.mxu0 %v288
    %5479 = vmatpush1.msra.mxu0 %v287
    %5480 = vmatprep.subr.mxu0 %v284
    %5481 = vmatpush1.msra.mxu0 %v283
    %5482 = vmatprep.subr.mxu0 %v280
    %5483 = vmatpush1.msra.mxu0 %v279
    %5484 = vmatprep.subr.mxu0 %v276
    %5485 = vmatpush1.msra.mxu0 %v275
    %5486 = vmatprep.subr.mxu0 %v272
    %5487 = vmatpush1.msra.mxu0 %v271
    %5488 = vmatprep.subr.mxu0 %v268
    %5489 = vmatpush1.msra.mxu0 %v267
    %5490 = vmatprep.subr.mxu0 %v264
    %5491 = vmatpush1.msra.mxu0 %v263
    %5492 = vmatprep.subr.mxu0 %v260
    %5493 = vmatpush1.msra.mxu0 %v259
    %5494 = vmatprep.subr.mxu0 %v256
    %5495 = vmatpush1.msra.mxu0 %v255
    %5496 = vmatprep.subr.mxu0 %v252
    %5497 = vmatpush1.msra.mxu0 %v251
    %5498 = vmatprep.subr.mxu0 %v248
    %5499 = vmatpush1.msra.mxu0 %v247
    %5500 = vmatprep.subr.mxu0 0.0
    %5501 = vmatpush2.msra.mxu0 0.0
    %5502 = vmatprep.subr.mxu0 0.0
    %5503 = vmatpush2.msra.mxu0 0.0
    %5504 = vmatprep.subr.mxu0 0.0
    %5505 = vmatpush2.msra.mxu0 0.0
    %5506 = vmatprep.subr.mxu0 0.0
    %5507 = vmatpush2.msra.mxu0 0.0
    %5508 = vmatprep.subr.mxu0 0.0
    %5509 = vmatpush2.msra.mxu0 0.0
    %5510 = vmatprep.subr.mxu0 0.0
    %5511 = vmatpush2.msra.mxu0 0.0
    %5512 = vmatprep.subr.mxu0 0.0
    %5513 = vmatpush2.msra.mxu0 0.0
    %5514 = vmatprep.subr.mxu0 0.0
    %5515 = vmatpush2.msra.mxu0 0.0
    %5516 = vmatprep.subr.mxu0 0.0
    %5517 = vmatpush2.msra.mxu0 0.0
    %5518 = vmatprep.subr.mxu0 0.0
    %5519 = vmatpush2.msra.mxu0 0.0
    %5520 = vmatprep.subr.mxu0 0.0
    %5521 = vmatpush2.msra.mxu0 0.0
    %5522 = vmatprep.subr.mxu0 0.0
    %5523 = vmatpush2.msra.mxu0 0.0
    %5524 = vmatprep.subr.mxu0 0.0
    %5525 = vmatpush2.msra.mxu0 0.0
    %5526 = vmatprep.subr.mxu0 0.0
    %5527 = vmatpush2.msra.mxu0 0.0
    %5528 = vmatprep.subr.mxu0 0.0
    %5529 = vmatpush2.msra.mxu0 0.0
    %5530 = vmatprep.subr.mxu0 0.0
    %5531 = vmatpush2.msra.mxu0 0.0
    %5532 = vmatprep.mubr.f32.mxu0 0.0
    %5533 = vmatmul.mubr.f32.gmra.mxu0 %v5145
    %v5534 = vpop.f32.mrf.mxu0
    %v5535 = vadd.f32 %v402, %v5534
    %v5536 = vpop.f32.mrf.mxu0
    %v5537 = vadd.f32 %v406, %v5536
    %5538 = vdwg.mxu0
    %5539 = vmatprep.subr.mxu0 %v310
    %5540 = vmatpush1.msra.mxu0 %v309
    %5541 = vmatprep.subr.mxu0 %v306
    %5542 = vmatpush1.msra.mxu0 %v305
    %5543 = vmatprep.subr.mxu0 %v302
    %5544 = vmatpush1.msra.mxu0 %v301
    %5545 = vmatprep.subr.mxu0 %v298
    %5546 = vmatpush1.msra.mxu0 %v297
    %5547 = vmatprep.subr.mxu0 %v294
    %5548 = vmatpush1.msra.mxu0 %v293
    %5549 = vmatprep.subr.mxu0 %v290
    %5550 = vmatpush1.msra.mxu0 %v289
    %5551 = vmatprep.subr.mxu0 %v286
    %5552 = vmatpush1.msra.mxu0 %v285
    %5553 = vmatprep.subr.mxu0 %v282
    %5554 = vmatpush1.msra.mxu0 %v281
    %5555 = vmatprep.subr.mxu0 %v278
    %5556 = vmatpush1.msra.mxu0 %v277
    %5557 = vmatprep.subr.mxu0 %v274
    %5558 = vmatpush1.msra.mxu0 %v273
    %5559 = vmatprep.subr.mxu0 %v270
    %5560 = vmatpush1.msra.mxu0 %v269
    %5561 = vmatprep.subr.mxu0 %v266
    %5562 = vmatpush1.msra.mxu0 %v265
    %5563 = vmatprep.subr.mxu0 %v262
    %5564 = vmatpush1.msra.mxu0 %v261
    %5565 = vmatprep.subr.mxu0 %v258
    %5566 = vmatpush1.msra.mxu0 %v257
    %5567 = vmatprep.subr.mxu0 %v254
    %5568 = vmatpush1.msra.mxu0 %v253
    %5569 = vmatprep.subr.mxu0 %v250
    %5570 = vmatpush1.msra.mxu0 %v249
    %5571 = vmatprep.subr.mxu0 0.0
    %5572 = vmatpush2.msra.mxu0 0.0
    %5573 = vmatprep.subr.mxu0 0.0
    %5574 = vmatpush2.msra.mxu0 0.0
    %5575 = vmatprep.subr.mxu0 0.0
    %5576 = vmatpush2.msra.mxu0 0.0
    %5577 = vmatprep.subr.mxu0 0.0
    %5578 = vmatpush2.msra.mxu0 0.0
    %5579 = vmatprep.subr.mxu0 0.0
    %5580 = vmatpush2.msra.mxu0 0.0
    %5581 = vmatprep.subr.mxu0 0.0
    %5582 = vmatpush2.msra.mxu0 0.0
    %5583 = vmatprep.subr.mxu0 0.0
    %5584 = vmatpush2.msra.mxu0 0.0
    %5585 = vmatprep.subr.mxu0 0.0
    %5586 = vmatpush2.msra.mxu0 0.0
    %5587 = vmatprep.subr.mxu0 0.0
    %5588 = vmatpush2.msra.mxu0 0.0
    %5589 = vmatprep.subr.mxu0 0.0
    %5590 = vmatpush2.msra.mxu0 0.0
    %5591 = vmatprep.subr.mxu0 0.0
    %5592 = vmatpush2.msra.mxu0 0.0
    %5593 = vmatprep.subr.mxu0 0.0
    %5594 = vmatpush2.msra.mxu0 0.0
    %5595 = vmatprep.subr.mxu0 0.0
    %5596 = vmatpush2.msra.mxu0 0.0
    %5597 = vmatprep.subr.mxu0 0.0
    %5598 = vmatpush2.msra.mxu0 0.0
    %5599 = vmatprep.subr.mxu0 0.0
    %5600 = vmatpush2.msra.mxu0 0.0
    %5601 = vmatprep.subr.mxu0 0.0
    %5602 = vmatpush2.msra.mxu0 0.0
    %5603 = vmatprep.mubr.f32.mxu0 0.0
    %5604 = vmatmul.mubr.f32.gmra.mxu0 %v5145
    %v5605 = vpop.f32.mrf.mxu0
    %v5606 = vadd.f32 %v410, %v5605
    %v5607 = vpop.f32.mrf.mxu0
    %v5608 = vadd.f32 %v414, %v5607
    %5609 = vdwg.mxu0
    %5610 = vmatprep.subr.mxu0 %v244
    %5611 = vmatpush1.msra.mxu0 %v243
    %5612 = vmatprep.subr.mxu0 %v240
    %5613 = vmatpush1.msra.mxu0 %v239
    %5614 = vmatprep.subr.mxu0 %v236
    %5615 = vmatpush1.msra.mxu0 %v235
    %5616 = vmatprep.subr.mxu0 %v232
    %5617 = vmatpush1.msra.mxu0 %v231
    %5618 = vmatprep.subr.mxu0 %v228
    %5619 = vmatpush1.msra.mxu0 %v227
    %5620 = vmatprep.subr.mxu0 %v224
    %5621 = vmatpush1.msra.mxu0 %v223
    %5622 = vmatprep.subr.mxu0 %v220
    %5623 = vmatpush1.msra.mxu0 %v219
    %5624 = vmatprep.subr.mxu0 %v216
    %5625 = vmatpush1.msra.mxu0 %v215
    %5626 = vmatprep.subr.mxu0 %v212
    %5627 = vmatpush1.msra.mxu0 %v211
    %5628 = vmatprep.subr.mxu0 %v208
    %5629 = vmatpush1.msra.mxu0 %v207
    %5630 = vmatprep.subr.mxu0 %v204
    %5631 = vmatpush1.msra.mxu0 %v203
    %5632 = vmatprep.subr.mxu0 %v200
    %5633 = vmatpush1.msra.mxu0 %v199
    %5634 = vmatprep.subr.mxu0 %v196
    %5635 = vmatpush1.msra.mxu0 %v195
    %5636 = vmatprep.subr.mxu0 %v192
    %5637 = vmatpush1.msra.mxu0 %v191
    %5638 = vmatprep.subr.mxu0 %v188
    %5639 = vmatpush1.msra.mxu0 %v187
    %5640 = vmatprep.subr.mxu0 %v184
    %5641 = vmatpush1.msra.mxu0 %v183
    %5642 = vmatprep.subr.mxu0 0.0
    %5643 = vmatpush2.msra.mxu0 0.0
    %5644 = vmatprep.subr.mxu0 0.0
    %5645 = vmatpush2.msra.mxu0 0.0
    %5646 = vmatprep.subr.mxu0 0.0
    %5647 = vmatpush2.msra.mxu0 0.0
    %5648 = vmatprep.subr.mxu0 0.0
    %5649 = vmatpush2.msra.mxu0 0.0
    %5650 = vmatprep.subr.mxu0 0.0
    %5651 = vmatpush2.msra.mxu0 0.0
    %5652 = vmatprep.subr.mxu0 0.0
    %5653 = vmatpush2.msra.mxu0 0.0
    %5654 = vmatprep.subr.mxu0 0.0
    %5655 = vmatpush2.msra.mxu0 0.0
    %5656 = vmatprep.subr.mxu0 0.0
    %5657 = vmatpush2.msra.mxu0 0.0
    %5658 = vmatprep.subr.mxu0 0.0
    %5659 = vmatpush2.msra.mxu0 0.0
    %5660 = vmatprep.subr.mxu0 0.0
    %5661 = vmatpush2.msra.mxu0 0.0
    %5662 = vmatprep.subr.mxu0 0.0
    %5663 = vmatpush2.msra.mxu0 0.0
    %5664 = vmatprep.subr.mxu0 0.0
    %5665 = vmatpush2.msra.mxu0 0.0
    %5666 = vmatprep.subr.mxu0 0.0
    %5667 = vmatpush2.msra.mxu0 0.0
    %5668 = vmatprep.subr.mxu0 0.0
    %5669 = vmatpush2.msra.mxu0 0.0
    %5670 = vmatprep.subr.mxu0 0.0
    %5671 = vmatpush2.msra.mxu0 0.0
    %5672 = vmatprep.subr.mxu0 0.0
    %5673 = vmatpush2.msra.mxu0 0.0
    %5674 = vmatprep.mubr.f32.mxu0 0.0
    %5675 = vmatmul.mubr.f32.gmra.mxu0 %v5467
    %v5676 = vpop.f32.mrf.mxu0
    %v5677 = vadd.f32 0.0, %v5676
    %v5678 = vpop.f32.mrf.mxu0
    %v5679 = vadd.f32 0.0, %v5678
    %5680 = vdwg.mxu0
    %5681 = vmatprep.subr.mxu0 %v246
    %5682 = vmatpush1.msra.mxu0 %v245
    %5683 = vmatprep.subr.mxu0 %v242
    %5684 = vmatpush1.msra.mxu0 %v241
    %5685 = vmatprep.subr.mxu0 %v238
    %5686 = vmatpush1.msra.mxu0 %v237
    %5687 = vmatprep.subr.mxu0 %v234
    %5688 = vmatpush1.msra.mxu0 %v233
    %5689 = vmatprep.subr.mxu0 %v230
    %5690 = vmatpush1.msra.mxu0 %v229
    %5691 = vmatprep.subr.mxu0 %v226
    %5692 = vmatpush1.msra.mxu0 %v225
    %5693 = vmatprep.subr.mxu0 %v222
    %5694 = vmatpush1.msra.mxu0 %v221
    %5695 = vmatprep.subr.mxu0 %v218
    %5696 = vmatpush1.msra.mxu0 %v217
    %5697 = vmatprep.subr.mxu0 %v214
    %5698 = vmatpush1.msra.mxu0 %v213
    %5699 = vmatprep.subr.mxu0 %v210
    %5700 = vmatpush1.msra.mxu0 %v209
    %5701 = vmatprep.subr.mxu0 %v206
    %5702 = vmatpush1.msra.mxu0 %v205
    %5703 = vmatprep.subr.mxu0 %v202
    %5704 = vmatpush1.msra.mxu0 %v201
    %5705 = vmatprep.subr.mxu0 %v198
    %5706 = vmatpush1.msra.mxu0 %v197
    %5707 = vmatprep.subr.mxu0 %v194
    %5708 = vmatpush1.msra.mxu0 %v193
    %5709 = vmatprep.subr.mxu0 %v190
    %5710 = vmatpush1.msra.mxu0 %v189
    %5711 = vmatprep.subr.mxu0 %v186
    %5712 = vmatpush1.msra.mxu0 %v185
    %5713 = vmatprep.subr.mxu0 0.0
    %5714 = vmatpush2.msra.mxu0 0.0
    %5715 = vmatprep.subr.mxu0 0.0
    %5716 = vmatpush2.msra.mxu0 0.0
    %5717 = vmatprep.subr.mxu0 0.0
    %5718 = vmatpush2.msra.mxu0 0.0
    %5719 = vmatprep.subr.mxu0 0.0
    %5720 = vmatpush2.msra.mxu0 0.0
    %5721 = vmatprep.subr.mxu0 0.0
    %5722 = vmatpush2.msra.mxu0 0.0
    %5723 = vmatprep.subr.mxu0 0.0
    %5724 = vmatpush2.msra.mxu0 0.0
    %5725 = vmatprep.subr.mxu0 0.0
    %5726 = vmatpush2.msra.mxu0 0.0
    %5727 = vmatprep.subr.mxu0 0.0
    %5728 = vmatpush2.msra.mxu0 0.0
    %5729 = vmatprep.subr.mxu0 0.0
    %5730 = vmatpush2.msra.mxu0 0.0
    %5731 = vmatprep.subr.mxu0 0.0
    %5732 = vmatpush2.msra.mxu0 0.0
    %5733 = vmatprep.subr.mxu0 0.0
    %5734 = vmatpush2.msra.mxu0 0.0
    %5735 = vmatprep.subr.mxu0 0.0
    %5736 = vmatpush2.msra.mxu0 0.0
    %5737 = vmatprep.subr.mxu0 0.0
    %5738 = vmatpush2.msra.mxu0 0.0
    %5739 = vmatprep.subr.mxu0 0.0
    %5740 = vmatpush2.msra.mxu0 0.0
    %5741 = vmatprep.subr.mxu0 0.0
    %5742 = vmatpush2.msra.mxu0 0.0
    %5743 = vmatprep.subr.mxu0 0.0
    %5744 = vmatpush2.msra.mxu0 0.0
    %5745 = vmatprep.mubr.f32.mxu0 0.0
    %5746 = vmatmul.mubr.f32.gmra.mxu0 %v5467
    %v5747 = vpop.f32.mrf.mxu0
    %v5748 = vadd.f32 0.0, %v5747
    %v5749 = vpop.f32.mrf.mxu0
    %v5750 = vadd.f32 0.0, %v5749
    %5751 = vdwg.mxu0
    %v5752 = vadd.f32 %v5535, %v5677
    %v5753 = vadd.f32 %v5537, %v5679
    %v5754 = vadd.f32 %v5606, %v5748
    %v5755 = vadd.f32 %v5608, %v5750
    %v5756 = vxor.u32 %v5752, 2147483648
    %v5757 = vmul.f32 %v5756, 1.442695
    %v5758 = vpow.pop %v5757
    %v5759 = vadd.f32 %v5758, 1.0
    %v5760 = vrcp.pop %v5759
    %v5761 = vmul.f32 1.0, %v5760
    %v5762 = vxor.u32 %v5753, 2147483648
    %v5763 = vmul.f32 %v5762, 1.442695
    %v5764 = vpow.pop %v5763
    %v5765 = vadd.f32 %v5764, 1.0
    %v5766 = vrcp.pop %v5765
    %v5767 = vmul.f32 1.0, %v5766
    %v5768 = vtanh.pop %v5754
    %v5769 = vxor.u32 %v5755, 2147483648
    %v5770 = vmul.f32 %v5769, 1.442695
    %v5771 = vpow.pop %v5770
    %v5772 = vadd.f32 %v5771, 1.0
    %v5773 = vrcp.pop %v5772
    %v5774 = vmul.f32 1.0, %v5773
    %v5775 = vmul.f32 %v5767, %v5143
    %v5776 = vmul.f32 %v5761, %v5768
    %v5777 = vadd.f32 %v5775, %v5776
    %v5778 = vtanh.pop %v5777
    %v5779 = vmul.f32 %v5774, %v5778
    %v5780 = vmul.f32 %v5779, %v446
    %5781 = vadd.xlane.f32.xlu0 %v5780
    %v5782 = vpop.xlane.xlu0 %5781
    %v5783 = vadd.f32 %v5782, %v453
    %5785 = vrot.lane.b32.xlu0 %v5783, 9
    %v5786 = vpop.permute.xlu0 %5785
    %vm5788 = vcmask 80968
    %5789 = vst.msk [vmem:[#allocation14] sm:$0xff] %vm5788, %v5786
    %5790 = vmatprep.subr.mxu0 %v372
    %5791 = vmatpush1.msra.mxu0 %v371
    %5792 = vmatprep.subr.mxu0 %v368
    %5793 = vmatpush1.msra.mxu0 %v367
    %5794 = vmatprep.subr.mxu0 %v364
    %5795 = vmatpush1.msra.mxu0 %v363
    %5796 = vmatprep.subr.mxu0 %v360
    %5797 = vmatpush1.msra.mxu0 %v359
    %5798 = vmatprep.subr.mxu0 %v356
    %5799 = vmatpush1.msra.mxu0 %v355
    %5800 = vmatprep.subr.mxu0 %v352
    %5801 = vmatpush1.msra.mxu0 %v351
    %5802 = vmatprep.subr.mxu0 %v348
    %5803 = vmatpush1.msra.mxu0 %v347
    %5804 = vmatprep.subr.mxu0 %v344
    %5805 = vmatpush1.msra.mxu0 %v343
    %5806 = vmatprep.subr.mxu0 %v340
    %5807 = vmatpush1.msra.mxu0 %v339
    %5808 = vmatprep.subr.mxu0 %v336
    %5809 = vmatpush1.msra.mxu0 %v335
    %5810 = vmatprep.subr.mxu0 %v332
    %5811 = vmatpush1.msra.mxu0 %v331
    %5812 = vmatprep.subr.mxu0 %v328
    %5813 = vmatpush1.msra.mxu0 %v327
    %5814 = vmatprep.subr.mxu0 %v324
    %5815 = vmatpush1.msra.mxu0 %v323
    %5816 = vmatprep.subr.mxu0 %v320
    %5817 = vmatpush1.msra.mxu0 %v319
    %5818 = vmatprep.subr.mxu0 %v316
    %5819 = vmatpush1.msra.mxu0 %v315
    %5820 = vmatprep.subr.mxu0 %v312
    %5821 = vmatpush1.msra.mxu0 %v311
    %5822 = vmatprep.subr.mxu0 0.0
    %5823 = vmatpush2.msra.mxu0 0.0
    %5824 = vmatprep.subr.mxu0 0.0
    %5825 = vmatpush2.msra.mxu0 0.0
    %5826 = vmatprep.subr.mxu0 0.0
    %5827 = vmatpush2.msra.mxu0 0.0
    %5828 = vmatprep.subr.mxu0 0.0
    %5829 = vmatpush2.msra.mxu0 0.0
    %5830 = vmatprep.subr.mxu0 0.0
    %5831 = vmatpush2.msra.mxu0 0.0
    %5832 = vmatprep.subr.mxu0 0.0
    %5833 = vmatpush2.msra.mxu0 0.0
    %5834 = vmatprep.subr.mxu0 0.0
    %5835 = vmatpush2.msra.mxu0 0.0
    %5836 = vmatprep.subr.mxu0 0.0
    %5837 = vmatpush2.msra.mxu0 0.0
    %5838 = vmatprep.subr.mxu0 0.0
    %5839 = vmatpush2.msra.mxu0 0.0
    %5840 = vmatprep.subr.mxu0 0.0
    %5841 = vmatpush2.msra.mxu0 0.0
    %5842 = vmatprep.subr.mxu0 0.0
    %5843 = vmatpush2.msra.mxu0 0.0
    %5844 = vmatprep.subr.mxu0 0.0
    %5845 = vmatpush2.msra.mxu0 0.0
    %5846 = vmatprep.subr.mxu0 0.0
    %5847 = vmatpush2.msra.mxu0 0.0
    %5848 = vmatprep.subr.mxu0 0.0
    %5849 = vmatpush2.msra.mxu0 0.0
    %5850 = vmatprep.subr.mxu0 0.0
    %5851 = vmatpush2.msra.mxu0 0.0
    %5852 = vmatprep.subr.mxu0 0.0
    %5853 = vmatpush2.msra.mxu0 0.0
    %5854 = vmatprep.mubr.f32.mxu0 0.0
    %5855 = vmatmul.mubr.f32.gmra.mxu0 %v5779
    %v5856 = vpop.f32.mrf.mxu0
    %v5857 = vadd.f32 %v424, %v5856
    %v5858 = vpop.f32.mrf.mxu0
    %v5859 = vadd.f32 %v428, %v5858
    %5860 = vdwg.mxu0
    %5861 = vmatprep.subr.mxu0 %v374
    %5862 = vmatpush1.msra.mxu0 %v373
    %5863 = vmatprep.subr.mxu0 %v370
    %5864 = vmatpush1.msra.mxu0 %v369
    %5865 = vmatprep.subr.mxu0 %v366
    %5866 = vmatpush1.msra.mxu0 %v365
    %5867 = vmatprep.subr.mxu0 %v362
    %5868 = vmatpush1.msra.mxu0 %v361
    %5869 = vmatprep.subr.mxu0 %v358
    %5870 = vmatpush1.msra.mxu0 %v357
    %5871 = vmatprep.subr.mxu0 %v354
    %5872 = vmatpush1.msra.mxu0 %v353
    %5873 = vmatprep.subr.mxu0 %v350
    %5874 = vmatpush1.msra.mxu0 %v349
    %5875 = vmatprep.subr.mxu0 %v346
    %5876 = vmatpush1.msra.mxu0 %v345
    %5877 = vmatprep.subr.mxu0 %v342
    %5878 = vmatpush1.msra.mxu0 %v341
    %5879 = vmatprep.subr.mxu0 %v338
    %5880 = vmatpush1.msra.mxu0 %v337
    %5881 = vmatprep.subr.mxu0 %v334
    %5882 = vmatpush1.msra.mxu0 %v333
    %5883 = vmatprep.subr.mxu0 %v330
    %5884 = vmatpush1.msra.mxu0 %v329
    %5885 = vmatprep.subr.mxu0 %v326
    %5886 = vmatpush1.msra.mxu0 %v325
    %5887 = vmatprep.subr.mxu0 %v322
    %5888 = vmatpush1.msra.mxu0 %v321
    %5889 = vmatprep.subr.mxu0 %v318
    %5890 = vmatpush1.msra.mxu0 %v317
    %5891 = vmatprep.subr.mxu0 %v314
    %5892 = vmatpush1.msra.mxu0 %v313
    %5893 = vmatprep.subr.mxu0 0.0
    %5894 = vmatpush2.msra.mxu0 0.0
    %5895 = vmatprep.subr.mxu0 0.0
    %5896 = vmatpush2.msra.mxu0 0.0
    %5897 = vmatprep.subr.mxu0 0.0
    %5898 = vmatpush2.msra.mxu0 0.0
    %5899 = vmatprep.subr.mxu0 0.0
    %5900 = vmatpush2.msra.mxu0 0.0
    %5901 = vmatprep.subr.mxu0 0.0
    %5902 = vmatpush2.msra.mxu0 0.0
    %5903 = vmatprep.subr.mxu0 0.0
    %5904 = vmatpush2.msra.mxu0 0.0
    %5905 = vmatprep.subr.mxu0 0.0
    %5906 = vmatpush2.msra.mxu0 0.0
    %5907 = vmatprep.subr.mxu0 0.0
    %5908 = vmatpush2.msra.mxu0 0.0
    %5909 = vmatprep.subr.mxu0 0.0
    %5910 = vmatpush2.msra.mxu0 0.0
    %5911 = vmatprep.subr.mxu0 0.0
    %5912 = vmatpush2.msra.mxu0 0.0
    %5913 = vmatprep.subr.mxu0 0.0
    %5914 = vmatpush2.msra.mxu0 0.0
    %5915 = vmatprep.subr.mxu0 0.0
    %5916 = vmatpush2.msra.mxu0 0.0
    %5917 = vmatprep.subr.mxu0 0.0
    %5918 = vmatpush2.msra.mxu0 0.0
    %5919 = vmatprep.subr.mxu0 0.0
    %5920 = vmatpush2.msra.mxu0 0.0
    %5921 = vmatprep.subr.mxu0 0.0
    %5922 = vmatpush2.msra.mxu0 0.0
    %5923 = vmatprep.subr.mxu0 0.0
    %5924 = vmatpush2.msra.mxu0 0.0
    %5925 = vmatprep.mubr.f32.mxu0 0.0
    %5926 = vmatmul.mubr.f32.gmra.mxu0 %v5779
    %v5927 = vpop.f32.mrf.mxu0
    %v5928 = vadd.f32 %v432, %v5927
    %v5929 = vpop.f32.mrf.mxu0
    %v5930 = vadd.f32 %v436, %v5929
    %5931 = vdwg.mxu0
    %5932 = vmatprep.subr.mxu0 %v180
    %5933 = vmatpush1.msra.mxu0 %v179
    %5934 = vmatprep.subr.mxu0 %v176
    %5935 = vmatpush1.msra.mxu0 %v175
    %5936 = vmatprep.subr.mxu0 %v172
    %5937 = vmatpush1.msra.mxu0 %v171
    %5938 = vmatprep.subr.mxu0 %v168
    %5939 = vmatpush1.msra.mxu0 %v167
    %5940 = vmatprep.subr.mxu0 %v164
    %5941 = vmatpush1.msra.mxu0 %v163
    %5942 = vmatprep.subr.mxu0 %v160
    %5943 = vmatpush1.msra.mxu0 %v159
    %5944 = vmatprep.subr.mxu0 %v156
    %5945 = vmatpush1.msra.mxu0 %v155
    %5946 = vmatprep.subr.mxu0 %v152
    %5947 = vmatpush1.msra.mxu0 %v151
    %5948 = vmatprep.subr.mxu0 %v148
    %5949 = vmatpush1.msra.mxu0 %v147
    %5950 = vmatprep.subr.mxu0 %v144
    %5951 = vmatpush1.msra.mxu0 %v143
    %5952 = vmatprep.subr.mxu0 %v140
    %5953 = vmatpush1.msra.mxu0 %v139
    %5954 = vmatprep.subr.mxu0 %v136
    %5955 = vmatpush1.msra.mxu0 %v135
    %5956 = vmatprep.subr.mxu0 %v132
    %5957 = vmatpush1.msra.mxu0 %v131
    %5958 = vmatprep.subr.mxu0 %v128
    %5959 = vmatpush1.msra.mxu0 %v127
    %5960 = vmatprep.subr.mxu0 %v124
    %5961 = vmatpush1.msra.mxu0 %v123
    %5962 = vmatprep.subr.mxu0 %v120
    %5963 = vmatpush1.msra.mxu0 %v119
    %5964 = vmatprep.subr.mxu0 0.0
    %5965 = vmatpush2.msra.mxu0 0.0
    %5966 = vmatprep.subr.mxu0 0.0
    %5967 = vmatpush2.msra.mxu0 0.0
    %5968 = vmatprep.subr.mxu0 0.0
    %5969 = vmatpush2.msra.mxu0 0.0
    %5970 = vmatprep.subr.mxu0 0.0
    %5971 = vmatpush2.msra.mxu0 0.0
    %5972 = vmatprep.subr.mxu0 0.0
    %5973 = vmatpush2.msra.mxu0 0.0
    %5974 = vmatprep.subr.mxu0 0.0
    %5975 = vmatpush2.msra.mxu0 0.0
    %5976 = vmatprep.subr.mxu0 0.0
    %5977 = vmatpush2.msra.mxu0 0.0
    %5978 = vmatprep.subr.mxu0 0.0
    %5979 = vmatpush2.msra.mxu0 0.0
    %5980 = vmatprep.subr.mxu0 0.0
    %5981 = vmatpush2.msra.mxu0 0.0
    %5982 = vmatprep.subr.mxu0 0.0
    %5983 = vmatpush2.msra.mxu0 0.0
    %5984 = vmatprep.subr.mxu0 0.0
    %5985 = vmatpush2.msra.mxu0 0.0
    %5986 = vmatprep.subr.mxu0 0.0
    %5987 = vmatpush2.msra.mxu0 0.0
    %5988 = vmatprep.subr.mxu0 0.0
    %5989 = vmatpush2.msra.mxu0 0.0
    %5990 = vmatprep.subr.mxu0 0.0
    %5991 = vmatpush2.msra.mxu0 0.0
    %5992 = vmatprep.subr.mxu0 0.0
    %5993 = vmatpush2.msra.mxu0 0.0
    %5994 = vmatprep.subr.mxu0 0.0
    %5995 = vmatpush2.msra.mxu0 0.0
    %5996 = vmatprep.mubr.f32.mxu0 0.0
    %5997 = vmatmul.mubr.f32.gmra.mxu0 %v5467
    %v5998 = vpop.f32.mrf.mxu0
    %v5999 = vadd.f32 0.0, %v5998
    %v6000 = vpop.f32.mrf.mxu0
    %v6001 = vadd.f32 0.0, %v6000
    %6002 = vdwg.mxu0
    %6003 = vmatprep.subr.mxu0 %v182
    %6004 = vmatpush1.msra.mxu0 %v181
    %6005 = vmatprep.subr.mxu0 %v178
    %6006 = vmatpush1.msra.mxu0 %v177
    %6007 = vmatprep.subr.mxu0 %v174
    %6008 = vmatpush1.msra.mxu0 %v173
    %6009 = vmatprep.subr.mxu0 %v170
    %6010 = vmatpush1.msra.mxu0 %v169
    %6011 = vmatprep.subr.mxu0 %v166
    %6012 = vmatpush1.msra.mxu0 %v165
    %6013 = vmatprep.subr.mxu0 %v162
    %6014 = vmatpush1.msra.mxu0 %v161
    %6015 = vmatprep.subr.mxu0 %v158
    %6016 = vmatpush1.msra.mxu0 %v157
    %6017 = vmatprep.subr.mxu0 %v154
    %6018 = vmatpush1.msra.mxu0 %v153
    %6019 = vmatprep.subr.mxu0 %v150
    %6020 = vmatpush1.msra.mxu0 %v149
    %6021 = vmatprep.subr.mxu0 %v146
    %6022 = vmatpush1.msra.mxu0 %v145
    %6023 = vmatprep.subr.mxu0 %v142
    %6024 = vmatpush1.msra.mxu0 %v141
    %6025 = vmatprep.subr.mxu0 %v138
    %6026 = vmatpush1.msra.mxu0 %v137
    %6027 = vmatprep.subr.mxu0 %v134
    %6028 = vmatpush1.msra.mxu0 %v133
    %6029 = vmatprep.subr.mxu0 %v130
    %6030 = vmatpush1.msra.mxu0 %v129
    %6031 = vmatprep.subr.mxu0 %v126
    %6032 = vmatpush1.msra.mxu0 %v125
    %6033 = vmatprep.subr.mxu0 %v122
    %6034 = vmatpush1.msra.mxu0 %v121
    %6035 = vmatprep.subr.mxu0 0.0
    %6036 = vmatpush2.msra.mxu0 0.0
    %6037 = vmatprep.subr.mxu0 0.0
    %6038 = vmatpush2.msra.mxu0 0.0
    %6039 = vmatprep.subr.mxu0 0.0
    %6040 = vmatpush2.msra.mxu0 0.0
    %6041 = vmatprep.subr.mxu0 0.0
    %6042 = vmatpush2.msra.mxu0 0.0
    %6043 = vmatprep.subr.mxu0 0.0
    %6044 = vmatpush2.msra.mxu0 0.0
    %6045 = vmatprep.subr.mxu0 0.0
    %6046 = vmatpush2.msra.mxu0 0.0
    %6047 = vmatprep.subr.mxu0 0.0
    %6048 = vmatpush2.msra.mxu0 0.0
    %6049 = vmatprep.subr.mxu0 0.0
    %6050 = vmatpush2.msra.mxu0 0.0
    %6051 = vmatprep.subr.mxu0 0.0
    %6052 = vmatpush2.msra.mxu0 0.0
    %6053 = vmatprep.subr.mxu0 0.0
    %6054 = vmatpush2.msra.mxu0 0.0
    %6055 = vmatprep.subr.mxu0 0.0
    %6056 = vmatpush2.msra.mxu0 0.0
    %6057 = vmatprep.subr.mxu0 0.0
    %6058 = vmatpush2.msra.mxu0 0.0
    %6059 = vmatprep.subr.mxu0 0.0
    %6060 = vmatpush2.msra.mxu0 0.0
    %6061 = vmatprep.subr.mxu0 0.0
    %6062 = vmatpush2.msra.mxu0 0.0
    %6063 = vmatprep.subr.mxu0 0.0
    %6064 = vmatpush2.msra.mxu0 0.0
    %6065 = vmatprep.subr.mxu0 0.0
    %6066 = vmatpush2.msra.mxu0 0.0
    %6067 = vmatprep.mubr.f32.mxu0 0.0
    %6068 = vmatmul.mubr.f32.gmra.mxu0 %v5467
    %v6069 = vpop.f32.mrf.mxu0
    %v6070 = vadd.f32 0.0, %v6069
    %v6071 = vpop.f32.mrf.mxu0
    %v6072 = vadd.f32 0.0, %v6071
    %6073 = vdwg.mxu0
    %v6074 = vadd.f32 %v5857, %v5999
    %v6075 = vadd.f32 %v5859, %v6001
    %v6076 = vadd.f32 %v5928, %v6070
    %v6077 = vadd.f32 %v5930, %v6072
    %v6078 = vxor.u32 %v6074, 2147483648
    %v6079 = vmul.f32 %v6078, 1.442695
    %v6080 = vpow.pop %v6079
    %v6081 = vadd.f32 %v6080, 1.0
    %v6082 = vrcp.pop %v6081
    %v6083 = vmul.f32 1.0, %v6082
    %v6084 = vxor.u32 %v6075, 2147483648
    %v6085 = vmul.f32 %v6084, 1.442695
    %v6086 = vpow.pop %v6085
    %v6087 = vadd.f32 %v6086, 1.0
    %v6088 = vrcp.pop %v6087
    %v6089 = vmul.f32 1.0, %v6088
    %v6090 = vtanh.pop %v6076
    %v6091 = vxor.u32 %v6077, 2147483648
    %v6092 = vmul.f32 %v6091, 1.442695
    %v6093 = vpow.pop %v6092
    %v6094 = vadd.f32 %v6093, 1.0
    %v6095 = vrcp.pop %v6094
    %v6096 = vmul.f32 1.0, %v6095
    %v6097 = vmul.f32 %v6089, %v5465
    %v6098 = vmul.f32 %v6083, %v6090
    %v6099 = vadd.f32 %v6097, %v6098
    %v6100 = vtanh.pop %v6099
    %v6101 = vmul.f32 %v6096, %v6100
    %6102 = vmatprep.subr.mxu0 %v308
    %6103 = vmatpush1.msra.mxu0 %v307
    %6104 = vmatprep.subr.mxu0 %v304
    %6105 = vmatpush1.msra.mxu0 %v303
    %6106 = vmatprep.subr.mxu0 %v300
    %6107 = vmatpush1.msra.mxu0 %v299
    %6108 = vmatprep.subr.mxu0 %v296
    %6109 = vmatpush1.msra.mxu0 %v295
    %6110 = vmatprep.subr.mxu0 %v292
    %6111 = vmatpush1.msra.mxu0 %v291
    %6112 = vmatprep.subr.mxu0 %v288
    %6113 = vmatpush1.msra.mxu0 %v287
    %6114 = vmatprep.subr.mxu0 %v284
    %6115 = vmatpush1.msra.mxu0 %v283
    %6116 = vmatprep.subr.mxu0 %v280
    %6117 = vmatpush1.msra.mxu0 %v279
    %6118 = vmatprep.subr.mxu0 %v276
    %6119 = vmatpush1.msra.mxu0 %v275
    %6120 = vmatprep.subr.mxu0 %v272
    %6121 = vmatpush1.msra.mxu0 %v271
    %6122 = vmatprep.subr.mxu0 %v268
    %6123 = vmatpush1.msra.mxu0 %v267
    %6124 = vmatprep.subr.mxu0 %v264
    %6125 = vmatpush1.msra.mxu0 %v263
    %6126 = vmatprep.subr.mxu0 %v260
    %6127 = vmatpush1.msra.mxu0 %v259
    %6128 = vmatprep.subr.mxu0 %v256
    %6129 = vmatpush1.msra.mxu0 %v255
    %6130 = vmatprep.subr.mxu0 %v252
    %6131 = vmatpush1.msra.mxu0 %v251
    %6132 = vmatprep.subr.mxu0 %v248
    %6133 = vmatpush1.msra.mxu0 %v247
    %6134 = vmatprep.subr.mxu0 0.0
    %6135 = vmatpush2.msra.mxu0 0.0
    %6136 = vmatprep.subr.mxu0 0.0
    %6137 = vmatpush2.msra.mxu0 0.0
    %6138 = vmatprep.subr.mxu0 0.0
    %6139 = vmatpush2.msra.mxu0 0.0
    %6140 = vmatprep.subr.mxu0 0.0
    %6141 = vmatpush2.msra.mxu0 0.0
    %6142 = vmatprep.subr.mxu0 0.0
    %6143 = vmatpush2.msra.mxu0 0.0
    %6144 = vmatprep.subr.mxu0 0.0
    %6145 = vmatpush2.msra.mxu0 0.0
    %6146 = vmatprep.subr.mxu0 0.0
    %6147 = vmatpush2.msra.mxu0 0.0
    %6148 = vmatprep.subr.mxu0 0.0
    %6149 = vmatpush2.msra.mxu0 0.0
    %6150 = vmatprep.subr.mxu0 0.0
    %6151 = vmatpush2.msra.mxu0 0.0
    %6152 = vmatprep.subr.mxu0 0.0
    %6153 = vmatpush2.msra.mxu0 0.0
    %6154 = vmatprep.subr.mxu0 0.0
    %6155 = vmatpush2.msra.mxu0 0.0
    %6156 = vmatprep.subr.mxu0 0.0
    %6157 = vmatpush2.msra.mxu0 0.0
    %6158 = vmatprep.subr.mxu0 0.0
    %6159 = vmatpush2.msra.mxu0 0.0
    %6160 = vmatprep.subr.mxu0 0.0
    %6161 = vmatpush2.msra.mxu0 0.0
    %6162 = vmatprep.subr.mxu0 0.0
    %6163 = vmatpush2.msra.mxu0 0.0
    %6164 = vmatprep.subr.mxu0 0.0
    %6165 = vmatpush2.msra.mxu0 0.0
    %6166 = vmatprep.mubr.f32.mxu0 0.0
    %6167 = vmatmul.mubr.f32.gmra.mxu0 %v5779
    %v6168 = vpop.f32.mrf.mxu0
    %v6169 = vadd.f32 %v402, %v6168
    %v6170 = vpop.f32.mrf.mxu0
    %v6171 = vadd.f32 %v406, %v6170
    %6172 = vdwg.mxu0
    %6173 = vmatprep.subr.mxu0 %v310
    %6174 = vmatpush1.msra.mxu0 %v309
    %6175 = vmatprep.subr.mxu0 %v306
    %6176 = vmatpush1.msra.mxu0 %v305
    %6177 = vmatprep.subr.mxu0 %v302
    %6178 = vmatpush1.msra.mxu0 %v301
    %6179 = vmatprep.subr.mxu0 %v298
    %6180 = vmatpush1.msra.mxu0 %v297
    %6181 = vmatprep.subr.mxu0 %v294
    %6182 = vmatpush1.msra.mxu0 %v293
    %6183 = vmatprep.subr.mxu0 %v290
    %6184 = vmatpush1.msra.mxu0 %v289
    %6185 = vmatprep.subr.mxu0 %v286
    %6186 = vmatpush1.msra.mxu0 %v285
    %6187 = vmatprep.subr.mxu0 %v282
    %6188 = vmatpush1.msra.mxu0 %v281
    %6189 = vmatprep.subr.mxu0 %v278
    %6190 = vmatpush1.msra.mxu0 %v277
    %6191 = vmatprep.subr.mxu0 %v274
    %6192 = vmatpush1.msra.mxu0 %v273
    %6193 = vmatprep.subr.mxu0 %v270
    %6194 = vmatpush1.msra.mxu0 %v269
    %6195 = vmatprep.subr.mxu0 %v266
    %6196 = vmatpush1.msra.mxu0 %v265
    %6197 = vmatprep.subr.mxu0 %v262
    %6198 = vmatpush1.msra.mxu0 %v261
    %6199 = vmatprep.subr.mxu0 %v258
    %6200 = vmatpush1.msra.mxu0 %v257
    %6201 = vmatprep.subr.mxu0 %v254
    %6202 = vmatpush1.msra.mxu0 %v253
    %6203 = vmatprep.subr.mxu0 %v250
    %6204 = vmatpush1.msra.mxu0 %v249
    %6205 = vmatprep.subr.mxu0 0.0
    %6206 = vmatpush2.msra.mxu0 0.0
    %6207 = vmatprep.subr.mxu0 0.0
    %6208 = vmatpush2.msra.mxu0 0.0
    %6209 = vmatprep.subr.mxu0 0.0
    %6210 = vmatpush2.msra.mxu0 0.0
    %6211 = vmatprep.subr.mxu0 0.0
    %6212 = vmatpush2.msra.mxu0 0.0
    %6213 = vmatprep.subr.mxu0 0.0
    %6214 = vmatpush2.msra.mxu0 0.0
    %6215 = vmatprep.subr.mxu0 0.0
    %6216 = vmatpush2.msra.mxu0 0.0
    %6217 = vmatprep.subr.mxu0 0.0
    %6218 = vmatpush2.msra.mxu0 0.0
    %6219 = vmatprep.subr.mxu0 0.0
    %6220 = vmatpush2.msra.mxu0 0.0
    %6221 = vmatprep.subr.mxu0 0.0
    %6222 = vmatpush2.msra.mxu0 0.0
    %6223 = vmatprep.subr.mxu0 0.0
    %6224 = vmatpush2.msra.mxu0 0.0
    %6225 = vmatprep.subr.mxu0 0.0
    %6226 = vmatpush2.msra.mxu0 0.0
    %6227 = vmatprep.subr.mxu0 0.0
    %6228 = vmatpush2.msra.mxu0 0.0
    %6229 = vmatprep.subr.mxu0 0.0
    %6230 = vmatpush2.msra.mxu0 0.0
    %6231 = vmatprep.subr.mxu0 0.0
    %6232 = vmatpush2.msra.mxu0 0.0
    %6233 = vmatprep.subr.mxu0 0.0
    %6234 = vmatpush2.msra.mxu0 0.0
    %6235 = vmatprep.subr.mxu0 0.0
    %6236 = vmatpush2.msra.mxu0 0.0
    %6237 = vmatprep.mubr.f32.mxu0 0.0
    %6238 = vmatmul.mubr.f32.gmra.mxu0 %v5779
    %v6239 = vpop.f32.mrf.mxu0
    %v6240 = vadd.f32 %v410, %v6239
    %v6241 = vpop.f32.mrf.mxu0
    %v6242 = vadd.f32 %v414, %v6241
    %6243 = vdwg.mxu0
    %6244 = vmatprep.subr.mxu0 %v244
    %6245 = vmatpush1.msra.mxu0 %v243
    %6246 = vmatprep.subr.mxu0 %v240
    %6247 = vmatpush1.msra.mxu0 %v239
    %6248 = vmatprep.subr.mxu0 %v236
    %6249 = vmatpush1.msra.mxu0 %v235
    %6250 = vmatprep.subr.mxu0 %v232
    %6251 = vmatpush1.msra.mxu0 %v231
    %6252 = vmatprep.subr.mxu0 %v228
    %6253 = vmatpush1.msra.mxu0 %v227
    %6254 = vmatprep.subr.mxu0 %v224
    %6255 = vmatpush1.msra.mxu0 %v223
    %6256 = vmatprep.subr.mxu0 %v220
    %6257 = vmatpush1.msra.mxu0 %v219
    %6258 = vmatprep.subr.mxu0 %v216
    %6259 = vmatpush1.msra.mxu0 %v215
    %6260 = vmatprep.subr.mxu0 %v212
    %6261 = vmatpush1.msra.mxu0 %v211
    %6262 = vmatprep.subr.mxu0 %v208
    %6263 = vmatpush1.msra.mxu0 %v207
    %6264 = vmatprep.subr.mxu0 %v204
    %6265 = vmatpush1.msra.mxu0 %v203
    %6266 = vmatprep.subr.mxu0 %v200
    %6267 = vmatpush1.msra.mxu0 %v199
    %6268 = vmatprep.subr.mxu0 %v196
    %6269 = vmatpush1.msra.mxu0 %v195
    %6270 = vmatprep.subr.mxu0 %v192
    %6271 = vmatpush1.msra.mxu0 %v191
    %6272 = vmatprep.subr.mxu0 %v188
    %6273 = vmatpush1.msra.mxu0 %v187
    %6274 = vmatprep.subr.mxu0 %v184
    %6275 = vmatpush1.msra.mxu0 %v183
    %6276 = vmatprep.subr.mxu0 0.0
    %6277 = vmatpush2.msra.mxu0 0.0
    %6278 = vmatprep.subr.mxu0 0.0
    %6279 = vmatpush2.msra.mxu0 0.0
    %6280 = vmatprep.subr.mxu0 0.0
    %6281 = vmatpush2.msra.mxu0 0.0
    %6282 = vmatprep.subr.mxu0 0.0
    %6283 = vmatpush2.msra.mxu0 0.0
    %6284 = vmatprep.subr.mxu0 0.0
    %6285 = vmatpush2.msra.mxu0 0.0
    %6286 = vmatprep.subr.mxu0 0.0
    %6287 = vmatpush2.msra.mxu0 0.0
    %6288 = vmatprep.subr.mxu0 0.0
    %6289 = vmatpush2.msra.mxu0 0.0
    %6290 = vmatprep.subr.mxu0 0.0
    %6291 = vmatpush2.msra.mxu0 0.0
    %6292 = vmatprep.subr.mxu0 0.0
    %6293 = vmatpush2.msra.mxu0 0.0
    %6294 = vmatprep.subr.mxu0 0.0
    %6295 = vmatpush2.msra.mxu0 0.0
    %6296 = vmatprep.subr.mxu0 0.0
    %6297 = vmatpush2.msra.mxu0 0.0
    %6298 = vmatprep.subr.mxu0 0.0
    %6299 = vmatpush2.msra.mxu0 0.0
    %6300 = vmatprep.subr.mxu0 0.0
    %6301 = vmatpush2.msra.mxu0 0.0
    %6302 = vmatprep.subr.mxu0 0.0
    %6303 = vmatpush2.msra.mxu0 0.0
    %6304 = vmatprep.subr.mxu0 0.0
    %6305 = vmatpush2.msra.mxu0 0.0
    %6306 = vmatprep.subr.mxu0 0.0
    %6307 = vmatpush2.msra.mxu0 0.0
    %6308 = vmatprep.mubr.f32.mxu0 0.0
    %6309 = vmatmul.mubr.f32.gmra.mxu0 %v6101
    %v6310 = vpop.f32.mrf.mxu0
    %v6311 = vadd.f32 0.0, %v6310
    %v6312 = vpop.f32.mrf.mxu0
    %v6313 = vadd.f32 0.0, %v6312
    %6314 = vdwg.mxu0
    %6315 = vmatprep.subr.mxu0 %v246
    %6316 = vmatpush1.msra.mxu0 %v245
    %6317 = vmatprep.subr.mxu0 %v242
    %6318 = vmatpush1.msra.mxu0 %v241
    %6319 = vmatprep.subr.mxu0 %v238
    %6320 = vmatpush1.msra.mxu0 %v237
    %6321 = vmatprep.subr.mxu0 %v234
    %6322 = vmatpush1.msra.mxu0 %v233
    %6323 = vmatprep.subr.mxu0 %v230
    %6324 = vmatpush1.msra.mxu0 %v229
    %6325 = vmatprep.subr.mxu0 %v226
    %6326 = vmatpush1.msra.mxu0 %v225
    %6327 = vmatprep.subr.mxu0 %v222
    %6328 = vmatpush1.msra.mxu0 %v221
    %6329 = vmatprep.subr.mxu0 %v218
    %6330 = vmatpush1.msra.mxu0 %v217
    %6331 = vmatprep.subr.mxu0 %v214
    %6332 = vmatpush1.msra.mxu0 %v213
    %6333 = vmatprep.subr.mxu0 %v210
    %6334 = vmatpush1.msra.mxu0 %v209
    %6335 = vmatprep.subr.mxu0 %v206
    %6336 = vmatpush1.msra.mxu0 %v205
    %6337 = vmatprep.subr.mxu0 %v202
    %6338 = vmatpush1.msra.mxu0 %v201
    %6339 = vmatprep.subr.mxu0 %v198
    %6340 = vmatpush1.msra.mxu0 %v197
    %6341 = vmatprep.subr.mxu0 %v194
    %6342 = vmatpush1.msra.mxu0 %v193
    %6343 = vmatprep.subr.mxu0 %v190
    %6344 = vmatpush1.msra.mxu0 %v189
    %6345 = vmatprep.subr.mxu0 %v186
    %6346 = vmatpush1.msra.mxu0 %v185
    %6347 = vmatprep.subr.mxu0 0.0
    %6348 = vmatpush2.msra.mxu0 0.0
    %6349 = vmatprep.subr.mxu0 0.0
    %6350 = vmatpush2.msra.mxu0 0.0
    %6351 = vmatprep.subr.mxu0 0.0
    %6352 = vmatpush2.msra.mxu0 0.0
    %6353 = vmatprep.subr.mxu0 0.0
    %6354 = vmatpush2.msra.mxu0 0.0
    %6355 = vmatprep.subr.mxu0 0.0
    %6356 = vmatpush2.msra.mxu0 0.0
    %6357 = vmatprep.subr.mxu0 0.0
    %6358 = vmatpush2.msra.mxu0 0.0
    %6359 = vmatprep.subr.mxu0 0.0
    %6360 = vmatpush2.msra.mxu0 0.0
    %6361 = vmatprep.subr.mxu0 0.0
    %6362 = vmatpush2.msra.mxu0 0.0
    %6363 = vmatprep.subr.mxu0 0.0
    %6364 = vmatpush2.msra.mxu0 0.0
    %6365 = vmatprep.subr.mxu0 0.0
    %6366 = vmatpush2.msra.mxu0 0.0
    %6367 = vmatprep.subr.mxu0 0.0
    %6368 = vmatpush2.msra.mxu0 0.0
    %6369 = vmatprep.subr.mxu0 0.0
    %6370 = vmatpush2.msra.mxu0 0.0
    %6371 = vmatprep.subr.mxu0 0.0
    %6372 = vmatpush2.msra.mxu0 0.0
    %6373 = vmatprep.subr.mxu0 0.0
    %6374 = vmatpush2.msra.mxu0 0.0
    %6375 = vmatprep.subr.mxu0 0.0
    %6376 = vmatpush2.msra.mxu0 0.0
    %6377 = vmatprep.subr.mxu0 0.0
    %6378 = vmatpush2.msra.mxu0 0.0
    %6379 = vmatprep.mubr.f32.mxu0 0.0
    %6380 = vmatmul.mubr.f32.gmra.mxu0 %v6101
    %v6381 = vpop.f32.mrf.mxu0
    %v6382 = vadd.f32 0.0, %v6381
    %v6383 = vpop.f32.mrf.mxu0
    %v6384 = vadd.f32 0.0, %v6383
    %6385 = vdwg.mxu0
    %v6386 = vadd.f32 %v6169, %v6311
    %v6387 = vadd.f32 %v6171, %v6313
    %v6388 = vadd.f32 %v6240, %v6382
    %v6389 = vadd.f32 %v6242, %v6384
    %v6390 = vxor.u32 %v6386, 2147483648
    %v6391 = vmul.f32 %v6390, 1.442695
    %v6392 = vpow.pop %v6391
    %v6393 = vadd.f32 %v6392, 1.0
    %v6394 = vrcp.pop %v6393
    %v6395 = vmul.f32 1.0, %v6394
    %v6396 = vxor.u32 %v6387, 2147483648
    %v6397 = vmul.f32 %v6396, 1.442695
    %v6398 = vpow.pop %v6397
    %v6399 = vadd.f32 %v6398, 1.0
    %v6400 = vrcp.pop %v6399
    %v6401 = vmul.f32 1.0, %v6400
    %v6402 = vtanh.pop %v6388
    %v6403 = vxor.u32 %v6389, 2147483648
    %v6404 = vmul.f32 %v6403, 1.442695
    %v6405 = vpow.pop %v6404
    %v6406 = vadd.f32 %v6405, 1.0
    %v6407 = vrcp.pop %v6406
    %v6408 = vmul.f32 1.0, %v6407
    %v6409 = vmul.f32 %v6401, %v5777
    %v6410 = vmul.f32 %v6395, %v6402
    %v6411 = vadd.f32 %v6409, %v6410
    %v6412 = vtanh.pop %v6411
    %v6413 = vmul.f32 %v6408, %v6412
    %v6414 = vmul.f32 %v6413, %v446
    %6415 = vadd.xlane.f32.xlu0 %v6414
    %v6416 = vpop.xlane.xlu0 %6415
    %v6417 = vadd.f32 %v6416, %v453
    %6419 = vrot.lane.b32.xlu0 %v6417, 10
    %v6420 = vpop.permute.xlu0 %6419
    %vm6422 = vcmask 89168
    %6423 = vst.msk [vmem:[#allocation14] sm:$0xff] %vm6422, %v6420
    %6424 = vmatprep.subr.mxu0 %v372
    %6425 = vmatpush1.msra.mxu0 %v371
    %6426 = vmatprep.subr.mxu0 %v368
    %6427 = vmatpush1.msra.mxu0 %v367
    %6428 = vmatprep.subr.mxu0 %v364
    %6429 = vmatpush1.msra.mxu0 %v363
    %6430 = vmatprep.subr.mxu0 %v360
    %6431 = vmatpush1.msra.mxu0 %v359
    %6432 = vmatprep.subr.mxu0 %v356
    %6433 = vmatpush1.msra.mxu0 %v355
    %6434 = vmatprep.subr.mxu0 %v352
    %6435 = vmatpush1.msra.mxu0 %v351
    %6436 = vmatprep.subr.mxu0 %v348
    %6437 = vmatpush1.msra.mxu0 %v347
    %6438 = vmatprep.subr.mxu0 %v344
    %6439 = vmatpush1.msra.mxu0 %v343
    %6440 = vmatprep.subr.mxu0 %v340
    %6441 = vmatpush1.msra.mxu0 %v339
    %6442 = vmatprep.subr.mxu0 %v336
    %6443 = vmatpush1.msra.mxu0 %v335
    %6444 = vmatprep.subr.mxu0 %v332
    %6445 = vmatpush1.msra.mxu0 %v331
    %6446 = vmatprep.subr.mxu0 %v328
    %6447 = vmatpush1.msra.mxu0 %v327
    %6448 = vmatprep.subr.mxu0 %v324
    %6449 = vmatpush1.msra.mxu0 %v323
    %6450 = vmatprep.subr.mxu0 %v320
    %6451 = vmatpush1.msra.mxu0 %v319
    %6452 = vmatprep.subr.mxu0 %v316
    %6453 = vmatpush1.msra.mxu0 %v315
    %6454 = vmatprep.subr.mxu0 %v312
    %6455 = vmatpush1.msra.mxu0 %v311
    %6456 = vmatprep.subr.mxu0 0.0
    %6457 = vmatpush2.msra.mxu0 0.0
    %6458 = vmatprep.subr.mxu0 0.0
    %6459 = vmatpush2.msra.mxu0 0.0
    %6460 = vmatprep.subr.mxu0 0.0
    %6461 = vmatpush2.msra.mxu0 0.0
    %6462 = vmatprep.subr.mxu0 0.0
    %6463 = vmatpush2.msra.mxu0 0.0
    %6464 = vmatprep.subr.mxu0 0.0
    %6465 = vmatpush2.msra.mxu0 0.0
    %6466 = vmatprep.subr.mxu0 0.0
    %6467 = vmatpush2.msra.mxu0 0.0
    %6468 = vmatprep.subr.mxu0 0.0
    %6469 = vmatpush2.msra.mxu0 0.0
    %6470 = vmatprep.subr.mxu0 0.0
    %6471 = vmatpush2.msra.mxu0 0.0
    %6472 = vmatprep.subr.mxu0 0.0
    %6473 = vmatpush2.msra.mxu0 0.0
    %6474 = vmatprep.subr.mxu0 0.0
    %6475 = vmatpush2.msra.mxu0 0.0
    %6476 = vmatprep.subr.mxu0 0.0
    %6477 = vmatpush2.msra.mxu0 0.0
    %6478 = vmatprep.subr.mxu0 0.0
    %6479 = vmatpush2.msra.mxu0 0.0
    %6480 = vmatprep.subr.mxu0 0.0
    %6481 = vmatpush2.msra.mxu0 0.0
    %6482 = vmatprep.subr.mxu0 0.0
    %6483 = vmatpush2.msra.mxu0 0.0
    %6484 = vmatprep.subr.mxu0 0.0
    %6485 = vmatpush2.msra.mxu0 0.0
    %6486 = vmatprep.subr.mxu0 0.0
    %6487 = vmatpush2.msra.mxu0 0.0
    %6488 = vmatprep.mubr.f32.mxu0 0.0
    %6489 = vmatmul.mubr.f32.gmra.mxu0 %v6413
    %v6490 = vpop.f32.mrf.mxu0
    %v6491 = vadd.f32 %v424, %v6490
    %v6492 = vpop.f32.mrf.mxu0
    %v6493 = vadd.f32 %v428, %v6492
    %6494 = vdwg.mxu0
    %6495 = vmatprep.subr.mxu0 %v374
    %6496 = vmatpush1.msra.mxu0 %v373
    %6497 = vmatprep.subr.mxu0 %v370
    %6498 = vmatpush1.msra.mxu0 %v369
    %6499 = vmatprep.subr.mxu0 %v366
    %6500 = vmatpush1.msra.mxu0 %v365
    %6501 = vmatprep.subr.mxu0 %v362
    %6502 = vmatpush1.msra.mxu0 %v361
    %6503 = vmatprep.subr.mxu0 %v358
    %6504 = vmatpush1.msra.mxu0 %v357
    %6505 = vmatprep.subr.mxu0 %v354
    %6506 = vmatpush1.msra.mxu0 %v353
    %6507 = vmatprep.subr.mxu0 %v350
    %6508 = vmatpush1.msra.mxu0 %v349
    %6509 = vmatprep.subr.mxu0 %v346
    %6510 = vmatpush1.msra.mxu0 %v345
    %6511 = vmatprep.subr.mxu0 %v342
    %6512 = vmatpush1.msra.mxu0 %v341
    %6513 = vmatprep.subr.mxu0 %v338
    %6514 = vmatpush1.msra.mxu0 %v337
    %6515 = vmatprep.subr.mxu0 %v334
    %6516 = vmatpush1.msra.mxu0 %v333
    %6517 = vmatprep.subr.mxu0 %v330
    %6518 = vmatpush1.msra.mxu0 %v329
    %6519 = vmatprep.subr.mxu0 %v326
    %6520 = vmatpush1.msra.mxu0 %v325
    %6521 = vmatprep.subr.mxu0 %v322
    %6522 = vmatpush1.msra.mxu0 %v321
    %6523 = vmatprep.subr.mxu0 %v318
    %6524 = vmatpush1.msra.mxu0 %v317
    %6525 = vmatprep.subr.mxu0 %v314
    %6526 = vmatpush1.msra.mxu0 %v313
    %6527 = vmatprep.subr.mxu0 0.0
    %6528 = vmatpush2.msra.mxu0 0.0
    %6529 = vmatprep.subr.mxu0 0.0
    %6530 = vmatpush2.msra.mxu0 0.0
    %6531 = vmatprep.subr.mxu0 0.0
    %6532 = vmatpush2.msra.mxu0 0.0
    %6533 = vmatprep.subr.mxu0 0.0
    %6534 = vmatpush2.msra.mxu0 0.0
    %6535 = vmatprep.subr.mxu0 0.0
    %6536 = vmatpush2.msra.mxu0 0.0
    %6537 = vmatprep.subr.mxu0 0.0
    %6538 = vmatpush2.msra.mxu0 0.0
    %6539 = vmatprep.subr.mxu0 0.0
    %6540 = vmatpush2.msra.mxu0 0.0
    %6541 = vmatprep.subr.mxu0 0.0
    %6542 = vmatpush2.msra.mxu0 0.0
    %6543 = vmatprep.subr.mxu0 0.0
    %6544 = vmatpush2.msra.mxu0 0.0
    %6545 = vmatprep.subr.mxu0 0.0
    %6546 = vmatpush2.msra.mxu0 0.0
    %6547 = vmatprep.subr.mxu0 0.0
    %6548 = vmatpush2.msra.mxu0 0.0
    %6549 = vmatprep.subr.mxu0 0.0
    %6550 = vmatpush2.msra.mxu0 0.0
    %6551 = vmatprep.subr.mxu0 0.0
    %6552 = vmatpush2.msra.mxu0 0.0
    %6553 = vmatprep.subr.mxu0 0.0
    %6554 = vmatpush2.msra.mxu0 0.0
    %6555 = vmatprep.subr.mxu0 0.0
    %6556 = vmatpush2.msra.mxu0 0.0
    %6557 = vmatprep.subr.mxu0 0.0
    %6558 = vmatpush2.msra.mxu0 0.0
    %6559 = vmatprep.mubr.f32.mxu0 0.0
    %6560 = vmatmul.mubr.f32.gmra.mxu0 %v6413
    %v6561 = vpop.f32.mrf.mxu0
    %v6562 = vadd.f32 %v432, %v6561
    %v6563 = vpop.f32.mrf.mxu0
    %v6564 = vadd.f32 %v436, %v6563
    %6565 = vdwg.mxu0
    %6566 = vmatprep.subr.mxu0 %v180
    %6567 = vmatpush1.msra.mxu0 %v179
    %6568 = vmatprep.subr.mxu0 %v176
    %6569 = vmatpush1.msra.mxu0 %v175
    %6570 = vmatprep.subr.mxu0 %v172
    %6571 = vmatpush1.msra.mxu0 %v171
    %6572 = vmatprep.subr.mxu0 %v168
    %6573 = vmatpush1.msra.mxu0 %v167
    %6574 = vmatprep.subr.mxu0 %v164
    %6575 = vmatpush1.msra.mxu0 %v163
    %6576 = vmatprep.subr.mxu0 %v160
    %6577 = vmatpush1.msra.mxu0 %v159
    %6578 = vmatprep.subr.mxu0 %v156
    %6579 = vmatpush1.msra.mxu0 %v155
    %6580 = vmatprep.subr.mxu0 %v152
    %6581 = vmatpush1.msra.mxu0 %v151
    %6582 = vmatprep.subr.mxu0 %v148
    %6583 = vmatpush1.msra.mxu0 %v147
    %6584 = vmatprep.subr.mxu0 %v144
    %6585 = vmatpush1.msra.mxu0 %v143
    %6586 = vmatprep.subr.mxu0 %v140
    %6587 = vmatpush1.msra.mxu0 %v139
    %6588 = vmatprep.subr.mxu0 %v136
    %6589 = vmatpush1.msra.mxu0 %v135
    %6590 = vmatprep.subr.mxu0 %v132
    %6591 = vmatpush1.msra.mxu0 %v131
    %6592 = vmatprep.subr.mxu0 %v128
    %6593 = vmatpush1.msra.mxu0 %v127
    %6594 = vmatprep.subr.mxu0 %v124
    %6595 = vmatpush1.msra.mxu0 %v123
    %6596 = vmatprep.subr.mxu0 %v120
    %6597 = vmatpush1.msra.mxu0 %v119
    %6598 = vmatprep.subr.mxu0 0.0
    %6599 = vmatpush2.msra.mxu0 0.0
    %6600 = vmatprep.subr.mxu0 0.0
    %6601 = vmatpush2.msra.mxu0 0.0
    %6602 = vmatprep.subr.mxu0 0.0
    %6603 = vmatpush2.msra.mxu0 0.0
    %6604 = vmatprep.subr.mxu0 0.0
    %6605 = vmatpush2.msra.mxu0 0.0
    %6606 = vmatprep.subr.mxu0 0.0
    %6607 = vmatpush2.msra.mxu0 0.0
    %6608 = vmatprep.subr.mxu0 0.0
    %6609 = vmatpush2.msra.mxu0 0.0
    %6610 = vmatprep.subr.mxu0 0.0
    %6611 = vmatpush2.msra.mxu0 0.0
    %6612 = vmatprep.subr.mxu0 0.0
    %6613 = vmatpush2.msra.mxu0 0.0
    %6614 = vmatprep.subr.mxu0 0.0
    %6615 = vmatpush2.msra.mxu0 0.0
    %6616 = vmatprep.subr.mxu0 0.0
    %6617 = vmatpush2.msra.mxu0 0.0
    %6618 = vmatprep.subr.mxu0 0.0
    %6619 = vmatpush2.msra.mxu0 0.0
    %6620 = vmatprep.subr.mxu0 0.0
    %6621 = vmatpush2.msra.mxu0 0.0
    %6622 = vmatprep.subr.mxu0 0.0
    %6623 = vmatpush2.msra.mxu0 0.0
    %6624 = vmatprep.subr.mxu0 0.0
    %6625 = vmatpush2.msra.mxu0 0.0
    %6626 = vmatprep.subr.mxu0 0.0
    %6627 = vmatpush2.msra.mxu0 0.0
    %6628 = vmatprep.subr.mxu0 0.0
    %6629 = vmatpush2.msra.mxu0 0.0
    %6630 = vmatprep.mubr.f32.mxu0 0.0
    %6631 = vmatmul.mubr.f32.gmra.mxu0 %v6101
    %v6632 = vpop.f32.mrf.mxu0
    %v6633 = vadd.f32 0.0, %v6632
    %v6634 = vpop.f32.mrf.mxu0
    %v6635 = vadd.f32 0.0, %v6634
    %6636 = vdwg.mxu0
    %6637 = vmatprep.subr.mxu0 %v182
    %6638 = vmatpush1.msra.mxu0 %v181
    %6639 = vmatprep.subr.mxu0 %v178
    %6640 = vmatpush1.msra.mxu0 %v177
    %6641 = vmatprep.subr.mxu0 %v174
    %6642 = vmatpush1.msra.mxu0 %v173
    %6643 = vmatprep.subr.mxu0 %v170
    %6644 = vmatpush1.msra.mxu0 %v169
    %6645 = vmatprep.subr.mxu0 %v166
    %6646 = vmatpush1.msra.mxu0 %v165
    %6647 = vmatprep.subr.mxu0 %v162
    %6648 = vmatpush1.msra.mxu0 %v161
    %6649 = vmatprep.subr.mxu0 %v158
    %6650 = vmatpush1.msra.mxu0 %v157
    %6651 = vmatprep.subr.mxu0 %v154
    %6652 = vmatpush1.msra.mxu0 %v153
    %6653 = vmatprep.subr.mxu0 %v150
    %6654 = vmatpush1.msra.mxu0 %v149
    %6655 = vmatprep.subr.mxu0 %v146
    %6656 = vmatpush1.msra.mxu0 %v145
    %6657 = vmatprep.subr.mxu0 %v142
    %6658 = vmatpush1.msra.mxu0 %v141
    %6659 = vmatprep.subr.mxu0 %v138
    %6660 = vmatpush1.msra.mxu0 %v137
    %6661 = vmatprep.subr.mxu0 %v134
    %6662 = vmatpush1.msra.mxu0 %v133
    %6663 = vmatprep.subr.mxu0 %v130
    %6664 = vmatpush1.msra.mxu0 %v129
    %6665 = vmatprep.subr.mxu0 %v126
    %6666 = vmatpush1.msra.mxu0 %v125
    %6667 = vmatprep.subr.mxu0 %v122
    %6668 = vmatpush1.msra.mxu0 %v121
    %6669 = vmatprep.subr.mxu0 0.0
    %6670 = vmatpush2.msra.mxu0 0.0
    %6671 = vmatprep.subr.mxu0 0.0
    %6672 = vmatpush2.msra.mxu0 0.0
    %6673 = vmatprep.subr.mxu0 0.0
    %6674 = vmatpush2.msra.mxu0 0.0
    %6675 = vmatprep.subr.mxu0 0.0
    %6676 = vmatpush2.msra.mxu0 0.0
    %6677 = vmatprep.subr.mxu0 0.0
    %6678 = vmatpush2.msra.mxu0 0.0
    %6679 = vmatprep.subr.mxu0 0.0
    %6680 = vmatpush2.msra.mxu0 0.0
    %6681 = vmatprep.subr.mxu0 0.0
    %6682 = vmatpush2.msra.mxu0 0.0
    %6683 = vmatprep.subr.mxu0 0.0
    %6684 = vmatpush2.msra.mxu0 0.0
    %6685 = vmatprep.subr.mxu0 0.0
    %6686 = vmatpush2.msra.mxu0 0.0
    %6687 = vmatprep.subr.mxu0 0.0
    %6688 = vmatpush2.msra.mxu0 0.0
    %6689 = vmatprep.subr.mxu0 0.0
    %6690 = vmatpush2.msra.mxu0 0.0
    %6691 = vmatprep.subr.mxu0 0.0
    %6692 = vmatpush2.msra.mxu0 0.0
    %6693 = vmatprep.subr.mxu0 0.0
    %6694 = vmatpush2.msra.mxu0 0.0
    %6695 = vmatprep.subr.mxu0 0.0
    %6696 = vmatpush2.msra.mxu0 0.0
    %6697 = vmatprep.subr.mxu0 0.0
    %6698 = vmatpush2.msra.mxu0 0.0
    %6699 = vmatprep.subr.mxu0 0.0
    %6700 = vmatpush2.msra.mxu0 0.0
    %6701 = vmatprep.mubr.f32.mxu0 0.0
    %6702 = vmatmul.mubr.f32.gmra.mxu0 %v6101
    %v6703 = vpop.f32.mrf.mxu0
    %v6704 = vadd.f32 0.0, %v6703
    %v6705 = vpop.f32.mrf.mxu0
    %v6706 = vadd.f32 0.0, %v6705
    %6707 = vdwg.mxu0
    %v6708 = vadd.f32 %v6491, %v6633
    %v6709 = vadd.f32 %v6493, %v6635
    %v6710 = vadd.f32 %v6562, %v6704
    %v6711 = vadd.f32 %v6564, %v6706
    %v6712 = vxor.u32 %v6708, 2147483648
    %v6713 = vmul.f32 %v6712, 1.442695
    %v6714 = vpow.pop %v6713
    %v6715 = vadd.f32 %v6714, 1.0
    %v6716 = vrcp.pop %v6715
    %v6717 = vmul.f32 1.0, %v6716
    %v6718 = vxor.u32 %v6709, 2147483648
    %v6719 = vmul.f32 %v6718, 1.442695
    %v6720 = vpow.pop %v6719
    %v6721 = vadd.f32 %v6720, 1.0
    %v6722 = vrcp.pop %v6721
    %v6723 = vmul.f32 1.0, %v6722
    %v6724 = vtanh.pop %v6710
    %v6725 = vxor.u32 %v6711, 2147483648
    %v6726 = vmul.f32 %v6725, 1.442695
    %v6727 = vpow.pop %v6726
    %v6728 = vadd.f32 %v6727, 1.0
    %v6729 = vrcp.pop %v6728
    %v6730 = vmul.f32 1.0, %v6729
    %v6731 = vmul.f32 %v6723, %v6099
    %v6732 = vmul.f32 %v6717, %v6724
    %v6733 = vadd.f32 %v6731, %v6732
    %v6734 = vtanh.pop %v6733
    %v6735 = vmul.f32 %v6730, %v6734
    %6736 = vmatprep.subr.mxu0 %v308
    %6737 = vmatpush1.msra.mxu0 %v307
    %6738 = vmatprep.subr.mxu0 %v304
    %6739 = vmatpush1.msra.mxu0 %v303
    %6740 = vmatprep.subr.mxu0 %v300
    %6741 = vmatpush1.msra.mxu0 %v299
    %6742 = vmatprep.subr.mxu0 %v296
    %6743 = vmatpush1.msra.mxu0 %v295
    %6744 = vmatprep.subr.mxu0 %v292
    %6745 = vmatpush1.msra.mxu0 %v291
    %6746 = vmatprep.subr.mxu0 %v288
    %6747 = vmatpush1.msra.mxu0 %v287
    %6748 = vmatprep.subr.mxu0 %v284
    %6749 = vmatpush1.msra.mxu0 %v283
    %6750 = vmatprep.subr.mxu0 %v280
    %6751 = vmatpush1.msra.mxu0 %v279
    %6752 = vmatprep.subr.mxu0 %v276
    %6753 = vmatpush1.msra.mxu0 %v275
    %6754 = vmatprep.subr.mxu0 %v272
    %6755 = vmatpush1.msra.mxu0 %v271
    %6756 = vmatprep.subr.mxu0 %v268
    %6757 = vmatpush1.msra.mxu0 %v267
    %6758 = vmatprep.subr.mxu0 %v264
    %6759 = vmatpush1.msra.mxu0 %v263
    %6760 = vmatprep.subr.mxu0 %v260
    %6761 = vmatpush1.msra.mxu0 %v259
    %6762 = vmatprep.subr.mxu0 %v256
    %6763 = vmatpush1.msra.mxu0 %v255
    %6764 = vmatprep.subr.mxu0 %v252
    %6765 = vmatpush1.msra.mxu0 %v251
    %6766 = vmatprep.subr.mxu0 %v248
    %6767 = vmatpush1.msra.mxu0 %v247
    %6768 = vmatprep.subr.mxu0 0.0
    %6769 = vmatpush2.msra.mxu0 0.0
    %6770 = vmatprep.subr.mxu0 0.0
    %6771 = vmatpush2.msra.mxu0 0.0
    %6772 = vmatprep.subr.mxu0 0.0
    %6773 = vmatpush2.msra.mxu0 0.0
    %6774 = vmatprep.subr.mxu0 0.0
    %6775 = vmatpush2.msra.mxu0 0.0
    %6776 = vmatprep.subr.mxu0 0.0
    %6777 = vmatpush2.msra.mxu0 0.0
    %6778 = vmatprep.subr.mxu0 0.0
    %6779 = vmatpush2.msra.mxu0 0.0
    %6780 = vmatprep.subr.mxu0 0.0
    %6781 = vmatpush2.msra.mxu0 0.0
    %6782 = vmatprep.subr.mxu0 0.0
    %6783 = vmatpush2.msra.mxu0 0.0
    %6784 = vmatprep.subr.mxu0 0.0
    %6785 = vmatpush2.msra.mxu0 0.0
    %6786 = vmatprep.subr.mxu0 0.0
    %6787 = vmatpush2.msra.mxu0 0.0
    %6788 = vmatprep.subr.mxu0 0.0
    %6789 = vmatpush2.msra.mxu0 0.0
    %6790 = vmatprep.subr.mxu0 0.0
    %6791 = vmatpush2.msra.mxu0 0.0
    %6792 = vmatprep.subr.mxu0 0.0
    %6793 = vmatpush2.msra.mxu0 0.0
    %6794 = vmatprep.subr.mxu0 0.0
    %6795 = vmatpush2.msra.mxu0 0.0
    %6796 = vmatprep.subr.mxu0 0.0
    %6797 = vmatpush2.msra.mxu0 0.0
    %6798 = vmatprep.subr.mxu0 0.0
    %6799 = vmatpush2.msra.mxu0 0.0
    %6800 = vmatprep.mubr.f32.mxu0 0.0
    %6801 = vmatmul.mubr.f32.gmra.mxu0 %v6413
    %v6802 = vpop.f32.mrf.mxu0
    %v6803 = vadd.f32 %v402, %v6802
    %v6804 = vpop.f32.mrf.mxu0
    %v6805 = vadd.f32 %v406, %v6804
    %6806 = vdwg.mxu0
    %6807 = vmatprep.subr.mxu0 %v310
    %6808 = vmatpush1.msra.mxu0 %v309
    %6809 = vmatprep.subr.mxu0 %v306
    %6810 = vmatpush1.msra.mxu0 %v305
    %6811 = vmatprep.subr.mxu0 %v302
    %6812 = vmatpush1.msra.mxu0 %v301
    %6813 = vmatprep.subr.mxu0 %v298
    %6814 = vmatpush1.msra.mxu0 %v297
    %6815 = vmatprep.subr.mxu0 %v294
    %6816 = vmatpush1.msra.mxu0 %v293
    %6817 = vmatprep.subr.mxu0 %v290
    %6818 = vmatpush1.msra.mxu0 %v289
    %6819 = vmatprep.subr.mxu0 %v286
    %6820 = vmatpush1.msra.mxu0 %v285
    %6821 = vmatprep.subr.mxu0 %v282
    %6822 = vmatpush1.msra.mxu0 %v281
    %6823 = vmatprep.subr.mxu0 %v278
    %6824 = vmatpush1.msra.mxu0 %v277
    %6825 = vmatprep.subr.mxu0 %v274
    %6826 = vmatpush1.msra.mxu0 %v273
    %6827 = vmatprep.subr.mxu0 %v270
    %6828 = vmatpush1.msra.mxu0 %v269
    %6829 = vmatprep.subr.mxu0 %v266
    %6830 = vmatpush1.msra.mxu0 %v265
    %6831 = vmatprep.subr.mxu0 %v262
    %6832 = vmatpush1.msra.mxu0 %v261
    %6833 = vmatprep.subr.mxu0 %v258
    %6834 = vmatpush1.msra.mxu0 %v257
    %6835 = vmatprep.subr.mxu0 %v254
    %6836 = vmatpush1.msra.mxu0 %v253
    %6837 = vmatprep.subr.mxu0 %v250
    %6838 = vmatpush1.msra.mxu0 %v249
    %6839 = vmatprep.subr.mxu0 0.0
    %6840 = vmatpush2.msra.mxu0 0.0
    %6841 = vmatprep.subr.mxu0 0.0
    %6842 = vmatpush2.msra.mxu0 0.0
    %6843 = vmatprep.subr.mxu0 0.0
    %6844 = vmatpush2.msra.mxu0 0.0
    %6845 = vmatprep.subr.mxu0 0.0
    %6846 = vmatpush2.msra.mxu0 0.0
    %6847 = vmatprep.subr.mxu0 0.0
    %6848 = vmatpush2.msra.mxu0 0.0
    %6849 = vmatprep.subr.mxu0 0.0
    %6850 = vmatpush2.msra.mxu0 0.0
    %6851 = vmatprep.subr.mxu0 0.0
    %6852 = vmatpush2.msra.mxu0 0.0
    %6853 = vmatprep.subr.mxu0 0.0
    %6854 = vmatpush2.msra.mxu0 0.0
    %6855 = vmatprep.subr.mxu0 0.0
    %6856 = vmatpush2.msra.mxu0 0.0
    %6857 = vmatprep.subr.mxu0 0.0
    %6858 = vmatpush2.msra.mxu0 0.0
    %6859 = vmatprep.subr.mxu0 0.0
    %6860 = vmatpush2.msra.mxu0 0.0
    %6861 = vmatprep.subr.mxu0 0.0
    %6862 = vmatpush2.msra.mxu0 0.0
    %6863 = vmatprep.subr.mxu0 0.0
    %6864 = vmatpush2.msra.mxu0 0.0
    %6865 = vmatprep.subr.mxu0 0.0
    %6866 = vmatpush2.msra.mxu0 0.0
    %6867 = vmatprep.subr.mxu0 0.0
    %6868 = vmatpush2.msra.mxu0 0.0
    %6869 = vmatprep.subr.mxu0 0.0
    %6870 = vmatpush2.msra.mxu0 0.0
    %6871 = vmatprep.mubr.f32.mxu0 0.0
    %6872 = vmatmul.mubr.f32.gmra.mxu0 %v6413
    %v6873 = vpop.f32.mrf.mxu0
    %v6874 = vadd.f32 %v410, %v6873
    %v6875 = vpop.f32.mrf.mxu0
    %v6876 = vadd.f32 %v414, %v6875
    %6877 = vdwg.mxu0
    %6878 = vmatprep.subr.mxu0 %v244
    %6879 = vmatpush1.msra.mxu0 %v243
    %6880 = vmatprep.subr.mxu0 %v240
    %6881 = vmatpush1.msra.mxu0 %v239
    %6882 = vmatprep.subr.mxu0 %v236
    %6883 = vmatpush1.msra.mxu0 %v235
    %6884 = vmatprep.subr.mxu0 %v232
    %6885 = vmatpush1.msra.mxu0 %v231
    %6886 = vmatprep.subr.mxu0 %v228
    %6887 = vmatpush1.msra.mxu0 %v227
    %6888 = vmatprep.subr.mxu0 %v224
    %6889 = vmatpush1.msra.mxu0 %v223
    %6890 = vmatprep.subr.mxu0 %v220
    %6891 = vmatpush1.msra.mxu0 %v219
    %6892 = vmatprep.subr.mxu0 %v216
    %6893 = vmatpush1.msra.mxu0 %v215
    %6894 = vmatprep.subr.mxu0 %v212
    %6895 = vmatpush1.msra.mxu0 %v211
    %6896 = vmatprep.subr.mxu0 %v208
    %6897 = vmatpush1.msra.mxu0 %v207
    %6898 = vmatprep.subr.mxu0 %v204
    %6899 = vmatpush1.msra.mxu0 %v203
    %6900 = vmatprep.subr.mxu0 %v200
    %6901 = vmatpush1.msra.mxu0 %v199
    %6902 = vmatprep.subr.mxu0 %v196
    %6903 = vmatpush1.msra.mxu0 %v195
    %6904 = vmatprep.subr.mxu0 %v192
    %6905 = vmatpush1.msra.mxu0 %v191
    %6906 = vmatprep.subr.mxu0 %v188
    %6907 = vmatpush1.msra.mxu0 %v187
    %6908 = vmatprep.subr.mxu0 %v184
    %6909 = vmatpush1.msra.mxu0 %v183
    %6910 = vmatprep.subr.mxu0 0.0
    %6911 = vmatpush2.msra.mxu0 0.0
    %6912 = vmatprep.subr.mxu0 0.0
    %6913 = vmatpush2.msra.mxu0 0.0
    %6914 = vmatprep.subr.mxu0 0.0
    %6915 = vmatpush2.msra.mxu0 0.0
    %6916 = vmatprep.subr.mxu0 0.0
    %6917 = vmatpush2.msra.mxu0 0.0
    %6918 = vmatprep.subr.mxu0 0.0
    %6919 = vmatpush2.msra.mxu0 0.0
    %6920 = vmatprep.subr.mxu0 0.0
    %6921 = vmatpush2.msra.mxu0 0.0
    %6922 = vmatprep.subr.mxu0 0.0
    %6923 = vmatpush2.msra.mxu0 0.0
    %6924 = vmatprep.subr.mxu0 0.0
    %6925 = vmatpush2.msra.mxu0 0.0
    %6926 = vmatprep.subr.mxu0 0.0
    %6927 = vmatpush2.msra.mxu0 0.0
    %6928 = vmatprep.subr.mxu0 0.0
    %6929 = vmatpush2.msra.mxu0 0.0
    %6930 = vmatprep.subr.mxu0 0.0
    %6931 = vmatpush2.msra.mxu0 0.0
    %6932 = vmatprep.subr.mxu0 0.0
    %6933 = vmatpush2.msra.mxu0 0.0
    %6934 = vmatprep.subr.mxu0 0.0
    %6935 = vmatpush2.msra.mxu0 0.0
    %6936 = vmatprep.subr.mxu0 0.0
    %6937 = vmatpush2.msra.mxu0 0.0
    %6938 = vmatprep.subr.mxu0 0.0
    %6939 = vmatpush2.msra.mxu0 0.0
    %6940 = vmatprep.subr.mxu0 0.0
    %6941 = vmatpush2.msra.mxu0 0.0
    %6942 = vmatprep.mubr.f32.mxu0 0.0
    %6943 = vmatmul.mubr.f32.gmra.mxu0 %v6735
    %v6944 = vpop.f32.mrf.mxu0
    %v6945 = vadd.f32 0.0, %v6944
    %v6946 = vpop.f32.mrf.mxu0
    %v6947 = vadd.f32 0.0, %v6946
    %6948 = vdwg.mxu0
    %6949 = vmatprep.subr.mxu0 %v246
    %6950 = vmatpush1.msra.mxu0 %v245
    %6951 = vmatprep.subr.mxu0 %v242
    %6952 = vmatpush1.msra.mxu0 %v241
    %6953 = vmatprep.subr.mxu0 %v238
    %6954 = vmatpush1.msra.mxu0 %v237
    %6955 = vmatprep.subr.mxu0 %v234
    %6956 = vmatpush1.msra.mxu0 %v233
    %6957 = vmatprep.subr.mxu0 %v230
    %6958 = vmatpush1.msra.mxu0 %v229
    %6959 = vmatprep.subr.mxu0 %v226
    %6960 = vmatpush1.msra.mxu0 %v225
    %6961 = vmatprep.subr.mxu0 %v222
    %6962 = vmatpush1.msra.mxu0 %v221
    %6963 = vmatprep.subr.mxu0 %v218
    %6964 = vmatpush1.msra.mxu0 %v217
    %6965 = vmatprep.subr.mxu0 %v214
    %6966 = vmatpush1.msra.mxu0 %v213
    %6967 = vmatprep.subr.mxu0 %v210
    %6968 = vmatpush1.msra.mxu0 %v209
    %6969 = vmatprep.subr.mxu0 %v206
    %6970 = vmatpush1.msra.mxu0 %v205
    %6971 = vmatprep.subr.mxu0 %v202
    %6972 = vmatpush1.msra.mxu0 %v201
    %6973 = vmatprep.subr.mxu0 %v198
    %6974 = vmatpush1.msra.mxu0 %v197
    %6975 = vmatprep.subr.mxu0 %v194
    %6976 = vmatpush1.msra.mxu0 %v193
    %6977 = vmatprep.subr.mxu0 %v190
    %6978 = vmatpush1.msra.mxu0 %v189
    %6979 = vmatprep.subr.mxu0 %v186
    %6980 = vmatpush1.msra.mxu0 %v185
    %6981 = vmatprep.subr.mxu0 0.0
    %6982 = vmatpush2.msra.mxu0 0.0
    %6983 = vmatprep.subr.mxu0 0.0
    %6984 = vmatpush2.msra.mxu0 0.0
    %6985 = vmatprep.subr.mxu0 0.0
    %6986 = vmatpush2.msra.mxu0 0.0
    %6987 = vmatprep.subr.mxu0 0.0
    %6988 = vmatpush2.msra.mxu0 0.0
    %6989 = vmatprep.subr.mxu0 0.0
    %6990 = vmatpush2.msra.mxu0 0.0
    %6991 = vmatprep.subr.mxu0 0.0
    %6992 = vmatpush2.msra.mxu0 0.0
    %6993 = vmatprep.subr.mxu0 0.0
    %6994 = vmatpush2.msra.mxu0 0.0
    %6995 = vmatprep.subr.mxu0 0.0
    %6996 = vmatpush2.msra.mxu0 0.0
    %6997 = vmatprep.subr.mxu0 0.0
    %6998 = vmatpush2.msra.mxu0 0.0
    %6999 = vmatprep.subr.mxu0 0.0
    %7000 = vmatpush2.msra.mxu0 0.0
    %7001 = vmatprep.subr.mxu0 0.0
    %7002 = vmatpush2.msra.mxu0 0.0
    %7003 = vmatprep.subr.mxu0 0.0
    %7004 = vmatpush2.msra.mxu0 0.0
    %7005 = vmatprep.subr.mxu0 0.0
    %7006 = vmatpush2.msra.mxu0 0.0
    %7007 = vmatprep.subr.mxu0 0.0
    %7008 = vmatpush2.msra.mxu0 0.0
    %7009 = vmatprep.subr.mxu0 0.0
    %7010 = vmatpush2.msra.mxu0 0.0
    %7011 = vmatprep.subr.mxu0 0.0
    %7012 = vmatpush2.msra.mxu0 0.0
    %7013 = vmatprep.mubr.f32.mxu0 0.0
    %7014 = vmatmul.mubr.f32.gmra.mxu0 %v6735
    %v7015 = vpop.f32.mrf.mxu0
    %v7016 = vadd.f32 0.0, %v7015
    %v7017 = vpop.f32.mrf.mxu0
    %v7018 = vadd.f32 0.0, %v7017
    %7019 = vdwg.mxu0
    %v7020 = vadd.f32 %v6803, %v6945
    %v7021 = vadd.f32 %v6805, %v6947
    %v7022 = vadd.f32 %v6874, %v7016
    %v7023 = vadd.f32 %v6876, %v7018
    %v7024 = vxor.u32 %v7020, 2147483648
    %v7025 = vmul.f32 %v7024, 1.442695
    %v7026 = vpow.pop %v7025
    %v7027 = vadd.f32 %v7026, 1.0
    %v7028 = vrcp.pop %v7027
    %v7029 = vmul.f32 1.0, %v7028
    %v7030 = vxor.u32 %v7021, 2147483648
    %v7031 = vmul.f32 %v7030, 1.442695
    %v7032 = vpow.pop %v7031
    %v7033 = vadd.f32 %v7032, 1.0
    %v7034 = vrcp.pop %v7033
    %v7035 = vmul.f32 1.0, %v7034
    %v7036 = vtanh.pop %v7022
    %v7037 = vxor.u32 %v7023, 2147483648
    %v7038 = vmul.f32 %v7037, 1.442695
    %v7039 = vpow.pop %v7038
    %v7040 = vadd.f32 %v7039, 1.0
    %v7041 = vrcp.pop %v7040
    %v7042 = vmul.f32 1.0, %v7041
    %v7043 = vmul.f32 %v7035, %v6411
    %v7044 = vmul.f32 %v7029, %v7036
    %v7045 = vadd.f32 %v7043, %v7044
    %v7046 = vtanh.pop %v7045
    %v7047 = vmul.f32 %v7042, %v7046
    %v7048 = vmul.f32 %v7047, %v446
    %7049 = vadd.xlane.f32.xlu0 %v7048
    %v7050 = vpop.xlane.xlu0 %7049
    %v7051 = vadd.f32 %v7050, %v453
    %7053 = vrot.lane.b32.xlu0 %v7051, 11
    %v7054 = vpop.permute.xlu0 %7053
    %vm7056 = vcmask 97368
    %7057 = vst.msk [vmem:[#allocation14] sm:$0xff] %vm7056, %v7054
    // Predicated region
    $region70: #{tpu_custom_call.1} parent=1 // pred_check
      _
    $region71: #{tpu_custom_call.1} parent=1 // pred_check_branch
      %7059 = sbr.rel (0) target = $region73
    $region72: #{tpu_custom_call.1} parent=1 // pred_region
      %s7061 = ssub.s32 128, 128
      %7062 = vsyncadd [#allocation5], %s7061
      %s7064 = sshll.u32 [#allocation14], 4
      %s7065 = int_to_ptr.vmem [resolvable:$true] %s7064
      %7067 = dma.vmem_to_hbm [thread:$0]  %s7065, 128, %s11, [#allocation5]
    $region73: #{tpu_custom_call.1} parent=1 // pred_fallthru
      _
    // Predicated region
    $region74: #{tpu_custom_call.1} parent=1 // pred_check
      _
    $region75: #{tpu_custom_call.1} parent=1 // pred_check_branch
      %7069 = sbr.rel (0) target = $region77
    $region76: #{tpu_custom_call.1} parent=1 // pred_region
      %7070 = dma.done [#allocation5], 128
    $region77: #{tpu_custom_call.1} parent=1 // pred_fallthru
      _
    %7071 = vsyncpa [#allocation4], 1
    %7072 = vsyncpa [#allocation7], 1
    %7073 = vsyncpa [#allocation10], 1
    %7074 = vsyncpa [#allocation13], 1
    %7075 = vsyncpa [#allocation5], 1

</llo_original>
